<compile_context>
chip_gen: v7x
topology: tpu7x:2x2x1
jax: 0.10.0
libtpu: 0.0.40
codegen_flags: <defaults>
</compile_context>

<pallas_src>
import functools

import jax
import jax.numpy as jnp
from jax.experimental import pallas as pl
from jax.experimental.pallas import tpu as pltpu

# ---------------------------------------------------------------------------
# Model hyper-parameters (mirror the PyTorch __init__ defaults / constructor)
# ---------------------------------------------------------------------------
DOMAIN_DIM = 4          # domain_dimension
OUTPUT_DIM = 1          # output_dimension
NUM_LAYERS = 5          # number_of_layers  -> NUM_LAYERS - 1 hidden Linear layers
NUM_NODES = 36          # number_of_nodes

NUM_HIDDEN = NUM_LAYERS - 1

H_SUB = 64              # hidden width padded to 64 sublanes (36 -> 64)
TM = 2048               # rows of the flattened (num_paths*path_length) batch per grid step


# ---------------------------------------------------------------------------
# Pallas kernel: full MLP forward for one tile of rows (transposed layout)
# ---------------------------------------------------------------------------
def _silu(h):
    # SiLU(x) = x * sigmoid(x); sigmoid via a single tanh -> one EUP op per element.
    return h * (0.5 * jnp.tanh(0.5 * h) + 0.5)


def mlp_kernel(xT_ref, w_inT_ref, b_in_ref, w_hT_ref, b_h_ref, w_out_ref, b_out_ref,
               o_ref, *, num_hidden, domain_dim, output_dim):
    # xT_ref:    (domain_dim, TM)            f32  (contiguous 8 KiB HBM rows)
    # w_inT_ref: (H_SUB, domain_dim)         f32  (w_in^T, rows >= 36 zero)
    # b_in_ref:  (H_SUB, 1)                  f32
    # w_hT_ref:  (num_hidden, H_SUB, H_SUB)  bf16 (each W_l^T, padded region zero)
    # b_h_ref:   (num_hidden, H_SUB, 1)      f32
    # w_out_ref: (H_SUB, output_dim)         f32  (rows >= 36 zero)
    # b_out_ref: (output_dim, 1)             f32
    # o_ref:     (output_dim, TM)            f32  (lane-dense store)
    xT = xT_ref[...]
    w_inT = w_inT_ref[...]

    # Input layer: K = domain_dim is tiny, so skip the MXU and accumulate
    # outer products on the VPU: preT = sum_k w_in^T[:, k] (outer) xT[k, :].
    pre = w_inT[:, 0:1] * xT[0:1, :]
    for k in range(1, domain_dim):
        pre = pre + w_inT[:, k:k + 1] * xT[k:k + 1, :]
    h = _silu(pre + b_in_ref[...])                       # (H_SUB, TM) f32

    # Hidden layers: bf16 MXU matmuls with f32 accumulation; bias + SiLU in f32
    # (v5e has no bf16 VPU/EUP).  hT_next = silu(W_l^T @ hT + b_l).
    for l in range(num_hidden):                          # static unroll (4 iterations)
        z = jnp.dot(w_hT_ref[l], h.astype(jnp.bfloat16),
                    preferred_element_type=jnp.float32)  # (H_SUB, TM) f32
        h = _silu(z + b_h_ref[l])

    # Output layer: N = output_dim is tiny -> sublane reduction (7 VPU adds +
    # one intra-vreg XLU reduce per lane group) instead of a wasted MXU pass.
    for o in range(output_dim):
        col = jnp.sum(h * w_out_ref[:, o:o + 1], axis=0, keepdims=True)   # (1, TM)
        o_ref[o:o + 1, :] = (col + b_out_ref[o:o + 1, :]).astype(o_ref.dtype)


# ---------------------------------------------------------------------------
# Parameter initialization (deterministic, PyTorch-style uniform init)
# ---------------------------------------------------------------------------
def init_params(key):
    def linear(key, fan_in, fan_out):
        kw, kb = jax.random.split(key)
        bound = 1.0 / jnp.sqrt(fan_in)
        w = jax.random.uniform(kw, (fan_in, fan_out), jnp.float32, -bound, bound)
        b = jax.random.uniform(kb, (fan_out,), jnp.float32, -bound, bound)
        return w, b

    keys = jax.random.split(key, NUM_HIDDEN + 2)
    w_in, b_in = linear(keys[0], DOMAIN_DIM, NUM_NODES)
    hidden = [linear(keys[1 + i], NUM_NODES, NUM_NODES) for i in range(NUM_HIDDEN)]
    w_out, b_out = linear(keys[-1], NUM_NODES, OUTPUT_DIM)
    return dict(
        w_in=w_in, b_in=b_in,
        w_h=jnp.stack([w for w, _ in hidden]),   # (NUM_HIDDEN, 36, 36)
        b_h=jnp.stack([b for _, b in hidden]),   # (NUM_HIDDEN, 36)
        w_out=w_out, b_out=b_out,
    )


def pad_params(p):
    """Transpose weights for the sublane layout; pad 36 -> 64 with ZEROS (the output
    reduction and matmul masking rely on the padded region staying zero)."""
    w_inT = jnp.zeros((H_SUB, DOMAIN_DIM), jnp.float32).at[:NUM_NODES, :].set(p["w_in"].T)
    b_in = jnp.zeros((H_SUB, 1), jnp.float32).at[:NUM_NODES, 0].set(p["b_in"])
    w_hT = jnp.zeros((NUM_HIDDEN, H_SUB, H_SUB), jnp.float32)
    w_hT = w_hT.at[:, :NUM_NODES, :NUM_NODES].set(
        jnp.swapaxes(p["w_h"], 1, 2)).astype(jnp.bfloat16)
    b_h = jnp.zeros((NUM_HIDDEN, H_SUB, 1), jnp.float32).at[:, :NUM_NODES, 0].set(p["b_h"])
    w_out = jnp.zeros((H_SUB, OUTPUT_DIM), jnp.float32).at[:NUM_NODES, :].set(p["w_out"])
    b_out = p["b_out"].reshape(OUTPUT_DIM, 1).astype(jnp.float32)
    return w_inT, b_in, w_hT, b_h, w_out, b_out


# ---------------------------------------------------------------------------
# Wrapper: flatten rows, transpose to lane-major, pad lanes to TM multiple,
# pallas_call over row tiles, unpad / reshape back.
# ---------------------------------------------------------------------------
@jax.jit
def function_approximator_forward(x, params):
    """x: (num_paths, path_length, DOMAIN_DIM) f32 -> (num_paths, path_length, OUTPUT_DIM)."""
    num_paths, path_len, d = x.shape
    n_rows = num_paths * path_len
    n_pad = pl.cdiv(n_rows, TM) * TM

    # (d, n_rows) -> pad the lane (batch) axis only; every HBM row is contiguous.
    xT = x.reshape(n_rows, d).astype(jnp.float32).T
    xT = jnp.pad(xT, ((0, 0), (0, n_pad - n_rows)))

    w_inT, b_in, w_hT, b_h, w_out, b_out = pad_params(params)

    kernel = functools.partial(mlp_kernel, num_hidden=NUM_HIDDEN,
                               domain_dim=d, output_dim=OUTPUT_DIM)

    # Row-tile grid; "parallel" lets v7x shard tiles across its two TensorCores
    # (single-TC chips ignore it).  Weights/biases are grid-invariant blocks.
    outT = pl.pallas_call(
        kernel,
        out_shape=jax.ShapeDtypeStruct((OUTPUT_DIM, n_pad), jnp.float32),
        grid_spec=pltpu.PrefetchScalarGridSpec(
            num_scalar_prefetch=0,
            grid=(n_pad // TM,),
            in_specs=[
                pl.BlockSpec((d, TM), lambda i: (0, i)),                        # xT
                pl.BlockSpec((H_SUB, d), lambda i: (0, 0)),                     # w_in^T
                pl.BlockSpec((H_SUB, 1), lambda i: (0, 0)),                     # b_in
                pl.BlockSpec((NUM_HIDDEN, H_SUB, H_SUB), lambda i: (0, 0, 0)),  # w_h^T (bf16)
                pl.BlockSpec((NUM_HIDDEN, H_SUB, 1), lambda i: (0, 0, 0)),      # b_h
                pl.BlockSpec((H_SUB, OUTPUT_DIM), lambda i: (0, 0)),            # w_out
                pl.BlockSpec((OUTPUT_DIM, 1), lambda i: (0, 0)),                # b_out
            ],
            out_specs=pl.BlockSpec((OUTPUT_DIM, TM), lambda i: (0, i)),         # lane-dense out
        ),
        compiler_params=pltpu.CompilerParams(
            dimension_semantics=("parallel",),
        ),
    )(xT, w_inT, b_in, w_hT, b_h, w_out, b_out)

    # (OUTPUT_DIM, n_pad) -> (num_paths, path_len, OUTPUT_DIM); free for OUTPUT_DIM == 1.
    return outT[:, :n_rows].T.reshape(num_paths, path_len, OUTPUT_DIM)


# Pure-JAX f32 reference (matches the PyTorch module's forward) for correctness checking.
def reference_forward(x, p):
    h = jax.nn.silu(x @ p["w_in"] + p["b_in"])
    for l in range(NUM_HIDDEN):
        h = jax.nn.silu(h @ p["w_h"][l] + p["b_h"][l])
    return h @ p["w_out"] + p["b_out"]


if __name__ == "__main__":
    key = jax.random.PRNGKey(0)
    k_x, k_p = jax.random.split(key)

    # Small input consistent with the module's expected (num_paths, path_length, domain_dim).
    num_paths, path_len = 2, 8
    x = jax.random.normal(k_x, (num_paths, path_len, DOMAIN_DIM), jnp.float32)

    params = init_params(k_p)

    y = function_approximator_forward(x, params)
    y = jax.block_until_ready(y)

    y_ref = reference_forward(x, params)
    assert y.shape == (num_paths, path_len, OUTPUT_DIM)
    # bf16 hidden matmuls -> compare against the f32 reference with a tolerance that
    # still catches structural/semantic bugs.
    assert jnp.allclose(y, y_ref, atol=1e-2, rtol=1e-2), "mismatch vs. JAX reference"

    print("KERNEL_OK")
</pallas_src>

<mosaic_0001>
module attributes {stable_mosaic.version = 11 : i64} {
  func.func @mlp_kernel(%arg0: i32, %arg1: memref<4x2048xf32, #tpu.memory_space<vmem>>, %arg2: memref<64x4xf32, #tpu.memory_space<vmem>>, %arg3: memref<64x1xf32, #tpu.memory_space<vmem>>, %arg4: memref<4x64x64xbf16, #tpu.memory_space<vmem>>, %arg5: memref<4x64x1xf32, #tpu.memory_space<vmem>>, %arg6: memref<64x1xf32, #tpu.memory_space<vmem>>, %arg7: memref<1x1xf32, #tpu.memory_space<vmem>>, %arg8: memref<1x2048xf32, #tpu.memory_space<vmem>>) attributes {dimension_semantics = [#tpu.dimension_semantics<parallel>], iteration_bounds = array<i64: 1>, scalar_prefetch = 0 : i64, scratch_operands = 0 : i64, tpu.core_type = #tpu.core_type<tc>, window_params = [{transform_indices = @transform_0, window_bounds = array<i64: 4, 2048>}, {pipeline_mode = #tpu.pipeline_mode<synchronous>, transform_indices = @transform_1, window_bounds = array<i64: 64, 4>}, {pipeline_mode = #tpu.pipeline_mode<synchronous>, transform_indices = @transform_2, window_bounds = array<i64: 64, 1>}, {pipeline_mode = #tpu.pipeline_mode<synchronous>, transform_indices = @transform_3, window_bounds = array<i64: 4, 64, 64>}, {pipeline_mode = #tpu.pipeline_mode<synchronous>, transform_indices = @transform_4, window_bounds = array<i64: 4, 64, 1>}, {pipeline_mode = #tpu.pipeline_mode<synchronous>, transform_indices = @transform_5, window_bounds = array<i64: 64, 1>}, {pipeline_mode = #tpu.pipeline_mode<synchronous>, transform_indices = @transform_6, window_bounds = array<i64: 1, 1>}, {transform_indices = @transform_7, window_bounds = array<i64: 1, 2048>}]} {
    %c0 = arith.constant 0 : index
    %c0_0 = arith.constant 0 : index
    %0 = vector.load %arg1[%c0, %c0_0] : memref<4x2048xf32, #tpu.memory_space<vmem>>, vector<4x2048xf32>
    %c0_1 = arith.constant 0 : index
    %c0_2 = arith.constant 0 : index
    %1 = vector.load %arg2[%c0_1, %c0_2] : memref<64x4xf32, #tpu.memory_space<vmem>>, vector<64x4xf32>
    %2 = vector.extract_strided_slice %1 {offsets = [0, 0], sizes = [64, 1], strides = [1, 1]} : vector<64x4xf32> to vector<64x1xf32>
    %3 = vector.extract_strided_slice %0 {offsets = [0, 0], sizes = [1, 2048], strides = [1, 1]} : vector<4x2048xf32> to vector<1x2048xf32>
    %4 = vector.broadcast %2 : vector<64x1xf32> to vector<64x2048xf32>
    %5 = vector.broadcast %3 : vector<1x2048xf32> to vector<64x2048xf32>
    %6 = arith.mulf %4, %5 : vector<64x2048xf32>
    %7 = vector.extract_strided_slice %1 {offsets = [0, 1], sizes = [64, 1], strides = [1, 1]} : vector<64x4xf32> to vector<64x1xf32>
    %8 = vector.extract_strided_slice %0 {offsets = [1, 0], sizes = [1, 2048], strides = [1, 1]} : vector<4x2048xf32> to vector<1x2048xf32>
    %9 = vector.broadcast %7 : vector<64x1xf32> to vector<64x2048xf32>
    %10 = vector.broadcast %8 : vector<1x2048xf32> to vector<64x2048xf32>
    %11 = arith.mulf %9, %10 : vector<64x2048xf32>
    %12 = arith.addf %6, %11 : vector<64x2048xf32>
    %13 = vector.extract_strided_slice %1 {offsets = [0, 2], sizes = [64, 1], strides = [1, 1]} : vector<64x4xf32> to vector<64x1xf32>
    %14 = vector.extract_strided_slice %0 {offsets = [2, 0], sizes = [1, 2048], strides = [1, 1]} : vector<4x2048xf32> to vector<1x2048xf32>
    %15 = vector.broadcast %13 : vector<64x1xf32> to vector<64x2048xf32>
    %16 = vector.broadcast %14 : vector<1x2048xf32> to vector<64x2048xf32>
    %17 = arith.mulf %15, %16 : vector<64x2048xf32>
    %18 = arith.addf %12, %17 : vector<64x2048xf32>
    %19 = vector.extract_strided_slice %1 {offsets = [0, 3], sizes = [64, 1], strides = [1, 1]} : vector<64x4xf32> to vector<64x1xf32>
    %20 = vector.extract_strided_slice %0 {offsets = [3, 0], sizes = [1, 2048], strides = [1, 1]} : vector<4x2048xf32> to vector<1x2048xf32>
    %21 = vector.broadcast %19 : vector<64x1xf32> to vector<64x2048xf32>
    %22 = vector.broadcast %20 : vector<1x2048xf32> to vector<64x2048xf32>
    %23 = arith.mulf %21, %22 : vector<64x2048xf32>
    %24 = arith.addf %18, %23 : vector<64x2048xf32>
    %c0_3 = arith.constant 0 : index
    %c0_4 = arith.constant 0 : index
    %25 = vector.load %arg3[%c0_3, %c0_4] : memref<64x1xf32, #tpu.memory_space<vmem>>, vector<64x1xf32>
    %26 = vector.broadcast %25 : vector<64x1xf32> to vector<64x2048xf32>
    %27 = arith.addf %24, %26 : vector<64x2048xf32>
    %cst = arith.constant 5.000000e-01 : f32
    %28 = vector.broadcast %cst : f32 to vector<64x2048xf32>
    %29 = arith.mulf %28, %27 : vector<64x2048xf32>
    %30 = math.tanh %29 : vector<64x2048xf32>
    %cst_5 = arith.constant 5.000000e-01 : f32
    %31 = vector.broadcast %cst_5 : f32 to vector<64x2048xf32>
    %32 = arith.mulf %31, %30 : vector<64x2048xf32>
    %cst_6 = arith.constant 5.000000e-01 : f32
    %33 = vector.broadcast %cst_6 : f32 to vector<64x2048xf32>
    %34 = arith.addf %32, %33 : vector<64x2048xf32>
    %35 = arith.mulf %27, %34 : vector<64x2048xf32>
    %c0_7 = arith.constant 0 : index
    %c0_8 = arith.constant 0 : index
    %c0_9 = arith.constant 0 : index
    %36 = vector.load %arg4[%c0_7, %c0_8, %c0_9] : memref<4x64x64xbf16, #tpu.memory_space<vmem>>, vector<1x64x64xbf16>
    %37 = vector.shape_cast %36 : vector<1x64x64xbf16> to vector<64x64xbf16>
    %38 = arith.truncf %35 : vector<64x2048xf32> to vector<64x2048xbf16>
    %cst_10 = arith.constant dense<0.000000e+00> : vector<64x2048xf32>
    %39 = tpu.matmul %37, %38, %cst_10 {dimension_numbers = #tpu.dot_dimension_numbers<[1], [0], [0], [1], [0, 0, 1, 1], [], []>} : vector<64x64xbf16>, vector<64x2048xbf16>, vector<64x2048xf32> -> vector<64x2048xf32>
    %c0_11 = arith.constant 0 : index
    %c0_12 = arith.constant 0 : index
    %c0_13 = arith.constant 0 : index
    %40 = vector.load %arg5[%c0_11, %c0_12, %c0_13] : memref<4x64x1xf32, #tpu.memory_space<vmem>>, vector<1x64x1xf32>
    %41 = vector.shape_cast %40 : vector<1x64x1xf32> to vector<64x1xf32>
    %42 = vector.broadcast %41 : vector<64x1xf32> to vector<64x2048xf32>
    %43 = arith.addf %39, %42 : vector<64x2048xf32>
    %cst_14 = arith.constant 5.000000e-01 : f32
    %44 = vector.broadcast %cst_14 : f32 to vector<64x2048xf32>
    %45 = arith.mulf %44, %43 : vector<64x2048xf32>
    %46 = math.tanh %45 : vector<64x2048xf32>
    %cst_15 = arith.constant 5.000000e-01 : f32
    %47 = vector.broadcast %cst_15 : f32 to vector<64x2048xf32>
    %48 = arith.mulf %47, %46 : vector<64x2048xf32>
    %cst_16 = arith.constant 5.000000e-01 : f32
    %49 = vector.broadcast %cst_16 : f32 to vector<64x2048xf32>
    %50 = arith.addf %48, %49 : vector<64x2048xf32>
    %51 = arith.mulf %43, %50 : vector<64x2048xf32>
    %c1 = arith.constant 1 : index
    %c0_17 = arith.constant 0 : index
    %c0_18 = arith.constant 0 : index
    %52 = vector.load %arg4[%c1, %c0_17, %c0_18] : memref<4x64x64xbf16, #tpu.memory_space<vmem>>, vector<1x64x64xbf16>
    %53 = vector.shape_cast %52 : vector<1x64x64xbf16> to vector<64x64xbf16>
    %54 = arith.truncf %51 : vector<64x2048xf32> to vector<64x2048xbf16>
    %cst_19 = arith.constant dense<0.000000e+00> : vector<64x2048xf32>
    %55 = tpu.matmul %53, %54, %cst_19 {dimension_numbers = #tpu.dot_dimension_numbers<[1], [0], [0], [1], [0, 0, 1, 1], [], []>} : vector<64x64xbf16>, vector<64x2048xbf16>, vector<64x2048xf32> -> vector<64x2048xf32>
    %c1_20 = arith.constant 1 : index
    %c0_21 = arith.constant 0 : index
    %c0_22 = arith.constant 0 : index
    %56 = vector.load %arg5[%c1_20, %c0_21, %c0_22] : memref<4x64x1xf32, #tpu.memory_space<vmem>>, vector<1x64x1xf32>
    %57 = vector.shape_cast %56 : vector<1x64x1xf32> to vector<64x1xf32>
    %58 = vector.broadcast %57 : vector<64x1xf32> to vector<64x2048xf32>
    %59 = arith.addf %55, %58 : vector<64x2048xf32>
    %cst_23 = arith.constant 5.000000e-01 : f32
    %60 = vector.broadcast %cst_23 : f32 to vector<64x2048xf32>
    %61 = arith.mulf %60, %59 : vector<64x2048xf32>
    %62 = math.tanh %61 : vector<64x2048xf32>
    %cst_24 = arith.constant 5.000000e-01 : f32
    %63 = vector.broadcast %cst_24 : f32 to vector<64x2048xf32>
    %64 = arith.mulf %63, %62 : vector<64x2048xf32>
    %cst_25 = arith.constant 5.000000e-01 : f32
    %65 = vector.broadcast %cst_25 : f32 to vector<64x2048xf32>
    %66 = arith.addf %64, %65 : vector<64x2048xf32>
    %67 = arith.mulf %59, %66 : vector<64x2048xf32>
    %c2 = arith.constant 2 : index
    %c0_26 = arith.constant 0 : index
    %c0_27 = arith.constant 0 : index
    %68 = vector.load %arg4[%c2, %c0_26, %c0_27] : memref<4x64x64xbf16, #tpu.memory_space<vmem>>, vector<1x64x64xbf16>
    %69 = vector.shape_cast %68 : vector<1x64x64xbf16> to vector<64x64xbf16>
    %70 = arith.truncf %67 : vector<64x2048xf32> to vector<64x2048xbf16>
    %cst_28 = arith.constant dense<0.000000e+00> : vector<64x2048xf32>
    %71 = tpu.matmul %69, %70, %cst_28 {dimension_numbers = #tpu.dot_dimension_numbers<[1], [0], [0], [1], [0, 0, 1, 1], [], []>} : vector<64x64xbf16>, vector<64x2048xbf16>, vector<64x2048xf32> -> vector<64x2048xf32>
    %c2_29 = arith.constant 2 : index
    %c0_30 = arith.constant 0 : index
    %c0_31 = arith.constant 0 : index
    %72 = vector.load %arg5[%c2_29, %c0_30, %c0_31] : memref<4x64x1xf32, #tpu.memory_space<vmem>>, vector<1x64x1xf32>
    %73 = vector.shape_cast %72 : vector<1x64x1xf32> to vector<64x1xf32>
    %74 = vector.broadcast %73 : vector<64x1xf32> to vector<64x2048xf32>
    %75 = arith.addf %71, %74 : vector<64x2048xf32>
    %cst_32 = arith.constant 5.000000e-01 : f32
    %76 = vector.broadcast %cst_32 : f32 to vector<64x2048xf32>
    %77 = arith.mulf %76, %75 : vector<64x2048xf32>
    %78 = math.tanh %77 : vector<64x2048xf32>
    %cst_33 = arith.constant 5.000000e-01 : f32
    %79 = vector.broadcast %cst_33 : f32 to vector<64x2048xf32>
    %80 = arith.mulf %79, %78 : vector<64x2048xf32>
    %cst_34 = arith.constant 5.000000e-01 : f32
    %81 = vector.broadcast %cst_34 : f32 to vector<64x2048xf32>
    %82 = arith.addf %80, %81 : vector<64x2048xf32>
    %83 = arith.mulf %75, %82 : vector<64x2048xf32>
    %c3 = arith.constant 3 : index
    %c0_35 = arith.constant 0 : index
    %c0_36 = arith.constant 0 : index
    %84 = vector.load %arg4[%c3, %c0_35, %c0_36] : memref<4x64x64xbf16, #tpu.memory_space<vmem>>, vector<1x64x64xbf16>
    %85 = vector.shape_cast %84 : vector<1x64x64xbf16> to vector<64x64xbf16>
    %86 = arith.truncf %83 : vector<64x2048xf32> to vector<64x2048xbf16>
    %cst_37 = arith.constant dense<0.000000e+00> : vector<64x2048xf32>
    %87 = tpu.matmul %85, %86, %cst_37 {dimension_numbers = #tpu.dot_dimension_numbers<[1], [0], [0], [1], [0, 0, 1, 1], [], []>} : vector<64x64xbf16>, vector<64x2048xbf16>, vector<64x2048xf32> -> vector<64x2048xf32>
    %c3_38 = arith.constant 3 : index
    %c0_39 = arith.constant 0 : index
    %c0_40 = arith.constant 0 : index
    %88 = vector.load %arg5[%c3_38, %c0_39, %c0_40] : memref<4x64x1xf32, #tpu.memory_space<vmem>>, vector<1x64x1xf32>
    %89 = vector.shape_cast %88 : vector<1x64x1xf32> to vector<64x1xf32>
    %90 = vector.broadcast %89 : vector<64x1xf32> to vector<64x2048xf32>
    %91 = arith.addf %87, %90 : vector<64x2048xf32>
    %cst_41 = arith.constant 5.000000e-01 : f32
    %92 = vector.broadcast %cst_41 : f32 to vector<64x2048xf32>
    %93 = arith.mulf %92, %91 : vector<64x2048xf32>
    %94 = math.tanh %93 : vector<64x2048xf32>
    %cst_42 = arith.constant 5.000000e-01 : f32
    %95 = vector.broadcast %cst_42 : f32 to vector<64x2048xf32>
    %96 = arith.mulf %95, %94 : vector<64x2048xf32>
    %cst_43 = arith.constant 5.000000e-01 : f32
    %97 = vector.broadcast %cst_43 : f32 to vector<64x2048xf32>
    %98 = arith.addf %96, %97 : vector<64x2048xf32>
    %99 = arith.mulf %91, %98 : vector<64x2048xf32>
    %c0_44 = arith.constant 0 : index
    %c0_45 = arith.constant 0 : index
    %100 = vector.load %arg6[%c0_44, %c0_45] : memref<64x1xf32, #tpu.memory_space<vmem>>, vector<64x1xf32>
    %101 = vector.broadcast %100 : vector<64x1xf32> to vector<64x2048xf32>
    %102 = arith.mulf %99, %101 : vector<64x2048xf32>
    %cst_46 = arith.constant dense<0.000000e+00> : vector<2048xf32>
    %103 = vector.multi_reduction <add>, %102, %cst_46 [0] : vector<64x2048xf32> to vector<2048xf32>
    %104 = vector.shape_cast %103 : vector<2048xf32> to vector<1x2048xf32>
    %c0_47 = arith.constant 0 : index
    %c0_48 = arith.constant 0 : index
    %105 = vector.load %arg7[%c0_47, %c0_48] : memref<1x1xf32, #tpu.memory_space<vmem>>, vector<1x1xf32>
    %106 = vector.broadcast %105 : vector<1x1xf32> to vector<1x2048xf32>
    %107 = arith.addf %104, %106 : vector<1x2048xf32>
    %c0_49 = arith.constant 0 : index
    %c0_50 = arith.constant 0 : index
    %108 = vector.load %arg8[%c0_49, %c0_50] : memref<1x2048xf32, #tpu.memory_space<vmem>>, vector<1x2048xf32>
    tpu.vector_store %arg8[%c0_49, %c0_50], %107 {strides = array<i32>} : memref<1x2048xf32, #tpu.memory_space<vmem>>, vector<1x2048xf32>,
    return
  }
  func.func @transform_0(%arg0: i32) -> (i32, i32) {
    %c0_i32 = arith.constant 0 : i32
    %c0_i32_0 = arith.constant 0 : i32
    return %c0_i32, %arg0 : i32, i32
  }
  func.func @transform_1(%arg0: i32) -> (i32, i32) {
    %c0_i32 = arith.constant 0 : i32
    %c0_i32_0 = arith.constant 0 : i32
    %c0_i32_1 = arith.constant 0 : i32
    return %c0_i32, %c0_i32_0 : i32, i32
  }
  func.func @transform_2(%arg0: i32) -> (i32, i32) {
    %c0_i32 = arith.constant 0 : i32
    %c0_i32_0 = arith.constant 0 : i32
    %c0_i32_1 = arith.constant 0 : i32
    return %c0_i32, %c0_i32_0 : i32, i32
  }
  func.func @transform_3(%arg0: i32) -> (i32, i32, i32) {
    %c0_i32 = arith.constant 0 : i32
    %c0_i32_0 = arith.constant 0 : i32
    %c0_i32_1 = arith.constant 0 : i32
    %c0_i32_2 = arith.constant 0 : i32
    return %c0_i32, %c0_i32_0, %c0_i32_1 : i32, i32, i32
  }
  func.func @transform_4(%arg0: i32) -> (i32, i32, i32) {
    %c0_i32 = arith.constant 0 : i32
    %c0_i32_0 = arith.constant 0 : i32
    %c0_i32_1 = arith.constant 0 : i32
    %c0_i32_2 = arith.constant 0 : i32
    return %c0_i32, %c0_i32_0, %c0_i32_1 : i32, i32, i32
  }
  func.func @transform_5(%arg0: i32) -> (i32, i32) {
    %c0_i32 = arith.constant 0 : i32
    %c0_i32_0 = arith.constant 0 : i32
    %c0_i32_1 = arith.constant 0 : i32
    return %c0_i32, %c0_i32_0 : i32, i32
  }
  func.func @transform_6(%arg0: i32) -> (i32, i32) {
    %c0_i32 = arith.constant 0 : i32
    %c0_i32_0 = arith.constant 0 : i32
    %c0_i32_1 = arith.constant 0 : i32
    return %c0_i32, %c0_i32_0 : i32, i32
  }
  func.func @transform_7(%arg0: i32) -> (i32, i32) {
    %c0_i32 = arith.constant 0 : i32
    %c0_i32_0 = arith.constant 0 : i32
    return %c0_i32, %arg0 : i32, i32
  }
}

</mosaic_0001>

<llo_original>
// kernel: function_approximator_forward.1
$region0: #{function_approximator_forward.1}
  #allocation0 [shape = 'u32[]', space=smem, size = 0x4, offset = 0x4, fixed_abs, tag = 'smem constant byte address 0x4 - core index']
  #allocation1 [shape = 'u32[144,128]{1,0:T(1,128)}', space=vmem, size = 0x12000, scoped, tag = 'internal scratch']
  #allocation2 [shape = 'f32[1,1]{1,0:T(1,128)S(1)}', space=vmem, size = 0x200, scoped, tag = 'scoped memory for function_approximator_forward.1']
  %s0 = inlined_call_operand.vmem [shape: f32[4,2048], index: 0, kind: input, shape index: {}]
  %s1 = inlined_call_operand.vmem [shape: f32[64,4], index: 1, kind: input, shape index: {}]
  %s2 = inlined_call_operand.vmem [shape: f32[64,1], index: 2, kind: input, shape index: {}]
  %s3 = inlined_call_operand.vmem [shape: bf16[4,64,64], index: 3, kind: input, shape index: {}]
  %s4 = inlined_call_operand.vmem [shape: f32[4,64,1], index: 4, kind: input, shape index: {}]
  %s5 = inlined_call_operand.vmem [shape: f32[64,1], index: 5, kind: input, shape index: {}]
  %s6 = inlined_call_operand.<no memory space> [shape: f32[1,1], index: 6, kind: input, shape index: {}]
  %s7 = inlined_call_operand.vmem [shape: f32[1,2048], index: 7, kind: output, shape index: {}]
  %s8 = sld [smem:[#allocation0]]
  $region38: #{function_approximator_forward.1} parent=0
    _
  %s10 = ssub.s32 1, %s8
  %s11 = scalar_select 0, %s10, %s8
  %v12 = vstv %s6
  %13 = vst [vmem:[#allocation2] sm:$0x1] %v12
  // Predicated region
  $region2: #{function_approximator_forward.1} parent=0 // pred_check
    _
  $region3: #{function_approximator_forward.1} parent=0 // pred_check_branch
    %15 = sbr.rel (0) target = $region5
  $region4: #{function_approximator_forward.1} parent=0 // pred_region
    _
  $region5: #{function_approximator_forward.1} parent=0 // pred_fallthru
    _
  // Predicated region
  $region6: #{function_approximator_forward.1} parent=0 // pred_check
    _
  $region7: #{function_approximator_forward.1} parent=0 // pred_check_branch
    %17 = sbr.rel (0) target = $region9
  $region8: #{function_approximator_forward.1} parent=0 // pred_region
    _
  $region9: #{function_approximator_forward.1} parent=0 // pred_fallthru
    _
  // Predicated region
  $region10: #{function_approximator_forward.1} parent=0 // pred_check
    _
  $region11: #{function_approximator_forward.1} parent=0 // pred_check_branch
    %19 = sbr.rel (0) target = $region13
  $region12: #{function_approximator_forward.1} parent=0 // pred_region
    _
  $region13: #{function_approximator_forward.1} parent=0 // pred_fallthru
    _
  // Predicated region
  $region14: #{function_approximator_forward.1} parent=0 // pred_check
    _
  $region15: #{function_approximator_forward.1} parent=0 // pred_check_branch
    %21 = sbr.rel (0) target = $region17
  $region16: #{function_approximator_forward.1} parent=0 // pred_region
    _
  $region17: #{function_approximator_forward.1} parent=0 // pred_fallthru
    _
  // Predicated region
  $region18: #{function_approximator_forward.1} parent=0 // pred_check
    _
  $region19: #{function_approximator_forward.1} parent=0 // pred_check_branch
    %23 = sbr.rel (0) target = $region21
  $region20: #{function_approximator_forward.1} parent=0 // pred_region
    _
  $region21: #{function_approximator_forward.1} parent=0 // pred_fallthru
    _
  // Predicated region
  $region22: #{function_approximator_forward.1} parent=0 // pred_check
    _
  $region23: #{function_approximator_forward.1} parent=0 // pred_check_branch
    %25 = sbr.rel (0) target = $region25
  $region24: #{function_approximator_forward.1} parent=0 // pred_region
    _
  $region25: #{function_approximator_forward.1} parent=0 // pred_fallthru
    _
  // Predicated region
  $region26: #{function_approximator_forward.1} parent=0 // pred_check
    _
  $region27: #{function_approximator_forward.1} parent=0 // pred_check_branch
    %27 = sbr.rel (0) target = $region29
  $region28: #{function_approximator_forward.1} parent=0 // pred_region
    _
  $region29: #{function_approximator_forward.1} parent=0 // pred_fallthru
    _
  %v29 = vld [vmem:[%s0] sm:$0xff]
  %v30 = vld [vmem:[%s0 + $0x8] sm:$0xff]
  %v31 = vld [vmem:[%s0 + $0x10] sm:$0xff]
  %v32 = vld [vmem:[%s0 + $0x18] sm:$0xff]
  %v33 = vld [vmem:[%s0 + $0x20] sm:$0xff]
  %v34 = vld [vmem:[%s0 + $0x28] sm:$0xff]
  %v35 = vld [vmem:[%s0 + $0x30] sm:$0xff]
  %v36 = vld [vmem:[%s0 + $0x38] sm:$0xff]
  %v37 = vld [vmem:[%s1] sm:$0xff]
  %v38 = vld [vmem:[%s1 + $0x8] sm:$0xff]
  %v39 = vld [vmem:[%s1 + $0x10] sm:$0xff]
  %v40 = vld [vmem:[%s1 + $0x18] sm:$0xff]
  %v41 = vld [vmem:[%s1 + $0x20] sm:$0xff]
  %v42 = vld [vmem:[%s1 + $0x28] sm:$0xff]
  %v43 = vld [vmem:[%s1 + $0x30] sm:$0xff]
  %v44 = vld [vmem:[%s1 + $0x38] sm:$0xff]
  %46 = vset.pattern.permute.xlu0 0
  %47 = vperm.xlu0 %46, %v37
  %v48 = vpop.permute.xlu0 %47
  %51 = vset.pattern.permute.xlu0 0
  %52 = vperm.xlu0 %51, %v38
  %v53 = vpop.permute.xlu0 %52
  %56 = vset.pattern.permute.xlu0 0
  %57 = vperm.xlu0 %56, %v39
  %v58 = vpop.permute.xlu0 %57
  %61 = vset.pattern.permute.xlu0 0
  %62 = vperm.xlu0 %61, %v40
  %v63 = vpop.permute.xlu0 %62
  %66 = vset.pattern.permute.xlu0 0
  %67 = vperm.xlu0 %66, %v41
  %v68 = vpop.permute.xlu0 %67
  %71 = vset.pattern.permute.xlu0 0
  %72 = vperm.xlu0 %71, %v42
  %v73 = vpop.permute.xlu0 %72
  %76 = vset.pattern.permute.xlu0 0
  %77 = vperm.xlu0 %76, %v43
  %v78 = vpop.permute.xlu0 %77
  %81 = vset.pattern.permute.xlu0 0
  %82 = vperm.xlu0 %81, %v44
  %v83 = vpop.permute.xlu0 %82
  %v93 = vlaneseq
  %v94 = vshrl.u32 %v93, 7
  %v95 = vsub.s32 0, %v94
  %v96 = vrot.slane %v29, %v95
  %v97 = vlaneseq
  %v98 = vshrl.u32 %v97, 7
  %v99 = vsub.s32 4, %v98
  %v100 = vrot.slane %v29, %v99
  %v101 = vlaneseq
  %v102 = vshrl.u32 %v101, 7
  %v103 = vsub.s32 0, %v102
  %v104 = vrot.slane %v30, %v103
  %v105 = vlaneseq
  %v106 = vshrl.u32 %v105, 7
  %v107 = vsub.s32 4, %v106
  %v108 = vrot.slane %v30, %v107
  %v109 = vlaneseq
  %v110 = vshrl.u32 %v109, 7
  %v111 = vsub.s32 0, %v110
  %v112 = vrot.slane %v31, %v111
  %v113 = vlaneseq
  %v114 = vshrl.u32 %v113, 7
  %v115 = vsub.s32 4, %v114
  %v116 = vrot.slane %v31, %v115
  %v117 = vlaneseq
  %v118 = vshrl.u32 %v117, 7
  %v119 = vsub.s32 0, %v118
  %v120 = vrot.slane %v32, %v119
  %v121 = vlaneseq
  %v122 = vshrl.u32 %v121, 7
  %v123 = vsub.s32 4, %v122
  %v124 = vrot.slane %v32, %v123
  %v125 = vlaneseq
  %v126 = vshrl.u32 %v125, 7
  %v127 = vsub.s32 0, %v126
  %v128 = vrot.slane %v33, %v127
  %v129 = vlaneseq
  %v130 = vshrl.u32 %v129, 7
  %v131 = vsub.s32 4, %v130
  %v132 = vrot.slane %v33, %v131
  %v133 = vlaneseq
  %v134 = vshrl.u32 %v133, 7
  %v135 = vsub.s32 0, %v134
  %v136 = vrot.slane %v34, %v135
  %v137 = vlaneseq
  %v138 = vshrl.u32 %v137, 7
  %v139 = vsub.s32 4, %v138
  %v140 = vrot.slane %v34, %v139
  %v141 = vlaneseq
  %v142 = vshrl.u32 %v141, 7
  %v143 = vsub.s32 0, %v142
  %v144 = vrot.slane %v35, %v143
  %v145 = vlaneseq
  %v146 = vshrl.u32 %v145, 7
  %v147 = vsub.s32 4, %v146
  %v148 = vrot.slane %v35, %v147
  %v149 = vlaneseq
  %v150 = vshrl.u32 %v149, 7
  %v151 = vsub.s32 0, %v150
  %v152 = vrot.slane %v36, %v151
  %v153 = vlaneseq
  %v154 = vshrl.u32 %v153, 7
  %v155 = vsub.s32 4, %v154
  %v156 = vrot.slane %v36, %v155
  %v173 = vlaneseq
  %v174 = vshrl.u32 %v173, 7
  %v175 = vsub.s32 0, %v174
  %v176 = vrot.slane %v96, %v175
  %v177 = vlaneseq
  %v178 = vshrl.u32 %v177, 7
  %v179 = vsub.s32 0, %v178
  %v180 = vrot.slane %v100, %v179
  %v181 = vlaneseq
  %v182 = vshrl.u32 %v181, 7
  %v183 = vsub.s32 0, %v182
  %v184 = vrot.slane %v104, %v183
  %v185 = vlaneseq
  %v186 = vshrl.u32 %v185, 7
  %v187 = vsub.s32 0, %v186
  %v188 = vrot.slane %v108, %v187
  %v189 = vlaneseq
  %v190 = vshrl.u32 %v189, 7
  %v191 = vsub.s32 0, %v190
  %v192 = vrot.slane %v112, %v191
  %v193 = vlaneseq
  %v194 = vshrl.u32 %v193, 7
  %v195 = vsub.s32 0, %v194
  %v196 = vrot.slane %v116, %v195
  %v197 = vlaneseq
  %v198 = vshrl.u32 %v197, 7
  %v199 = vsub.s32 0, %v198
  %v200 = vrot.slane %v120, %v199
  %v201 = vlaneseq
  %v202 = vshrl.u32 %v201, 7
  %v203 = vsub.s32 0, %v202
  %v204 = vrot.slane %v124, %v203
  %v205 = vlaneseq
  %v206 = vshrl.u32 %v205, 7
  %v207 = vsub.s32 0, %v206
  %v208 = vrot.slane %v128, %v207
  %v209 = vlaneseq
  %v210 = vshrl.u32 %v209, 7
  %v211 = vsub.s32 0, %v210
  %v212 = vrot.slane %v132, %v211
  %v213 = vlaneseq
  %v214 = vshrl.u32 %v213, 7
  %v215 = vsub.s32 0, %v214
  %v216 = vrot.slane %v136, %v215
  %v217 = vlaneseq
  %v218 = vshrl.u32 %v217, 7
  %v219 = vsub.s32 0, %v218
  %v220 = vrot.slane %v140, %v219
  %v221 = vlaneseq
  %v222 = vshrl.u32 %v221, 7
  %v223 = vsub.s32 0, %v222
  %v224 = vrot.slane %v144, %v223
  %v225 = vlaneseq
  %v226 = vshrl.u32 %v225, 7
  %v227 = vsub.s32 0, %v226
  %v228 = vrot.slane %v148, %v227
  %v229 = vlaneseq
  %v230 = vshrl.u32 %v229, 7
  %v231 = vsub.s32 0, %v230
  %v232 = vrot.slane %v152, %v231
  %v233 = vlaneseq
  %v234 = vshrl.u32 %v233, 7
  %v235 = vsub.s32 0, %v234
  %v236 = vrot.slane %v156, %v235
  %v237 = vmul.f32 %v48, %v176
  %v238 = vmul.f32 %v48, %v180
  %v239 = vmul.f32 %v48, %v184
  %v240 = vmul.f32 %v48, %v188
  %v241 = vmul.f32 %v48, %v192
  %v242 = vmul.f32 %v48, %v196
  %v243 = vmul.f32 %v48, %v200
  %v244 = vmul.f32 %v48, %v204
  %v245 = vmul.f32 %v48, %v208
  %v246 = vmul.f32 %v48, %v212
  %v247 = vmul.f32 %v48, %v216
  %v248 = vmul.f32 %v48, %v220
  %v249 = vmul.f32 %v48, %v224
  %v250 = vmul.f32 %v48, %v228
  %v251 = vmul.f32 %v48, %v232
  %v252 = vmul.f32 %v48, %v236
  %v253 = vmul.f32 %v53, %v176
  %v254 = vmul.f32 %v53, %v180
  %v255 = vmul.f32 %v53, %v184
  %v256 = vmul.f32 %v53, %v188
  %v257 = vmul.f32 %v53, %v192
  %v258 = vmul.f32 %v53, %v196
  %v259 = vmul.f32 %v53, %v200
  %v260 = vmul.f32 %v53, %v204
  %v261 = vmul.f32 %v53, %v208
  %v262 = vmul.f32 %v53, %v212
  %v263 = vmul.f32 %v53, %v216
  %v264 = vmul.f32 %v53, %v220
  %v265 = vmul.f32 %v53, %v224
  %v266 = vmul.f32 %v53, %v228
  %v267 = vmul.f32 %v53, %v232
  %v268 = vmul.f32 %v53, %v236
  %v269 = vmul.f32 %v58, %v176
  %v270 = vmul.f32 %v58, %v180
  %v271 = vmul.f32 %v58, %v184
  %v272 = vmul.f32 %v58, %v188
  %v273 = vmul.f32 %v58, %v192
  %v274 = vmul.f32 %v58, %v196
  %v275 = vmul.f32 %v58, %v200
  %v276 = vmul.f32 %v58, %v204
  %v277 = vmul.f32 %v58, %v208
  %v278 = vmul.f32 %v58, %v212
  %v279 = vmul.f32 %v58, %v216
  %v280 = vmul.f32 %v58, %v220
  %v281 = vmul.f32 %v58, %v224
  %v282 = vmul.f32 %v58, %v228
  %v283 = vmul.f32 %v58, %v232
  %v284 = vmul.f32 %v58, %v236
  %v285 = vmul.f32 %v63, %v176
  %v286 = vmul.f32 %v63, %v180
  %v287 = vmul.f32 %v63, %v184
  %v288 = vmul.f32 %v63, %v188
  %v289 = vmul.f32 %v63, %v192
  %v290 = vmul.f32 %v63, %v196
  %v291 = vmul.f32 %v63, %v200
  %v292 = vmul.f32 %v63, %v204
  %v293 = vmul.f32 %v63, %v208
  %v294 = vmul.f32 %v63, %v212
  %v295 = vmul.f32 %v63, %v216
  %v296 = vmul.f32 %v63, %v220
  %v297 = vmul.f32 %v63, %v224
  %v298 = vmul.f32 %v63, %v228
  %v299 = vmul.f32 %v63, %v232
  %v300 = vmul.f32 %v63, %v236
  %v301 = vmul.f32 %v68, %v176
  %v302 = vmul.f32 %v68, %v180
  %v303 = vmul.f32 %v68, %v184
  %v304 = vmul.f32 %v68, %v188
  %v305 = vmul.f32 %v68, %v192
  %v306 = vmul.f32 %v68, %v196
  %v307 = vmul.f32 %v68, %v200
  %v308 = vmul.f32 %v68, %v204
  %v309 = vmul.f32 %v68, %v208
  %v310 = vmul.f32 %v68, %v212
  %v311 = vmul.f32 %v68, %v216
  %v312 = vmul.f32 %v68, %v220
  %v313 = vmul.f32 %v68, %v224
  %v314 = vmul.f32 %v68, %v228
  %v315 = vmul.f32 %v68, %v232
  %v316 = vmul.f32 %v68, %v236
  %v317 = vmul.f32 %v73, %v176
  %v318 = vmul.f32 %v73, %v180
  %v319 = vmul.f32 %v73, %v184
  %v320 = vmul.f32 %v73, %v188
  %v321 = vmul.f32 %v73, %v192
  %v322 = vmul.f32 %v73, %v196
  %v323 = vmul.f32 %v73, %v200
  %v324 = vmul.f32 %v73, %v204
  %v325 = vmul.f32 %v73, %v208
  %v326 = vmul.f32 %v73, %v212
  %v327 = vmul.f32 %v73, %v216
  %v328 = vmul.f32 %v73, %v220
  %v329 = vmul.f32 %v73, %v224
  %v330 = vmul.f32 %v73, %v228
  %v331 = vmul.f32 %v73, %v232
  %v332 = vmul.f32 %v73, %v236
  %v333 = vmul.f32 %v78, %v176
  %v334 = vmul.f32 %v78, %v180
  %v335 = vmul.f32 %v78, %v184
  %v336 = vmul.f32 %v78, %v188
  %v337 = vmul.f32 %v78, %v192
  %v338 = vmul.f32 %v78, %v196
  %v339 = vmul.f32 %v78, %v200
  %v340 = vmul.f32 %v78, %v204
  %v341 = vmul.f32 %v78, %v208
  %v342 = vmul.f32 %v78, %v212
  %v343 = vmul.f32 %v78, %v216
  %v344 = vmul.f32 %v78, %v220
  %v345 = vmul.f32 %v78, %v224
  %v346 = vmul.f32 %v78, %v228
  %v347 = vmul.f32 %v78, %v232
  %v348 = vmul.f32 %v78, %v236
  %v349 = vmul.f32 %v83, %v176
  %v350 = vmul.f32 %v83, %v180
  %v351 = vmul.f32 %v83, %v184
  %v352 = vmul.f32 %v83, %v188
  %v353 = vmul.f32 %v83, %v192
  %v354 = vmul.f32 %v83, %v196
  %v355 = vmul.f32 %v83, %v200
  %v356 = vmul.f32 %v83, %v204
  %v357 = vmul.f32 %v83, %v208
  %v358 = vmul.f32 %v83, %v212
  %v359 = vmul.f32 %v83, %v216
  %v360 = vmul.f32 %v83, %v220
  %v361 = vmul.f32 %v83, %v224
  %v362 = vmul.f32 %v83, %v228
  %v363 = vmul.f32 %v83, %v232
  %v364 = vmul.f32 %v83, %v236
  %365 = vset.pattern.permute.xlu0 1
  %366 = vperm.xlu0 %365, %v37
  %v367 = vpop.permute.xlu0 %366
  %369 = vset.pattern.permute.xlu0 1
  %370 = vperm.xlu0 %369, %v38
  %v371 = vpop.permute.xlu0 %370
  %373 = vset.pattern.permute.xlu0 1
  %374 = vperm.xlu0 %373, %v39
  %v375 = vpop.permute.xlu0 %374
  %377 = vset.pattern.permute.xlu0 1
  %378 = vperm.xlu0 %377, %v40
  %v379 = vpop.permute.xlu0 %378
  %381 = vset.pattern.permute.xlu0 1
  %382 = vperm.xlu0 %381, %v41
  %v383 = vpop.permute.xlu0 %382
  %385 = vset.pattern.permute.xlu0 1
  %386 = vperm.xlu0 %385, %v42
  %v387 = vpop.permute.xlu0 %386
  %389 = vset.pattern.permute.xlu0 1
  %390 = vperm.xlu0 %389, %v43
  %v391 = vpop.permute.xlu0 %390
  %393 = vset.pattern.permute.xlu0 1
  %394 = vperm.xlu0 %393, %v44
  %v395 = vpop.permute.xlu0 %394
  %v397 = vlaneseq
  %v398 = vshrl.u32 %v397, 7
  %v399 = vsub.s32 1, %v398
  %v400 = vrot.slane %v29, %v399
  %v401 = vlaneseq
  %v402 = vshrl.u32 %v401, 7
  %v403 = vsub.s32 5, %v402
  %v404 = vrot.slane %v29, %v403
  %v405 = vlaneseq
  %v406 = vshrl.u32 %v405, 7
  %v407 = vsub.s32 1, %v406
  %v408 = vrot.slane %v30, %v407
  %v409 = vlaneseq
  %v410 = vshrl.u32 %v409, 7
  %v411 = vsub.s32 5, %v410
  %v412 = vrot.slane %v30, %v411
  %v413 = vlaneseq
  %v414 = vshrl.u32 %v413, 7
  %v415 = vsub.s32 1, %v414
  %v416 = vrot.slane %v31, %v415
  %v417 = vlaneseq
  %v418 = vshrl.u32 %v417, 7
  %v419 = vsub.s32 5, %v418
  %v420 = vrot.slane %v31, %v419
  %v421 = vlaneseq
  %v422 = vshrl.u32 %v421, 7
  %v423 = vsub.s32 1, %v422
  %v424 = vrot.slane %v32, %v423
  %v425 = vlaneseq
  %v426 = vshrl.u32 %v425, 7
  %v427 = vsub.s32 5, %v426
  %v428 = vrot.slane %v32, %v427
  %v429 = vlaneseq
  %v430 = vshrl.u32 %v429, 7
  %v431 = vsub.s32 1, %v430
  %v432 = vrot.slane %v33, %v431
  %v433 = vlaneseq
  %v434 = vshrl.u32 %v433, 7
  %v435 = vsub.s32 5, %v434
  %v436 = vrot.slane %v33, %v435
  %v437 = vlaneseq
  %v438 = vshrl.u32 %v437, 7
  %v439 = vsub.s32 1, %v438
  %v440 = vrot.slane %v34, %v439
  %v441 = vlaneseq
  %v442 = vshrl.u32 %v441, 7
  %v443 = vsub.s32 5, %v442
  %v444 = vrot.slane %v34, %v443
  %v445 = vlaneseq
  %v446 = vshrl.u32 %v445, 7
  %v447 = vsub.s32 1, %v446
  %v448 = vrot.slane %v35, %v447
  %v449 = vlaneseq
  %v450 = vshrl.u32 %v449, 7
  %v451 = vsub.s32 5, %v450
  %v452 = vrot.slane %v35, %v451
  %v453 = vlaneseq
  %v454 = vshrl.u32 %v453, 7
  %v455 = vsub.s32 1, %v454
  %v456 = vrot.slane %v36, %v455
  %v457 = vlaneseq
  %v458 = vshrl.u32 %v457, 7
  %v459 = vsub.s32 5, %v458
  %v460 = vrot.slane %v36, %v459
  %v477 = vlaneseq
  %v478 = vshrl.u32 %v477, 7
  %v479 = vsub.s32 1, %v478
  %v480 = vrot.slane %v400, %v479
  %v481 = vlaneseq
  %v482 = vshrl.u32 %v481, 7
  %v483 = vsub.s32 1, %v482
  %v484 = vrot.slane %v404, %v483
  %v485 = vlaneseq
  %v486 = vshrl.u32 %v485, 7
  %v487 = vsub.s32 1, %v486
  %v488 = vrot.slane %v408, %v487
  %v489 = vlaneseq
  %v490 = vshrl.u32 %v489, 7
  %v491 = vsub.s32 1, %v490
  %v492 = vrot.slane %v412, %v491
  %v493 = vlaneseq
  %v494 = vshrl.u32 %v493, 7
  %v495 = vsub.s32 1, %v494
  %v496 = vrot.slane %v416, %v495
  %v497 = vlaneseq
  %v498 = vshrl.u32 %v497, 7
  %v499 = vsub.s32 1, %v498
  %v500 = vrot.slane %v420, %v499
  %v501 = vlaneseq
  %v502 = vshrl.u32 %v501, 7
  %v503 = vsub.s32 1, %v502
  %v504 = vrot.slane %v424, %v503
  %v505 = vlaneseq
  %v506 = vshrl.u32 %v505, 7
  %v507 = vsub.s32 1, %v506
  %v508 = vrot.slane %v428, %v507
  %v509 = vlaneseq
  %v510 = vshrl.u32 %v509, 7
  %v511 = vsub.s32 1, %v510
  %v512 = vrot.slane %v432, %v511
  %v513 = vlaneseq
  %v514 = vshrl.u32 %v513, 7
  %v515 = vsub.s32 1, %v514
  %v516 = vrot.slane %v436, %v515
  %v517 = vlaneseq
  %v518 = vshrl.u32 %v517, 7
  %v519 = vsub.s32 1, %v518
  %v520 = vrot.slane %v440, %v519
  %v521 = vlaneseq
  %v522 = vshrl.u32 %v521, 7
  %v523 = vsub.s32 1, %v522
  %v524 = vrot.slane %v444, %v523
  %v525 = vlaneseq
  %v526 = vshrl.u32 %v525, 7
  %v527 = vsub.s32 1, %v526
  %v528 = vrot.slane %v448, %v527
  %v529 = vlaneseq
  %v530 = vshrl.u32 %v529, 7
  %v531 = vsub.s32 1, %v530
  %v532 = vrot.slane %v452, %v531
  %v533 = vlaneseq
  %v534 = vshrl.u32 %v533, 7
  %v535 = vsub.s32 1, %v534
  %v536 = vrot.slane %v456, %v535
  %v537 = vlaneseq
  %v538 = vshrl.u32 %v537, 7
  %v539 = vsub.s32 1, %v538
  %v540 = vrot.slane %v460, %v539
  %v541 = vmul.f32 %v367, %v480
  %v542 = vmul.f32 %v367, %v484
  %v543 = vmul.f32 %v367, %v488
  %v544 = vmul.f32 %v367, %v492
  %v545 = vmul.f32 %v367, %v496
  %v546 = vmul.f32 %v367, %v500
  %v547 = vmul.f32 %v367, %v504
  %v548 = vmul.f32 %v367, %v508
  %v549 = vmul.f32 %v367, %v512
  %v550 = vmul.f32 %v367, %v516
  %v551 = vmul.f32 %v367, %v520
  %v552 = vmul.f32 %v367, %v524
  %v553 = vmul.f32 %v367, %v528
  %v554 = vmul.f32 %v367, %v532
  %v555 = vmul.f32 %v367, %v536
  %v556 = vmul.f32 %v367, %v540
  %v557 = vmul.f32 %v371, %v480
  %v558 = vmul.f32 %v371, %v484
  %v559 = vmul.f32 %v371, %v488
  %v560 = vmul.f32 %v371, %v492
  %v561 = vmul.f32 %v371, %v496
  %v562 = vmul.f32 %v371, %v500
  %v563 = vmul.f32 %v371, %v504
  %v564 = vmul.f32 %v371, %v508
  %v565 = vmul.f32 %v371, %v512
  %v566 = vmul.f32 %v371, %v516
  %v567 = vmul.f32 %v371, %v520
  %v568 = vmul.f32 %v371, %v524
  %v569 = vmul.f32 %v371, %v528
  %v570 = vmul.f32 %v371, %v532
  %v571 = vmul.f32 %v371, %v536
  %v572 = vmul.f32 %v371, %v540
  %v573 = vmul.f32 %v375, %v480
  %v574 = vmul.f32 %v375, %v484
  %v575 = vmul.f32 %v375, %v488
  %v576 = vmul.f32 %v375, %v492
  %v577 = vmul.f32 %v375, %v496
  %v578 = vmul.f32 %v375, %v500
  %v579 = vmul.f32 %v375, %v504
  %v580 = vmul.f32 %v375, %v508
  %v581 = vmul.f32 %v375, %v512
  %v582 = vmul.f32 %v375, %v516
  %v583 = vmul.f32 %v375, %v520
  %v584 = vmul.f32 %v375, %v524
  %v585 = vmul.f32 %v375, %v528
  %v586 = vmul.f32 %v375, %v532
  %v587 = vmul.f32 %v375, %v536
  %v588 = vmul.f32 %v375, %v540
  %v589 = vmul.f32 %v379, %v480
  %v590 = vmul.f32 %v379, %v484
  %v591 = vmul.f32 %v379, %v488
  %v592 = vmul.f32 %v379, %v492
  %v593 = vmul.f32 %v379, %v496
  %v594 = vmul.f32 %v379, %v500
  %v595 = vmul.f32 %v379, %v504
  %v596 = vmul.f32 %v379, %v508
  %v597 = vmul.f32 %v379, %v512
  %v598 = vmul.f32 %v379, %v516
  %v599 = vmul.f32 %v379, %v520
  %v600 = vmul.f32 %v379, %v524
  %v601 = vmul.f32 %v379, %v528
  %v602 = vmul.f32 %v379, %v532
  %v603 = vmul.f32 %v379, %v536
  %v604 = vmul.f32 %v379, %v540
  %v605 = vmul.f32 %v383, %v480
  %v606 = vmul.f32 %v383, %v484
  %v607 = vmul.f32 %v383, %v488
  %v608 = vmul.f32 %v383, %v492
  %v609 = vmul.f32 %v383, %v496
  %v610 = vmul.f32 %v383, %v500
  %v611 = vmul.f32 %v383, %v504
  %v612 = vmul.f32 %v383, %v508
  %v613 = vmul.f32 %v383, %v512
  %v614 = vmul.f32 %v383, %v516
  %v615 = vmul.f32 %v383, %v520
  %v616 = vmul.f32 %v383, %v524
  %v617 = vmul.f32 %v383, %v528
  %v618 = vmul.f32 %v383, %v532
  %v619 = vmul.f32 %v383, %v536
  %v620 = vmul.f32 %v383, %v540
  %v621 = vmul.f32 %v387, %v480
  %v622 = vmul.f32 %v387, %v484
  %v623 = vmul.f32 %v387, %v488
  %v624 = vmul.f32 %v387, %v492
  %v625 = vmul.f32 %v387, %v496
  %v626 = vmul.f32 %v387, %v500
  %v627 = vmul.f32 %v387, %v504
  %v628 = vmul.f32 %v387, %v508
  %v629 = vmul.f32 %v387, %v512
  %v630 = vmul.f32 %v387, %v516
  %v631 = vmul.f32 %v387, %v520
  %v632 = vmul.f32 %v387, %v524
  %v633 = vmul.f32 %v387, %v528
  %v634 = vmul.f32 %v387, %v532
  %v635 = vmul.f32 %v387, %v536
  %v636 = vmul.f32 %v387, %v540
  %v637 = vmul.f32 %v391, %v480
  %v638 = vmul.f32 %v391, %v484
  %v639 = vmul.f32 %v391, %v488
  %v640 = vmul.f32 %v391, %v492
  %v641 = vmul.f32 %v391, %v496
  %v642 = vmul.f32 %v391, %v500
  %v643 = vmul.f32 %v391, %v504
  %v644 = vmul.f32 %v391, %v508
  %v645 = vmul.f32 %v391, %v512
  %v646 = vmul.f32 %v391, %v516
  %v647 = vmul.f32 %v391, %v520
  %v648 = vmul.f32 %v391, %v524
  %v649 = vmul.f32 %v391, %v528
  %v650 = vmul.f32 %v391, %v532
  %v651 = vmul.f32 %v391, %v536
  %v652 = vmul.f32 %v391, %v540
  %v653 = vmul.f32 %v395, %v480
  %v654 = vmul.f32 %v395, %v484
  %v655 = vmul.f32 %v395, %v488
  %v656 = vmul.f32 %v395, %v492
  %v657 = vmul.f32 %v395, %v496
  %v658 = vmul.f32 %v395, %v500
  %v659 = vmul.f32 %v395, %v504
  %v660 = vmul.f32 %v395, %v508
  %v661 = vmul.f32 %v395, %v512
  %v662 = vmul.f32 %v395, %v516
  %v663 = vmul.f32 %v395, %v520
  %v664 = vmul.f32 %v395, %v524
  %v665 = vmul.f32 %v395, %v528
  %v666 = vmul.f32 %v395, %v532
  %v667 = vmul.f32 %v395, %v536
  %v668 = vmul.f32 %v395, %v540
  %v669 = vadd.f32 %v237, %v541
  %v670 = vadd.f32 %v238, %v542
  %v671 = vadd.f32 %v239, %v543
  %v672 = vadd.f32 %v240, %v544
  %v673 = vadd.f32 %v241, %v545
  %v674 = vadd.f32 %v242, %v546
  %v675 = vadd.f32 %v243, %v547
  %v676 = vadd.f32 %v244, %v548
  %v677 = vadd.f32 %v245, %v549
  %v678 = vadd.f32 %v246, %v550
  %v679 = vadd.f32 %v247, %v551
  %v680 = vadd.f32 %v248, %v552
  %v681 = vadd.f32 %v249, %v553
  %v682 = vadd.f32 %v250, %v554
  %v683 = vadd.f32 %v251, %v555
  %v684 = vadd.f32 %v252, %v556
  %v685 = vadd.f32 %v253, %v557
  %v686 = vadd.f32 %v254, %v558
  %v687 = vadd.f32 %v255, %v559
  %v688 = vadd.f32 %v256, %v560
  %v689 = vadd.f32 %v257, %v561
  %v690 = vadd.f32 %v258, %v562
  %v691 = vadd.f32 %v259, %v563
  %v692 = vadd.f32 %v260, %v564
  %v693 = vadd.f32 %v261, %v565
  %v694 = vadd.f32 %v262, %v566
  %v695 = vadd.f32 %v263, %v567
  %v696 = vadd.f32 %v264, %v568
  %v697 = vadd.f32 %v265, %v569
  %v698 = vadd.f32 %v266, %v570
  %v699 = vadd.f32 %v267, %v571
  %v700 = vadd.f32 %v268, %v572
  %v701 = vadd.f32 %v269, %v573
  %v702 = vadd.f32 %v270, %v574
  %v703 = vadd.f32 %v271, %v575
  %v704 = vadd.f32 %v272, %v576
  %v705 = vadd.f32 %v273, %v577
  %v706 = vadd.f32 %v274, %v578
  %v707 = vadd.f32 %v275, %v579
  %v708 = vadd.f32 %v276, %v580
  %v709 = vadd.f32 %v277, %v581
  %v710 = vadd.f32 %v278, %v582
  %v711 = vadd.f32 %v279, %v583
  %v712 = vadd.f32 %v280, %v584
  %v713 = vadd.f32 %v281, %v585
  %v714 = vadd.f32 %v282, %v586
  %v715 = vadd.f32 %v283, %v587
  %v716 = vadd.f32 %v284, %v588
  %v717 = vadd.f32 %v285, %v589
  %v718 = vadd.f32 %v286, %v590
  %v719 = vadd.f32 %v287, %v591
  %v720 = vadd.f32 %v288, %v592
  %v721 = vadd.f32 %v289, %v593
  %v722 = vadd.f32 %v290, %v594
  %v723 = vadd.f32 %v291, %v595
  %v724 = vadd.f32 %v292, %v596
  %v725 = vadd.f32 %v293, %v597
  %v726 = vadd.f32 %v294, %v598
  %v727 = vadd.f32 %v295, %v599
  %v728 = vadd.f32 %v296, %v600
  %v729 = vadd.f32 %v297, %v601
  %v730 = vadd.f32 %v298, %v602
  %v731 = vadd.f32 %v299, %v603
  %v732 = vadd.f32 %v300, %v604
  %v733 = vadd.f32 %v301, %v605
  %v734 = vadd.f32 %v302, %v606
  %v735 = vadd.f32 %v303, %v607
  %v736 = vadd.f32 %v304, %v608
  %v737 = vadd.f32 %v305, %v609
  %v738 = vadd.f32 %v306, %v610
  %v739 = vadd.f32 %v307, %v611
  %v740 = vadd.f32 %v308, %v612
  %v741 = vadd.f32 %v309, %v613
  %v742 = vadd.f32 %v310, %v614
  %v743 = vadd.f32 %v311, %v615
  %v744 = vadd.f32 %v312, %v616
  %v745 = vadd.f32 %v313, %v617
  %v746 = vadd.f32 %v314, %v618
  %v747 = vadd.f32 %v315, %v619
  %v748 = vadd.f32 %v316, %v620
  %v749 = vadd.f32 %v317, %v621
  %v750 = vadd.f32 %v318, %v622
  %v751 = vadd.f32 %v319, %v623
  %v752 = vadd.f32 %v320, %v624
  %v753 = vadd.f32 %v321, %v625
  %v754 = vadd.f32 %v322, %v626
  %v755 = vadd.f32 %v323, %v627
  %v756 = vadd.f32 %v324, %v628
  %v757 = vadd.f32 %v325, %v629
  %v758 = vadd.f32 %v326, %v630
  %v759 = vadd.f32 %v327, %v631
  %v760 = vadd.f32 %v328, %v632
  %v761 = vadd.f32 %v329, %v633
  %v762 = vadd.f32 %v330, %v634
  %v763 = vadd.f32 %v331, %v635
  %v764 = vadd.f32 %v332, %v636
  %v765 = vadd.f32 %v333, %v637
  %v766 = vadd.f32 %v334, %v638
  %v767 = vadd.f32 %v335, %v639
  %v768 = vadd.f32 %v336, %v640
  %v769 = vadd.f32 %v337, %v641
  %v770 = vadd.f32 %v338, %v642
  %v771 = vadd.f32 %v339, %v643
  %v772 = vadd.f32 %v340, %v644
  %v773 = vadd.f32 %v341, %v645
  %v774 = vadd.f32 %v342, %v646
  %v775 = vadd.f32 %v343, %v647
  %v776 = vadd.f32 %v344, %v648
  %v777 = vadd.f32 %v345, %v649
  %v778 = vadd.f32 %v346, %v650
  %v779 = vadd.f32 %v347, %v651
  %v780 = vadd.f32 %v348, %v652
  %v781 = vadd.f32 %v349, %v653
  %v782 = vadd.f32 %v350, %v654
  %v783 = vadd.f32 %v351, %v655
  %v784 = vadd.f32 %v352, %v656
  %v785 = vadd.f32 %v353, %v657
  %v786 = vadd.f32 %v354, %v658
  %v787 = vadd.f32 %v355, %v659
  %v788 = vadd.f32 %v356, %v660
  %v789 = vadd.f32 %v357, %v661
  %v790 = vadd.f32 %v358, %v662
  %v791 = vadd.f32 %v359, %v663
  %v792 = vadd.f32 %v360, %v664
  %v793 = vadd.f32 %v361, %v665
  %v794 = vadd.f32 %v362, %v666
  %v795 = vadd.f32 %v363, %v667
  %v796 = vadd.f32 %v364, %v668
  %797 = vset.pattern.permute.xlu0 2
  %798 = vperm.xlu0 %797, %v37
  %v799 = vpop.permute.xlu0 %798
  %801 = vset.pattern.permute.xlu0 2
  %802 = vperm.xlu0 %801, %v38
  %v803 = vpop.permute.xlu0 %802
  %805 = vset.pattern.permute.xlu0 2
  %806 = vperm.xlu0 %805, %v39
  %v807 = vpop.permute.xlu0 %806
  %809 = vset.pattern.permute.xlu0 2
  %810 = vperm.xlu0 %809, %v40
  %v811 = vpop.permute.xlu0 %810
  %813 = vset.pattern.permute.xlu0 2
  %814 = vperm.xlu0 %813, %v41
  %v815 = vpop.permute.xlu0 %814
  %817 = vset.pattern.permute.xlu0 2
  %818 = vperm.xlu0 %817, %v42
  %v819 = vpop.permute.xlu0 %818
  %821 = vset.pattern.permute.xlu0 2
  %822 = vperm.xlu0 %821, %v43
  %v823 = vpop.permute.xlu0 %822
  %825 = vset.pattern.permute.xlu0 2
  %826 = vperm.xlu0 %825, %v44
  %v827 = vpop.permute.xlu0 %826
  %v829 = vlaneseq
  %v830 = vshrl.u32 %v829, 7
  %v831 = vsub.s32 2, %v830
  %v832 = vrot.slane %v29, %v831
  %v833 = vlaneseq
  %v834 = vshrl.u32 %v833, 7
  %v835 = vsub.s32 6, %v834
  %v836 = vrot.slane %v29, %v835
  %v837 = vlaneseq
  %v838 = vshrl.u32 %v837, 7
  %v839 = vsub.s32 2, %v838
  %v840 = vrot.slane %v30, %v839
  %v841 = vlaneseq
  %v842 = vshrl.u32 %v841, 7
  %v843 = vsub.s32 6, %v842
  %v844 = vrot.slane %v30, %v843
  %v845 = vlaneseq
  %v846 = vshrl.u32 %v845, 7
  %v847 = vsub.s32 2, %v846
  %v848 = vrot.slane %v31, %v847
  %v849 = vlaneseq
  %v850 = vshrl.u32 %v849, 7
  %v851 = vsub.s32 6, %v850
  %v852 = vrot.slane %v31, %v851
  %v853 = vlaneseq
  %v854 = vshrl.u32 %v853, 7
  %v855 = vsub.s32 2, %v854
  %v856 = vrot.slane %v32, %v855
  %v857 = vlaneseq
  %v858 = vshrl.u32 %v857, 7
  %v859 = vsub.s32 6, %v858
  %v860 = vrot.slane %v32, %v859
  %v861 = vlaneseq
  %v862 = vshrl.u32 %v861, 7
  %v863 = vsub.s32 2, %v862
  %v864 = vrot.slane %v33, %v863
  %v865 = vlaneseq
  %v866 = vshrl.u32 %v865, 7
  %v867 = vsub.s32 6, %v866
  %v868 = vrot.slane %v33, %v867
  %v869 = vlaneseq
  %v870 = vshrl.u32 %v869, 7
  %v871 = vsub.s32 2, %v870
  %v872 = vrot.slane %v34, %v871
  %v873 = vlaneseq
  %v874 = vshrl.u32 %v873, 7
  %v875 = vsub.s32 6, %v874
  %v876 = vrot.slane %v34, %v875
  %v877 = vlaneseq
  %v878 = vshrl.u32 %v877, 7
  %v879 = vsub.s32 2, %v878
  %v880 = vrot.slane %v35, %v879
  %v881 = vlaneseq
  %v882 = vshrl.u32 %v881, 7
  %v883 = vsub.s32 6, %v882
  %v884 = vrot.slane %v35, %v883
  %v885 = vlaneseq
  %v886 = vshrl.u32 %v885, 7
  %v887 = vsub.s32 2, %v886
  %v888 = vrot.slane %v36, %v887
  %v889 = vlaneseq
  %v890 = vshrl.u32 %v889, 7
  %v891 = vsub.s32 6, %v890
  %v892 = vrot.slane %v36, %v891
  %v909 = vlaneseq
  %v910 = vshrl.u32 %v909, 7
  %v911 = vsub.s32 2, %v910
  %v912 = vrot.slane %v832, %v911
  %v913 = vlaneseq
  %v914 = vshrl.u32 %v913, 7
  %v915 = vsub.s32 2, %v914
  %v916 = vrot.slane %v836, %v915
  %v917 = vlaneseq
  %v918 = vshrl.u32 %v917, 7
  %v919 = vsub.s32 2, %v918
  %v920 = vrot.slane %v840, %v919
  %v921 = vlaneseq
  %v922 = vshrl.u32 %v921, 7
  %v923 = vsub.s32 2, %v922
  %v924 = vrot.slane %v844, %v923
  %v925 = vlaneseq
  %v926 = vshrl.u32 %v925, 7
  %v927 = vsub.s32 2, %v926
  %v928 = vrot.slane %v848, %v927
  %v929 = vlaneseq
  %v930 = vshrl.u32 %v929, 7
  %v931 = vsub.s32 2, %v930
  %v932 = vrot.slane %v852, %v931
  %v933 = vlaneseq
  %v934 = vshrl.u32 %v933, 7
  %v935 = vsub.s32 2, %v934
  %v936 = vrot.slane %v856, %v935
  %v937 = vlaneseq
  %v938 = vshrl.u32 %v937, 7
  %v939 = vsub.s32 2, %v938
  %v940 = vrot.slane %v860, %v939
  %v941 = vlaneseq
  %v942 = vshrl.u32 %v941, 7
  %v943 = vsub.s32 2, %v942
  %v944 = vrot.slane %v864, %v943
  %v945 = vlaneseq
  %v946 = vshrl.u32 %v945, 7
  %v947 = vsub.s32 2, %v946
  %v948 = vrot.slane %v868, %v947
  %v949 = vlaneseq
  %v950 = vshrl.u32 %v949, 7
  %v951 = vsub.s32 2, %v950
  %v952 = vrot.slane %v872, %v951
  %v953 = vlaneseq
  %v954 = vshrl.u32 %v953, 7
  %v955 = vsub.s32 2, %v954
  %v956 = vrot.slane %v876, %v955
  %v957 = vlaneseq
  %v958 = vshrl.u32 %v957, 7
  %v959 = vsub.s32 2, %v958
  %v960 = vrot.slane %v880, %v959
  %v961 = vlaneseq
  %v962 = vshrl.u32 %v961, 7
  %v963 = vsub.s32 2, %v962
  %v964 = vrot.slane %v884, %v963
  %v965 = vlaneseq
  %v966 = vshrl.u32 %v965, 7
  %v967 = vsub.s32 2, %v966
  %v968 = vrot.slane %v888, %v967
  %v969 = vlaneseq
  %v970 = vshrl.u32 %v969, 7
  %v971 = vsub.s32 2, %v970
  %v972 = vrot.slane %v892, %v971
  %v973 = vmul.f32 %v799, %v912
  %v974 = vmul.f32 %v799, %v916
  %v975 = vmul.f32 %v799, %v920
  %v976 = vmul.f32 %v799, %v924
  %v977 = vmul.f32 %v799, %v928
  %v978 = vmul.f32 %v799, %v932
  %v979 = vmul.f32 %v799, %v936
  %v980 = vmul.f32 %v799, %v940
  %v981 = vmul.f32 %v799, %v944
  %v982 = vmul.f32 %v799, %v948
  %v983 = vmul.f32 %v799, %v952
  %v984 = vmul.f32 %v799, %v956
  %v985 = vmul.f32 %v799, %v960
  %v986 = vmul.f32 %v799, %v964
  %v987 = vmul.f32 %v799, %v968
  %v988 = vmul.f32 %v799, %v972
  %v989 = vmul.f32 %v803, %v912
  %v990 = vmul.f32 %v803, %v916
  %v991 = vmul.f32 %v803, %v920
  %v992 = vmul.f32 %v803, %v924
  %v993 = vmul.f32 %v803, %v928
  %v994 = vmul.f32 %v803, %v932
  %v995 = vmul.f32 %v803, %v936
  %v996 = vmul.f32 %v803, %v940
  %v997 = vmul.f32 %v803, %v944
  %v998 = vmul.f32 %v803, %v948
  %v999 = vmul.f32 %v803, %v952
  %v1000 = vmul.f32 %v803, %v956
  %v1001 = vmul.f32 %v803, %v960
  %v1002 = vmul.f32 %v803, %v964
  %v1003 = vmul.f32 %v803, %v968
  %v1004 = vmul.f32 %v803, %v972
  %v1005 = vmul.f32 %v807, %v912
  %v1006 = vmul.f32 %v807, %v916
  %v1007 = vmul.f32 %v807, %v920
  %v1008 = vmul.f32 %v807, %v924
  %v1009 = vmul.f32 %v807, %v928
  %v1010 = vmul.f32 %v807, %v932
  %v1011 = vmul.f32 %v807, %v936
  %v1012 = vmul.f32 %v807, %v940
  %v1013 = vmul.f32 %v807, %v944
  %v1014 = vmul.f32 %v807, %v948
  %v1015 = vmul.f32 %v807, %v952
  %v1016 = vmul.f32 %v807, %v956
  %v1017 = vmul.f32 %v807, %v960
  %v1018 = vmul.f32 %v807, %v964
  %v1019 = vmul.f32 %v807, %v968
  %v1020 = vmul.f32 %v807, %v972
  %v1021 = vmul.f32 %v811, %v912
  %v1022 = vmul.f32 %v811, %v916
  %v1023 = vmul.f32 %v811, %v920
  %v1024 = vmul.f32 %v811, %v924
  %v1025 = vmul.f32 %v811, %v928
  %v1026 = vmul.f32 %v811, %v932
  %v1027 = vmul.f32 %v811, %v936
  %v1028 = vmul.f32 %v811, %v940
  %v1029 = vmul.f32 %v811, %v944
  %v1030 = vmul.f32 %v811, %v948
  %v1031 = vmul.f32 %v811, %v952
  %v1032 = vmul.f32 %v811, %v956
  %v1033 = vmul.f32 %v811, %v960
  %v1034 = vmul.f32 %v811, %v964
  %v1035 = vmul.f32 %v811, %v968
  %v1036 = vmul.f32 %v811, %v972
  %v1037 = vmul.f32 %v815, %v912
  %v1038 = vmul.f32 %v815, %v916
  %v1039 = vmul.f32 %v815, %v920
  %v1040 = vmul.f32 %v815, %v924
  %v1041 = vmul.f32 %v815, %v928
  %v1042 = vmul.f32 %v815, %v932
  %v1043 = vmul.f32 %v815, %v936
  %v1044 = vmul.f32 %v815, %v940
  %v1045 = vmul.f32 %v815, %v944
  %v1046 = vmul.f32 %v815, %v948
  %v1047 = vmul.f32 %v815, %v952
  %v1048 = vmul.f32 %v815, %v956
  %v1049 = vmul.f32 %v815, %v960
  %v1050 = vmul.f32 %v815, %v964
  %v1051 = vmul.f32 %v815, %v968
  %v1052 = vmul.f32 %v815, %v972
  %v1053 = vmul.f32 %v819, %v912
  %v1054 = vmul.f32 %v819, %v916
  %v1055 = vmul.f32 %v819, %v920
  %v1056 = vmul.f32 %v819, %v924
  %v1057 = vmul.f32 %v819, %v928
  %v1058 = vmul.f32 %v819, %v932
  %v1059 = vmul.f32 %v819, %v936
  %v1060 = vmul.f32 %v819, %v940
  %v1061 = vmul.f32 %v819, %v944
  %v1062 = vmul.f32 %v819, %v948
  %v1063 = vmul.f32 %v819, %v952
  %v1064 = vmul.f32 %v819, %v956
  %v1065 = vmul.f32 %v819, %v960
  %v1066 = vmul.f32 %v819, %v964
  %v1067 = vmul.f32 %v819, %v968
  %v1068 = vmul.f32 %v819, %v972
  %v1069 = vmul.f32 %v823, %v912
  %v1070 = vmul.f32 %v823, %v916
  %v1071 = vmul.f32 %v823, %v920
  %v1072 = vmul.f32 %v823, %v924
  %v1073 = vmul.f32 %v823, %v928
  %v1074 = vmul.f32 %v823, %v932
  %v1075 = vmul.f32 %v823, %v936
  %v1076 = vmul.f32 %v823, %v940
  %v1077 = vmul.f32 %v823, %v944
  %v1078 = vmul.f32 %v823, %v948
  %v1079 = vmul.f32 %v823, %v952
  %v1080 = vmul.f32 %v823, %v956
  %v1081 = vmul.f32 %v823, %v960
  %v1082 = vmul.f32 %v823, %v964
  %v1083 = vmul.f32 %v823, %v968
  %v1084 = vmul.f32 %v823, %v972
  %v1085 = vmul.f32 %v827, %v912
  %v1086 = vmul.f32 %v827, %v916
  %v1087 = vmul.f32 %v827, %v920
  %v1088 = vmul.f32 %v827, %v924
  %v1089 = vmul.f32 %v827, %v928
  %v1090 = vmul.f32 %v827, %v932
  %v1091 = vmul.f32 %v827, %v936
  %v1092 = vmul.f32 %v827, %v940
  %v1093 = vmul.f32 %v827, %v944
  %v1094 = vmul.f32 %v827, %v948
  %v1095 = vmul.f32 %v827, %v952
  %v1096 = vmul.f32 %v827, %v956
  %v1097 = vmul.f32 %v827, %v960
  %v1098 = vmul.f32 %v827, %v964
  %v1099 = vmul.f32 %v827, %v968
  %v1100 = vmul.f32 %v827, %v972
  %v1101 = vadd.f32 %v669, %v973
  %v1102 = vadd.f32 %v670, %v974
  %v1103 = vadd.f32 %v671, %v975
  %v1104 = vadd.f32 %v672, %v976
  %v1105 = vadd.f32 %v673, %v977
  %v1106 = vadd.f32 %v674, %v978
  %v1107 = vadd.f32 %v675, %v979
  %v1108 = vadd.f32 %v676, %v980
  %v1109 = vadd.f32 %v677, %v981
  %v1110 = vadd.f32 %v678, %v982
  %v1111 = vadd.f32 %v679, %v983
  %v1112 = vadd.f32 %v680, %v984
  %v1113 = vadd.f32 %v681, %v985
  %v1114 = vadd.f32 %v682, %v986
  %v1115 = vadd.f32 %v683, %v987
  %v1116 = vadd.f32 %v684, %v988
  %v1117 = vadd.f32 %v685, %v989
  %v1118 = vadd.f32 %v686, %v990
  %v1119 = vadd.f32 %v687, %v991
  %v1120 = vadd.f32 %v688, %v992
  %v1121 = vadd.f32 %v689, %v993
  %v1122 = vadd.f32 %v690, %v994
  %v1123 = vadd.f32 %v691, %v995
  %v1124 = vadd.f32 %v692, %v996
  %v1125 = vadd.f32 %v693, %v997
  %v1126 = vadd.f32 %v694, %v998
  %v1127 = vadd.f32 %v695, %v999
  %v1128 = vadd.f32 %v696, %v1000
  %v1129 = vadd.f32 %v697, %v1001
  %v1130 = vadd.f32 %v698, %v1002
  %v1131 = vadd.f32 %v699, %v1003
  %v1132 = vadd.f32 %v700, %v1004
  %v1133 = vadd.f32 %v701, %v1005
  %v1134 = vadd.f32 %v702, %v1006
  %v1135 = vadd.f32 %v703, %v1007
  %v1136 = vadd.f32 %v704, %v1008
  %v1137 = vadd.f32 %v705, %v1009
  %v1138 = vadd.f32 %v706, %v1010
  %v1139 = vadd.f32 %v707, %v1011
  %v1140 = vadd.f32 %v708, %v1012
  %v1141 = vadd.f32 %v709, %v1013
  %v1142 = vadd.f32 %v710, %v1014
  %v1143 = vadd.f32 %v711, %v1015
  %v1144 = vadd.f32 %v712, %v1016
  %v1145 = vadd.f32 %v713, %v1017
  %v1146 = vadd.f32 %v714, %v1018
  %v1147 = vadd.f32 %v715, %v1019
  %v1148 = vadd.f32 %v716, %v1020
  %v1149 = vadd.f32 %v717, %v1021
  %v1150 = vadd.f32 %v718, %v1022
  %v1151 = vadd.f32 %v719, %v1023
  %v1152 = vadd.f32 %v720, %v1024
  %v1153 = vadd.f32 %v721, %v1025
  %v1154 = vadd.f32 %v722, %v1026
  %v1155 = vadd.f32 %v723, %v1027
  %v1156 = vadd.f32 %v724, %v1028
  %v1157 = vadd.f32 %v725, %v1029
  %v1158 = vadd.f32 %v726, %v1030
  %v1159 = vadd.f32 %v727, %v1031
  %v1160 = vadd.f32 %v728, %v1032
  %v1161 = vadd.f32 %v729, %v1033
  %v1162 = vadd.f32 %v730, %v1034
  %v1163 = vadd.f32 %v731, %v1035
  %v1164 = vadd.f32 %v732, %v1036
  %v1165 = vadd.f32 %v733, %v1037
  %v1166 = vadd.f32 %v734, %v1038
  %v1167 = vadd.f32 %v735, %v1039
  %v1168 = vadd.f32 %v736, %v1040
  %v1169 = vadd.f32 %v737, %v1041
  %v1170 = vadd.f32 %v738, %v1042
  %v1171 = vadd.f32 %v739, %v1043
  %v1172 = vadd.f32 %v740, %v1044
  %v1173 = vadd.f32 %v741, %v1045
  %v1174 = vadd.f32 %v742, %v1046
  %v1175 = vadd.f32 %v743, %v1047
  %v1176 = vadd.f32 %v744, %v1048
  %v1177 = vadd.f32 %v745, %v1049
  %v1178 = vadd.f32 %v746, %v1050
  %v1179 = vadd.f32 %v747, %v1051
  %v1180 = vadd.f32 %v748, %v1052
  %v1181 = vadd.f32 %v749, %v1053
  %v1182 = vadd.f32 %v750, %v1054
  %v1183 = vadd.f32 %v751, %v1055
  %v1184 = vadd.f32 %v752, %v1056
  %v1185 = vadd.f32 %v753, %v1057
  %v1186 = vadd.f32 %v754, %v1058
  %v1187 = vadd.f32 %v755, %v1059
  %v1188 = vadd.f32 %v756, %v1060
  %v1189 = vadd.f32 %v757, %v1061
  %v1190 = vadd.f32 %v758, %v1062
  %v1191 = vadd.f32 %v759, %v1063
  %v1192 = vadd.f32 %v760, %v1064
  %v1193 = vadd.f32 %v761, %v1065
  %v1194 = vadd.f32 %v762, %v1066
  %v1195 = vadd.f32 %v763, %v1067
  %v1196 = vadd.f32 %v764, %v1068
  %v1197 = vadd.f32 %v765, %v1069
  %v1198 = vadd.f32 %v766, %v1070
  %v1199 = vadd.f32 %v767, %v1071
  %v1200 = vadd.f32 %v768, %v1072
  %v1201 = vadd.f32 %v769, %v1073
  %v1202 = vadd.f32 %v770, %v1074
  %v1203 = vadd.f32 %v771, %v1075
  %v1204 = vadd.f32 %v772, %v1076
  %v1205 = vadd.f32 %v773, %v1077
  %v1206 = vadd.f32 %v774, %v1078
  %v1207 = vadd.f32 %v775, %v1079
  %v1208 = vadd.f32 %v776, %v1080
  %v1209 = vadd.f32 %v777, %v1081
  %v1210 = vadd.f32 %v778, %v1082
  %v1211 = vadd.f32 %v779, %v1083
  %v1212 = vadd.f32 %v780, %v1084
  %v1213 = vadd.f32 %v781, %v1085
  %v1214 = vadd.f32 %v782, %v1086
  %v1215 = vadd.f32 %v783, %v1087
  %v1216 = vadd.f32 %v784, %v1088
  %v1217 = vadd.f32 %v785, %v1089
  %v1218 = vadd.f32 %v786, %v1090
  %v1219 = vadd.f32 %v787, %v1091
  %v1220 = vadd.f32 %v788, %v1092
  %v1221 = vadd.f32 %v789, %v1093
  %v1222 = vadd.f32 %v790, %v1094
  %v1223 = vadd.f32 %v791, %v1095
  %v1224 = vadd.f32 %v792, %v1096
  %v1225 = vadd.f32 %v793, %v1097
  %v1226 = vadd.f32 %v794, %v1098
  %v1227 = vadd.f32 %v795, %v1099
  %v1228 = vadd.f32 %v796, %v1100
  %1229 = vset.pattern.permute.xlu0 3
  %1230 = vperm.xlu0 %1229, %v37
  %v1231 = vpop.permute.xlu0 %1230
  %1233 = vset.pattern.permute.xlu0 3
  %1234 = vperm.xlu0 %1233, %v38
  %v1235 = vpop.permute.xlu0 %1234
  %1237 = vset.pattern.permute.xlu0 3
  %1238 = vperm.xlu0 %1237, %v39
  %v1239 = vpop.permute.xlu0 %1238
  %1241 = vset.pattern.permute.xlu0 3
  %1242 = vperm.xlu0 %1241, %v40
  %v1243 = vpop.permute.xlu0 %1242
  %1245 = vset.pattern.permute.xlu0 3
  %1246 = vperm.xlu0 %1245, %v41
  %v1247 = vpop.permute.xlu0 %1246
  %1249 = vset.pattern.permute.xlu0 3
  %1250 = vperm.xlu0 %1249, %v42
  %v1251 = vpop.permute.xlu0 %1250
  %1253 = vset.pattern.permute.xlu0 3
  %1254 = vperm.xlu0 %1253, %v43
  %v1255 = vpop.permute.xlu0 %1254
  %1257 = vset.pattern.permute.xlu0 3
  %1258 = vperm.xlu0 %1257, %v44
  %v1259 = vpop.permute.xlu0 %1258
  %v1261 = vlaneseq
  %v1262 = vshrl.u32 %v1261, 7
  %v1263 = vsub.s32 3, %v1262
  %v1264 = vrot.slane %v29, %v1263
  %v1265 = vlaneseq
  %v1266 = vshrl.u32 %v1265, 7
  %v1267 = vsub.s32 7, %v1266
  %v1268 = vrot.slane %v29, %v1267
  %v1269 = vlaneseq
  %v1270 = vshrl.u32 %v1269, 7
  %v1271 = vsub.s32 3, %v1270
  %v1272 = vrot.slane %v30, %v1271
  %v1273 = vlaneseq
  %v1274 = vshrl.u32 %v1273, 7
  %v1275 = vsub.s32 7, %v1274
  %v1276 = vrot.slane %v30, %v1275
  %v1277 = vlaneseq
  %v1278 = vshrl.u32 %v1277, 7
  %v1279 = vsub.s32 3, %v1278
  %v1280 = vrot.slane %v31, %v1279
  %v1281 = vlaneseq
  %v1282 = vshrl.u32 %v1281, 7
  %v1283 = vsub.s32 7, %v1282
  %v1284 = vrot.slane %v31, %v1283
  %v1285 = vlaneseq
  %v1286 = vshrl.u32 %v1285, 7
  %v1287 = vsub.s32 3, %v1286
  %v1288 = vrot.slane %v32, %v1287
  %v1289 = vlaneseq
  %v1290 = vshrl.u32 %v1289, 7
  %v1291 = vsub.s32 7, %v1290
  %v1292 = vrot.slane %v32, %v1291
  %v1293 = vlaneseq
  %v1294 = vshrl.u32 %v1293, 7
  %v1295 = vsub.s32 3, %v1294
  %v1296 = vrot.slane %v33, %v1295
  %v1297 = vlaneseq
  %v1298 = vshrl.u32 %v1297, 7
  %v1299 = vsub.s32 7, %v1298
  %v1300 = vrot.slane %v33, %v1299
  %v1301 = vlaneseq
  %v1302 = vshrl.u32 %v1301, 7
  %v1303 = vsub.s32 3, %v1302
  %v1304 = vrot.slane %v34, %v1303
  %v1305 = vlaneseq
  %v1306 = vshrl.u32 %v1305, 7
  %v1307 = vsub.s32 7, %v1306
  %v1308 = vrot.slane %v34, %v1307
  %v1309 = vlaneseq
  %v1310 = vshrl.u32 %v1309, 7
  %v1311 = vsub.s32 3, %v1310
  %v1312 = vrot.slane %v35, %v1311
  %v1313 = vlaneseq
  %v1314 = vshrl.u32 %v1313, 7
  %v1315 = vsub.s32 7, %v1314
  %v1316 = vrot.slane %v35, %v1315
  %v1317 = vlaneseq
  %v1318 = vshrl.u32 %v1317, 7
  %v1319 = vsub.s32 3, %v1318
  %v1320 = vrot.slane %v36, %v1319
  %v1321 = vlaneseq
  %v1322 = vshrl.u32 %v1321, 7
  %v1323 = vsub.s32 7, %v1322
  %v1324 = vrot.slane %v36, %v1323
  %v1341 = vlaneseq
  %v1342 = vshrl.u32 %v1341, 7
  %v1343 = vsub.s32 3, %v1342
  %v1344 = vrot.slane %v1264, %v1343
  %v1345 = vlaneseq
  %v1346 = vshrl.u32 %v1345, 7
  %v1347 = vsub.s32 3, %v1346
  %v1348 = vrot.slane %v1268, %v1347
  %v1349 = vlaneseq
  %v1350 = vshrl.u32 %v1349, 7
  %v1351 = vsub.s32 3, %v1350
  %v1352 = vrot.slane %v1272, %v1351
  %v1353 = vlaneseq
  %v1354 = vshrl.u32 %v1353, 7
  %v1355 = vsub.s32 3, %v1354
  %v1356 = vrot.slane %v1276, %v1355
  %v1357 = vlaneseq
  %v1358 = vshrl.u32 %v1357, 7
  %v1359 = vsub.s32 3, %v1358
  %v1360 = vrot.slane %v1280, %v1359
  %v1361 = vlaneseq
  %v1362 = vshrl.u32 %v1361, 7
  %v1363 = vsub.s32 3, %v1362
  %v1364 = vrot.slane %v1284, %v1363
  %v1365 = vlaneseq
  %v1366 = vshrl.u32 %v1365, 7
  %v1367 = vsub.s32 3, %v1366
  %v1368 = vrot.slane %v1288, %v1367
  %v1369 = vlaneseq
  %v1370 = vshrl.u32 %v1369, 7
  %v1371 = vsub.s32 3, %v1370
  %v1372 = vrot.slane %v1292, %v1371
  %v1373 = vlaneseq
  %v1374 = vshrl.u32 %v1373, 7
  %v1375 = vsub.s32 3, %v1374
  %v1376 = vrot.slane %v1296, %v1375
  %v1377 = vlaneseq
  %v1378 = vshrl.u32 %v1377, 7
  %v1379 = vsub.s32 3, %v1378
  %v1380 = vrot.slane %v1300, %v1379
  %v1381 = vlaneseq
  %v1382 = vshrl.u32 %v1381, 7
  %v1383 = vsub.s32 3, %v1382
  %v1384 = vrot.slane %v1304, %v1383
  %v1385 = vlaneseq
  %v1386 = vshrl.u32 %v1385, 7
  %v1387 = vsub.s32 3, %v1386
  %v1388 = vrot.slane %v1308, %v1387
  %v1389 = vlaneseq
  %v1390 = vshrl.u32 %v1389, 7
  %v1391 = vsub.s32 3, %v1390
  %v1392 = vrot.slane %v1312, %v1391
  %v1393 = vlaneseq
  %v1394 = vshrl.u32 %v1393, 7
  %v1395 = vsub.s32 3, %v1394
  %v1396 = vrot.slane %v1316, %v1395
  %v1397 = vlaneseq
  %v1398 = vshrl.u32 %v1397, 7
  %v1399 = vsub.s32 3, %v1398
  %v1400 = vrot.slane %v1320, %v1399
  %v1401 = vlaneseq
  %v1402 = vshrl.u32 %v1401, 7
  %v1403 = vsub.s32 3, %v1402
  %v1404 = vrot.slane %v1324, %v1403
  %v1405 = vmul.f32 %v1231, %v1344
  %v1406 = vmul.f32 %v1231, %v1348
  %v1407 = vmul.f32 %v1231, %v1352
  %v1408 = vmul.f32 %v1231, %v1356
  %v1409 = vmul.f32 %v1231, %v1360
  %v1410 = vmul.f32 %v1231, %v1364
  %v1411 = vmul.f32 %v1231, %v1368
  %v1412 = vmul.f32 %v1231, %v1372
  %v1413 = vmul.f32 %v1231, %v1376
  %v1414 = vmul.f32 %v1231, %v1380
  %v1415 = vmul.f32 %v1231, %v1384
  %v1416 = vmul.f32 %v1231, %v1388
  %v1417 = vmul.f32 %v1231, %v1392
  %v1418 = vmul.f32 %v1231, %v1396
  %v1419 = vmul.f32 %v1231, %v1400
  %v1420 = vmul.f32 %v1231, %v1404
  %v1421 = vmul.f32 %v1235, %v1344
  %v1422 = vmul.f32 %v1235, %v1348
  %v1423 = vmul.f32 %v1235, %v1352
  %v1424 = vmul.f32 %v1235, %v1356
  %v1425 = vmul.f32 %v1235, %v1360
  %v1426 = vmul.f32 %v1235, %v1364
  %v1427 = vmul.f32 %v1235, %v1368
  %v1428 = vmul.f32 %v1235, %v1372
  %v1429 = vmul.f32 %v1235, %v1376
  %v1430 = vmul.f32 %v1235, %v1380
  %v1431 = vmul.f32 %v1235, %v1384
  %v1432 = vmul.f32 %v1235, %v1388
  %v1433 = vmul.f32 %v1235, %v1392
  %v1434 = vmul.f32 %v1235, %v1396
  %v1435 = vmul.f32 %v1235, %v1400
  %v1436 = vmul.f32 %v1235, %v1404
  %v1437 = vmul.f32 %v1239, %v1344
  %v1438 = vmul.f32 %v1239, %v1348
  %v1439 = vmul.f32 %v1239, %v1352
  %v1440 = vmul.f32 %v1239, %v1356
  %v1441 = vmul.f32 %v1239, %v1360
  %v1442 = vmul.f32 %v1239, %v1364
  %v1443 = vmul.f32 %v1239, %v1368
  %v1444 = vmul.f32 %v1239, %v1372
  %v1445 = vmul.f32 %v1239, %v1376
  %v1446 = vmul.f32 %v1239, %v1380
  %v1447 = vmul.f32 %v1239, %v1384
  %v1448 = vmul.f32 %v1239, %v1388
  %v1449 = vmul.f32 %v1239, %v1392
  %v1450 = vmul.f32 %v1239, %v1396
  %v1451 = vmul.f32 %v1239, %v1400
  %v1452 = vmul.f32 %v1239, %v1404
  %v1453 = vmul.f32 %v1243, %v1344
  %v1454 = vmul.f32 %v1243, %v1348
  %v1455 = vmul.f32 %v1243, %v1352
  %v1456 = vmul.f32 %v1243, %v1356
  %v1457 = vmul.f32 %v1243, %v1360
  %v1458 = vmul.f32 %v1243, %v1364
  %v1459 = vmul.f32 %v1243, %v1368
  %v1460 = vmul.f32 %v1243, %v1372
  %v1461 = vmul.f32 %v1243, %v1376
  %v1462 = vmul.f32 %v1243, %v1380
  %v1463 = vmul.f32 %v1243, %v1384
  %v1464 = vmul.f32 %v1243, %v1388
  %v1465 = vmul.f32 %v1243, %v1392
  %v1466 = vmul.f32 %v1243, %v1396
  %v1467 = vmul.f32 %v1243, %v1400
  %v1468 = vmul.f32 %v1243, %v1404
  %v1469 = vmul.f32 %v1247, %v1344
  %v1470 = vmul.f32 %v1247, %v1348
  %v1471 = vmul.f32 %v1247, %v1352
  %v1472 = vmul.f32 %v1247, %v1356
  %v1473 = vmul.f32 %v1247, %v1360
  %v1474 = vmul.f32 %v1247, %v1364
  %v1475 = vmul.f32 %v1247, %v1368
  %v1476 = vmul.f32 %v1247, %v1372
  %v1477 = vmul.f32 %v1247, %v1376
  %v1478 = vmul.f32 %v1247, %v1380
  %v1479 = vmul.f32 %v1247, %v1384
  %v1480 = vmul.f32 %v1247, %v1388
  %v1481 = vmul.f32 %v1247, %v1392
  %v1482 = vmul.f32 %v1247, %v1396
  %v1483 = vmul.f32 %v1247, %v1400
  %v1484 = vmul.f32 %v1247, %v1404
  %v1485 = vmul.f32 %v1251, %v1344
  %v1486 = vmul.f32 %v1251, %v1348
  %v1487 = vmul.f32 %v1251, %v1352
  %v1488 = vmul.f32 %v1251, %v1356
  %v1489 = vmul.f32 %v1251, %v1360
  %v1490 = vmul.f32 %v1251, %v1364
  %v1491 = vmul.f32 %v1251, %v1368
  %v1492 = vmul.f32 %v1251, %v1372
  %v1493 = vmul.f32 %v1251, %v1376
  %v1494 = vmul.f32 %v1251, %v1380
  %v1495 = vmul.f32 %v1251, %v1384
  %v1496 = vmul.f32 %v1251, %v1388
  %v1497 = vmul.f32 %v1251, %v1392
  %v1498 = vmul.f32 %v1251, %v1396
  %v1499 = vmul.f32 %v1251, %v1400
  %v1500 = vmul.f32 %v1251, %v1404
  %v1501 = vmul.f32 %v1255, %v1344
  %v1502 = vmul.f32 %v1255, %v1348
  %v1503 = vmul.f32 %v1255, %v1352
  %v1504 = vmul.f32 %v1255, %v1356
  %v1505 = vmul.f32 %v1255, %v1360
  %v1506 = vmul.f32 %v1255, %v1364
  %v1507 = vmul.f32 %v1255, %v1368
  %v1508 = vmul.f32 %v1255, %v1372
  %v1509 = vmul.f32 %v1255, %v1376
  %v1510 = vmul.f32 %v1255, %v1380
  %v1511 = vmul.f32 %v1255, %v1384
  %v1512 = vmul.f32 %v1255, %v1388
  %v1513 = vmul.f32 %v1255, %v1392
  %v1514 = vmul.f32 %v1255, %v1396
  %v1515 = vmul.f32 %v1255, %v1400
  %v1516 = vmul.f32 %v1255, %v1404
  %v1517 = vmul.f32 %v1259, %v1344
  %v1518 = vmul.f32 %v1259, %v1348
  %v1519 = vmul.f32 %v1259, %v1352
  %v1520 = vmul.f32 %v1259, %v1356
  %v1521 = vmul.f32 %v1259, %v1360
  %v1522 = vmul.f32 %v1259, %v1364
  %v1523 = vmul.f32 %v1259, %v1368
  %v1524 = vmul.f32 %v1259, %v1372
  %v1525 = vmul.f32 %v1259, %v1376
  %v1526 = vmul.f32 %v1259, %v1380
  %v1527 = vmul.f32 %v1259, %v1384
  %v1528 = vmul.f32 %v1259, %v1388
  %v1529 = vmul.f32 %v1259, %v1392
  %v1530 = vmul.f32 %v1259, %v1396
  %v1531 = vmul.f32 %v1259, %v1400
  %v1532 = vmul.f32 %v1259, %v1404
  %v1533 = vadd.f32 %v1101, %v1405
  %v1534 = vadd.f32 %v1102, %v1406
  %v1535 = vadd.f32 %v1103, %v1407
  %v1536 = vadd.f32 %v1104, %v1408
  %v1537 = vadd.f32 %v1105, %v1409
  %v1538 = vadd.f32 %v1106, %v1410
  %v1539 = vadd.f32 %v1107, %v1411
  %v1540 = vadd.f32 %v1108, %v1412
  %v1541 = vadd.f32 %v1109, %v1413
  %v1542 = vadd.f32 %v1110, %v1414
  %v1543 = vadd.f32 %v1111, %v1415
  %v1544 = vadd.f32 %v1112, %v1416
  %v1545 = vadd.f32 %v1113, %v1417
  %v1546 = vadd.f32 %v1114, %v1418
  %v1547 = vadd.f32 %v1115, %v1419
  %v1548 = vadd.f32 %v1116, %v1420
  %v1549 = vadd.f32 %v1117, %v1421
  %v1550 = vadd.f32 %v1118, %v1422
  %v1551 = vadd.f32 %v1119, %v1423
  %v1552 = vadd.f32 %v1120, %v1424
  %v1553 = vadd.f32 %v1121, %v1425
  %v1554 = vadd.f32 %v1122, %v1426
  %v1555 = vadd.f32 %v1123, %v1427
  %v1556 = vadd.f32 %v1124, %v1428
  %v1557 = vadd.f32 %v1125, %v1429
  %v1558 = vadd.f32 %v1126, %v1430
  %v1559 = vadd.f32 %v1127, %v1431
  %v1560 = vadd.f32 %v1128, %v1432
  %v1561 = vadd.f32 %v1129, %v1433
  %v1562 = vadd.f32 %v1130, %v1434
  %v1563 = vadd.f32 %v1131, %v1435
  %v1564 = vadd.f32 %v1132, %v1436
  %v1565 = vadd.f32 %v1133, %v1437
  %v1566 = vadd.f32 %v1134, %v1438
  %v1567 = vadd.f32 %v1135, %v1439
  %v1568 = vadd.f32 %v1136, %v1440
  %v1569 = vadd.f32 %v1137, %v1441
  %v1570 = vadd.f32 %v1138, %v1442
  %v1571 = vadd.f32 %v1139, %v1443
  %v1572 = vadd.f32 %v1140, %v1444
  %v1573 = vadd.f32 %v1141, %v1445
  %v1574 = vadd.f32 %v1142, %v1446
  %v1575 = vadd.f32 %v1143, %v1447
  %v1576 = vadd.f32 %v1144, %v1448
  %v1577 = vadd.f32 %v1145, %v1449
  %v1578 = vadd.f32 %v1146, %v1450
  %v1579 = vadd.f32 %v1147, %v1451
  %v1580 = vadd.f32 %v1148, %v1452
  %v1581 = vadd.f32 %v1149, %v1453
  %v1582 = vadd.f32 %v1150, %v1454
  %v1583 = vadd.f32 %v1151, %v1455
  %v1584 = vadd.f32 %v1152, %v1456
  %v1585 = vadd.f32 %v1153, %v1457
  %v1586 = vadd.f32 %v1154, %v1458
  %v1587 = vadd.f32 %v1155, %v1459
  %v1588 = vadd.f32 %v1156, %v1460
  %v1589 = vadd.f32 %v1157, %v1461
  %v1590 = vadd.f32 %v1158, %v1462
  %v1591 = vadd.f32 %v1159, %v1463
  %v1592 = vadd.f32 %v1160, %v1464
  %v1593 = vadd.f32 %v1161, %v1465
  %v1594 = vadd.f32 %v1162, %v1466
  %v1595 = vadd.f32 %v1163, %v1467
  %v1596 = vadd.f32 %v1164, %v1468
  %v1597 = vadd.f32 %v1165, %v1469
  %v1598 = vadd.f32 %v1166, %v1470
  %v1599 = vadd.f32 %v1167, %v1471
  %v1600 = vadd.f32 %v1168, %v1472
  %v1601 = vadd.f32 %v1169, %v1473
  %v1602 = vadd.f32 %v1170, %v1474
  %v1603 = vadd.f32 %v1171, %v1475
  %v1604 = vadd.f32 %v1172, %v1476
  %v1605 = vadd.f32 %v1173, %v1477
  %v1606 = vadd.f32 %v1174, %v1478
  %v1607 = vadd.f32 %v1175, %v1479
  %v1608 = vadd.f32 %v1176, %v1480
  %v1609 = vadd.f32 %v1177, %v1481
  %v1610 = vadd.f32 %v1178, %v1482
  %v1611 = vadd.f32 %v1179, %v1483
  %v1612 = vadd.f32 %v1180, %v1484
  %v1613 = vadd.f32 %v1181, %v1485
  %v1614 = vadd.f32 %v1182, %v1486
  %v1615 = vadd.f32 %v1183, %v1487
  %v1616 = vadd.f32 %v1184, %v1488
  %v1617 = vadd.f32 %v1185, %v1489
  %v1618 = vadd.f32 %v1186, %v1490
  %v1619 = vadd.f32 %v1187, %v1491
  %v1620 = vadd.f32 %v1188, %v1492
  %v1621 = vadd.f32 %v1189, %v1493
  %v1622 = vadd.f32 %v1190, %v1494
  %v1623 = vadd.f32 %v1191, %v1495
  %v1624 = vadd.f32 %v1192, %v1496
  %v1625 = vadd.f32 %v1193, %v1497
  %v1626 = vadd.f32 %v1194, %v1498
  %v1627 = vadd.f32 %v1195, %v1499
  %v1628 = vadd.f32 %v1196, %v1500
  %v1629 = vadd.f32 %v1197, %v1501
  %v1630 = vadd.f32 %v1198, %v1502
  %v1631 = vadd.f32 %v1199, %v1503
  %v1632 = vadd.f32 %v1200, %v1504
  %v1633 = vadd.f32 %v1201, %v1505
  %v1634 = vadd.f32 %v1202, %v1506
  %v1635 = vadd.f32 %v1203, %v1507
  %v1636 = vadd.f32 %v1204, %v1508
  %v1637 = vadd.f32 %v1205, %v1509
  %v1638 = vadd.f32 %v1206, %v1510
  %v1639 = vadd.f32 %v1207, %v1511
  %v1640 = vadd.f32 %v1208, %v1512
  %v1641 = vadd.f32 %v1209, %v1513
  %v1642 = vadd.f32 %v1210, %v1514
  %v1643 = vadd.f32 %v1211, %v1515
  %v1644 = vadd.f32 %v1212, %v1516
  %v1645 = vadd.f32 %v1213, %v1517
  %v1646 = vadd.f32 %v1214, %v1518
  %v1647 = vadd.f32 %v1215, %v1519
  %v1648 = vadd.f32 %v1216, %v1520
  %v1649 = vadd.f32 %v1217, %v1521
  %v1650 = vadd.f32 %v1218, %v1522
  %v1651 = vadd.f32 %v1219, %v1523
  %v1652 = vadd.f32 %v1220, %v1524
  %v1653 = vadd.f32 %v1221, %v1525
  %v1654 = vadd.f32 %v1222, %v1526
  %v1655 = vadd.f32 %v1223, %v1527
  %v1656 = vadd.f32 %v1224, %v1528
  %v1657 = vadd.f32 %v1225, %v1529
  %v1658 = vadd.f32 %v1226, %v1530
  %v1659 = vadd.f32 %v1227, %v1531
  %v1660 = vadd.f32 %v1228, %v1532
  %v1661 = vld [vmem:[%s2] sm:$0xff]
  %v1662 = vld [vmem:[%s2 + $0x8] sm:$0xff]
  %v1663 = vld [vmem:[%s2 + $0x10] sm:$0xff]
  %v1664 = vld [vmem:[%s2 + $0x18] sm:$0xff]
  %v1665 = vld [vmem:[%s2 + $0x20] sm:$0xff]
  %v1666 = vld [vmem:[%s2 + $0x28] sm:$0xff]
  %v1667 = vld [vmem:[%s2 + $0x30] sm:$0xff]
  %v1668 = vld [vmem:[%s2 + $0x38] sm:$0xff]
  %1670 = vset.pattern.permute.xlu0 0
  %1671 = vperm.xlu0 %1670, %v1661
  %v1672 = vpop.permute.xlu0 %1671
  %1675 = vset.pattern.permute.xlu0 0
  %1676 = vperm.xlu0 %1675, %v1662
  %v1677 = vpop.permute.xlu0 %1676
  %1680 = vset.pattern.permute.xlu0 0
  %1681 = vperm.xlu0 %1680, %v1663
  %v1682 = vpop.permute.xlu0 %1681
  %1685 = vset.pattern.permute.xlu0 0
  %1686 = vperm.xlu0 %1685, %v1664
  %v1687 = vpop.permute.xlu0 %1686
  %1690 = vset.pattern.permute.xlu0 0
  %1691 = vperm.xlu0 %1690, %v1665
  %v1692 = vpop.permute.xlu0 %1691
  %1695 = vset.pattern.permute.xlu0 0
  %1696 = vperm.xlu0 %1695, %v1666
  %v1697 = vpop.permute.xlu0 %1696
  %1700 = vset.pattern.permute.xlu0 0
  %1701 = vperm.xlu0 %1700, %v1667
  %v1702 = vpop.permute.xlu0 %1701
  %1705 = vset.pattern.permute.xlu0 0
  %1706 = vperm.xlu0 %1705, %v1668
  %v1707 = vpop.permute.xlu0 %1706
  %v1709 = vadd.f32 %v1533, %v1672
  %v1710 = vadd.f32 %v1534, %v1672
  %v1711 = vadd.f32 %v1535, %v1672
  %v1712 = vadd.f32 %v1536, %v1672
  %v1713 = vadd.f32 %v1537, %v1672
  %v1714 = vadd.f32 %v1538, %v1672
  %v1715 = vadd.f32 %v1539, %v1672
  %v1716 = vadd.f32 %v1540, %v1672
  %v1717 = vadd.f32 %v1541, %v1672
  %v1718 = vadd.f32 %v1542, %v1672
  %v1719 = vadd.f32 %v1543, %v1672
  %v1720 = vadd.f32 %v1544, %v1672
  %v1721 = vadd.f32 %v1545, %v1672
  %v1722 = vadd.f32 %v1546, %v1672
  %v1723 = vadd.f32 %v1547, %v1672
  %v1724 = vadd.f32 %v1548, %v1672
  %v1725 = vadd.f32 %v1549, %v1677
  %v1726 = vadd.f32 %v1550, %v1677
  %v1727 = vadd.f32 %v1551, %v1677
  %v1728 = vadd.f32 %v1552, %v1677
  %v1729 = vadd.f32 %v1553, %v1677
  %v1730 = vadd.f32 %v1554, %v1677
  %v1731 = vadd.f32 %v1555, %v1677
  %v1732 = vadd.f32 %v1556, %v1677
  %v1733 = vadd.f32 %v1557, %v1677
  %v1734 = vadd.f32 %v1558, %v1677
  %v1735 = vadd.f32 %v1559, %v1677
  %v1736 = vadd.f32 %v1560, %v1677
  %v1737 = vadd.f32 %v1561, %v1677
  %v1738 = vadd.f32 %v1562, %v1677
  %v1739 = vadd.f32 %v1563, %v1677
  %v1740 = vadd.f32 %v1564, %v1677
  %v1741 = vadd.f32 %v1565, %v1682
  %v1742 = vadd.f32 %v1566, %v1682
  %v1743 = vadd.f32 %v1567, %v1682
  %v1744 = vadd.f32 %v1568, %v1682
  %v1745 = vadd.f32 %v1569, %v1682
  %v1746 = vadd.f32 %v1570, %v1682
  %v1747 = vadd.f32 %v1571, %v1682
  %v1748 = vadd.f32 %v1572, %v1682
  %v1749 = vadd.f32 %v1573, %v1682
  %v1750 = vadd.f32 %v1574, %v1682
  %v1751 = vadd.f32 %v1575, %v1682
  %v1752 = vadd.f32 %v1576, %v1682
  %v1753 = vadd.f32 %v1577, %v1682
  %v1754 = vadd.f32 %v1578, %v1682
  %v1755 = vadd.f32 %v1579, %v1682
  %v1756 = vadd.f32 %v1580, %v1682
  %v1757 = vadd.f32 %v1581, %v1687
  %v1758 = vadd.f32 %v1582, %v1687
  %v1759 = vadd.f32 %v1583, %v1687
  %v1760 = vadd.f32 %v1584, %v1687
  %v1761 = vadd.f32 %v1585, %v1687
  %v1762 = vadd.f32 %v1586, %v1687
  %v1763 = vadd.f32 %v1587, %v1687
  %v1764 = vadd.f32 %v1588, %v1687
  %v1765 = vadd.f32 %v1589, %v1687
  %v1766 = vadd.f32 %v1590, %v1687
  %v1767 = vadd.f32 %v1591, %v1687
  %v1768 = vadd.f32 %v1592, %v1687
  %v1769 = vadd.f32 %v1593, %v1687
  %v1770 = vadd.f32 %v1594, %v1687
  %v1771 = vadd.f32 %v1595, %v1687
  %v1772 = vadd.f32 %v1596, %v1687
  %v1773 = vadd.f32 %v1597, %v1692
  %v1774 = vadd.f32 %v1598, %v1692
  %v1775 = vadd.f32 %v1599, %v1692
  %v1776 = vadd.f32 %v1600, %v1692
  %v1777 = vadd.f32 %v1601, %v1692
  %v1778 = vadd.f32 %v1602, %v1692
  %v1779 = vadd.f32 %v1603, %v1692
  %v1780 = vadd.f32 %v1604, %v1692
  %v1781 = vadd.f32 %v1605, %v1692
  %v1782 = vadd.f32 %v1606, %v1692
  %v1783 = vadd.f32 %v1607, %v1692
  %v1784 = vadd.f32 %v1608, %v1692
  %v1785 = vadd.f32 %v1609, %v1692
  %v1786 = vadd.f32 %v1610, %v1692
  %v1787 = vadd.f32 %v1611, %v1692
  %v1788 = vadd.f32 %v1612, %v1692
  %v1789 = vadd.f32 %v1613, %v1697
  %v1790 = vadd.f32 %v1614, %v1697
  %v1791 = vadd.f32 %v1615, %v1697
  %v1792 = vadd.f32 %v1616, %v1697
  %v1793 = vadd.f32 %v1617, %v1697
  %v1794 = vadd.f32 %v1618, %v1697
  %v1795 = vadd.f32 %v1619, %v1697
  %v1796 = vadd.f32 %v1620, %v1697
  %v1797 = vadd.f32 %v1621, %v1697
  %v1798 = vadd.f32 %v1622, %v1697
  %v1799 = vadd.f32 %v1623, %v1697
  %v1800 = vadd.f32 %v1624, %v1697
  %v1801 = vadd.f32 %v1625, %v1697
  %v1802 = vadd.f32 %v1626, %v1697
  %v1803 = vadd.f32 %v1627, %v1697
  %v1804 = vadd.f32 %v1628, %v1697
  %v1805 = vadd.f32 %v1629, %v1702
  %v1806 = vadd.f32 %v1630, %v1702
  %v1807 = vadd.f32 %v1631, %v1702
  %v1808 = vadd.f32 %v1632, %v1702
  %v1809 = vadd.f32 %v1633, %v1702
  %v1810 = vadd.f32 %v1634, %v1702
  %v1811 = vadd.f32 %v1635, %v1702
  %v1812 = vadd.f32 %v1636, %v1702
  %v1813 = vadd.f32 %v1637, %v1702
  %v1814 = vadd.f32 %v1638, %v1702
  %v1815 = vadd.f32 %v1639, %v1702
  %v1816 = vadd.f32 %v1640, %v1702
  %v1817 = vadd.f32 %v1641, %v1702
  %v1818 = vadd.f32 %v1642, %v1702
  %v1819 = vadd.f32 %v1643, %v1702
  %v1820 = vadd.f32 %v1644, %v1702
  %v1821 = vadd.f32 %v1645, %v1707
  %v1822 = vadd.f32 %v1646, %v1707
  %v1823 = vadd.f32 %v1647, %v1707
  %v1824 = vadd.f32 %v1648, %v1707
  %v1825 = vadd.f32 %v1649, %v1707
  %v1826 = vadd.f32 %v1650, %v1707
  %v1827 = vadd.f32 %v1651, %v1707
  %v1828 = vadd.f32 %v1652, %v1707
  %v1829 = vadd.f32 %v1653, %v1707
  %v1830 = vadd.f32 %v1654, %v1707
  %v1831 = vadd.f32 %v1655, %v1707
  %v1832 = vadd.f32 %v1656, %v1707
  %v1833 = vadd.f32 %v1657, %v1707
  %v1834 = vadd.f32 %v1658, %v1707
  %v1835 = vadd.f32 %v1659, %v1707
  %v1836 = vadd.f32 %v1660, %v1707
  %v1837 = vmul.f32 %v1709, 0.5
  %v1838 = vmul.f32 %v1710, 0.5
  %v1839 = vmul.f32 %v1711, 0.5
  %v1840 = vmul.f32 %v1712, 0.5
  %v1841 = vmul.f32 %v1713, 0.5
  %v1842 = vmul.f32 %v1714, 0.5
  %v1843 = vmul.f32 %v1715, 0.5
  %v1844 = vmul.f32 %v1716, 0.5
  %v1845 = vmul.f32 %v1717, 0.5
  %v1846 = vmul.f32 %v1718, 0.5
  %v1847 = vmul.f32 %v1719, 0.5
  %v1848 = vmul.f32 %v1720, 0.5
  %v1849 = vmul.f32 %v1721, 0.5
  %v1850 = vmul.f32 %v1722, 0.5
  %v1851 = vmul.f32 %v1723, 0.5
  %v1852 = vmul.f32 %v1724, 0.5
  %v1853 = vmul.f32 %v1725, 0.5
  %v1854 = vmul.f32 %v1726, 0.5
  %v1855 = vmul.f32 %v1727, 0.5
  %v1856 = vmul.f32 %v1728, 0.5
  %v1857 = vmul.f32 %v1729, 0.5
  %v1858 = vmul.f32 %v1730, 0.5
  %v1859 = vmul.f32 %v1731, 0.5
  %v1860 = vmul.f32 %v1732, 0.5
  %v1861 = vmul.f32 %v1733, 0.5
  %v1862 = vmul.f32 %v1734, 0.5
  %v1863 = vmul.f32 %v1735, 0.5
  %v1864 = vmul.f32 %v1736, 0.5
  %v1865 = vmul.f32 %v1737, 0.5
  %v1866 = vmul.f32 %v1738, 0.5
  %v1867 = vmul.f32 %v1739, 0.5
  %v1868 = vmul.f32 %v1740, 0.5
  %v1869 = vmul.f32 %v1741, 0.5
  %v1870 = vmul.f32 %v1742, 0.5
  %v1871 = vmul.f32 %v1743, 0.5
  %v1872 = vmul.f32 %v1744, 0.5
  %v1873 = vmul.f32 %v1745, 0.5
  %v1874 = vmul.f32 %v1746, 0.5
  %v1875 = vmul.f32 %v1747, 0.5
  %v1876 = vmul.f32 %v1748, 0.5
  %v1877 = vmul.f32 %v1749, 0.5
  %v1878 = vmul.f32 %v1750, 0.5
  %v1879 = vmul.f32 %v1751, 0.5
  %v1880 = vmul.f32 %v1752, 0.5
  %v1881 = vmul.f32 %v1753, 0.5
  %v1882 = vmul.f32 %v1754, 0.5
  %v1883 = vmul.f32 %v1755, 0.5
  %v1884 = vmul.f32 %v1756, 0.5
  %v1885 = vmul.f32 %v1757, 0.5
  %v1886 = vmul.f32 %v1758, 0.5
  %v1887 = vmul.f32 %v1759, 0.5
  %v1888 = vmul.f32 %v1760, 0.5
  %v1889 = vmul.f32 %v1761, 0.5
  %v1890 = vmul.f32 %v1762, 0.5
  %v1891 = vmul.f32 %v1763, 0.5
  %v1892 = vmul.f32 %v1764, 0.5
  %v1893 = vmul.f32 %v1765, 0.5
  %v1894 = vmul.f32 %v1766, 0.5
  %v1895 = vmul.f32 %v1767, 0.5
  %v1896 = vmul.f32 %v1768, 0.5
  %v1897 = vmul.f32 %v1769, 0.5
  %v1898 = vmul.f32 %v1770, 0.5
  %v1899 = vmul.f32 %v1771, 0.5
  %v1900 = vmul.f32 %v1772, 0.5
  %v1901 = vmul.f32 %v1773, 0.5
  %v1902 = vmul.f32 %v1774, 0.5
  %v1903 = vmul.f32 %v1775, 0.5
  %v1904 = vmul.f32 %v1776, 0.5
  %v1905 = vmul.f32 %v1777, 0.5
  %v1906 = vmul.f32 %v1778, 0.5
  %v1907 = vmul.f32 %v1779, 0.5
  %v1908 = vmul.f32 %v1780, 0.5
  %v1909 = vmul.f32 %v1781, 0.5
  %v1910 = vmul.f32 %v1782, 0.5
  %v1911 = vmul.f32 %v1783, 0.5
  %v1912 = vmul.f32 %v1784, 0.5
  %v1913 = vmul.f32 %v1785, 0.5
  %v1914 = vmul.f32 %v1786, 0.5
  %v1915 = vmul.f32 %v1787, 0.5
  %v1916 = vmul.f32 %v1788, 0.5
  %v1917 = vmul.f32 %v1789, 0.5
  %v1918 = vmul.f32 %v1790, 0.5
  %v1919 = vmul.f32 %v1791, 0.5
  %v1920 = vmul.f32 %v1792, 0.5
  %v1921 = vmul.f32 %v1793, 0.5
  %v1922 = vmul.f32 %v1794, 0.5
  %v1923 = vmul.f32 %v1795, 0.5
  %v1924 = vmul.f32 %v1796, 0.5
  %v1925 = vmul.f32 %v1797, 0.5
  %v1926 = vmul.f32 %v1798, 0.5
  %v1927 = vmul.f32 %v1799, 0.5
  %v1928 = vmul.f32 %v1800, 0.5
  %v1929 = vmul.f32 %v1801, 0.5
  %v1930 = vmul.f32 %v1802, 0.5
  %v1931 = vmul.f32 %v1803, 0.5
  %v1932 = vmul.f32 %v1804, 0.5
  %v1933 = vmul.f32 %v1805, 0.5
  %v1934 = vmul.f32 %v1806, 0.5
  %v1935 = vmul.f32 %v1807, 0.5
  %v1936 = vmul.f32 %v1808, 0.5
  %v1937 = vmul.f32 %v1809, 0.5
  %v1938 = vmul.f32 %v1810, 0.5
  %v1939 = vmul.f32 %v1811, 0.5
  %v1940 = vmul.f32 %v1812, 0.5
  %v1941 = vmul.f32 %v1813, 0.5
  %v1942 = vmul.f32 %v1814, 0.5
  %v1943 = vmul.f32 %v1815, 0.5
  %v1944 = vmul.f32 %v1816, 0.5
  %v1945 = vmul.f32 %v1817, 0.5
  %v1946 = vmul.f32 %v1818, 0.5
  %v1947 = vmul.f32 %v1819, 0.5
  %v1948 = vmul.f32 %v1820, 0.5
  %v1949 = vmul.f32 %v1821, 0.5
  %v1950 = vmul.f32 %v1822, 0.5
  %v1951 = vmul.f32 %v1823, 0.5
  %v1952 = vmul.f32 %v1824, 0.5
  %v1953 = vmul.f32 %v1825, 0.5
  %v1954 = vmul.f32 %v1826, 0.5
  %v1955 = vmul.f32 %v1827, 0.5
  %v1956 = vmul.f32 %v1828, 0.5
  %v1957 = vmul.f32 %v1829, 0.5
  %v1958 = vmul.f32 %v1830, 0.5
  %v1959 = vmul.f32 %v1831, 0.5
  %v1960 = vmul.f32 %v1832, 0.5
  %v1961 = vmul.f32 %v1833, 0.5
  %v1962 = vmul.f32 %v1834, 0.5
  %v1963 = vmul.f32 %v1835, 0.5
  %v1964 = vmul.f32 %v1836, 0.5
  %v1965 = vtanh.pop %v1837
  %v1966 = vtanh.pop %v1838
  %v1967 = vtanh.pop %v1839
  %v1968 = vtanh.pop %v1840
  %v1969 = vtanh.pop %v1841
  %v1970 = vtanh.pop %v1842
  %v1971 = vtanh.pop %v1843
  %v1972 = vtanh.pop %v1844
  %v1973 = vtanh.pop %v1845
  %v1974 = vtanh.pop %v1846
  %v1975 = vtanh.pop %v1847
  %v1976 = vtanh.pop %v1848
  %v1977 = vtanh.pop %v1849
  %v1978 = vtanh.pop %v1850
  %v1979 = vtanh.pop %v1851
  %v1980 = vtanh.pop %v1852
  %v1981 = vtanh.pop %v1853
  %v1982 = vtanh.pop %v1854
  %v1983 = vtanh.pop %v1855
  %v1984 = vtanh.pop %v1856
  %v1985 = vtanh.pop %v1857
  %v1986 = vtanh.pop %v1858
  %v1987 = vtanh.pop %v1859
  %v1988 = vtanh.pop %v1860
  %v1989 = vtanh.pop %v1861
  %v1990 = vtanh.pop %v1862
  %v1991 = vtanh.pop %v1863
  %v1992 = vtanh.pop %v1864
  %v1993 = vtanh.pop %v1865
  %v1994 = vtanh.pop %v1866
  %v1995 = vtanh.pop %v1867
  %v1996 = vtanh.pop %v1868
  %v1997 = vtanh.pop %v1869
  %v1998 = vtanh.pop %v1870
  %v1999 = vtanh.pop %v1871
  %v2000 = vtanh.pop %v1872
  %v2001 = vtanh.pop %v1873
  %v2002 = vtanh.pop %v1874
  %v2003 = vtanh.pop %v1875
  %v2004 = vtanh.pop %v1876
  %v2005 = vtanh.pop %v1877
  %v2006 = vtanh.pop %v1878
  %v2007 = vtanh.pop %v1879
  %v2008 = vtanh.pop %v1880
  %v2009 = vtanh.pop %v1881
  %v2010 = vtanh.pop %v1882
  %v2011 = vtanh.pop %v1883
  %v2012 = vtanh.pop %v1884
  %v2013 = vtanh.pop %v1885
  %v2014 = vtanh.pop %v1886
  %v2015 = vtanh.pop %v1887
  %v2016 = vtanh.pop %v1888
  %v2017 = vtanh.pop %v1889
  %v2018 = vtanh.pop %v1890
  %v2019 = vtanh.pop %v1891
  %v2020 = vtanh.pop %v1892
  %v2021 = vtanh.pop %v1893
  %v2022 = vtanh.pop %v1894
  %v2023 = vtanh.pop %v1895
  %v2024 = vtanh.pop %v1896
  %v2025 = vtanh.pop %v1897
  %v2026 = vtanh.pop %v1898
  %v2027 = vtanh.pop %v1899
  %v2028 = vtanh.pop %v1900
  %v2029 = vtanh.pop %v1901
  %v2030 = vtanh.pop %v1902
  %v2031 = vtanh.pop %v1903
  %v2032 = vtanh.pop %v1904
  %v2033 = vtanh.pop %v1905
  %v2034 = vtanh.pop %v1906
  %v2035 = vtanh.pop %v1907
  %v2036 = vtanh.pop %v1908
  %v2037 = vtanh.pop %v1909
  %v2038 = vtanh.pop %v1910
  %v2039 = vtanh.pop %v1911
  %v2040 = vtanh.pop %v1912
  %v2041 = vtanh.pop %v1913
  %v2042 = vtanh.pop %v1914
  %v2043 = vtanh.pop %v1915
  %v2044 = vtanh.pop %v1916
  %v2045 = vtanh.pop %v1917
  %v2046 = vtanh.pop %v1918
  %v2047 = vtanh.pop %v1919
  %v2048 = vtanh.pop %v1920
  %v2049 = vtanh.pop %v1921
  %v2050 = vtanh.pop %v1922
  %v2051 = vtanh.pop %v1923
  %v2052 = vtanh.pop %v1924
  %v2053 = vtanh.pop %v1925
  %v2054 = vtanh.pop %v1926
  %v2055 = vtanh.pop %v1927
  %v2056 = vtanh.pop %v1928
  %v2057 = vtanh.pop %v1929
  %v2058 = vtanh.pop %v1930
  %v2059 = vtanh.pop %v1931
  %v2060 = vtanh.pop %v1932
  %v2061 = vtanh.pop %v1933
  %v2062 = vtanh.pop %v1934
  %v2063 = vtanh.pop %v1935
  %v2064 = vtanh.pop %v1936
  %v2065 = vtanh.pop %v1937
  %v2066 = vtanh.pop %v1938
  %v2067 = vtanh.pop %v1939
  %v2068 = vtanh.pop %v1940
  %v2069 = vtanh.pop %v1941
  %v2070 = vtanh.pop %v1942
  %v2071 = vtanh.pop %v1943
  %v2072 = vtanh.pop %v1944
  %v2073 = vtanh.pop %v1945
  %v2074 = vtanh.pop %v1946
  %v2075 = vtanh.pop %v1947
  %v2076 = vtanh.pop %v1948
  %v2077 = vtanh.pop %v1949
  %v2078 = vtanh.pop %v1950
  %v2079 = vtanh.pop %v1951
  %v2080 = vtanh.pop %v1952
  %v2081 = vtanh.pop %v1953
  %v2082 = vtanh.pop %v1954
  %v2083 = vtanh.pop %v1955
  %v2084 = vtanh.pop %v1956
  %v2085 = vtanh.pop %v1957
  %v2086 = vtanh.pop %v1958
  %v2087 = vtanh.pop %v1959
  %v2088 = vtanh.pop %v1960
  %v2089 = vtanh.pop %v1961
  %v2090 = vtanh.pop %v1962
  %v2091 = vtanh.pop %v1963
  %v2092 = vtanh.pop %v1964
  %v2093 = vmul.f32 %v1965, 0.5
  %v2094 = vmul.f32 %v1966, 0.5
  %v2095 = vmul.f32 %v1967, 0.5
  %v2096 = vmul.f32 %v1968, 0.5
  %v2097 = vmul.f32 %v1969, 0.5
  %v2098 = vmul.f32 %v1970, 0.5
  %v2099 = vmul.f32 %v1971, 0.5
  %v2100 = vmul.f32 %v1972, 0.5
  %v2101 = vmul.f32 %v1973, 0.5
  %v2102 = vmul.f32 %v1974, 0.5
  %v2103 = vmul.f32 %v1975, 0.5
  %v2104 = vmul.f32 %v1976, 0.5
  %v2105 = vmul.f32 %v1977, 0.5
  %v2106 = vmul.f32 %v1978, 0.5
  %v2107 = vmul.f32 %v1979, 0.5
  %v2108 = vmul.f32 %v1980, 0.5
  %v2109 = vmul.f32 %v1981, 0.5
  %v2110 = vmul.f32 %v1982, 0.5
  %v2111 = vmul.f32 %v1983, 0.5
  %v2112 = vmul.f32 %v1984, 0.5
  %v2113 = vmul.f32 %v1985, 0.5
  %v2114 = vmul.f32 %v1986, 0.5
  %v2115 = vmul.f32 %v1987, 0.5
  %v2116 = vmul.f32 %v1988, 0.5
  %v2117 = vmul.f32 %v1989, 0.5
  %v2118 = vmul.f32 %v1990, 0.5
  %v2119 = vmul.f32 %v1991, 0.5
  %v2120 = vmul.f32 %v1992, 0.5
  %v2121 = vmul.f32 %v1993, 0.5
  %v2122 = vmul.f32 %v1994, 0.5
  %v2123 = vmul.f32 %v1995, 0.5
  %v2124 = vmul.f32 %v1996, 0.5
  %v2125 = vmul.f32 %v1997, 0.5
  %v2126 = vmul.f32 %v1998, 0.5
  %v2127 = vmul.f32 %v1999, 0.5
  %v2128 = vmul.f32 %v2000, 0.5
  %v2129 = vmul.f32 %v2001, 0.5
  %v2130 = vmul.f32 %v2002, 0.5
  %v2131 = vmul.f32 %v2003, 0.5
  %v2132 = vmul.f32 %v2004, 0.5
  %v2133 = vmul.f32 %v2005, 0.5
  %v2134 = vmul.f32 %v2006, 0.5
  %v2135 = vmul.f32 %v2007, 0.5
  %v2136 = vmul.f32 %v2008, 0.5
  %v2137 = vmul.f32 %v2009, 0.5
  %v2138 = vmul.f32 %v2010, 0.5
  %v2139 = vmul.f32 %v2011, 0.5
  %v2140 = vmul.f32 %v2012, 0.5
  %v2141 = vmul.f32 %v2013, 0.5
  %v2142 = vmul.f32 %v2014, 0.5
  %v2143 = vmul.f32 %v2015, 0.5
  %v2144 = vmul.f32 %v2016, 0.5
  %v2145 = vmul.f32 %v2017, 0.5
  %v2146 = vmul.f32 %v2018, 0.5
  %v2147 = vmul.f32 %v2019, 0.5
  %v2148 = vmul.f32 %v2020, 0.5
  %v2149 = vmul.f32 %v2021, 0.5
  %v2150 = vmul.f32 %v2022, 0.5
  %v2151 = vmul.f32 %v2023, 0.5
  %v2152 = vmul.f32 %v2024, 0.5
  %v2153 = vmul.f32 %v2025, 0.5
  %v2154 = vmul.f32 %v2026, 0.5
  %v2155 = vmul.f32 %v2027, 0.5
  %v2156 = vmul.f32 %v2028, 0.5
  %v2157 = vmul.f32 %v2029, 0.5
  %v2158 = vmul.f32 %v2030, 0.5
  %v2159 = vmul.f32 %v2031, 0.5
  %v2160 = vmul.f32 %v2032, 0.5
  %v2161 = vmul.f32 %v2033, 0.5
  %v2162 = vmul.f32 %v2034, 0.5
  %v2163 = vmul.f32 %v2035, 0.5
  %v2164 = vmul.f32 %v2036, 0.5
  %v2165 = vmul.f32 %v2037, 0.5
  %v2166 = vmul.f32 %v2038, 0.5
  %v2167 = vmul.f32 %v2039, 0.5
  %v2168 = vmul.f32 %v2040, 0.5
  %v2169 = vmul.f32 %v2041, 0.5
  %v2170 = vmul.f32 %v2042, 0.5
  %v2171 = vmul.f32 %v2043, 0.5
  %v2172 = vmul.f32 %v2044, 0.5
  %v2173 = vmul.f32 %v2045, 0.5
  %v2174 = vmul.f32 %v2046, 0.5
  %v2175 = vmul.f32 %v2047, 0.5
  %v2176 = vmul.f32 %v2048, 0.5
  %v2177 = vmul.f32 %v2049, 0.5
  %v2178 = vmul.f32 %v2050, 0.5
  %v2179 = vmul.f32 %v2051, 0.5
  %v2180 = vmul.f32 %v2052, 0.5
  %v2181 = vmul.f32 %v2053, 0.5
  %v2182 = vmul.f32 %v2054, 0.5
  %v2183 = vmul.f32 %v2055, 0.5
  %v2184 = vmul.f32 %v2056, 0.5
  %v2185 = vmul.f32 %v2057, 0.5
  %v2186 = vmul.f32 %v2058, 0.5
  %v2187 = vmul.f32 %v2059, 0.5
  %v2188 = vmul.f32 %v2060, 0.5
  %v2189 = vmul.f32 %v2061, 0.5
  %v2190 = vmul.f32 %v2062, 0.5
  %v2191 = vmul.f32 %v2063, 0.5
  %v2192 = vmul.f32 %v2064, 0.5
  %v2193 = vmul.f32 %v2065, 0.5
  %v2194 = vmul.f32 %v2066, 0.5
  %v2195 = vmul.f32 %v2067, 0.5
  %v2196 = vmul.f32 %v2068, 0.5
  %v2197 = vmul.f32 %v2069, 0.5
  %v2198 = vmul.f32 %v2070, 0.5
  %v2199 = vmul.f32 %v2071, 0.5
  %v2200 = vmul.f32 %v2072, 0.5
  %v2201 = vmul.f32 %v2073, 0.5
  %v2202 = vmul.f32 %v2074, 0.5
  %v2203 = vmul.f32 %v2075, 0.5
  %v2204 = vmul.f32 %v2076, 0.5
  %v2205 = vmul.f32 %v2077, 0.5
  %v2206 = vmul.f32 %v2078, 0.5
  %v2207 = vmul.f32 %v2079, 0.5
  %v2208 = vmul.f32 %v2080, 0.5
  %v2209 = vmul.f32 %v2081, 0.5
  %v2210 = vmul.f32 %v2082, 0.5
  %v2211 = vmul.f32 %v2083, 0.5
  %v2212 = vmul.f32 %v2084, 0.5
  %v2213 = vmul.f32 %v2085, 0.5
  %v2214 = vmul.f32 %v2086, 0.5
  %v2215 = vmul.f32 %v2087, 0.5
  %v2216 = vmul.f32 %v2088, 0.5
  %v2217 = vmul.f32 %v2089, 0.5
  %v2218 = vmul.f32 %v2090, 0.5
  %v2219 = vmul.f32 %v2091, 0.5
  %v2220 = vmul.f32 %v2092, 0.5
  %v2221 = vadd.f32 %v2093, 0.5
  %v2222 = vadd.f32 %v2094, 0.5
  %v2223 = vadd.f32 %v2095, 0.5
  %v2224 = vadd.f32 %v2096, 0.5
  %v2225 = vadd.f32 %v2097, 0.5
  %v2226 = vadd.f32 %v2098, 0.5
  %v2227 = vadd.f32 %v2099, 0.5
  %v2228 = vadd.f32 %v2100, 0.5
  %v2229 = vadd.f32 %v2101, 0.5
  %v2230 = vadd.f32 %v2102, 0.5
  %v2231 = vadd.f32 %v2103, 0.5
  %v2232 = vadd.f32 %v2104, 0.5
  %v2233 = vadd.f32 %v2105, 0.5
  %v2234 = vadd.f32 %v2106, 0.5
  %v2235 = vadd.f32 %v2107, 0.5
  %v2236 = vadd.f32 %v2108, 0.5
  %v2237 = vadd.f32 %v2109, 0.5
  %v2238 = vadd.f32 %v2110, 0.5
  %v2239 = vadd.f32 %v2111, 0.5
  %v2240 = vadd.f32 %v2112, 0.5
  %v2241 = vadd.f32 %v2113, 0.5
  %v2242 = vadd.f32 %v2114, 0.5
  %v2243 = vadd.f32 %v2115, 0.5
  %v2244 = vadd.f32 %v2116, 0.5
  %v2245 = vadd.f32 %v2117, 0.5
  %v2246 = vadd.f32 %v2118, 0.5
  %v2247 = vadd.f32 %v2119, 0.5
  %v2248 = vadd.f32 %v2120, 0.5
  %v2249 = vadd.f32 %v2121, 0.5
  %v2250 = vadd.f32 %v2122, 0.5
  %v2251 = vadd.f32 %v2123, 0.5
  %v2252 = vadd.f32 %v2124, 0.5
  %v2253 = vadd.f32 %v2125, 0.5
  %v2254 = vadd.f32 %v2126, 0.5
  %v2255 = vadd.f32 %v2127, 0.5
  %v2256 = vadd.f32 %v2128, 0.5
  %v2257 = vadd.f32 %v2129, 0.5
  %v2258 = vadd.f32 %v2130, 0.5
  %v2259 = vadd.f32 %v2131, 0.5
  %v2260 = vadd.f32 %v2132, 0.5
  %v2261 = vadd.f32 %v2133, 0.5
  %v2262 = vadd.f32 %v2134, 0.5
  %v2263 = vadd.f32 %v2135, 0.5
  %v2264 = vadd.f32 %v2136, 0.5
  %v2265 = vadd.f32 %v2137, 0.5
  %v2266 = vadd.f32 %v2138, 0.5
  %v2267 = vadd.f32 %v2139, 0.5
  %v2268 = vadd.f32 %v2140, 0.5
  %v2269 = vadd.f32 %v2141, 0.5
  %v2270 = vadd.f32 %v2142, 0.5
  %v2271 = vadd.f32 %v2143, 0.5
  %v2272 = vadd.f32 %v2144, 0.5
  %v2273 = vadd.f32 %v2145, 0.5
  %v2274 = vadd.f32 %v2146, 0.5
  %v2275 = vadd.f32 %v2147, 0.5
  %v2276 = vadd.f32 %v2148, 0.5
  %v2277 = vadd.f32 %v2149, 0.5
  %v2278 = vadd.f32 %v2150, 0.5
  %v2279 = vadd.f32 %v2151, 0.5
  %v2280 = vadd.f32 %v2152, 0.5
  %v2281 = vadd.f32 %v2153, 0.5
  %v2282 = vadd.f32 %v2154, 0.5
  %v2283 = vadd.f32 %v2155, 0.5
  %v2284 = vadd.f32 %v2156, 0.5
  %v2285 = vadd.f32 %v2157, 0.5
  %v2286 = vadd.f32 %v2158, 0.5
  %v2287 = vadd.f32 %v2159, 0.5
  %v2288 = vadd.f32 %v2160, 0.5
  %v2289 = vadd.f32 %v2161, 0.5
  %v2290 = vadd.f32 %v2162, 0.5
  %v2291 = vadd.f32 %v2163, 0.5
  %v2292 = vadd.f32 %v2164, 0.5
  %v2293 = vadd.f32 %v2165, 0.5
  %v2294 = vadd.f32 %v2166, 0.5
  %v2295 = vadd.f32 %v2167, 0.5
  %v2296 = vadd.f32 %v2168, 0.5
  %v2297 = vadd.f32 %v2169, 0.5
  %v2298 = vadd.f32 %v2170, 0.5
  %v2299 = vadd.f32 %v2171, 0.5
  %v2300 = vadd.f32 %v2172, 0.5
  %v2301 = vadd.f32 %v2173, 0.5
  %v2302 = vadd.f32 %v2174, 0.5
  %v2303 = vadd.f32 %v2175, 0.5
  %v2304 = vadd.f32 %v2176, 0.5
  %v2305 = vadd.f32 %v2177, 0.5
  %v2306 = vadd.f32 %v2178, 0.5
  %v2307 = vadd.f32 %v2179, 0.5
  %v2308 = vadd.f32 %v2180, 0.5
  %v2309 = vadd.f32 %v2181, 0.5
  %v2310 = vadd.f32 %v2182, 0.5
  %v2311 = vadd.f32 %v2183, 0.5
  %v2312 = vadd.f32 %v2184, 0.5
  %v2313 = vadd.f32 %v2185, 0.5
  %v2314 = vadd.f32 %v2186, 0.5
  %v2315 = vadd.f32 %v2187, 0.5
  %v2316 = vadd.f32 %v2188, 0.5
  %v2317 = vadd.f32 %v2189, 0.5
  %v2318 = vadd.f32 %v2190, 0.5
  %v2319 = vadd.f32 %v2191, 0.5
  %v2320 = vadd.f32 %v2192, 0.5
  %v2321 = vadd.f32 %v2193, 0.5
  %v2322 = vadd.f32 %v2194, 0.5
  %v2323 = vadd.f32 %v2195, 0.5
  %v2324 = vadd.f32 %v2196, 0.5
  %v2325 = vadd.f32 %v2197, 0.5
  %v2326 = vadd.f32 %v2198, 0.5
  %v2327 = vadd.f32 %v2199, 0.5
  %v2328 = vadd.f32 %v2200, 0.5
  %v2329 = vadd.f32 %v2201, 0.5
  %v2330 = vadd.f32 %v2202, 0.5
  %v2331 = vadd.f32 %v2203, 0.5
  %v2332 = vadd.f32 %v2204, 0.5
  %v2333 = vadd.f32 %v2205, 0.5
  %v2334 = vadd.f32 %v2206, 0.5
  %v2335 = vadd.f32 %v2207, 0.5
  %v2336 = vadd.f32 %v2208, 0.5
  %v2337 = vadd.f32 %v2209, 0.5
  %v2338 = vadd.f32 %v2210, 0.5
  %v2339 = vadd.f32 %v2211, 0.5
  %v2340 = vadd.f32 %v2212, 0.5
  %v2341 = vadd.f32 %v2213, 0.5
  %v2342 = vadd.f32 %v2214, 0.5
  %v2343 = vadd.f32 %v2215, 0.5
  %v2344 = vadd.f32 %v2216, 0.5
  %v2345 = vadd.f32 %v2217, 0.5
  %v2346 = vadd.f32 %v2218, 0.5
  %v2347 = vadd.f32 %v2219, 0.5
  %v2348 = vadd.f32 %v2220, 0.5
  %v2349 = vmul.f32 %v1709, %v2221
  %v2350 = vmul.f32 %v1710, %v2222
  %v2351 = vmul.f32 %v1711, %v2223
  %v2352 = vmul.f32 %v1712, %v2224
  %v2353 = vmul.f32 %v1713, %v2225
  %v2354 = vmul.f32 %v1714, %v2226
  %v2355 = vmul.f32 %v1715, %v2227
  %v2356 = vmul.f32 %v1716, %v2228
  %v2357 = vmul.f32 %v1717, %v2229
  %v2358 = vmul.f32 %v1718, %v2230
  %v2359 = vmul.f32 %v1719, %v2231
  %v2360 = vmul.f32 %v1720, %v2232
  %v2361 = vmul.f32 %v1721, %v2233
  %v2362 = vmul.f32 %v1722, %v2234
  %v2363 = vmul.f32 %v1723, %v2235
  %v2364 = vmul.f32 %v1724, %v2236
  %v2365 = vmul.f32 %v1725, %v2237
  %v2366 = vmul.f32 %v1726, %v2238
  %v2367 = vmul.f32 %v1727, %v2239
  %v2368 = vmul.f32 %v1728, %v2240
  %v2369 = vmul.f32 %v1729, %v2241
  %v2370 = vmul.f32 %v1730, %v2242
  %v2371 = vmul.f32 %v1731, %v2243
  %v2372 = vmul.f32 %v1732, %v2244
  %v2373 = vmul.f32 %v1733, %v2245
  %v2374 = vmul.f32 %v1734, %v2246
  %v2375 = vmul.f32 %v1735, %v2247
  %v2376 = vmul.f32 %v1736, %v2248
  %v2377 = vmul.f32 %v1737, %v2249
  %v2378 = vmul.f32 %v1738, %v2250
  %v2379 = vmul.f32 %v1739, %v2251
  %v2380 = vmul.f32 %v1740, %v2252
  %v2381 = vmul.f32 %v1741, %v2253
  %v2382 = vmul.f32 %v1742, %v2254
  %v2383 = vmul.f32 %v1743, %v2255
  %v2384 = vmul.f32 %v1744, %v2256
  %v2385 = vmul.f32 %v1745, %v2257
  %v2386 = vmul.f32 %v1746, %v2258
  %v2387 = vmul.f32 %v1747, %v2259
  %v2388 = vmul.f32 %v1748, %v2260
  %v2389 = vmul.f32 %v1749, %v2261
  %v2390 = vmul.f32 %v1750, %v2262
  %v2391 = vmul.f32 %v1751, %v2263
  %v2392 = vmul.f32 %v1752, %v2264
  %v2393 = vmul.f32 %v1753, %v2265
  %v2394 = vmul.f32 %v1754, %v2266
  %v2395 = vmul.f32 %v1755, %v2267
  %v2396 = vmul.f32 %v1756, %v2268
  %v2397 = vmul.f32 %v1757, %v2269
  %v2398 = vmul.f32 %v1758, %v2270
  %v2399 = vmul.f32 %v1759, %v2271
  %v2400 = vmul.f32 %v1760, %v2272
  %v2401 = vmul.f32 %v1761, %v2273
  %v2402 = vmul.f32 %v1762, %v2274
  %v2403 = vmul.f32 %v1763, %v2275
  %v2404 = vmul.f32 %v1764, %v2276
  %v2405 = vmul.f32 %v1765, %v2277
  %v2406 = vmul.f32 %v1766, %v2278
  %v2407 = vmul.f32 %v1767, %v2279
  %v2408 = vmul.f32 %v1768, %v2280
  %v2409 = vmul.f32 %v1769, %v2281
  %v2410 = vmul.f32 %v1770, %v2282
  %v2411 = vmul.f32 %v1771, %v2283
  %v2412 = vmul.f32 %v1772, %v2284
  %v2413 = vmul.f32 %v1773, %v2285
  %v2414 = vmul.f32 %v1774, %v2286
  %v2415 = vmul.f32 %v1775, %v2287
  %v2416 = vmul.f32 %v1776, %v2288
  %v2417 = vmul.f32 %v1777, %v2289
  %v2418 = vmul.f32 %v1778, %v2290
  %v2419 = vmul.f32 %v1779, %v2291
  %v2420 = vmul.f32 %v1780, %v2292
  %v2421 = vmul.f32 %v1781, %v2293
  %v2422 = vmul.f32 %v1782, %v2294
  %v2423 = vmul.f32 %v1783, %v2295
  %v2424 = vmul.f32 %v1784, %v2296
  %v2425 = vmul.f32 %v1785, %v2297
  %v2426 = vmul.f32 %v1786, %v2298
  %v2427 = vmul.f32 %v1787, %v2299
  %v2428 = vmul.f32 %v1788, %v2300
  %v2429 = vmul.f32 %v1789, %v2301
  %v2430 = vmul.f32 %v1790, %v2302
  %v2431 = vmul.f32 %v1791, %v2303
  %v2432 = vmul.f32 %v1792, %v2304
  %v2433 = vmul.f32 %v1793, %v2305
  %v2434 = vmul.f32 %v1794, %v2306
  %v2435 = vmul.f32 %v1795, %v2307
  %v2436 = vmul.f32 %v1796, %v2308
  %v2437 = vmul.f32 %v1797, %v2309
  %v2438 = vmul.f32 %v1798, %v2310
  %v2439 = vmul.f32 %v1799, %v2311
  %v2440 = vmul.f32 %v1800, %v2312
  %v2441 = vmul.f32 %v1801, %v2313
  %v2442 = vmul.f32 %v1802, %v2314
  %v2443 = vmul.f32 %v1803, %v2315
  %v2444 = vmul.f32 %v1804, %v2316
  %v2445 = vmul.f32 %v1805, %v2317
  %v2446 = vmul.f32 %v1806, %v2318
  %v2447 = vmul.f32 %v1807, %v2319
  %v2448 = vmul.f32 %v1808, %v2320
  %v2449 = vmul.f32 %v1809, %v2321
  %v2450 = vmul.f32 %v1810, %v2322
  %v2451 = vmul.f32 %v1811, %v2323
  %v2452 = vmul.f32 %v1812, %v2324
  %v2453 = vmul.f32 %v1813, %v2325
  %v2454 = vmul.f32 %v1814, %v2326
  %v2455 = vmul.f32 %v1815, %v2327
  %v2456 = vmul.f32 %v1816, %v2328
  %v2457 = vmul.f32 %v1817, %v2329
  %v2458 = vmul.f32 %v1818, %v2330
  %v2459 = vmul.f32 %v1819, %v2331
  %v2460 = vmul.f32 %v1820, %v2332
  %v2461 = vmul.f32 %v1821, %v2333
  %v2462 = vmul.f32 %v1822, %v2334
  %v2463 = vmul.f32 %v1823, %v2335
  %v2464 = vmul.f32 %v1824, %v2336
  %v2465 = vmul.f32 %v1825, %v2337
  %v2466 = vmul.f32 %v1826, %v2338
  %v2467 = vmul.f32 %v1827, %v2339
  %v2468 = vmul.f32 %v1828, %v2340
  %v2469 = vmul.f32 %v1829, %v2341
  %v2470 = vmul.f32 %v1830, %v2342
  %v2471 = vmul.f32 %v1831, %v2343
  %v2472 = vmul.f32 %v1832, %v2344
  %v2473 = vmul.f32 %v1833, %v2345
  %v2474 = vmul.f32 %v1834, %v2346
  %v2475 = vmul.f32 %v1835, %v2347
  %v2476 = vmul.f32 %v1836, %v2348
  %v2477 = vld [vmem:[%s3] sm:$0xf]
  %v2478 = vld [vmem:[%s3 + $0x4] sm:$0xf]
  %v2479 = vld [vmem:[%s3 + $0x8] sm:$0xf]
  %v2480 = vld [vmem:[%s3 + $0xc] sm:$0xf]
  %v2481 = vld [vmem:[%s3 + $0x10] sm:$0xf]
  %v2482 = vld [vmem:[%s3 + $0x14] sm:$0xf]
  %v2483 = vld [vmem:[%s3 + $0x18] sm:$0xf]
  %v2484 = vld [vmem:[%s3 + $0x1c] sm:$0xf]
  %v2485 = vpack.c.bf16 %v2365, %v2349
  %v2486 = vpack.c.bf16 %v2366, %v2350
  %v2487 = vpack.c.bf16 %v2367, %v2351
  %v2488 = vpack.c.bf16 %v2368, %v2352
  %v2489 = vpack.c.bf16 %v2369, %v2353
  %v2490 = vpack.c.bf16 %v2370, %v2354
  %v2491 = vpack.c.bf16 %v2371, %v2355
  %v2492 = vpack.c.bf16 %v2372, %v2356
  %v2493 = vpack.c.bf16 %v2373, %v2357
  %v2494 = vpack.c.bf16 %v2374, %v2358
  %v2495 = vpack.c.bf16 %v2375, %v2359
  %v2496 = vpack.c.bf16 %v2376, %v2360
  %v2497 = vpack.c.bf16 %v2377, %v2361
  %v2498 = vpack.c.bf16 %v2378, %v2362
  %v2499 = vpack.c.bf16 %v2379, %v2363
  %v2500 = vpack.c.bf16 %v2380, %v2364
  %v2501 = vpack.c.bf16 %v2397, %v2381
  %v2502 = vpack.c.bf16 %v2398, %v2382
  %v2503 = vpack.c.bf16 %v2399, %v2383
  %v2504 = vpack.c.bf16 %v2400, %v2384
  %v2505 = vpack.c.bf16 %v2401, %v2385
  %v2506 = vpack.c.bf16 %v2402, %v2386
  %v2507 = vpack.c.bf16 %v2403, %v2387
  %v2508 = vpack.c.bf16 %v2404, %v2388
  %v2509 = vpack.c.bf16 %v2405, %v2389
  %v2510 = vpack.c.bf16 %v2406, %v2390
  %v2511 = vpack.c.bf16 %v2407, %v2391
  %v2512 = vpack.c.bf16 %v2408, %v2392
  %v2513 = vpack.c.bf16 %v2409, %v2393
  %v2514 = vpack.c.bf16 %v2410, %v2394
  %v2515 = vpack.c.bf16 %v2411, %v2395
  %v2516 = vpack.c.bf16 %v2412, %v2396
  %v2517 = vpack.c.bf16 %v2429, %v2413
  %v2518 = vpack.c.bf16 %v2430, %v2414
  %v2519 = vpack.c.bf16 %v2431, %v2415
  %v2520 = vpack.c.bf16 %v2432, %v2416
  %v2521 = vpack.c.bf16 %v2433, %v2417
  %v2522 = vpack.c.bf16 %v2434, %v2418
  %v2523 = vpack.c.bf16 %v2435, %v2419
  %v2524 = vpack.c.bf16 %v2436, %v2420
  %v2525 = vpack.c.bf16 %v2437, %v2421
  %v2526 = vpack.c.bf16 %v2438, %v2422
  %v2527 = vpack.c.bf16 %v2439, %v2423
  %v2528 = vpack.c.bf16 %v2440, %v2424
  %v2529 = vpack.c.bf16 %v2441, %v2425
  %v2530 = vpack.c.bf16 %v2442, %v2426
  %v2531 = vpack.c.bf16 %v2443, %v2427
  %v2532 = vpack.c.bf16 %v2444, %v2428
  %v2533 = vpack.c.bf16 %v2461, %v2445
  %v2534 = vpack.c.bf16 %v2462, %v2446
  %v2535 = vpack.c.bf16 %v2463, %v2447
  %v2536 = vpack.c.bf16 %v2464, %v2448
  %v2537 = vpack.c.bf16 %v2465, %v2449
  %v2538 = vpack.c.bf16 %v2466, %v2450
  %v2539 = vpack.c.bf16 %v2467, %v2451
  %v2540 = vpack.c.bf16 %v2468, %v2452
  %v2541 = vpack.c.bf16 %v2469, %v2453
  %v2542 = vpack.c.bf16 %v2470, %v2454
  %v2543 = vpack.c.bf16 %v2471, %v2455
  %v2544 = vpack.c.bf16 %v2472, %v2456
  %v2545 = vpack.c.bf16 %v2473, %v2457
  %v2546 = vpack.c.bf16 %v2474, %v2458
  %v2547 = vpack.c.bf16 %v2475, %v2459
  %v2548 = vpack.c.bf16 %v2476, %v2460
  %v2549 = vld [vmem:[%s4] sm:$0xff]
  %v2550 = vld [vmem:[%s4 + $0x8] sm:$0xff]
  %v2551 = vld [vmem:[%s4 + $0x10] sm:$0xff]
  %v2552 = vld [vmem:[%s4 + $0x18] sm:$0xff]
  %v2553 = vld [vmem:[%s4 + $0x20] sm:$0xff]
  %v2554 = vld [vmem:[%s4 + $0x28] sm:$0xff]
  %v2555 = vld [vmem:[%s4 + $0x30] sm:$0xff]
  %v2556 = vld [vmem:[%s4 + $0x38] sm:$0xff]
  %2558 = vset.pattern.permute.xlu0 0
  %2559 = vperm.xlu0 %2558, %v2549
  %v2560 = vpop.permute.xlu0 %2559
  %2563 = vset.pattern.permute.xlu0 0
  %2564 = vperm.xlu0 %2563, %v2550
  %v2565 = vpop.permute.xlu0 %2564
  %2568 = vset.pattern.permute.xlu0 0
  %2569 = vperm.xlu0 %2568, %v2551
  %v2570 = vpop.permute.xlu0 %2569
  %2573 = vset.pattern.permute.xlu0 0
  %2574 = vperm.xlu0 %2573, %v2552
  %v2575 = vpop.permute.xlu0 %2574
  %2578 = vset.pattern.permute.xlu0 0
  %2579 = vperm.xlu0 %2578, %v2553
  %v2580 = vpop.permute.xlu0 %2579
  %2583 = vset.pattern.permute.xlu0 0
  %2584 = vperm.xlu0 %2583, %v2554
  %v2585 = vpop.permute.xlu0 %2584
  %2588 = vset.pattern.permute.xlu0 0
  %2589 = vperm.xlu0 %2588, %v2555
  %v2590 = vpop.permute.xlu0 %2589
  %2593 = vset.pattern.permute.xlu0 0
  %2594 = vperm.xlu0 %2593, %v2556
  %v2595 = vpop.permute.xlu0 %2594
  %v2605 = vunpack.c.l.b16 %v2477
  %v2606 = vunpack.c.l.b16 %v2478
  %v2607 = vunpack.c.l.b16 %v2479
  %v2608 = vunpack.c.l.b16 %v2480
  %v2609 = vunpack.c.l.b16 %v2481
  %v2610 = vunpack.c.l.b16 %v2482
  %v2611 = vunpack.c.l.b16 %v2483
  %v2612 = vunpack.c.l.b16 %v2484
  %v2613 = vpack.c.b16 %v2606, %v2605
  %v2614 = vpack.c.b16 %v2608, %v2607
  %v2615 = vpack.c.b16 %v2610, %v2609
  %v2616 = vpack.c.b16 %v2612, %v2611
  %vm2617 = vcmask 523264
  %v2619 = vsel %vm2617, %v2613, 0
  %v2622 = vsel %vm2617, %v2614, 0
  %v2625 = vsel %vm2617, %v2615, 0
  %v2628 = vsel %vm2617, %v2616, 0
  %2630 = vmatprep.subr.bf16.mxu0 %v2486
  %2631 = vmatpush1.bf16.msra.mxu0 %v2485
  %2632 = vmatprep.subr.bf16.mxu0 %v2502
  %2633 = vmatpush1.bf16.msra.mxu0 %v2501
  %2634 = vmatprep.subr.bf16.mxu0 %v2518
  %2635 = vmatpush1.bf16.msra.mxu0 %v2517
  %2636 = vmatprep.subr.bf16.mxu0 %v2534
  %2637 = vmatpush1.bf16.msra.mxu0 %v2533
  %2638 = vmatprep.subr.bf16.mxu0 0
  %2639 = vmatpush1.bf16.msra.mxu0 0
  %2640 = vmatprep.subr.bf16.mxu0 0
  %2641 = vmatpush1.bf16.msra.mxu0 0
  %2642 = vmatprep.subr.bf16.mxu0 0
  %2643 = vmatpush1.bf16.msra.mxu0 0
  %2644 = vmatprep.subr.bf16.mxu0 0
  %2645 = vmatpush1.bf16.msra.mxu0 0
  %2646 = vmatprep.subr.bf16.mxu0 0
  %2647 = vmatpush1.bf16.msra.mxu0 0
  %2648 = vmatprep.subr.bf16.mxu0 0
  %2649 = vmatpush1.bf16.msra.mxu0 0
  %2650 = vmatprep.subr.bf16.mxu0 0
  %2651 = vmatpush1.bf16.msra.mxu0 0
  %2652 = vmatprep.subr.bf16.mxu0 0
  %2653 = vmatpush1.bf16.msra.mxu0 0
  %2654 = vmatprep.subr.bf16.mxu0 0
  %2655 = vmatpush1.bf16.msra.mxu0 0
  %2656 = vmatprep.subr.bf16.mxu0 0
  %2657 = vmatpush1.bf16.msra.mxu0 0
  %2658 = vmatprep.subr.bf16.mxu0 0
  %2659 = vmatpush1.bf16.msra.mxu0 0
  %2660 = vmatprep.subr.bf16.mxu0 0
  %2661 = vmatpush1.bf16.msra.mxu0 0
  %2662 = vmatprep.mubr.bf16.mxu0 0
  %2663 = vmatmul.mubr.bf16.gmra.mrb[0].mxu0 %v2619
  %v2664 = vpop.f32.mrb[0].mxu0
  %v2665 = vadd.f32 %v2560, %v2664
  %v2666 = vpop.f32.mrb[0].mxu0
  %v2667 = vadd.f32 %v2560, %v2666
  %v2668 = vpop.f32.mrb[0].mxu0
  %v2669 = vadd.f32 %v2565, %v2668
  %v2670 = vpop.f32.mrb[0].mxu0
  %v2671 = vadd.f32 %v2565, %v2670
  %2672 = vmatprep.mubr.bf16.mxu0 0
  %2673 = vmatmul.mubr.bf16.gmra.mrb[0].mxu0 %v2622
  %v2674 = vpop.f32.mrb[0].mxu0
  %v2675 = vadd.f32 %v2570, %v2674
  %v2676 = vpop.f32.mrb[0].mxu0
  %v2677 = vadd.f32 %v2570, %v2676
  %v2678 = vpop.f32.mrb[0].mxu0
  %v2679 = vadd.f32 %v2575, %v2678
  %v2680 = vpop.f32.mrb[0].mxu0
  %v2681 = vadd.f32 %v2575, %v2680
  %2682 = vmatprep.mubr.bf16.mxu0 0
  %2683 = vmatmul.mubr.bf16.gmra.mrb[0].mxu0 %v2625
  %v2684 = vpop.f32.mrb[0].mxu0
  %v2685 = vadd.f32 %v2580, %v2684
  %v2686 = vpop.f32.mrb[0].mxu0
  %v2687 = vadd.f32 %v2580, %v2686
  %v2688 = vpop.f32.mrb[0].mxu0
  %v2689 = vadd.f32 %v2585, %v2688
  %v2690 = vpop.f32.mrb[0].mxu0
  %v2691 = vadd.f32 %v2585, %v2690
  %2692 = vmatprep.mubr.bf16.mxu0 0
  %2693 = vmatmul.mubr.bf16.gmra.mrb[0].mxu0 %v2628
  %v2694 = vpop.f32.mrb[0].mxu0
  %v2695 = vadd.f32 %v2590, %v2694
  %v2696 = vpop.f32.mrb[0].mxu0
  %v2697 = vadd.f32 %v2590, %v2696
  %v2698 = vpop.f32.mrb[0].mxu0
  %v2699 = vadd.f32 %v2595, %v2698
  %v2700 = vpop.f32.mrb[0].mxu0
  %v2701 = vadd.f32 %v2595, %v2700
  %2702 = vdwg.mxu0
  %2703 = vmatprep.subr.bf16.mxu0 %v2488
  %2704 = vmatpush1.bf16.msra.mxu0 %v2487
  %2705 = vmatprep.subr.bf16.mxu0 %v2504
  %2706 = vmatpush1.bf16.msra.mxu0 %v2503
  %2707 = vmatprep.subr.bf16.mxu0 %v2520
  %2708 = vmatpush1.bf16.msra.mxu0 %v2519
  %2709 = vmatprep.subr.bf16.mxu0 %v2536
  %2710 = vmatpush1.bf16.msra.mxu0 %v2535
  %2711 = vmatprep.subr.bf16.mxu0 0
  %2712 = vmatpush1.bf16.msra.mxu0 0
  %2713 = vmatprep.subr.bf16.mxu0 0
  %2714 = vmatpush1.bf16.msra.mxu0 0
  %2715 = vmatprep.subr.bf16.mxu0 0
  %2716 = vmatpush1.bf16.msra.mxu0 0
  %2717 = vmatprep.subr.bf16.mxu0 0
  %2718 = vmatpush1.bf16.msra.mxu0 0
  %2719 = vmatprep.subr.bf16.mxu0 0
  %2720 = vmatpush1.bf16.msra.mxu0 0
  %2721 = vmatprep.subr.bf16.mxu0 0
  %2722 = vmatpush1.bf16.msra.mxu0 0
  %2723 = vmatprep.subr.bf16.mxu0 0
  %2724 = vmatpush1.bf16.msra.mxu0 0
  %2725 = vmatprep.subr.bf16.mxu0 0
  %2726 = vmatpush1.bf16.msra.mxu0 0
  %2727 = vmatprep.subr.bf16.mxu0 0
  %2728 = vmatpush1.bf16.msra.mxu0 0
  %2729 = vmatprep.subr.bf16.mxu0 0
  %2730 = vmatpush1.bf16.msra.mxu0 0
  %2731 = vmatprep.subr.bf16.mxu0 0
  %2732 = vmatpush1.bf16.msra.mxu0 0
  %2733 = vmatprep.subr.bf16.mxu0 0
  %2734 = vmatpush1.bf16.msra.mxu0 0
  %2735 = vmatprep.mubr.bf16.mxu0 0
  %2736 = vmatmul.mubr.bf16.gmra.mrb[0].mxu0 %v2619
  %v2737 = vpop.f32.mrb[0].mxu0
  %v2738 = vadd.f32 %v2560, %v2737
  %v2739 = vpop.f32.mrb[0].mxu0
  %v2740 = vadd.f32 %v2560, %v2739
  %v2741 = vpop.f32.mrb[0].mxu0
  %v2742 = vadd.f32 %v2565, %v2741
  %v2743 = vpop.f32.mrb[0].mxu0
  %v2744 = vadd.f32 %v2565, %v2743
  %2745 = vmatprep.mubr.bf16.mxu0 0
  %2746 = vmatmul.mubr.bf16.gmra.mrb[0].mxu0 %v2622
  %v2747 = vpop.f32.mrb[0].mxu0
  %v2748 = vadd.f32 %v2570, %v2747
  %v2749 = vpop.f32.mrb[0].mxu0
  %v2750 = vadd.f32 %v2570, %v2749
  %v2751 = vpop.f32.mrb[0].mxu0
  %v2752 = vadd.f32 %v2575, %v2751
  %v2753 = vpop.f32.mrb[0].mxu0
  %v2754 = vadd.f32 %v2575, %v2753
  %2755 = vmatprep.mubr.bf16.mxu0 0
  %2756 = vmatmul.mubr.bf16.gmra.mrb[0].mxu0 %v2625
  %v2757 = vpop.f32.mrb[0].mxu0
  %v2758 = vadd.f32 %v2580, %v2757
  %v2759 = vpop.f32.mrb[0].mxu0
  %v2760 = vadd.f32 %v2580, %v2759
  %v2761 = vpop.f32.mrb[0].mxu0
  %v2762 = vadd.f32 %v2585, %v2761
  %v2763 = vpop.f32.mrb[0].mxu0
  %v2764 = vadd.f32 %v2585, %v2763
  %2765 = vmatprep.mubr.bf16.mxu0 0
  %2766 = vmatmul.mubr.bf16.gmra.mrb[0].mxu0 %v2628
  %v2767 = vpop.f32.mrb[0].mxu0
  %v2768 = vadd.f32 %v2590, %v2767
  %v2769 = vpop.f32.mrb[0].mxu0
  %v2770 = vadd.f32 %v2590, %v2769
  %v2771 = vpop.f32.mrb[0].mxu0
  %v2772 = vadd.f32 %v2595, %v2771
  %v2773 = vpop.f32.mrb[0].mxu0
  %v2774 = vadd.f32 %v2595, %v2773
  %2775 = vdwg.mxu0
  %2776 = vmatprep.subr.bf16.mxu0 %v2490
  %2777 = vmatpush1.bf16.msra.mxu0 %v2489
  %2778 = vmatprep.subr.bf16.mxu0 %v2506
  %2779 = vmatpush1.bf16.msra.mxu0 %v2505
  %2780 = vmatprep.subr.bf16.mxu0 %v2522
  %2781 = vmatpush1.bf16.msra.mxu0 %v2521
  %2782 = vmatprep.subr.bf16.mxu0 %v2538
  %2783 = vmatpush1.bf16.msra.mxu0 %v2537
  %2784 = vmatprep.subr.bf16.mxu0 0
  %2785 = vmatpush1.bf16.msra.mxu0 0
  %2786 = vmatprep.subr.bf16.mxu0 0
  %2787 = vmatpush1.bf16.msra.mxu0 0
  %2788 = vmatprep.subr.bf16.mxu0 0
  %2789 = vmatpush1.bf16.msra.mxu0 0
  %2790 = vmatprep.subr.bf16.mxu0 0
  %2791 = vmatpush1.bf16.msra.mxu0 0
  %2792 = vmatprep.subr.bf16.mxu0 0
  %2793 = vmatpush1.bf16.msra.mxu0 0
  %2794 = vmatprep.subr.bf16.mxu0 0
  %2795 = vmatpush1.bf16.msra.mxu0 0
  %2796 = vmatprep.subr.bf16.mxu0 0
  %2797 = vmatpush1.bf16.msra.mxu0 0
  %2798 = vmatprep.subr.bf16.mxu0 0
  %2799 = vmatpush1.bf16.msra.mxu0 0
  %2800 = vmatprep.subr.bf16.mxu0 0
  %2801 = vmatpush1.bf16.msra.mxu0 0
  %2802 = vmatprep.subr.bf16.mxu0 0
  %2803 = vmatpush1.bf16.msra.mxu0 0
  %2804 = vmatprep.subr.bf16.mxu0 0
  %2805 = vmatpush1.bf16.msra.mxu0 0
  %2806 = vmatprep.subr.bf16.mxu0 0
  %2807 = vmatpush1.bf16.msra.mxu0 0
  %2808 = vmatprep.mubr.bf16.mxu0 0
  %2809 = vmatmul.mubr.bf16.gmra.mrb[0].mxu0 %v2619
  %v2810 = vpop.f32.mrb[0].mxu0
  %v2811 = vadd.f32 %v2560, %v2810
  %v2812 = vpop.f32.mrb[0].mxu0
  %v2813 = vadd.f32 %v2560, %v2812
  %v2814 = vpop.f32.mrb[0].mxu0
  %v2815 = vadd.f32 %v2565, %v2814
  %v2816 = vpop.f32.mrb[0].mxu0
  %v2817 = vadd.f32 %v2565, %v2816
  %2818 = vmatprep.mubr.bf16.mxu0 0
  %2819 = vmatmul.mubr.bf16.gmra.mrb[0].mxu0 %v2622
  %v2820 = vpop.f32.mrb[0].mxu0
  %v2821 = vadd.f32 %v2570, %v2820
  %v2822 = vpop.f32.mrb[0].mxu0
  %v2823 = vadd.f32 %v2570, %v2822
  %v2824 = vpop.f32.mrb[0].mxu0
  %v2825 = vadd.f32 %v2575, %v2824
  %v2826 = vpop.f32.mrb[0].mxu0
  %v2827 = vadd.f32 %v2575, %v2826
  %2828 = vmatprep.mubr.bf16.mxu0 0
  %2829 = vmatmul.mubr.bf16.gmra.mrb[0].mxu0 %v2625
  %v2830 = vpop.f32.mrb[0].mxu0
  %v2831 = vadd.f32 %v2580, %v2830
  %v2832 = vpop.f32.mrb[0].mxu0
  %v2833 = vadd.f32 %v2580, %v2832
  %v2834 = vpop.f32.mrb[0].mxu0
  %v2835 = vadd.f32 %v2585, %v2834
  %v2836 = vpop.f32.mrb[0].mxu0
  %v2837 = vadd.f32 %v2585, %v2836
  %2838 = vmatprep.mubr.bf16.mxu0 0
  %2839 = vmatmul.mubr.bf16.gmra.mrb[0].mxu0 %v2628
  %v2840 = vpop.f32.mrb[0].mxu0
  %v2841 = vadd.f32 %v2590, %v2840
  %v2842 = vpop.f32.mrb[0].mxu0
  %v2843 = vadd.f32 %v2590, %v2842
  %v2844 = vpop.f32.mrb[0].mxu0
  %v2845 = vadd.f32 %v2595, %v2844
  %v2846 = vpop.f32.mrb[0].mxu0
  %v2847 = vadd.f32 %v2595, %v2846
  %2848 = vdwg.mxu0
  %2849 = vmatprep.subr.bf16.mxu0 %v2492
  %2850 = vmatpush1.bf16.msra.mxu0 %v2491
  %2851 = vmatprep.subr.bf16.mxu0 %v2508
  %2852 = vmatpush1.bf16.msra.mxu0 %v2507
  %2853 = vmatprep.subr.bf16.mxu0 %v2524
  %2854 = vmatpush1.bf16.msra.mxu0 %v2523
  %2855 = vmatprep.subr.bf16.mxu0 %v2540
  %2856 = vmatpush1.bf16.msra.mxu0 %v2539
  %2857 = vmatprep.subr.bf16.mxu0 0
  %2858 = vmatpush1.bf16.msra.mxu0 0
  %2859 = vmatprep.subr.bf16.mxu0 0
  %2860 = vmatpush1.bf16.msra.mxu0 0
  %2861 = vmatprep.subr.bf16.mxu0 0
  %2862 = vmatpush1.bf16.msra.mxu0 0
  %2863 = vmatprep.subr.bf16.mxu0 0
  %2864 = vmatpush1.bf16.msra.mxu0 0
  %2865 = vmatprep.subr.bf16.mxu0 0
  %2866 = vmatpush1.bf16.msra.mxu0 0
  %2867 = vmatprep.subr.bf16.mxu0 0
  %2868 = vmatpush1.bf16.msra.mxu0 0
  %2869 = vmatprep.subr.bf16.mxu0 0
  %2870 = vmatpush1.bf16.msra.mxu0 0
  %2871 = vmatprep.subr.bf16.mxu0 0
  %2872 = vmatpush1.bf16.msra.mxu0 0
  %2873 = vmatprep.subr.bf16.mxu0 0
  %2874 = vmatpush1.bf16.msra.mxu0 0
  %2875 = vmatprep.subr.bf16.mxu0 0
  %2876 = vmatpush1.bf16.msra.mxu0 0
  %2877 = vmatprep.subr.bf16.mxu0 0
  %2878 = vmatpush1.bf16.msra.mxu0 0
  %2879 = vmatprep.subr.bf16.mxu0 0
  %2880 = vmatpush1.bf16.msra.mxu0 0
  %2881 = vmatprep.mubr.bf16.mxu0 0
  %2882 = vmatmul.mubr.bf16.gmra.mrb[0].mxu0 %v2619
  %v2883 = vpop.f32.mrb[0].mxu0
  %v2884 = vadd.f32 %v2560, %v2883
  %v2885 = vpop.f32.mrb[0].mxu0
  %v2886 = vadd.f32 %v2560, %v2885
  %v2887 = vpop.f32.mrb[0].mxu0
  %v2888 = vadd.f32 %v2565, %v2887
  %v2889 = vpop.f32.mrb[0].mxu0
  %v2890 = vadd.f32 %v2565, %v2889
  %2891 = vmatprep.mubr.bf16.mxu0 0
  %2892 = vmatmul.mubr.bf16.gmra.mrb[0].mxu0 %v2622
  %v2893 = vpop.f32.mrb[0].mxu0
  %v2894 = vadd.f32 %v2570, %v2893
  %v2895 = vpop.f32.mrb[0].mxu0
  %v2896 = vadd.f32 %v2570, %v2895
  %v2897 = vpop.f32.mrb[0].mxu0
  %v2898 = vadd.f32 %v2575, %v2897
  %v2899 = vpop.f32.mrb[0].mxu0
  %v2900 = vadd.f32 %v2575, %v2899
  %2901 = vmatprep.mubr.bf16.mxu0 0
  %2902 = vmatmul.mubr.bf16.gmra.mrb[0].mxu0 %v2625
  %v2903 = vpop.f32.mrb[0].mxu0
  %v2904 = vadd.f32 %v2580, %v2903
  %v2905 = vpop.f32.mrb[0].mxu0
  %v2906 = vadd.f32 %v2580, %v2905
  %v2907 = vpop.f32.mrb[0].mxu0
  %v2908 = vadd.f32 %v2585, %v2907
  %v2909 = vpop.f32.mrb[0].mxu0
  %v2910 = vadd.f32 %v2585, %v2909
  %2911 = vmatprep.mubr.bf16.mxu0 0
  %2912 = vmatmul.mubr.bf16.gmra.mrb[0].mxu0 %v2628
  %v2913 = vpop.f32.mrb[0].mxu0
  %v2914 = vadd.f32 %v2590, %v2913
  %v2915 = vpop.f32.mrb[0].mxu0
  %v2916 = vadd.f32 %v2590, %v2915
  %v2917 = vpop.f32.mrb[0].mxu0
  %v2918 = vadd.f32 %v2595, %v2917
  %v2919 = vpop.f32.mrb[0].mxu0
  %v2920 = vadd.f32 %v2595, %v2919
  %2921 = vdwg.mxu0
  %2922 = vmatprep.subr.bf16.mxu0 %v2494
  %2923 = vmatpush1.bf16.msra.mxu0 %v2493
  %2924 = vmatprep.subr.bf16.mxu0 %v2510
  %2925 = vmatpush1.bf16.msra.mxu0 %v2509
  %2926 = vmatprep.subr.bf16.mxu0 %v2526
  %2927 = vmatpush1.bf16.msra.mxu0 %v2525
  %2928 = vmatprep.subr.bf16.mxu0 %v2542
  %2929 = vmatpush1.bf16.msra.mxu0 %v2541
  %2930 = vmatprep.subr.bf16.mxu0 0
  %2931 = vmatpush1.bf16.msra.mxu0 0
  %2932 = vmatprep.subr.bf16.mxu0 0
  %2933 = vmatpush1.bf16.msra.mxu0 0
  %2934 = vmatprep.subr.bf16.mxu0 0
  %2935 = vmatpush1.bf16.msra.mxu0 0
  %2936 = vmatprep.subr.bf16.mxu0 0
  %2937 = vmatpush1.bf16.msra.mxu0 0
  %2938 = vmatprep.subr.bf16.mxu0 0
  %2939 = vmatpush1.bf16.msra.mxu0 0
  %2940 = vmatprep.subr.bf16.mxu0 0
  %2941 = vmatpush1.bf16.msra.mxu0 0
  %2942 = vmatprep.subr.bf16.mxu0 0
  %2943 = vmatpush1.bf16.msra.mxu0 0
  %2944 = vmatprep.subr.bf16.mxu0 0
  %2945 = vmatpush1.bf16.msra.mxu0 0
  %2946 = vmatprep.subr.bf16.mxu0 0
  %2947 = vmatpush1.bf16.msra.mxu0 0
  %2948 = vmatprep.subr.bf16.mxu0 0
  %2949 = vmatpush1.bf16.msra.mxu0 0
  %2950 = vmatprep.subr.bf16.mxu0 0
  %2951 = vmatpush1.bf16.msra.mxu0 0
  %2952 = vmatprep.subr.bf16.mxu0 0
  %2953 = vmatpush1.bf16.msra.mxu0 0
  %2954 = vmatprep.mubr.bf16.mxu0 0
  %2955 = vmatmul.mubr.bf16.gmra.mrb[0].mxu0 %v2619
  %v2956 = vpop.f32.mrb[0].mxu0
  %v2957 = vadd.f32 %v2560, %v2956
  %v2958 = vpop.f32.mrb[0].mxu0
  %v2959 = vadd.f32 %v2560, %v2958
  %v2960 = vpop.f32.mrb[0].mxu0
  %v2961 = vadd.f32 %v2565, %v2960
  %v2962 = vpop.f32.mrb[0].mxu0
  %v2963 = vadd.f32 %v2565, %v2962
  %2964 = vmatprep.mubr.bf16.mxu0 0
  %2965 = vmatmul.mubr.bf16.gmra.mrb[0].mxu0 %v2622
  %v2966 = vpop.f32.mrb[0].mxu0
  %v2967 = vadd.f32 %v2570, %v2966
  %v2968 = vpop.f32.mrb[0].mxu0
  %v2969 = vadd.f32 %v2570, %v2968
  %v2970 = vpop.f32.mrb[0].mxu0
  %v2971 = vadd.f32 %v2575, %v2970
  %v2972 = vpop.f32.mrb[0].mxu0
  %v2973 = vadd.f32 %v2575, %v2972
  %2974 = vmatprep.mubr.bf16.mxu0 0
  %2975 = vmatmul.mubr.bf16.gmra.mrb[0].mxu0 %v2625
  %v2976 = vpop.f32.mrb[0].mxu0
  %v2977 = vadd.f32 %v2580, %v2976
  %v2978 = vpop.f32.mrb[0].mxu0
  %v2979 = vadd.f32 %v2580, %v2978
  %v2980 = vpop.f32.mrb[0].mxu0
  %v2981 = vadd.f32 %v2585, %v2980
  %v2982 = vpop.f32.mrb[0].mxu0
  %v2983 = vadd.f32 %v2585, %v2982
  %2984 = vmatprep.mubr.bf16.mxu0 0
  %2985 = vmatmul.mubr.bf16.gmra.mrb[0].mxu0 %v2628
  %v2986 = vpop.f32.mrb[0].mxu0
  %v2987 = vadd.f32 %v2590, %v2986
  %v2988 = vpop.f32.mrb[0].mxu0
  %v2989 = vadd.f32 %v2590, %v2988
  %v2990 = vpop.f32.mrb[0].mxu0
  %v2991 = vadd.f32 %v2595, %v2990
  %v2992 = vpop.f32.mrb[0].mxu0
  %v2993 = vadd.f32 %v2595, %v2992
  %2994 = vdwg.mxu0
  %2995 = vmatprep.subr.bf16.mxu0 %v2496
  %2996 = vmatpush1.bf16.msra.mxu0 %v2495
  %2997 = vmatprep.subr.bf16.mxu0 %v2512
  %2998 = vmatpush1.bf16.msra.mxu0 %v2511
  %2999 = vmatprep.subr.bf16.mxu0 %v2528
  %3000 = vmatpush1.bf16.msra.mxu0 %v2527
  %3001 = vmatprep.subr.bf16.mxu0 %v2544
  %3002 = vmatpush1.bf16.msra.mxu0 %v2543
  %3003 = vmatprep.subr.bf16.mxu0 0
  %3004 = vmatpush1.bf16.msra.mxu0 0
  %3005 = vmatprep.subr.bf16.mxu0 0
  %3006 = vmatpush1.bf16.msra.mxu0 0
  %3007 = vmatprep.subr.bf16.mxu0 0
  %3008 = vmatpush1.bf16.msra.mxu0 0
  %3009 = vmatprep.subr.bf16.mxu0 0
  %3010 = vmatpush1.bf16.msra.mxu0 0
  %3011 = vmatprep.subr.bf16.mxu0 0
  %3012 = vmatpush1.bf16.msra.mxu0 0
  %3013 = vmatprep.subr.bf16.mxu0 0
  %3014 = vmatpush1.bf16.msra.mxu0 0
  %3015 = vmatprep.subr.bf16.mxu0 0
  %3016 = vmatpush1.bf16.msra.mxu0 0
  %3017 = vmatprep.subr.bf16.mxu0 0
  %3018 = vmatpush1.bf16.msra.mxu0 0
  %3019 = vmatprep.subr.bf16.mxu0 0
  %3020 = vmatpush1.bf16.msra.mxu0 0
  %3021 = vmatprep.subr.bf16.mxu0 0
  %3022 = vmatpush1.bf16.msra.mxu0 0
  %3023 = vmatprep.subr.bf16.mxu0 0
  %3024 = vmatpush1.bf16.msra.mxu0 0
  %3025 = vmatprep.subr.bf16.mxu0 0
  %3026 = vmatpush1.bf16.msra.mxu0 0
  %3027 = vmatprep.mubr.bf16.mxu0 0
  %3028 = vmatmul.mubr.bf16.gmra.mrb[0].mxu0 %v2619
  %v3029 = vpop.f32.mrb[0].mxu0
  %v3030 = vadd.f32 %v2560, %v3029
  %v3031 = vpop.f32.mrb[0].mxu0
  %v3032 = vadd.f32 %v2560, %v3031
  %v3033 = vpop.f32.mrb[0].mxu0
  %v3034 = vadd.f32 %v2565, %v3033
  %v3035 = vpop.f32.mrb[0].mxu0
  %v3036 = vadd.f32 %v2565, %v3035
  %3037 = vmatprep.mubr.bf16.mxu0 0
  %3038 = vmatmul.mubr.bf16.gmra.mrb[0].mxu0 %v2622
  %v3039 = vpop.f32.mrb[0].mxu0
  %v3040 = vadd.f32 %v2570, %v3039
  %v3041 = vpop.f32.mrb[0].mxu0
  %v3042 = vadd.f32 %v2570, %v3041
  %v3043 = vpop.f32.mrb[0].mxu0
  %v3044 = vadd.f32 %v2575, %v3043
  %v3045 = vpop.f32.mrb[0].mxu0
  %v3046 = vadd.f32 %v2575, %v3045
  %3047 = vmatprep.mubr.bf16.mxu0 0
  %3048 = vmatmul.mubr.bf16.gmra.mrb[0].mxu0 %v2625
  %v3049 = vpop.f32.mrb[0].mxu0
  %v3050 = vadd.f32 %v2580, %v3049
  %v3051 = vpop.f32.mrb[0].mxu0
  %v3052 = vadd.f32 %v2580, %v3051
  %v3053 = vpop.f32.mrb[0].mxu0
  %v3054 = vadd.f32 %v2585, %v3053
  %v3055 = vpop.f32.mrb[0].mxu0
  %v3056 = vadd.f32 %v2585, %v3055
  %3057 = vmatprep.mubr.bf16.mxu0 0
  %3058 = vmatmul.mubr.bf16.gmra.mrb[0].mxu0 %v2628
  %v3059 = vpop.f32.mrb[0].mxu0
  %v3060 = vadd.f32 %v2590, %v3059
  %v3061 = vpop.f32.mrb[0].mxu0
  %v3062 = vadd.f32 %v2590, %v3061
  %v3063 = vpop.f32.mrb[0].mxu0
  %v3064 = vadd.f32 %v2595, %v3063
  %v3065 = vpop.f32.mrb[0].mxu0
  %v3066 = vadd.f32 %v2595, %v3065
  %3067 = vdwg.mxu0
  %3068 = vmatprep.subr.bf16.mxu0 %v2498
  %3069 = vmatpush1.bf16.msra.mxu0 %v2497
  %3070 = vmatprep.subr.bf16.mxu0 %v2514
  %3071 = vmatpush1.bf16.msra.mxu0 %v2513
  %3072 = vmatprep.subr.bf16.mxu0 %v2530
  %3073 = vmatpush1.bf16.msra.mxu0 %v2529
  %3074 = vmatprep.subr.bf16.mxu0 %v2546
  %3075 = vmatpush1.bf16.msra.mxu0 %v2545
  %3076 = vmatprep.subr.bf16.mxu0 0
  %3077 = vmatpush1.bf16.msra.mxu0 0
  %3078 = vmatprep.subr.bf16.mxu0 0
  %3079 = vmatpush1.bf16.msra.mxu0 0
  %3080 = vmatprep.subr.bf16.mxu0 0
  %3081 = vmatpush1.bf16.msra.mxu0 0
  %3082 = vmatprep.subr.bf16.mxu0 0
  %3083 = vmatpush1.bf16.msra.mxu0 0
  %3084 = vmatprep.subr.bf16.mxu0 0
  %3085 = vmatpush1.bf16.msra.mxu0 0
  %3086 = vmatprep.subr.bf16.mxu0 0
  %3087 = vmatpush1.bf16.msra.mxu0 0
  %3088 = vmatprep.subr.bf16.mxu0 0
  %3089 = vmatpush1.bf16.msra.mxu0 0
  %3090 = vmatprep.subr.bf16.mxu0 0
  %3091 = vmatpush1.bf16.msra.mxu0 0
  %3092 = vmatprep.subr.bf16.mxu0 0
  %3093 = vmatpush1.bf16.msra.mxu0 0
  %3094 = vmatprep.subr.bf16.mxu0 0
  %3095 = vmatpush1.bf16.msra.mxu0 0
  %3096 = vmatprep.subr.bf16.mxu0 0
  %3097 = vmatpush1.bf16.msra.mxu0 0
  %3098 = vmatprep.subr.bf16.mxu0 0
  %3099 = vmatpush1.bf16.msra.mxu0 0
  %3100 = vmatprep.mubr.bf16.mxu0 0
  %3101 = vmatmul.mubr.bf16.gmra.mrb[0].mxu0 %v2619
  %v3102 = vpop.f32.mrb[0].mxu0
  %v3103 = vadd.f32 %v2560, %v3102
  %v3104 = vpop.f32.mrb[0].mxu0
  %v3105 = vadd.f32 %v2560, %v3104
  %v3106 = vpop.f32.mrb[0].mxu0
  %v3107 = vadd.f32 %v2565, %v3106
  %v3108 = vpop.f32.mrb[0].mxu0
  %v3109 = vadd.f32 %v2565, %v3108
  %3110 = vmatprep.mubr.bf16.mxu0 0
  %3111 = vmatmul.mubr.bf16.gmra.mrb[0].mxu0 %v2622
  %v3112 = vpop.f32.mrb[0].mxu0
  %v3113 = vadd.f32 %v2570, %v3112
  %v3114 = vpop.f32.mrb[0].mxu0
  %v3115 = vadd.f32 %v2570, %v3114
  %v3116 = vpop.f32.mrb[0].mxu0
  %v3117 = vadd.f32 %v2575, %v3116
  %v3118 = vpop.f32.mrb[0].mxu0
  %v3119 = vadd.f32 %v2575, %v3118
  %3120 = vmatprep.mubr.bf16.mxu0 0
  %3121 = vmatmul.mubr.bf16.gmra.mrb[0].mxu0 %v2625
  %v3122 = vpop.f32.mrb[0].mxu0
  %v3123 = vadd.f32 %v2580, %v3122
  %v3124 = vpop.f32.mrb[0].mxu0
  %v3125 = vadd.f32 %v2580, %v3124
  %v3126 = vpop.f32.mrb[0].mxu0
  %v3127 = vadd.f32 %v2585, %v3126
  %v3128 = vpop.f32.mrb[0].mxu0
  %v3129 = vadd.f32 %v2585, %v3128
  %3130 = vmatprep.mubr.bf16.mxu0 0
  %3131 = vmatmul.mubr.bf16.gmra.mrb[0].mxu0 %v2628
  %v3132 = vpop.f32.mrb[0].mxu0
  %v3133 = vadd.f32 %v2590, %v3132
  %v3134 = vpop.f32.mrb[0].mxu0
  %v3135 = vadd.f32 %v2590, %v3134
  %v3136 = vpop.f32.mrb[0].mxu0
  %v3137 = vadd.f32 %v2595, %v3136
  %v3138 = vpop.f32.mrb[0].mxu0
  %v3139 = vadd.f32 %v2595, %v3138
  %3140 = vdwg.mxu0
  %3141 = vmatprep.subr.bf16.mxu0 %v2500
  %3142 = vmatpush1.bf16.msra.mxu0 %v2499
  %3143 = vmatprep.subr.bf16.mxu0 %v2516
  %3144 = vmatpush1.bf16.msra.mxu0 %v2515
  %3145 = vmatprep.subr.bf16.mxu0 %v2532
  %3146 = vmatpush1.bf16.msra.mxu0 %v2531
  %3147 = vmatprep.subr.bf16.mxu0 %v2548
  %3148 = vmatpush1.bf16.msra.mxu0 %v2547
  %3149 = vmatprep.subr.bf16.mxu0 0
  %3150 = vmatpush1.bf16.msra.mxu0 0
  %3151 = vmatprep.subr.bf16.mxu0 0
  %3152 = vmatpush1.bf16.msra.mxu0 0
  %3153 = vmatprep.subr.bf16.mxu0 0
  %3154 = vmatpush1.bf16.msra.mxu0 0
  %3155 = vmatprep.subr.bf16.mxu0 0
  %3156 = vmatpush1.bf16.msra.mxu0 0
  %3157 = vmatprep.subr.bf16.mxu0 0
  %3158 = vmatpush1.bf16.msra.mxu0 0
  %3159 = vmatprep.subr.bf16.mxu0 0
  %3160 = vmatpush1.bf16.msra.mxu0 0
  %3161 = vmatprep.subr.bf16.mxu0 0
  %3162 = vmatpush1.bf16.msra.mxu0 0
  %3163 = vmatprep.subr.bf16.mxu0 0
  %3164 = vmatpush1.bf16.msra.mxu0 0
  %3165 = vmatprep.subr.bf16.mxu0 0
  %3166 = vmatpush1.bf16.msra.mxu0 0
  %3167 = vmatprep.subr.bf16.mxu0 0
  %3168 = vmatpush1.bf16.msra.mxu0 0
  %3169 = vmatprep.subr.bf16.mxu0 0
  %3170 = vmatpush1.bf16.msra.mxu0 0
  %3171 = vmatprep.subr.bf16.mxu0 0
  %3172 = vmatpush1.bf16.msra.mxu0 0
  %3173 = vmatprep.mubr.bf16.mxu0 0
  %3174 = vmatmul.mubr.bf16.gmra.mrb[0].mxu0 %v2619
  %v3175 = vpop.f32.mrb[0].mxu0
  %v3176 = vadd.f32 %v2560, %v3175
  %v3177 = vpop.f32.mrb[0].mxu0
  %v3178 = vadd.f32 %v2560, %v3177
  %v3179 = vpop.f32.mrb[0].mxu0
  %v3180 = vadd.f32 %v2565, %v3179
  %v3181 = vpop.f32.mrb[0].mxu0
  %v3182 = vadd.f32 %v2565, %v3181
  %3183 = vmatprep.mubr.bf16.mxu0 0
  %3184 = vmatmul.mubr.bf16.gmra.mrb[0].mxu0 %v2622
  %v3185 = vpop.f32.mrb[0].mxu0
  %v3186 = vadd.f32 %v2570, %v3185
  %v3187 = vpop.f32.mrb[0].mxu0
  %v3188 = vadd.f32 %v2570, %v3187
  %v3189 = vpop.f32.mrb[0].mxu0
  %v3190 = vadd.f32 %v2575, %v3189
  %v3191 = vpop.f32.mrb[0].mxu0
  %v3192 = vadd.f32 %v2575, %v3191
  %3193 = vmatprep.mubr.bf16.mxu0 0
  %3194 = vmatmul.mubr.bf16.gmra.mrb[0].mxu0 %v2625
  %v3195 = vpop.f32.mrb[0].mxu0
  %v3196 = vadd.f32 %v2580, %v3195
  %v3197 = vpop.f32.mrb[0].mxu0
  %v3198 = vadd.f32 %v2580, %v3197
  %v3199 = vpop.f32.mrb[0].mxu0
  %v3200 = vadd.f32 %v2585, %v3199
  %v3201 = vpop.f32.mrb[0].mxu0
  %v3202 = vadd.f32 %v2585, %v3201
  %3203 = vmatprep.mubr.bf16.mxu0 0
  %3204 = vmatmul.mubr.bf16.gmra.mrb[0].mxu0 %v2628
  %v3205 = vpop.f32.mrb[0].mxu0
  %v3206 = vadd.f32 %v2590, %v3205
  %v3207 = vpop.f32.mrb[0].mxu0
  %v3208 = vadd.f32 %v2590, %v3207
  %v3209 = vpop.f32.mrb[0].mxu0
  %v3210 = vadd.f32 %v2595, %v3209
  %v3211 = vpop.f32.mrb[0].mxu0
  %v3212 = vadd.f32 %v2595, %v3211
  %3213 = vdwg.mxu0
  %v3214 = vmul.f32 %v2665, 0.5
  %v3215 = vmul.f32 %v2667, 0.5
  %v3216 = vmul.f32 %v2738, 0.5
  %v3217 = vmul.f32 %v2740, 0.5
  %v3218 = vmul.f32 %v2811, 0.5
  %v3219 = vmul.f32 %v2813, 0.5
  %v3220 = vmul.f32 %v2884, 0.5
  %v3221 = vmul.f32 %v2886, 0.5
  %v3222 = vmul.f32 %v2957, 0.5
  %v3223 = vmul.f32 %v2959, 0.5
  %v3224 = vmul.f32 %v3030, 0.5
  %v3225 = vmul.f32 %v3032, 0.5
  %v3226 = vmul.f32 %v3103, 0.5
  %v3227 = vmul.f32 %v3105, 0.5
  %v3228 = vmul.f32 %v3176, 0.5
  %v3229 = vmul.f32 %v3178, 0.5
  %v3230 = vmul.f32 %v2669, 0.5
  %v3231 = vmul.f32 %v2671, 0.5
  %v3232 = vmul.f32 %v2742, 0.5
  %v3233 = vmul.f32 %v2744, 0.5
  %v3234 = vmul.f32 %v2815, 0.5
  %v3235 = vmul.f32 %v2817, 0.5
  %v3236 = vmul.f32 %v2888, 0.5
  %v3237 = vmul.f32 %v2890, 0.5
  %v3238 = vmul.f32 %v2961, 0.5
  %v3239 = vmul.f32 %v2963, 0.5
  %v3240 = vmul.f32 %v3034, 0.5
  %v3241 = vmul.f32 %v3036, 0.5
  %v3242 = vmul.f32 %v3107, 0.5
  %v3243 = vmul.f32 %v3109, 0.5
  %v3244 = vmul.f32 %v3180, 0.5
  %v3245 = vmul.f32 %v3182, 0.5
  %v3246 = vmul.f32 %v2675, 0.5
  %v3247 = vmul.f32 %v2677, 0.5
  %v3248 = vmul.f32 %v2748, 0.5
  %v3249 = vmul.f32 %v2750, 0.5
  %v3250 = vmul.f32 %v2821, 0.5
  %v3251 = vmul.f32 %v2823, 0.5
  %v3252 = vmul.f32 %v2894, 0.5
  %v3253 = vmul.f32 %v2896, 0.5
  %v3254 = vmul.f32 %v2967, 0.5
  %v3255 = vmul.f32 %v2969, 0.5
  %v3256 = vmul.f32 %v3040, 0.5
  %v3257 = vmul.f32 %v3042, 0.5
  %v3258 = vmul.f32 %v3113, 0.5
  %v3259 = vmul.f32 %v3115, 0.5
  %v3260 = vmul.f32 %v3186, 0.5
  %v3261 = vmul.f32 %v3188, 0.5
  %v3262 = vmul.f32 %v2679, 0.5
  %v3263 = vmul.f32 %v2681, 0.5
  %v3264 = vmul.f32 %v2752, 0.5
  %v3265 = vmul.f32 %v2754, 0.5
  %v3266 = vmul.f32 %v2825, 0.5
  %v3267 = vmul.f32 %v2827, 0.5
  %v3268 = vmul.f32 %v2898, 0.5
  %v3269 = vmul.f32 %v2900, 0.5
  %v3270 = vmul.f32 %v2971, 0.5
  %v3271 = vmul.f32 %v2973, 0.5
  %v3272 = vmul.f32 %v3044, 0.5
  %v3273 = vmul.f32 %v3046, 0.5
  %v3274 = vmul.f32 %v3117, 0.5
  %v3275 = vmul.f32 %v3119, 0.5
  %v3276 = vmul.f32 %v3190, 0.5
  %v3277 = vmul.f32 %v3192, 0.5
  %v3278 = vmul.f32 %v2685, 0.5
  %v3279 = vmul.f32 %v2687, 0.5
  %v3280 = vmul.f32 %v2758, 0.5
  %v3281 = vmul.f32 %v2760, 0.5
  %v3282 = vmul.f32 %v2831, 0.5
  %v3283 = vmul.f32 %v2833, 0.5
  %v3284 = vmul.f32 %v2904, 0.5
  %v3285 = vmul.f32 %v2906, 0.5
  %v3286 = vmul.f32 %v2977, 0.5
  %v3287 = vmul.f32 %v2979, 0.5
  %v3288 = vmul.f32 %v3050, 0.5
  %v3289 = vmul.f32 %v3052, 0.5
  %v3290 = vmul.f32 %v3123, 0.5
  %v3291 = vmul.f32 %v3125, 0.5
  %v3292 = vmul.f32 %v3196, 0.5
  %v3293 = vmul.f32 %v3198, 0.5
  %v3294 = vmul.f32 %v2689, 0.5
  %v3295 = vmul.f32 %v2691, 0.5
  %v3296 = vmul.f32 %v2762, 0.5
  %v3297 = vmul.f32 %v2764, 0.5
  %v3298 = vmul.f32 %v2835, 0.5
  %v3299 = vmul.f32 %v2837, 0.5
  %v3300 = vmul.f32 %v2908, 0.5
  %v3301 = vmul.f32 %v2910, 0.5
  %v3302 = vmul.f32 %v2981, 0.5
  %v3303 = vmul.f32 %v2983, 0.5
  %v3304 = vmul.f32 %v3054, 0.5
  %v3305 = vmul.f32 %v3056, 0.5
  %v3306 = vmul.f32 %v3127, 0.5
  %v3307 = vmul.f32 %v3129, 0.5
  %v3308 = vmul.f32 %v3200, 0.5
  %v3309 = vmul.f32 %v3202, 0.5
  %v3310 = vmul.f32 %v2695, 0.5
  %v3311 = vmul.f32 %v2697, 0.5
  %v3312 = vmul.f32 %v2768, 0.5
  %v3313 = vmul.f32 %v2770, 0.5
  %v3314 = vmul.f32 %v2841, 0.5
  %v3315 = vmul.f32 %v2843, 0.5
  %v3316 = vmul.f32 %v2914, 0.5
  %v3317 = vmul.f32 %v2916, 0.5
  %v3318 = vmul.f32 %v2987, 0.5
  %v3319 = vmul.f32 %v2989, 0.5
  %v3320 = vmul.f32 %v3060, 0.5
  %v3321 = vmul.f32 %v3062, 0.5
  %v3322 = vmul.f32 %v3133, 0.5
  %v3323 = vmul.f32 %v3135, 0.5
  %v3324 = vmul.f32 %v3206, 0.5
  %v3325 = vmul.f32 %v3208, 0.5
  %v3326 = vmul.f32 %v2699, 0.5
  %v3327 = vmul.f32 %v2701, 0.5
  %v3328 = vmul.f32 %v2772, 0.5
  %v3329 = vmul.f32 %v2774, 0.5
  %v3330 = vmul.f32 %v2845, 0.5
  %v3331 = vmul.f32 %v2847, 0.5
  %v3332 = vmul.f32 %v2918, 0.5
  %v3333 = vmul.f32 %v2920, 0.5
  %v3334 = vmul.f32 %v2991, 0.5
  %v3335 = vmul.f32 %v2993, 0.5
  %v3336 = vmul.f32 %v3064, 0.5
  %v3337 = vmul.f32 %v3066, 0.5
  %v3338 = vmul.f32 %v3137, 0.5
  %v3339 = vmul.f32 %v3139, 0.5
  %v3340 = vmul.f32 %v3210, 0.5
  %v3341 = vmul.f32 %v3212, 0.5
  %v3342 = vtanh.pop %v3214
  %v3343 = vtanh.pop %v3215
  %v3344 = vtanh.pop %v3216
  %v3345 = vtanh.pop %v3217
  %v3346 = vtanh.pop %v3218
  %v3347 = vtanh.pop %v3219
  %v3348 = vtanh.pop %v3220
  %v3349 = vtanh.pop %v3221
  %v3350 = vtanh.pop %v3222
  %v3351 = vtanh.pop %v3223
  %v3352 = vtanh.pop %v3224
  %v3353 = vtanh.pop %v3225
  %v3354 = vtanh.pop %v3226
  %v3355 = vtanh.pop %v3227
  %v3356 = vtanh.pop %v3228
  %v3357 = vtanh.pop %v3229
  %v3358 = vtanh.pop %v3230
  %v3359 = vtanh.pop %v3231
  %v3360 = vtanh.pop %v3232
  %v3361 = vtanh.pop %v3233
  %v3362 = vtanh.pop %v3234
  %v3363 = vtanh.pop %v3235
  %v3364 = vtanh.pop %v3236
  %v3365 = vtanh.pop %v3237
  %v3366 = vtanh.pop %v3238
  %v3367 = vtanh.pop %v3239
  %v3368 = vtanh.pop %v3240
  %v3369 = vtanh.pop %v3241
  %v3370 = vtanh.pop %v3242
  %v3371 = vtanh.pop %v3243
  %v3372 = vtanh.pop %v3244
  %v3373 = vtanh.pop %v3245
  %v3374 = vtanh.pop %v3246
  %v3375 = vtanh.pop %v3247
  %v3376 = vtanh.pop %v3248
  %v3377 = vtanh.pop %v3249
  %v3378 = vtanh.pop %v3250
  %v3379 = vtanh.pop %v3251
  %v3380 = vtanh.pop %v3252
  %v3381 = vtanh.pop %v3253
  %v3382 = vtanh.pop %v3254
  %v3383 = vtanh.pop %v3255
  %v3384 = vtanh.pop %v3256
  %v3385 = vtanh.pop %v3257
  %v3386 = vtanh.pop %v3258
  %v3387 = vtanh.pop %v3259
  %v3388 = vtanh.pop %v3260
  %v3389 = vtanh.pop %v3261
  %v3390 = vtanh.pop %v3262
  %v3391 = vtanh.pop %v3263
  %v3392 = vtanh.pop %v3264
  %v3393 = vtanh.pop %v3265
  %v3394 = vtanh.pop %v3266
  %v3395 = vtanh.pop %v3267
  %v3396 = vtanh.pop %v3268
  %v3397 = vtanh.pop %v3269
  %v3398 = vtanh.pop %v3270
  %v3399 = vtanh.pop %v3271
  %v3400 = vtanh.pop %v3272
  %v3401 = vtanh.pop %v3273
  %v3402 = vtanh.pop %v3274
  %v3403 = vtanh.pop %v3275
  %v3404 = vtanh.pop %v3276
  %v3405 = vtanh.pop %v3277
  %v3406 = vtanh.pop %v3278
  %v3407 = vtanh.pop %v3279
  %v3408 = vtanh.pop %v3280
  %v3409 = vtanh.pop %v3281
  %v3410 = vtanh.pop %v3282
  %v3411 = vtanh.pop %v3283
  %v3412 = vtanh.pop %v3284
  %v3413 = vtanh.pop %v3285
  %v3414 = vtanh.pop %v3286
  %v3415 = vtanh.pop %v3287
  %v3416 = vtanh.pop %v3288
  %v3417 = vtanh.pop %v3289
  %v3418 = vtanh.pop %v3290
  %v3419 = vtanh.pop %v3291
  %v3420 = vtanh.pop %v3292
  %v3421 = vtanh.pop %v3293
  %v3422 = vtanh.pop %v3294
  %v3423 = vtanh.pop %v3295
  %v3424 = vtanh.pop %v3296
  %v3425 = vtanh.pop %v3297
  %v3426 = vtanh.pop %v3298
  %v3427 = vtanh.pop %v3299
  %v3428 = vtanh.pop %v3300
  %v3429 = vtanh.pop %v3301
  %v3430 = vtanh.pop %v3302
  %v3431 = vtanh.pop %v3303
  %v3432 = vtanh.pop %v3304
  %v3433 = vtanh.pop %v3305
  %v3434 = vtanh.pop %v3306
  %v3435 = vtanh.pop %v3307
  %v3436 = vtanh.pop %v3308
  %v3437 = vtanh.pop %v3309
  %v3438 = vtanh.pop %v3310
  %v3439 = vtanh.pop %v3311
  %v3440 = vtanh.pop %v3312
  %v3441 = vtanh.pop %v3313
  %v3442 = vtanh.pop %v3314
  %v3443 = vtanh.pop %v3315
  %v3444 = vtanh.pop %v3316
  %v3445 = vtanh.pop %v3317
  %v3446 = vtanh.pop %v3318
  %v3447 = vtanh.pop %v3319
  %v3448 = vtanh.pop %v3320
  %v3449 = vtanh.pop %v3321
  %v3450 = vtanh.pop %v3322
  %v3451 = vtanh.pop %v3323
  %v3452 = vtanh.pop %v3324
  %v3453 = vtanh.pop %v3325
  %v3454 = vtanh.pop %v3326
  %v3455 = vtanh.pop %v3327
  %v3456 = vtanh.pop %v3328
  %v3457 = vtanh.pop %v3329
  %v3458 = vtanh.pop %v3330
  %v3459 = vtanh.pop %v3331
  %v3460 = vtanh.pop %v3332
  %v3461 = vtanh.pop %v3333
  %v3462 = vtanh.pop %v3334
  %v3463 = vtanh.pop %v3335
  %v3464 = vtanh.pop %v3336
  %v3465 = vtanh.pop %v3337
  %v3466 = vtanh.pop %v3338
  %v3467 = vtanh.pop %v3339
  %v3468 = vtanh.pop %v3340
  %v3469 = vtanh.pop %v3341
  %v3470 = vmul.f32 %v3342, 0.5
  %v3471 = vmul.f32 %v3343, 0.5
  %v3472 = vmul.f32 %v3344, 0.5
  %v3473 = vmul.f32 %v3345, 0.5
  %v3474 = vmul.f32 %v3346, 0.5
  %v3475 = vmul.f32 %v3347, 0.5
  %v3476 = vmul.f32 %v3348, 0.5
  %v3477 = vmul.f32 %v3349, 0.5
  %v3478 = vmul.f32 %v3350, 0.5
  %v3479 = vmul.f32 %v3351, 0.5
  %v3480 = vmul.f32 %v3352, 0.5
  %v3481 = vmul.f32 %v3353, 0.5
  %v3482 = vmul.f32 %v3354, 0.5
  %v3483 = vmul.f32 %v3355, 0.5
  %v3484 = vmul.f32 %v3356, 0.5
  %v3485 = vmul.f32 %v3357, 0.5
  %v3486 = vmul.f32 %v3358, 0.5
  %v3487 = vmul.f32 %v3359, 0.5
  %v3488 = vmul.f32 %v3360, 0.5
  %v3489 = vmul.f32 %v3361, 0.5
  %v3490 = vmul.f32 %v3362, 0.5
  %v3491 = vmul.f32 %v3363, 0.5
  %v3492 = vmul.f32 %v3364, 0.5
  %v3493 = vmul.f32 %v3365, 0.5
  %v3494 = vmul.f32 %v3366, 0.5
  %v3495 = vmul.f32 %v3367, 0.5
  %v3496 = vmul.f32 %v3368, 0.5
  %v3497 = vmul.f32 %v3369, 0.5
  %v3498 = vmul.f32 %v3370, 0.5
  %v3499 = vmul.f32 %v3371, 0.5
  %v3500 = vmul.f32 %v3372, 0.5
  %v3501 = vmul.f32 %v3373, 0.5
  %v3502 = vmul.f32 %v3374, 0.5
  %v3503 = vmul.f32 %v3375, 0.5
  %v3504 = vmul.f32 %v3376, 0.5
  %v3505 = vmul.f32 %v3377, 0.5
  %v3506 = vmul.f32 %v3378, 0.5
  %v3507 = vmul.f32 %v3379, 0.5
  %v3508 = vmul.f32 %v3380, 0.5
  %v3509 = vmul.f32 %v3381, 0.5
  %v3510 = vmul.f32 %v3382, 0.5
  %v3511 = vmul.f32 %v3383, 0.5
  %v3512 = vmul.f32 %v3384, 0.5
  %v3513 = vmul.f32 %v3385, 0.5
  %v3514 = vmul.f32 %v3386, 0.5
  %v3515 = vmul.f32 %v3387, 0.5
  %v3516 = vmul.f32 %v3388, 0.5
  %v3517 = vmul.f32 %v3389, 0.5
  %v3518 = vmul.f32 %v3390, 0.5
  %v3519 = vmul.f32 %v3391, 0.5
  %v3520 = vmul.f32 %v3392, 0.5
  %v3521 = vmul.f32 %v3393, 0.5
  %v3522 = vmul.f32 %v3394, 0.5
  %v3523 = vmul.f32 %v3395, 0.5
  %v3524 = vmul.f32 %v3396, 0.5
  %v3525 = vmul.f32 %v3397, 0.5
  %v3526 = vmul.f32 %v3398, 0.5
  %v3527 = vmul.f32 %v3399, 0.5
  %v3528 = vmul.f32 %v3400, 0.5
  %v3529 = vmul.f32 %v3401, 0.5
  %v3530 = vmul.f32 %v3402, 0.5
  %v3531 = vmul.f32 %v3403, 0.5
  %v3532 = vmul.f32 %v3404, 0.5
  %v3533 = vmul.f32 %v3405, 0.5
  %v3534 = vmul.f32 %v3406, 0.5
  %v3535 = vmul.f32 %v3407, 0.5
  %v3536 = vmul.f32 %v3408, 0.5
  %v3537 = vmul.f32 %v3409, 0.5
  %v3538 = vmul.f32 %v3410, 0.5
  %v3539 = vmul.f32 %v3411, 0.5
  %v3540 = vmul.f32 %v3412, 0.5
  %v3541 = vmul.f32 %v3413, 0.5
  %v3542 = vmul.f32 %v3414, 0.5
  %v3543 = vmul.f32 %v3415, 0.5
  %v3544 = vmul.f32 %v3416, 0.5
  %v3545 = vmul.f32 %v3417, 0.5
  %v3546 = vmul.f32 %v3418, 0.5
  %v3547 = vmul.f32 %v3419, 0.5
  %v3548 = vmul.f32 %v3420, 0.5
  %v3549 = vmul.f32 %v3421, 0.5
  %v3550 = vmul.f32 %v3422, 0.5
  %v3551 = vmul.f32 %v3423, 0.5
  %v3552 = vmul.f32 %v3424, 0.5
  %v3553 = vmul.f32 %v3425, 0.5
  %v3554 = vmul.f32 %v3426, 0.5
  %v3555 = vmul.f32 %v3427, 0.5
  %v3556 = vmul.f32 %v3428, 0.5
  %v3557 = vmul.f32 %v3429, 0.5
  %v3558 = vmul.f32 %v3430, 0.5
  %v3559 = vmul.f32 %v3431, 0.5
  %v3560 = vmul.f32 %v3432, 0.5
  %v3561 = vmul.f32 %v3433, 0.5
  %v3562 = vmul.f32 %v3434, 0.5
  %v3563 = vmul.f32 %v3435, 0.5
  %v3564 = vmul.f32 %v3436, 0.5
  %v3565 = vmul.f32 %v3437, 0.5
  %v3566 = vmul.f32 %v3438, 0.5
  %v3567 = vmul.f32 %v3439, 0.5
  %v3568 = vmul.f32 %v3440, 0.5
  %v3569 = vmul.f32 %v3441, 0.5
  %v3570 = vmul.f32 %v3442, 0.5
  %v3571 = vmul.f32 %v3443, 0.5
  %v3572 = vmul.f32 %v3444, 0.5
  %v3573 = vmul.f32 %v3445, 0.5
  %v3574 = vmul.f32 %v3446, 0.5
  %v3575 = vmul.f32 %v3447, 0.5
  %v3576 = vmul.f32 %v3448, 0.5
  %v3577 = vmul.f32 %v3449, 0.5
  %v3578 = vmul.f32 %v3450, 0.5
  %v3579 = vmul.f32 %v3451, 0.5
  %v3580 = vmul.f32 %v3452, 0.5
  %v3581 = vmul.f32 %v3453, 0.5
  %v3582 = vmul.f32 %v3454, 0.5
  %v3583 = vmul.f32 %v3455, 0.5
  %v3584 = vmul.f32 %v3456, 0.5
  %v3585 = vmul.f32 %v3457, 0.5
  %v3586 = vmul.f32 %v3458, 0.5
  %v3587 = vmul.f32 %v3459, 0.5
  %v3588 = vmul.f32 %v3460, 0.5
  %v3589 = vmul.f32 %v3461, 0.5
  %v3590 = vmul.f32 %v3462, 0.5
  %v3591 = vmul.f32 %v3463, 0.5
  %v3592 = vmul.f32 %v3464, 0.5
  %v3593 = vmul.f32 %v3465, 0.5
  %v3594 = vmul.f32 %v3466, 0.5
  %v3595 = vmul.f32 %v3467, 0.5
  %v3596 = vmul.f32 %v3468, 0.5
  %v3597 = vmul.f32 %v3469, 0.5
  %v3598 = vadd.f32 %v3470, 0.5
  %v3599 = vadd.f32 %v3471, 0.5
  %v3600 = vadd.f32 %v3472, 0.5
  %v3601 = vadd.f32 %v3473, 0.5
  %v3602 = vadd.f32 %v3474, 0.5
  %v3603 = vadd.f32 %v3475, 0.5
  %v3604 = vadd.f32 %v3476, 0.5
  %v3605 = vadd.f32 %v3477, 0.5
  %v3606 = vadd.f32 %v3478, 0.5
  %v3607 = vadd.f32 %v3479, 0.5
  %v3608 = vadd.f32 %v3480, 0.5
  %v3609 = vadd.f32 %v3481, 0.5
  %v3610 = vadd.f32 %v3482, 0.5
  %v3611 = vadd.f32 %v3483, 0.5
  %v3612 = vadd.f32 %v3484, 0.5
  %v3613 = vadd.f32 %v3485, 0.5
  %v3614 = vadd.f32 %v3486, 0.5
  %v3615 = vadd.f32 %v3487, 0.5
  %v3616 = vadd.f32 %v3488, 0.5
  %v3617 = vadd.f32 %v3489, 0.5
  %v3618 = vadd.f32 %v3490, 0.5
  %v3619 = vadd.f32 %v3491, 0.5
  %v3620 = vadd.f32 %v3492, 0.5
  %v3621 = vadd.f32 %v3493, 0.5
  %v3622 = vadd.f32 %v3494, 0.5
  %v3623 = vadd.f32 %v3495, 0.5
  %v3624 = vadd.f32 %v3496, 0.5
  %v3625 = vadd.f32 %v3497, 0.5
  %v3626 = vadd.f32 %v3498, 0.5
  %v3627 = vadd.f32 %v3499, 0.5
  %v3628 = vadd.f32 %v3500, 0.5
  %v3629 = vadd.f32 %v3501, 0.5
  %v3630 = vadd.f32 %v3502, 0.5
  %v3631 = vadd.f32 %v3503, 0.5
  %v3632 = vadd.f32 %v3504, 0.5
  %v3633 = vadd.f32 %v3505, 0.5
  %v3634 = vadd.f32 %v3506, 0.5
  %v3635 = vadd.f32 %v3507, 0.5
  %v3636 = vadd.f32 %v3508, 0.5
  %v3637 = vadd.f32 %v3509, 0.5
  %v3638 = vadd.f32 %v3510, 0.5
  %v3639 = vadd.f32 %v3511, 0.5
  %v3640 = vadd.f32 %v3512, 0.5
  %v3641 = vadd.f32 %v3513, 0.5
  %v3642 = vadd.f32 %v3514, 0.5
  %v3643 = vadd.f32 %v3515, 0.5
  %v3644 = vadd.f32 %v3516, 0.5
  %v3645 = vadd.f32 %v3517, 0.5
  %v3646 = vadd.f32 %v3518, 0.5
  %v3647 = vadd.f32 %v3519, 0.5
  %v3648 = vadd.f32 %v3520, 0.5
  %v3649 = vadd.f32 %v3521, 0.5
  %v3650 = vadd.f32 %v3522, 0.5
  %v3651 = vadd.f32 %v3523, 0.5
  %v3652 = vadd.f32 %v3524, 0.5
  %v3653 = vadd.f32 %v3525, 0.5
  %v3654 = vadd.f32 %v3526, 0.5
  %v3655 = vadd.f32 %v3527, 0.5
  %v3656 = vadd.f32 %v3528, 0.5
  %v3657 = vadd.f32 %v3529, 0.5
  %v3658 = vadd.f32 %v3530, 0.5
  %v3659 = vadd.f32 %v3531, 0.5
  %v3660 = vadd.f32 %v3532, 0.5
  %v3661 = vadd.f32 %v3533, 0.5
  %v3662 = vadd.f32 %v3534, 0.5
  %v3663 = vadd.f32 %v3535, 0.5
  %v3664 = vadd.f32 %v3536, 0.5
  %v3665 = vadd.f32 %v3537, 0.5
  %v3666 = vadd.f32 %v3538, 0.5
  %v3667 = vadd.f32 %v3539, 0.5
  %v3668 = vadd.f32 %v3540, 0.5
  %v3669 = vadd.f32 %v3541, 0.5
  %v3670 = vadd.f32 %v3542, 0.5
  %v3671 = vadd.f32 %v3543, 0.5
  %v3672 = vadd.f32 %v3544, 0.5
  %v3673 = vadd.f32 %v3545, 0.5
  %v3674 = vadd.f32 %v3546, 0.5
  %v3675 = vadd.f32 %v3547, 0.5
  %v3676 = vadd.f32 %v3548, 0.5
  %v3677 = vadd.f32 %v3549, 0.5
  %v3678 = vadd.f32 %v3550, 0.5
  %v3679 = vadd.f32 %v3551, 0.5
  %v3680 = vadd.f32 %v3552, 0.5
  %v3681 = vadd.f32 %v3553, 0.5
  %v3682 = vadd.f32 %v3554, 0.5
  %v3683 = vadd.f32 %v3555, 0.5
  %v3684 = vadd.f32 %v3556, 0.5
  %v3685 = vadd.f32 %v3557, 0.5
  %v3686 = vadd.f32 %v3558, 0.5
  %v3687 = vadd.f32 %v3559, 0.5
  %v3688 = vadd.f32 %v3560, 0.5
  %v3689 = vadd.f32 %v3561, 0.5
  %v3690 = vadd.f32 %v3562, 0.5
  %v3691 = vadd.f32 %v3563, 0.5
  %v3692 = vadd.f32 %v3564, 0.5
  %v3693 = vadd.f32 %v3565, 0.5
  %v3694 = vadd.f32 %v3566, 0.5
  %v3695 = vadd.f32 %v3567, 0.5
  %v3696 = vadd.f32 %v3568, 0.5
  %v3697 = vadd.f32 %v3569, 0.5
  %v3698 = vadd.f32 %v3570, 0.5
  %v3699 = vadd.f32 %v3571, 0.5
  %v3700 = vadd.f32 %v3572, 0.5
  %v3701 = vadd.f32 %v3573, 0.5
  %v3702 = vadd.f32 %v3574, 0.5
  %v3703 = vadd.f32 %v3575, 0.5
  %v3704 = vadd.f32 %v3576, 0.5
  %v3705 = vadd.f32 %v3577, 0.5
  %v3706 = vadd.f32 %v3578, 0.5
  %v3707 = vadd.f32 %v3579, 0.5
  %v3708 = vadd.f32 %v3580, 0.5
  %v3709 = vadd.f32 %v3581, 0.5
  %v3710 = vadd.f32 %v3582, 0.5
  %v3711 = vadd.f32 %v3583, 0.5
  %v3712 = vadd.f32 %v3584, 0.5
  %v3713 = vadd.f32 %v3585, 0.5
  %v3714 = vadd.f32 %v3586, 0.5
  %v3715 = vadd.f32 %v3587, 0.5
  %v3716 = vadd.f32 %v3588, 0.5
  %v3717 = vadd.f32 %v3589, 0.5
  %v3718 = vadd.f32 %v3590, 0.5
  %v3719 = vadd.f32 %v3591, 0.5
  %v3720 = vadd.f32 %v3592, 0.5
  %v3721 = vadd.f32 %v3593, 0.5
  %v3722 = vadd.f32 %v3594, 0.5
  %v3723 = vadd.f32 %v3595, 0.5
  %v3724 = vadd.f32 %v3596, 0.5
  %v3725 = vadd.f32 %v3597, 0.5
  %v3726 = vmul.f32 %v2665, %v3598
  %v3727 = vmul.f32 %v2667, %v3599
  %v3728 = vmul.f32 %v2738, %v3600
  %v3729 = vmul.f32 %v2740, %v3601
  %v3730 = vmul.f32 %v2811, %v3602
  %v3731 = vmul.f32 %v2813, %v3603
  %v3732 = vmul.f32 %v2884, %v3604
  %v3733 = vmul.f32 %v2886, %v3605
  %v3734 = vmul.f32 %v2957, %v3606
  %v3735 = vmul.f32 %v2959, %v3607
  %v3736 = vmul.f32 %v3030, %v3608
  %v3737 = vmul.f32 %v3032, %v3609
  %v3738 = vmul.f32 %v3103, %v3610
  %v3739 = vmul.f32 %v3105, %v3611
  %v3740 = vmul.f32 %v3176, %v3612
  %v3741 = vmul.f32 %v3178, %v3613
  %v3742 = vmul.f32 %v2669, %v3614
  %v3743 = vmul.f32 %v2671, %v3615
  %v3744 = vmul.f32 %v2742, %v3616
  %v3745 = vmul.f32 %v2744, %v3617
  %v3746 = vmul.f32 %v2815, %v3618
  %v3747 = vmul.f32 %v2817, %v3619
  %v3748 = vmul.f32 %v2888, %v3620
  %v3749 = vmul.f32 %v2890, %v3621
  %v3750 = vmul.f32 %v2961, %v3622
  %v3751 = vmul.f32 %v2963, %v3623
  %v3752 = vmul.f32 %v3034, %v3624
  %v3753 = vmul.f32 %v3036, %v3625
  %v3754 = vmul.f32 %v3107, %v3626
  %v3755 = vmul.f32 %v3109, %v3627
  %v3756 = vmul.f32 %v3180, %v3628
  %v3757 = vmul.f32 %v3182, %v3629
  %v3758 = vmul.f32 %v2675, %v3630
  %v3759 = vmul.f32 %v2677, %v3631
  %v3760 = vmul.f32 %v2748, %v3632
  %v3761 = vmul.f32 %v2750, %v3633
  %v3762 = vmul.f32 %v2821, %v3634
  %v3763 = vmul.f32 %v2823, %v3635
  %v3764 = vmul.f32 %v2894, %v3636
  %v3765 = vmul.f32 %v2896, %v3637
  %v3766 = vmul.f32 %v2967, %v3638
  %v3767 = vmul.f32 %v2969, %v3639
  %v3768 = vmul.f32 %v3040, %v3640
  %v3769 = vmul.f32 %v3042, %v3641
  %v3770 = vmul.f32 %v3113, %v3642
  %v3771 = vmul.f32 %v3115, %v3643
  %v3772 = vmul.f32 %v3186, %v3644
  %v3773 = vmul.f32 %v3188, %v3645
  %v3774 = vmul.f32 %v2679, %v3646
  %v3775 = vmul.f32 %v2681, %v3647
  %v3776 = vmul.f32 %v2752, %v3648
  %v3777 = vmul.f32 %v2754, %v3649
  %v3778 = vmul.f32 %v2825, %v3650
  %v3779 = vmul.f32 %v2827, %v3651
  %v3780 = vmul.f32 %v2898, %v3652
  %v3781 = vmul.f32 %v2900, %v3653
  %v3782 = vmul.f32 %v2971, %v3654
  %v3783 = vmul.f32 %v2973, %v3655
  %v3784 = vmul.f32 %v3044, %v3656
  %v3785 = vmul.f32 %v3046, %v3657
  %v3786 = vmul.f32 %v3117, %v3658
  %v3787 = vmul.f32 %v3119, %v3659
  %v3788 = vmul.f32 %v3190, %v3660
  %v3789 = vmul.f32 %v3192, %v3661
  %v3790 = vmul.f32 %v2685, %v3662
  %v3791 = vmul.f32 %v2687, %v3663
  %v3792 = vmul.f32 %v2758, %v3664
  %v3793 = vmul.f32 %v2760, %v3665
  %v3794 = vmul.f32 %v2831, %v3666
  %v3795 = vmul.f32 %v2833, %v3667
  %v3796 = vmul.f32 %v2904, %v3668
  %v3797 = vmul.f32 %v2906, %v3669
  %v3798 = vmul.f32 %v2977, %v3670
  %v3799 = vmul.f32 %v2979, %v3671
  %v3800 = vmul.f32 %v3050, %v3672
  %v3801 = vmul.f32 %v3052, %v3673
  %v3802 = vmul.f32 %v3123, %v3674
  %v3803 = vmul.f32 %v3125, %v3675
  %v3804 = vmul.f32 %v3196, %v3676
  %v3805 = vmul.f32 %v3198, %v3677
  %v3806 = vmul.f32 %v2689, %v3678
  %v3807 = vmul.f32 %v2691, %v3679
  %v3808 = vmul.f32 %v2762, %v3680
  %v3809 = vmul.f32 %v2764, %v3681
  %v3810 = vmul.f32 %v2835, %v3682
  %v3811 = vmul.f32 %v2837, %v3683
  %v3812 = vmul.f32 %v2908, %v3684
  %v3813 = vmul.f32 %v2910, %v3685
  %v3814 = vmul.f32 %v2981, %v3686
  %v3815 = vmul.f32 %v2983, %v3687
  %v3816 = vmul.f32 %v3054, %v3688
  %v3817 = vmul.f32 %v3056, %v3689
  %v3818 = vmul.f32 %v3127, %v3690
  %v3819 = vmul.f32 %v3129, %v3691
  %v3820 = vmul.f32 %v3200, %v3692
  %v3821 = vmul.f32 %v3202, %v3693
  %v3822 = vmul.f32 %v2695, %v3694
  %v3823 = vmul.f32 %v2697, %v3695
  %v3824 = vmul.f32 %v2768, %v3696
  %v3825 = vmul.f32 %v2770, %v3697
  %v3826 = vmul.f32 %v2841, %v3698
  %v3827 = vmul.f32 %v2843, %v3699
  %v3828 = vmul.f32 %v2914, %v3700
  %v3829 = vmul.f32 %v2916, %v3701
  %v3830 = vmul.f32 %v2987, %v3702
  %v3831 = vmul.f32 %v2989, %v3703
  %v3832 = vmul.f32 %v3060, %v3704
  %v3833 = vmul.f32 %v3062, %v3705
  %v3834 = vmul.f32 %v3133, %v3706
  %v3835 = vmul.f32 %v3135, %v3707
  %v3836 = vmul.f32 %v3206, %v3708
  %v3837 = vmul.f32 %v3208, %v3709
  %v3838 = vmul.f32 %v2699, %v3710
  %v3839 = vmul.f32 %v2701, %v3711
  %v3840 = vmul.f32 %v2772, %v3712
  %v3841 = vmul.f32 %v2774, %v3713
  %v3842 = vmul.f32 %v2845, %v3714
  %v3843 = vmul.f32 %v2847, %v3715
  %v3844 = vmul.f32 %v2918, %v3716
  %v3845 = vmul.f32 %v2920, %v3717
  %v3846 = vmul.f32 %v2991, %v3718
  %v3847 = vmul.f32 %v2993, %v3719
  %v3848 = vmul.f32 %v3064, %v3720
  %v3849 = vmul.f32 %v3066, %v3721
  %v3850 = vmul.f32 %v3137, %v3722
  %v3851 = vmul.f32 %v3139, %v3723
  %v3852 = vmul.f32 %v3210, %v3724
  %v3853 = vmul.f32 %v3212, %v3725
  %s3854 = scalar_lea.vmem %s3, 32
  %v3855 = vld [vmem:[%s3854] sm:$0xf]
  %v3856 = vld [vmem:[%s3854 + $0x4] sm:$0xf]
  %v3857 = vld [vmem:[%s3854 + $0x8] sm:$0xf]
  %v3858 = vld [vmem:[%s3854 + $0xc] sm:$0xf]
  %v3859 = vld [vmem:[%s3854 + $0x10] sm:$0xf]
  %v3860 = vld [vmem:[%s3854 + $0x14] sm:$0xf]
  %v3861 = vld [vmem:[%s3854 + $0x18] sm:$0xf]
  %v3862 = vld [vmem:[%s3854 + $0x1c] sm:$0xf]
  %v3863 = vpack.c.bf16 %v3742, %v3726
  %v3864 = vpack.c.bf16 %v3743, %v3727
  %v3865 = vpack.c.bf16 %v3744, %v3728
  %v3866 = vpack.c.bf16 %v3745, %v3729
  %v3867 = vpack.c.bf16 %v3746, %v3730
  %v3868 = vpack.c.bf16 %v3747, %v3731
  %v3869 = vpack.c.bf16 %v3748, %v3732
  %v3870 = vpack.c.bf16 %v3749, %v3733
  %v3871 = vpack.c.bf16 %v3750, %v3734
  %v3872 = vpack.c.bf16 %v3751, %v3735
  %v3873 = vpack.c.bf16 %v3752, %v3736
  %v3874 = vpack.c.bf16 %v3753, %v3737
  %v3875 = vpack.c.bf16 %v3754, %v3738
  %v3876 = vpack.c.bf16 %v3755, %v3739
  %v3877 = vpack.c.bf16 %v3756, %v3740
  %v3878 = vpack.c.bf16 %v3757, %v3741
  %v3879 = vpack.c.bf16 %v3774, %v3758
  %v3880 = vpack.c.bf16 %v3775, %v3759
  %v3881 = vpack.c.bf16 %v3776, %v3760
  %v3882 = vpack.c.bf16 %v3777, %v3761
  %v3883 = vpack.c.bf16 %v3778, %v3762
  %v3884 = vpack.c.bf16 %v3779, %v3763
  %v3885 = vpack.c.bf16 %v3780, %v3764
  %v3886 = vpack.c.bf16 %v3781, %v3765
  %v3887 = vpack.c.bf16 %v3782, %v3766
  %v3888 = vpack.c.bf16 %v3783, %v3767
  %v3889 = vpack.c.bf16 %v3784, %v3768
  %v3890 = vpack.c.bf16 %v3785, %v3769
  %v3891 = vpack.c.bf16 %v3786, %v3770
  %v3892 = vpack.c.bf16 %v3787, %v3771
  %v3893 = vpack.c.bf16 %v3788, %v3772
  %v3894 = vpack.c.bf16 %v3789, %v3773
  %v3895 = vpack.c.bf16 %v3806, %v3790
  %v3896 = vpack.c.bf16 %v3807, %v3791
  %v3897 = vpack.c.bf16 %v3808, %v3792
  %v3898 = vpack.c.bf16 %v3809, %v3793
  %v3899 = vpack.c.bf16 %v3810, %v3794
  %v3900 = vpack.c.bf16 %v3811, %v3795
  %v3901 = vpack.c.bf16 %v3812, %v3796
  %v3902 = vpack.c.bf16 %v3813, %v3797
  %v3903 = vpack.c.bf16 %v3814, %v3798
  %v3904 = vpack.c.bf16 %v3815, %v3799
  %v3905 = vpack.c.bf16 %v3816, %v3800
  %v3906 = vpack.c.bf16 %v3817, %v3801
  %v3907 = vpack.c.bf16 %v3818, %v3802
  %v3908 = vpack.c.bf16 %v3819, %v3803
  %v3909 = vpack.c.bf16 %v3820, %v3804
  %v3910 = vpack.c.bf16 %v3821, %v3805
  %v3911 = vpack.c.bf16 %v3838, %v3822
  %v3912 = vpack.c.bf16 %v3839, %v3823
  %v3913 = vpack.c.bf16 %v3840, %v3824
  %v3914 = vpack.c.bf16 %v3841, %v3825
  %v3915 = vpack.c.bf16 %v3842, %v3826
  %v3916 = vpack.c.bf16 %v3843, %v3827
  %v3917 = vpack.c.bf16 %v3844, %v3828
  %v3918 = vpack.c.bf16 %v3845, %v3829
  %v3919 = vpack.c.bf16 %v3846, %v3830
  %v3920 = vpack.c.bf16 %v3847, %v3831
  %v3921 = vpack.c.bf16 %v3848, %v3832
  %v3922 = vpack.c.bf16 %v3849, %v3833
  %v3923 = vpack.c.bf16 %v3850, %v3834
  %v3924 = vpack.c.bf16 %v3851, %v3835
  %v3925 = vpack.c.bf16 %v3852, %v3836
  %v3926 = vpack.c.bf16 %v3853, %v3837
  %s3927 = scalar_lea.vmem %s4, 64
  %v3928 = vld [vmem:[%s3927] sm:$0xff]
  %v3929 = vld [vmem:[%s3927 + $0x8] sm:$0xff]
  %v3930 = vld [vmem:[%s3927 + $0x10] sm:$0xff]
  %v3931 = vld [vmem:[%s3927 + $0x18] sm:$0xff]
  %v3932 = vld [vmem:[%s3927 + $0x20] sm:$0xff]
  %v3933 = vld [vmem:[%s3927 + $0x28] sm:$0xff]
  %v3934 = vld [vmem:[%s3927 + $0x30] sm:$0xff]
  %v3935 = vld [vmem:[%s3927 + $0x38] sm:$0xff]
  %3937 = vset.pattern.permute.xlu0 0
  %3938 = vperm.xlu0 %3937, %v3928
  %v3939 = vpop.permute.xlu0 %3938
  %3942 = vset.pattern.permute.xlu0 0
  %3943 = vperm.xlu0 %3942, %v3929
  %v3944 = vpop.permute.xlu0 %3943
  %3947 = vset.pattern.permute.xlu0 0
  %3948 = vperm.xlu0 %3947, %v3930
  %v3949 = vpop.permute.xlu0 %3948
  %3952 = vset.pattern.permute.xlu0 0
  %3953 = vperm.xlu0 %3952, %v3931
  %v3954 = vpop.permute.xlu0 %3953
  %3957 = vset.pattern.permute.xlu0 0
  %3958 = vperm.xlu0 %3957, %v3932
  %v3959 = vpop.permute.xlu0 %3958
  %3962 = vset.pattern.permute.xlu0 0
  %3963 = vperm.xlu0 %3962, %v3933
  %v3964 = vpop.permute.xlu0 %3963
  %3967 = vset.pattern.permute.xlu0 0
  %3968 = vperm.xlu0 %3967, %v3934
  %v3969 = vpop.permute.xlu0 %3968
  %3972 = vset.pattern.permute.xlu0 0
  %3973 = vperm.xlu0 %3972, %v3935
  %v3974 = vpop.permute.xlu0 %3973
  %v3984 = vunpack.c.l.b16 %v3855
  %v3985 = vunpack.c.l.b16 %v3856
  %v3986 = vunpack.c.l.b16 %v3857
  %v3987 = vunpack.c.l.b16 %v3858
  %v3988 = vunpack.c.l.b16 %v3859
  %v3989 = vunpack.c.l.b16 %v3860
  %v3990 = vunpack.c.l.b16 %v3861
  %v3991 = vunpack.c.l.b16 %v3862
  %v3992 = vpack.c.b16 %v3985, %v3984
  %v3993 = vpack.c.b16 %v3987, %v3986
  %v3994 = vpack.c.b16 %v3989, %v3988
  %v3995 = vpack.c.b16 %v3991, %v3990
  %v3997 = vsel %vm2617, %v3992, 0
  %v4000 = vsel %vm2617, %v3993, 0
  %v4003 = vsel %vm2617, %v3994, 0
  %v4006 = vsel %vm2617, %v3995, 0
  %4008 = vmatprep.subr.bf16.mxu0 %v3864
  %4009 = vmatpush1.bf16.msra.mxu0 %v3863
  %4010 = vmatprep.subr.bf16.mxu0 %v3880
  %4011 = vmatpush1.bf16.msra.mxu0 %v3879
  %4012 = vmatprep.subr.bf16.mxu0 %v3896
  %4013 = vmatpush1.bf16.msra.mxu0 %v3895
  %4014 = vmatprep.subr.bf16.mxu0 %v3912
  %4015 = vmatpush1.bf16.msra.mxu0 %v3911
  %4016 = vmatprep.subr.bf16.mxu0 0
  %4017 = vmatpush1.bf16.msra.mxu0 0
  %4018 = vmatprep.subr.bf16.mxu0 0
  %4019 = vmatpush1.bf16.msra.mxu0 0
  %4020 = vmatprep.subr.bf16.mxu0 0
  %4021 = vmatpush1.bf16.msra.mxu0 0
  %4022 = vmatprep.subr.bf16.mxu0 0
  %4023 = vmatpush1.bf16.msra.mxu0 0
  %4024 = vmatprep.subr.bf16.mxu0 0
  %4025 = vmatpush1.bf16.msra.mxu0 0
  %4026 = vmatprep.subr.bf16.mxu0 0
  %4027 = vmatpush1.bf16.msra.mxu0 0
  %4028 = vmatprep.subr.bf16.mxu0 0
  %4029 = vmatpush1.bf16.msra.mxu0 0
  %4030 = vmatprep.subr.bf16.mxu0 0
  %4031 = vmatpush1.bf16.msra.mxu0 0
  %4032 = vmatprep.subr.bf16.mxu0 0
  %4033 = vmatpush1.bf16.msra.mxu0 0
  %4034 = vmatprep.subr.bf16.mxu0 0
  %4035 = vmatpush1.bf16.msra.mxu0 0
  %4036 = vmatprep.subr.bf16.mxu0 0
  %4037 = vmatpush1.bf16.msra.mxu0 0
  %4038 = vmatprep.subr.bf16.mxu0 0
  %4039 = vmatpush1.bf16.msra.mxu0 0
  %4040 = vmatprep.mubr.bf16.mxu0 0
  %4041 = vmatmul.mubr.bf16.gmra.mrb[0].mxu0 %v3997
  %v4042 = vpop.f32.mrb[0].mxu0
  %v4043 = vadd.f32 %v3939, %v4042
  %v4044 = vpop.f32.mrb[0].mxu0
  %v4045 = vadd.f32 %v3939, %v4044
  %v4046 = vpop.f32.mrb[0].mxu0
  %v4047 = vadd.f32 %v3944, %v4046
  %v4048 = vpop.f32.mrb[0].mxu0
  %v4049 = vadd.f32 %v3944, %v4048
  %4050 = vmatprep.mubr.bf16.mxu0 0
  %4051 = vmatmul.mubr.bf16.gmra.mrb[0].mxu0 %v4000
  %v4052 = vpop.f32.mrb[0].mxu0
  %v4053 = vadd.f32 %v3949, %v4052
  %v4054 = vpop.f32.mrb[0].mxu0
  %v4055 = vadd.f32 %v3949, %v4054
  %v4056 = vpop.f32.mrb[0].mxu0
  %v4057 = vadd.f32 %v3954, %v4056
  %v4058 = vpop.f32.mrb[0].mxu0
  %v4059 = vadd.f32 %v3954, %v4058
  %4060 = vmatprep.mubr.bf16.mxu0 0
  %4061 = vmatmul.mubr.bf16.gmra.mrb[0].mxu0 %v4003
  %v4062 = vpop.f32.mrb[0].mxu0
  %v4063 = vadd.f32 %v3959, %v4062
  %v4064 = vpop.f32.mrb[0].mxu0
  %v4065 = vadd.f32 %v3959, %v4064
  %v4066 = vpop.f32.mrb[0].mxu0
  %v4067 = vadd.f32 %v3964, %v4066
  %v4068 = vpop.f32.mrb[0].mxu0
  %v4069 = vadd.f32 %v3964, %v4068
  %4070 = vmatprep.mubr.bf16.mxu0 0
  %4071 = vmatmul.mubr.bf16.gmra.mrb[0].mxu0 %v4006
  %v4072 = vpop.f32.mrb[0].mxu0
  %v4073 = vadd.f32 %v3969, %v4072
  %v4074 = vpop.f32.mrb[0].mxu0
  %v4075 = vadd.f32 %v3969, %v4074
  %v4076 = vpop.f32.mrb[0].mxu0
  %v4077 = vadd.f32 %v3974, %v4076
  %v4078 = vpop.f32.mrb[0].mxu0
  %v4079 = vadd.f32 %v3974, %v4078
  %4080 = vdwg.mxu0
  %4081 = vmatprep.subr.bf16.mxu0 %v3866
  %4082 = vmatpush1.bf16.msra.mxu0 %v3865
  %4083 = vmatprep.subr.bf16.mxu0 %v3882
  %4084 = vmatpush1.bf16.msra.mxu0 %v3881
  %4085 = vmatprep.subr.bf16.mxu0 %v3898
  %4086 = vmatpush1.bf16.msra.mxu0 %v3897
  %4087 = vmatprep.subr.bf16.mxu0 %v3914
  %4088 = vmatpush1.bf16.msra.mxu0 %v3913
  %4089 = vmatprep.subr.bf16.mxu0 0
  %4090 = vmatpush1.bf16.msra.mxu0 0
  %4091 = vmatprep.subr.bf16.mxu0 0
  %4092 = vmatpush1.bf16.msra.mxu0 0
  %4093 = vmatprep.subr.bf16.mxu0 0
  %4094 = vmatpush1.bf16.msra.mxu0 0
  %4095 = vmatprep.subr.bf16.mxu0 0
  %4096 = vmatpush1.bf16.msra.mxu0 0
  %4097 = vmatprep.subr.bf16.mxu0 0
  %4098 = vmatpush1.bf16.msra.mxu0 0
  %4099 = vmatprep.subr.bf16.mxu0 0
  %4100 = vmatpush1.bf16.msra.mxu0 0
  %4101 = vmatprep.subr.bf16.mxu0 0
  %4102 = vmatpush1.bf16.msra.mxu0 0
  %4103 = vmatprep.subr.bf16.mxu0 0
  %4104 = vmatpush1.bf16.msra.mxu0 0
  %4105 = vmatprep.subr.bf16.mxu0 0
  %4106 = vmatpush1.bf16.msra.mxu0 0
  %4107 = vmatprep.subr.bf16.mxu0 0
  %4108 = vmatpush1.bf16.msra.mxu0 0
  %4109 = vmatprep.subr.bf16.mxu0 0
  %4110 = vmatpush1.bf16.msra.mxu0 0
  %4111 = vmatprep.subr.bf16.mxu0 0
  %4112 = vmatpush1.bf16.msra.mxu0 0
  %4113 = vmatprep.mubr.bf16.mxu0 0
  %4114 = vmatmul.mubr.bf16.gmra.mrb[0].mxu0 %v3997
  %v4115 = vpop.f32.mrb[0].mxu0
  %v4116 = vadd.f32 %v3939, %v4115
  %v4117 = vpop.f32.mrb[0].mxu0
  %v4118 = vadd.f32 %v3939, %v4117
  %v4119 = vpop.f32.mrb[0].mxu0
  %v4120 = vadd.f32 %v3944, %v4119
  %v4121 = vpop.f32.mrb[0].mxu0
  %v4122 = vadd.f32 %v3944, %v4121
  %4123 = vmatprep.mubr.bf16.mxu0 0
  %4124 = vmatmul.mubr.bf16.gmra.mrb[0].mxu0 %v4000
  %v4125 = vpop.f32.mrb[0].mxu0
  %v4126 = vadd.f32 %v3949, %v4125
  %v4127 = vpop.f32.mrb[0].mxu0
  %v4128 = vadd.f32 %v3949, %v4127
  %v4129 = vpop.f32.mrb[0].mxu0
  %v4130 = vadd.f32 %v3954, %v4129
  %v4131 = vpop.f32.mrb[0].mxu0
  %v4132 = vadd.f32 %v3954, %v4131
  %4133 = vmatprep.mubr.bf16.mxu0 0
  %4134 = vmatmul.mubr.bf16.gmra.mrb[0].mxu0 %v4003
  %v4135 = vpop.f32.mrb[0].mxu0
  %v4136 = vadd.f32 %v3959, %v4135
  %v4137 = vpop.f32.mrb[0].mxu0
  %v4138 = vadd.f32 %v3959, %v4137
  %v4139 = vpop.f32.mrb[0].mxu0
  %v4140 = vadd.f32 %v3964, %v4139
  %v4141 = vpop.f32.mrb[0].mxu0
  %v4142 = vadd.f32 %v3964, %v4141
  %4143 = vmatprep.mubr.bf16.mxu0 0
  %4144 = vmatmul.mubr.bf16.gmra.mrb[0].mxu0 %v4006
  %v4145 = vpop.f32.mrb[0].mxu0
  %v4146 = vadd.f32 %v3969, %v4145
  %v4147 = vpop.f32.mrb[0].mxu0
  %v4148 = vadd.f32 %v3969, %v4147
  %v4149 = vpop.f32.mrb[0].mxu0
  %v4150 = vadd.f32 %v3974, %v4149
  %v4151 = vpop.f32.mrb[0].mxu0
  %v4152 = vadd.f32 %v3974, %v4151
  %4153 = vdwg.mxu0
  %4154 = vmatprep.subr.bf16.mxu0 %v3868
  %4155 = vmatpush1.bf16.msra.mxu0 %v3867
  %4156 = vmatprep.subr.bf16.mxu0 %v3884
  %4157 = vmatpush1.bf16.msra.mxu0 %v3883
  %4158 = vmatprep.subr.bf16.mxu0 %v3900
  %4159 = vmatpush1.bf16.msra.mxu0 %v3899
  %4160 = vmatprep.subr.bf16.mxu0 %v3916
  %4161 = vmatpush1.bf16.msra.mxu0 %v3915
  %4162 = vmatprep.subr.bf16.mxu0 0
  %4163 = vmatpush1.bf16.msra.mxu0 0
  %4164 = vmatprep.subr.bf16.mxu0 0
  %4165 = vmatpush1.bf16.msra.mxu0 0
  %4166 = vmatprep.subr.bf16.mxu0 0
  %4167 = vmatpush1.bf16.msra.mxu0 0
  %4168 = vmatprep.subr.bf16.mxu0 0
  %4169 = vmatpush1.bf16.msra.mxu0 0
  %4170 = vmatprep.subr.bf16.mxu0 0
  %4171 = vmatpush1.bf16.msra.mxu0 0
  %4172 = vmatprep.subr.bf16.mxu0 0
  %4173 = vmatpush1.bf16.msra.mxu0 0
  %4174 = vmatprep.subr.bf16.mxu0 0
  %4175 = vmatpush1.bf16.msra.mxu0 0
  %4176 = vmatprep.subr.bf16.mxu0 0
  %4177 = vmatpush1.bf16.msra.mxu0 0
  %4178 = vmatprep.subr.bf16.mxu0 0
  %4179 = vmatpush1.bf16.msra.mxu0 0
  %4180 = vmatprep.subr.bf16.mxu0 0
  %4181 = vmatpush1.bf16.msra.mxu0 0
  %4182 = vmatprep.subr.bf16.mxu0 0
  %4183 = vmatpush1.bf16.msra.mxu0 0
  %4184 = vmatprep.subr.bf16.mxu0 0
  %4185 = vmatpush1.bf16.msra.mxu0 0
  %4186 = vmatprep.mubr.bf16.mxu0 0
  %4187 = vmatmul.mubr.bf16.gmra.mrb[0].mxu0 %v3997
  %v4188 = vpop.f32.mrb[0].mxu0
  %v4189 = vadd.f32 %v3939, %v4188
  %v4190 = vpop.f32.mrb[0].mxu0
  %v4191 = vadd.f32 %v3939, %v4190
  %v4192 = vpop.f32.mrb[0].mxu0
  %v4193 = vadd.f32 %v3944, %v4192
  %v4194 = vpop.f32.mrb[0].mxu0
  %v4195 = vadd.f32 %v3944, %v4194
  %4196 = vmatprep.mubr.bf16.mxu0 0
  %4197 = vmatmul.mubr.bf16.gmra.mrb[0].mxu0 %v4000
  %v4198 = vpop.f32.mrb[0].mxu0
  %v4199 = vadd.f32 %v3949, %v4198
  %v4200 = vpop.f32.mrb[0].mxu0
  %v4201 = vadd.f32 %v3949, %v4200
  %v4202 = vpop.f32.mrb[0].mxu0
  %v4203 = vadd.f32 %v3954, %v4202
  %v4204 = vpop.f32.mrb[0].mxu0
  %v4205 = vadd.f32 %v3954, %v4204
  %4206 = vmatprep.mubr.bf16.mxu0 0
  %4207 = vmatmul.mubr.bf16.gmra.mrb[0].mxu0 %v4003
  %v4208 = vpop.f32.mrb[0].mxu0
  %v4209 = vadd.f32 %v3959, %v4208
  %v4210 = vpop.f32.mrb[0].mxu0
  %v4211 = vadd.f32 %v3959, %v4210
  %v4212 = vpop.f32.mrb[0].mxu0
  %v4213 = vadd.f32 %v3964, %v4212
  %v4214 = vpop.f32.mrb[0].mxu0
  %v4215 = vadd.f32 %v3964, %v4214
  %4216 = vmatprep.mubr.bf16.mxu0 0
  %4217 = vmatmul.mubr.bf16.gmra.mrb[0].mxu0 %v4006
  %v4218 = vpop.f32.mrb[0].mxu0
  %v4219 = vadd.f32 %v3969, %v4218
  %v4220 = vpop.f32.mrb[0].mxu0
  %v4221 = vadd.f32 %v3969, %v4220
  %v4222 = vpop.f32.mrb[0].mxu0
  %v4223 = vadd.f32 %v3974, %v4222
  %v4224 = vpop.f32.mrb[0].mxu0
  %v4225 = vadd.f32 %v3974, %v4224
  %4226 = vdwg.mxu0
  %4227 = vmatprep.subr.bf16.mxu0 %v3870
  %4228 = vmatpush1.bf16.msra.mxu0 %v3869
  %4229 = vmatprep.subr.bf16.mxu0 %v3886
  %4230 = vmatpush1.bf16.msra.mxu0 %v3885
  %4231 = vmatprep.subr.bf16.mxu0 %v3902
  %4232 = vmatpush1.bf16.msra.mxu0 %v3901
  %4233 = vmatprep.subr.bf16.mxu0 %v3918
  %4234 = vmatpush1.bf16.msra.mxu0 %v3917
  %4235 = vmatprep.subr.bf16.mxu0 0
  %4236 = vmatpush1.bf16.msra.mxu0 0
  %4237 = vmatprep.subr.bf16.mxu0 0
  %4238 = vmatpush1.bf16.msra.mxu0 0
  %4239 = vmatprep.subr.bf16.mxu0 0
  %4240 = vmatpush1.bf16.msra.mxu0 0
  %4241 = vmatprep.subr.bf16.mxu0 0
  %4242 = vmatpush1.bf16.msra.mxu0 0
  %4243 = vmatprep.subr.bf16.mxu0 0
  %4244 = vmatpush1.bf16.msra.mxu0 0
  %4245 = vmatprep.subr.bf16.mxu0 0
  %4246 = vmatpush1.bf16.msra.mxu0 0
  %4247 = vmatprep.subr.bf16.mxu0 0
  %4248 = vmatpush1.bf16.msra.mxu0 0
  %4249 = vmatprep.subr.bf16.mxu0 0
  %4250 = vmatpush1.bf16.msra.mxu0 0
  %4251 = vmatprep.subr.bf16.mxu0 0
  %4252 = vmatpush1.bf16.msra.mxu0 0
  %4253 = vmatprep.subr.bf16.mxu0 0
  %4254 = vmatpush1.bf16.msra.mxu0 0
  %4255 = vmatprep.subr.bf16.mxu0 0
  %4256 = vmatpush1.bf16.msra.mxu0 0
  %4257 = vmatprep.subr.bf16.mxu0 0
  %4258 = vmatpush1.bf16.msra.mxu0 0
  %4259 = vmatprep.mubr.bf16.mxu0 0
  %4260 = vmatmul.mubr.bf16.gmra.mrb[0].mxu0 %v3997
  %v4261 = vpop.f32.mrb[0].mxu0
  %v4262 = vadd.f32 %v3939, %v4261
  %v4263 = vpop.f32.mrb[0].mxu0
  %v4264 = vadd.f32 %v3939, %v4263
  %v4265 = vpop.f32.mrb[0].mxu0
  %v4266 = vadd.f32 %v3944, %v4265
  %v4267 = vpop.f32.mrb[0].mxu0
  %v4268 = vadd.f32 %v3944, %v4267
  %4269 = vmatprep.mubr.bf16.mxu0 0
  %4270 = vmatmul.mubr.bf16.gmra.mrb[0].mxu0 %v4000
  %v4271 = vpop.f32.mrb[0].mxu0
  %v4272 = vadd.f32 %v3949, %v4271
  %v4273 = vpop.f32.mrb[0].mxu0
  %v4274 = vadd.f32 %v3949, %v4273
  %v4275 = vpop.f32.mrb[0].mxu0
  %v4276 = vadd.f32 %v3954, %v4275
  %v4277 = vpop.f32.mrb[0].mxu0
  %v4278 = vadd.f32 %v3954, %v4277
  %4279 = vmatprep.mubr.bf16.mxu0 0
  %4280 = vmatmul.mubr.bf16.gmra.mrb[0].mxu0 %v4003
  %v4281 = vpop.f32.mrb[0].mxu0
  %v4282 = vadd.f32 %v3959, %v4281
  %v4283 = vpop.f32.mrb[0].mxu0
  %v4284 = vadd.f32 %v3959, %v4283
  %v4285 = vpop.f32.mrb[0].mxu0
  %v4286 = vadd.f32 %v3964, %v4285
  %v4287 = vpop.f32.mrb[0].mxu0
  %v4288 = vadd.f32 %v3964, %v4287
  %4289 = vmatprep.mubr.bf16.mxu0 0
  %4290 = vmatmul.mubr.bf16.gmra.mrb[0].mxu0 %v4006
  %v4291 = vpop.f32.mrb[0].mxu0
  %v4292 = vadd.f32 %v3969, %v4291
  %v4293 = vpop.f32.mrb[0].mxu0
  %v4294 = vadd.f32 %v3969, %v4293
  %v4295 = vpop.f32.mrb[0].mxu0
  %v4296 = vadd.f32 %v3974, %v4295
  %v4297 = vpop.f32.mrb[0].mxu0
  %v4298 = vadd.f32 %v3974, %v4297
  %4299 = vdwg.mxu0
  %4300 = vmatprep.subr.bf16.mxu0 %v3872
  %4301 = vmatpush1.bf16.msra.mxu0 %v3871
  %4302 = vmatprep.subr.bf16.mxu0 %v3888
  %4303 = vmatpush1.bf16.msra.mxu0 %v3887
  %4304 = vmatprep.subr.bf16.mxu0 %v3904
  %4305 = vmatpush1.bf16.msra.mxu0 %v3903
  %4306 = vmatprep.subr.bf16.mxu0 %v3920
  %4307 = vmatpush1.bf16.msra.mxu0 %v3919
  %4308 = vmatprep.subr.bf16.mxu0 0
  %4309 = vmatpush1.bf16.msra.mxu0 0
  %4310 = vmatprep.subr.bf16.mxu0 0
  %4311 = vmatpush1.bf16.msra.mxu0 0
  %4312 = vmatprep.subr.bf16.mxu0 0
  %4313 = vmatpush1.bf16.msra.mxu0 0
  %4314 = vmatprep.subr.bf16.mxu0 0
  %4315 = vmatpush1.bf16.msra.mxu0 0
  %4316 = vmatprep.subr.bf16.mxu0 0
  %4317 = vmatpush1.bf16.msra.mxu0 0
  %4318 = vmatprep.subr.bf16.mxu0 0
  %4319 = vmatpush1.bf16.msra.mxu0 0
  %4320 = vmatprep.subr.bf16.mxu0 0
  %4321 = vmatpush1.bf16.msra.mxu0 0
  %4322 = vmatprep.subr.bf16.mxu0 0
  %4323 = vmatpush1.bf16.msra.mxu0 0
  %4324 = vmatprep.subr.bf16.mxu0 0
  %4325 = vmatpush1.bf16.msra.mxu0 0
  %4326 = vmatprep.subr.bf16.mxu0 0
  %4327 = vmatpush1.bf16.msra.mxu0 0
  %4328 = vmatprep.subr.bf16.mxu0 0
  %4329 = vmatpush1.bf16.msra.mxu0 0
  %4330 = vmatprep.subr.bf16.mxu0 0
  %4331 = vmatpush1.bf16.msra.mxu0 0
  %4332 = vmatprep.mubr.bf16.mxu0 0
  %4333 = vmatmul.mubr.bf16.gmra.mrb[0].mxu0 %v3997
  %v4334 = vpop.f32.mrb[0].mxu0
  %v4335 = vadd.f32 %v3939, %v4334
  %v4336 = vpop.f32.mrb[0].mxu0
  %v4337 = vadd.f32 %v3939, %v4336
  %v4338 = vpop.f32.mrb[0].mxu0
  %v4339 = vadd.f32 %v3944, %v4338
  %v4340 = vpop.f32.mrb[0].mxu0
  %v4341 = vadd.f32 %v3944, %v4340
  %4342 = vmatprep.mubr.bf16.mxu0 0
  %4343 = vmatmul.mubr.bf16.gmra.mrb[0].mxu0 %v4000
  %v4344 = vpop.f32.mrb[0].mxu0
  %v4345 = vadd.f32 %v3949, %v4344
  %v4346 = vpop.f32.mrb[0].mxu0
  %v4347 = vadd.f32 %v3949, %v4346
  %v4348 = vpop.f32.mrb[0].mxu0
  %v4349 = vadd.f32 %v3954, %v4348
  %v4350 = vpop.f32.mrb[0].mxu0
  %v4351 = vadd.f32 %v3954, %v4350
  %4352 = vmatprep.mubr.bf16.mxu0 0
  %4353 = vmatmul.mubr.bf16.gmra.mrb[0].mxu0 %v4003
  %v4354 = vpop.f32.mrb[0].mxu0
  %v4355 = vadd.f32 %v3959, %v4354
  %v4356 = vpop.f32.mrb[0].mxu0
  %v4357 = vadd.f32 %v3959, %v4356
  %v4358 = vpop.f32.mrb[0].mxu0
  %v4359 = vadd.f32 %v3964, %v4358
  %v4360 = vpop.f32.mrb[0].mxu0
  %v4361 = vadd.f32 %v3964, %v4360
  %4362 = vmatprep.mubr.bf16.mxu0 0
  %4363 = vmatmul.mubr.bf16.gmra.mrb[0].mxu0 %v4006
  %v4364 = vpop.f32.mrb[0].mxu0
  %v4365 = vadd.f32 %v3969, %v4364
  %v4366 = vpop.f32.mrb[0].mxu0
  %v4367 = vadd.f32 %v3969, %v4366
  %v4368 = vpop.f32.mrb[0].mxu0
  %v4369 = vadd.f32 %v3974, %v4368
  %v4370 = vpop.f32.mrb[0].mxu0
  %v4371 = vadd.f32 %v3974, %v4370
  %4372 = vdwg.mxu0
  %4373 = vmatprep.subr.bf16.mxu0 %v3874
  %4374 = vmatpush1.bf16.msra.mxu0 %v3873
  %4375 = vmatprep.subr.bf16.mxu0 %v3890
  %4376 = vmatpush1.bf16.msra.mxu0 %v3889
  %4377 = vmatprep.subr.bf16.mxu0 %v3906
  %4378 = vmatpush1.bf16.msra.mxu0 %v3905
  %4379 = vmatprep.subr.bf16.mxu0 %v3922
  %4380 = vmatpush1.bf16.msra.mxu0 %v3921
  %4381 = vmatprep.subr.bf16.mxu0 0
  %4382 = vmatpush1.bf16.msra.mxu0 0
  %4383 = vmatprep.subr.bf16.mxu0 0
  %4384 = vmatpush1.bf16.msra.mxu0 0
  %4385 = vmatprep.subr.bf16.mxu0 0
  %4386 = vmatpush1.bf16.msra.mxu0 0
  %4387 = vmatprep.subr.bf16.mxu0 0
  %4388 = vmatpush1.bf16.msra.mxu0 0
  %4389 = vmatprep.subr.bf16.mxu0 0
  %4390 = vmatpush1.bf16.msra.mxu0 0
  %4391 = vmatprep.subr.bf16.mxu0 0
  %4392 = vmatpush1.bf16.msra.mxu0 0
  %4393 = vmatprep.subr.bf16.mxu0 0
  %4394 = vmatpush1.bf16.msra.mxu0 0
  %4395 = vmatprep.subr.bf16.mxu0 0
  %4396 = vmatpush1.bf16.msra.mxu0 0
  %4397 = vmatprep.subr.bf16.mxu0 0
  %4398 = vmatpush1.bf16.msra.mxu0 0
  %4399 = vmatprep.subr.bf16.mxu0 0
  %4400 = vmatpush1.bf16.msra.mxu0 0
  %4401 = vmatprep.subr.bf16.mxu0 0
  %4402 = vmatpush1.bf16.msra.mxu0 0
  %4403 = vmatprep.subr.bf16.mxu0 0
  %4404 = vmatpush1.bf16.msra.mxu0 0
  %4405 = vmatprep.mubr.bf16.mxu0 0
  %4406 = vmatmul.mubr.bf16.gmra.mrb[0].mxu0 %v3997
  %v4407 = vpop.f32.mrb[0].mxu0
  %v4408 = vadd.f32 %v3939, %v4407
  %v4409 = vpop.f32.mrb[0].mxu0
  %v4410 = vadd.f32 %v3939, %v4409
  %v4411 = vpop.f32.mrb[0].mxu0
  %v4412 = vadd.f32 %v3944, %v4411
  %v4413 = vpop.f32.mrb[0].mxu0
  %v4414 = vadd.f32 %v3944, %v4413
  %4415 = vmatprep.mubr.bf16.mxu0 0
  %4416 = vmatmul.mubr.bf16.gmra.mrb[0].mxu0 %v4000
  %v4417 = vpop.f32.mrb[0].mxu0
  %v4418 = vadd.f32 %v3949, %v4417
  %v4419 = vpop.f32.mrb[0].mxu0
  %v4420 = vadd.f32 %v3949, %v4419
  %v4421 = vpop.f32.mrb[0].mxu0
  %v4422 = vadd.f32 %v3954, %v4421
  %v4423 = vpop.f32.mrb[0].mxu0
  %v4424 = vadd.f32 %v3954, %v4423
  %4425 = vmatprep.mubr.bf16.mxu0 0
  %4426 = vmatmul.mubr.bf16.gmra.mrb[0].mxu0 %v4003
  %v4427 = vpop.f32.mrb[0].mxu0
  %v4428 = vadd.f32 %v3959, %v4427
  %v4429 = vpop.f32.mrb[0].mxu0
  %v4430 = vadd.f32 %v3959, %v4429
  %v4431 = vpop.f32.mrb[0].mxu0
  %v4432 = vadd.f32 %v3964, %v4431
  %v4433 = vpop.f32.mrb[0].mxu0
  %v4434 = vadd.f32 %v3964, %v4433
  %4435 = vmatprep.mubr.bf16.mxu0 0
  %4436 = vmatmul.mubr.bf16.gmra.mrb[0].mxu0 %v4006
  %v4437 = vpop.f32.mrb[0].mxu0
  %v4438 = vadd.f32 %v3969, %v4437
  %v4439 = vpop.f32.mrb[0].mxu0
  %v4440 = vadd.f32 %v3969, %v4439
  %v4441 = vpop.f32.mrb[0].mxu0
  %v4442 = vadd.f32 %v3974, %v4441
  %v4443 = vpop.f32.mrb[0].mxu0
  %v4444 = vadd.f32 %v3974, %v4443
  %4445 = vdwg.mxu0
  %4446 = vmatprep.subr.bf16.mxu0 %v3876
  %4447 = vmatpush1.bf16.msra.mxu0 %v3875
  %4448 = vmatprep.subr.bf16.mxu0 %v3892
  %4449 = vmatpush1.bf16.msra.mxu0 %v3891
  %4450 = vmatprep.subr.bf16.mxu0 %v3908
  %4451 = vmatpush1.bf16.msra.mxu0 %v3907
  %4452 = vmatprep.subr.bf16.mxu0 %v3924
  %4453 = vmatpush1.bf16.msra.mxu0 %v3923
  %4454 = vmatprep.subr.bf16.mxu0 0
  %4455 = vmatpush1.bf16.msra.mxu0 0
  %4456 = vmatprep.subr.bf16.mxu0 0
  %4457 = vmatpush1.bf16.msra.mxu0 0
  %4458 = vmatprep.subr.bf16.mxu0 0
  %4459 = vmatpush1.bf16.msra.mxu0 0
  %4460 = vmatprep.subr.bf16.mxu0 0
  %4461 = vmatpush1.bf16.msra.mxu0 0
  %4462 = vmatprep.subr.bf16.mxu0 0
  %4463 = vmatpush1.bf16.msra.mxu0 0
  %4464 = vmatprep.subr.bf16.mxu0 0
  %4465 = vmatpush1.bf16.msra.mxu0 0
  %4466 = vmatprep.subr.bf16.mxu0 0
  %4467 = vmatpush1.bf16.msra.mxu0 0
  %4468 = vmatprep.subr.bf16.mxu0 0
  %4469 = vmatpush1.bf16.msra.mxu0 0
  %4470 = vmatprep.subr.bf16.mxu0 0
  %4471 = vmatpush1.bf16.msra.mxu0 0
  %4472 = vmatprep.subr.bf16.mxu0 0
  %4473 = vmatpush1.bf16.msra.mxu0 0
  %4474 = vmatprep.subr.bf16.mxu0 0
  %4475 = vmatpush1.bf16.msra.mxu0 0
  %4476 = vmatprep.subr.bf16.mxu0 0
  %4477 = vmatpush1.bf16.msra.mxu0 0
  %4478 = vmatprep.mubr.bf16.mxu0 0
  %4479 = vmatmul.mubr.bf16.gmra.mrb[0].mxu0 %v3997
  %v4480 = vpop.f32.mrb[0].mxu0
  %v4481 = vadd.f32 %v3939, %v4480
  %v4482 = vpop.f32.mrb[0].mxu0
  %v4483 = vadd.f32 %v3939, %v4482
  %v4484 = vpop.f32.mrb[0].mxu0
  %v4485 = vadd.f32 %v3944, %v4484
  %v4486 = vpop.f32.mrb[0].mxu0
  %v4487 = vadd.f32 %v3944, %v4486
  %4488 = vmatprep.mubr.bf16.mxu0 0
  %4489 = vmatmul.mubr.bf16.gmra.mrb[0].mxu0 %v4000
  %v4490 = vpop.f32.mrb[0].mxu0
  %v4491 = vadd.f32 %v3949, %v4490
  %v4492 = vpop.f32.mrb[0].mxu0
  %v4493 = vadd.f32 %v3949, %v4492
  %v4494 = vpop.f32.mrb[0].mxu0
  %v4495 = vadd.f32 %v3954, %v4494
  %v4496 = vpop.f32.mrb[0].mxu0
  %v4497 = vadd.f32 %v3954, %v4496
  %4498 = vmatprep.mubr.bf16.mxu0 0
  %4499 = vmatmul.mubr.bf16.gmra.mrb[0].mxu0 %v4003
  %v4500 = vpop.f32.mrb[0].mxu0
  %v4501 = vadd.f32 %v3959, %v4500
  %v4502 = vpop.f32.mrb[0].mxu0
  %v4503 = vadd.f32 %v3959, %v4502
  %v4504 = vpop.f32.mrb[0].mxu0
  %v4505 = vadd.f32 %v3964, %v4504
  %v4506 = vpop.f32.mrb[0].mxu0
  %v4507 = vadd.f32 %v3964, %v4506
  %4508 = vmatprep.mubr.bf16.mxu0 0
  %4509 = vmatmul.mubr.bf16.gmra.mrb[0].mxu0 %v4006
  %v4510 = vpop.f32.mrb[0].mxu0
  %v4511 = vadd.f32 %v3969, %v4510
  %v4512 = vpop.f32.mrb[0].mxu0
  %v4513 = vadd.f32 %v3969, %v4512
  %v4514 = vpop.f32.mrb[0].mxu0
  %v4515 = vadd.f32 %v3974, %v4514
  %v4516 = vpop.f32.mrb[0].mxu0
  %v4517 = vadd.f32 %v3974, %v4516
  %4518 = vdwg.mxu0
  %4519 = vmatprep.subr.bf16.mxu0 %v3878
  %4520 = vmatpush1.bf16.msra.mxu0 %v3877
  %4521 = vmatprep.subr.bf16.mxu0 %v3894
  %4522 = vmatpush1.bf16.msra.mxu0 %v3893
  %4523 = vmatprep.subr.bf16.mxu0 %v3910
  %4524 = vmatpush1.bf16.msra.mxu0 %v3909
  %4525 = vmatprep.subr.bf16.mxu0 %v3926
  %4526 = vmatpush1.bf16.msra.mxu0 %v3925
  %4527 = vmatprep.subr.bf16.mxu0 0
  %4528 = vmatpush1.bf16.msra.mxu0 0
  %4529 = vmatprep.subr.bf16.mxu0 0
  %4530 = vmatpush1.bf16.msra.mxu0 0
  %4531 = vmatprep.subr.bf16.mxu0 0
  %4532 = vmatpush1.bf16.msra.mxu0 0
  %4533 = vmatprep.subr.bf16.mxu0 0
  %4534 = vmatpush1.bf16.msra.mxu0 0
  %4535 = vmatprep.subr.bf16.mxu0 0
  %4536 = vmatpush1.bf16.msra.mxu0 0
  %4537 = vmatprep.subr.bf16.mxu0 0
  %4538 = vmatpush1.bf16.msra.mxu0 0
  %4539 = vmatprep.subr.bf16.mxu0 0
  %4540 = vmatpush1.bf16.msra.mxu0 0
  %4541 = vmatprep.subr.bf16.mxu0 0
  %4542 = vmatpush1.bf16.msra.mxu0 0
  %4543 = vmatprep.subr.bf16.mxu0 0
  %4544 = vmatpush1.bf16.msra.mxu0 0
  %4545 = vmatprep.subr.bf16.mxu0 0
  %4546 = vmatpush1.bf16.msra.mxu0 0
  %4547 = vmatprep.subr.bf16.mxu0 0
  %4548 = vmatpush1.bf16.msra.mxu0 0
  %4549 = vmatprep.subr.bf16.mxu0 0
  %4550 = vmatpush1.bf16.msra.mxu0 0
  %4551 = vmatprep.mubr.bf16.mxu0 0
  %4552 = vmatmul.mubr.bf16.gmra.mrb[0].mxu0 %v3997
  %v4553 = vpop.f32.mrb[0].mxu0
  %v4554 = vadd.f32 %v3939, %v4553
  %v4555 = vpop.f32.mrb[0].mxu0
  %v4556 = vadd.f32 %v3939, %v4555
  %v4557 = vpop.f32.mrb[0].mxu0
  %v4558 = vadd.f32 %v3944, %v4557
  %v4559 = vpop.f32.mrb[0].mxu0
  %v4560 = vadd.f32 %v3944, %v4559
  %4561 = vmatprep.mubr.bf16.mxu0 0
  %4562 = vmatmul.mubr.bf16.gmra.mrb[0].mxu0 %v4000
  %v4563 = vpop.f32.mrb[0].mxu0
  %v4564 = vadd.f32 %v3949, %v4563
  %v4565 = vpop.f32.mrb[0].mxu0
  %v4566 = vadd.f32 %v3949, %v4565
  %v4567 = vpop.f32.mrb[0].mxu0
  %v4568 = vadd.f32 %v3954, %v4567
  %v4569 = vpop.f32.mrb[0].mxu0
  %v4570 = vadd.f32 %v3954, %v4569
  %4571 = vmatprep.mubr.bf16.mxu0 0
  %4572 = vmatmul.mubr.bf16.gmra.mrb[0].mxu0 %v4003
  %v4573 = vpop.f32.mrb[0].mxu0
  %v4574 = vadd.f32 %v3959, %v4573
  %v4575 = vpop.f32.mrb[0].mxu0
  %v4576 = vadd.f32 %v3959, %v4575
  %v4577 = vpop.f32.mrb[0].mxu0
  %v4578 = vadd.f32 %v3964, %v4577
  %v4579 = vpop.f32.mrb[0].mxu0
  %v4580 = vadd.f32 %v3964, %v4579
  %4581 = vmatprep.mubr.bf16.mxu0 0
  %4582 = vmatmul.mubr.bf16.gmra.mrb[0].mxu0 %v4006
  %v4583 = vpop.f32.mrb[0].mxu0
  %v4584 = vadd.f32 %v3969, %v4583
  %v4585 = vpop.f32.mrb[0].mxu0
  %v4586 = vadd.f32 %v3969, %v4585
  %v4587 = vpop.f32.mrb[0].mxu0
  %v4588 = vadd.f32 %v3974, %v4587
  %v4589 = vpop.f32.mrb[0].mxu0
  %v4590 = vadd.f32 %v3974, %v4589
  %4591 = vdwg.mxu0
  %v4592 = vmul.f32 %v4043, 0.5
  %v4593 = vmul.f32 %v4045, 0.5
  %v4594 = vmul.f32 %v4116, 0.5
  %v4595 = vmul.f32 %v4118, 0.5
  %v4596 = vmul.f32 %v4189, 0.5
  %v4597 = vmul.f32 %v4191, 0.5
  %v4598 = vmul.f32 %v4262, 0.5
  %v4599 = vmul.f32 %v4264, 0.5
  %v4600 = vmul.f32 %v4335, 0.5
  %v4601 = vmul.f32 %v4337, 0.5
  %v4602 = vmul.f32 %v4408, 0.5
  %v4603 = vmul.f32 %v4410, 0.5
  %v4604 = vmul.f32 %v4481, 0.5
  %v4605 = vmul.f32 %v4483, 0.5
  %v4606 = vmul.f32 %v4554, 0.5
  %v4607 = vmul.f32 %v4556, 0.5
  %v4608 = vmul.f32 %v4047, 0.5
  %v4609 = vmul.f32 %v4049, 0.5
  %v4610 = vmul.f32 %v4120, 0.5
  %v4611 = vmul.f32 %v4122, 0.5
  %v4612 = vmul.f32 %v4193, 0.5
  %v4613 = vmul.f32 %v4195, 0.5
  %v4614 = vmul.f32 %v4266, 0.5
  %v4615 = vmul.f32 %v4268, 0.5
  %v4616 = vmul.f32 %v4339, 0.5
  %v4617 = vmul.f32 %v4341, 0.5
  %v4618 = vmul.f32 %v4412, 0.5
  %v4619 = vmul.f32 %v4414, 0.5
  %v4620 = vmul.f32 %v4485, 0.5
  %v4621 = vmul.f32 %v4487, 0.5
  %v4622 = vmul.f32 %v4558, 0.5
  %v4623 = vmul.f32 %v4560, 0.5
  %v4624 = vmul.f32 %v4053, 0.5
  %v4625 = vmul.f32 %v4055, 0.5
  %v4626 = vmul.f32 %v4126, 0.5
  %v4627 = vmul.f32 %v4128, 0.5
  %v4628 = vmul.f32 %v4199, 0.5
  %v4629 = vmul.f32 %v4201, 0.5
  %v4630 = vmul.f32 %v4272, 0.5
  %v4631 = vmul.f32 %v4274, 0.5
  %v4632 = vmul.f32 %v4345, 0.5
  %v4633 = vmul.f32 %v4347, 0.5
  %v4634 = vmul.f32 %v4418, 0.5
  %v4635 = vmul.f32 %v4420, 0.5
  %v4636 = vmul.f32 %v4491, 0.5
  %v4637 = vmul.f32 %v4493, 0.5
  %v4638 = vmul.f32 %v4564, 0.5
  %v4639 = vmul.f32 %v4566, 0.5
  %v4640 = vmul.f32 %v4057, 0.5
  %v4641 = vmul.f32 %v4059, 0.5
  %v4642 = vmul.f32 %v4130, 0.5
  %v4643 = vmul.f32 %v4132, 0.5
  %v4644 = vmul.f32 %v4203, 0.5
  %v4645 = vmul.f32 %v4205, 0.5
  %v4646 = vmul.f32 %v4276, 0.5
  %v4647 = vmul.f32 %v4278, 0.5
  %v4648 = vmul.f32 %v4349, 0.5
  %v4649 = vmul.f32 %v4351, 0.5
  %v4650 = vmul.f32 %v4422, 0.5
  %v4651 = vmul.f32 %v4424, 0.5
  %v4652 = vmul.f32 %v4495, 0.5
  %v4653 = vmul.f32 %v4497, 0.5
  %v4654 = vmul.f32 %v4568, 0.5
  %v4655 = vmul.f32 %v4570, 0.5
  %v4656 = vmul.f32 %v4063, 0.5
  %v4657 = vmul.f32 %v4065, 0.5
  %v4658 = vmul.f32 %v4136, 0.5
  %v4659 = vmul.f32 %v4138, 0.5
  %v4660 = vmul.f32 %v4209, 0.5
  %v4661 = vmul.f32 %v4211, 0.5
  %v4662 = vmul.f32 %v4282, 0.5
  %v4663 = vmul.f32 %v4284, 0.5
  %v4664 = vmul.f32 %v4355, 0.5
  %v4665 = vmul.f32 %v4357, 0.5
  %v4666 = vmul.f32 %v4428, 0.5
  %v4667 = vmul.f32 %v4430, 0.5
  %v4668 = vmul.f32 %v4501, 0.5
  %v4669 = vmul.f32 %v4503, 0.5
  %v4670 = vmul.f32 %v4574, 0.5
  %v4671 = vmul.f32 %v4576, 0.5
  %v4672 = vmul.f32 %v4067, 0.5
  %v4673 = vmul.f32 %v4069, 0.5
  %v4674 = vmul.f32 %v4140, 0.5
  %v4675 = vmul.f32 %v4142, 0.5
  %v4676 = vmul.f32 %v4213, 0.5
  %v4677 = vmul.f32 %v4215, 0.5
  %v4678 = vmul.f32 %v4286, 0.5
  %v4679 = vmul.f32 %v4288, 0.5
  %v4680 = vmul.f32 %v4359, 0.5
  %v4681 = vmul.f32 %v4361, 0.5
  %v4682 = vmul.f32 %v4432, 0.5
  %v4683 = vmul.f32 %v4434, 0.5
  %v4684 = vmul.f32 %v4505, 0.5
  %v4685 = vmul.f32 %v4507, 0.5
  %v4686 = vmul.f32 %v4578, 0.5
  %v4687 = vmul.f32 %v4580, 0.5
  %v4688 = vmul.f32 %v4073, 0.5
  %v4689 = vmul.f32 %v4075, 0.5
  %v4690 = vmul.f32 %v4146, 0.5
  %v4691 = vmul.f32 %v4148, 0.5
  %v4692 = vmul.f32 %v4219, 0.5
  %v4693 = vmul.f32 %v4221, 0.5
  %v4694 = vmul.f32 %v4292, 0.5
  %v4695 = vmul.f32 %v4294, 0.5
  %v4696 = vmul.f32 %v4365, 0.5
  %v4697 = vmul.f32 %v4367, 0.5
  %v4698 = vmul.f32 %v4438, 0.5
  %v4699 = vmul.f32 %v4440, 0.5
  %v4700 = vmul.f32 %v4511, 0.5
  %v4701 = vmul.f32 %v4513, 0.5
  %v4702 = vmul.f32 %v4584, 0.5
  %v4703 = vmul.f32 %v4586, 0.5
  %v4704 = vmul.f32 %v4077, 0.5
  %v4705 = vmul.f32 %v4079, 0.5
  %v4706 = vmul.f32 %v4150, 0.5
  %v4707 = vmul.f32 %v4152, 0.5
  %v4708 = vmul.f32 %v4223, 0.5
  %v4709 = vmul.f32 %v4225, 0.5
  %v4710 = vmul.f32 %v4296, 0.5
  %v4711 = vmul.f32 %v4298, 0.5
  %v4712 = vmul.f32 %v4369, 0.5
  %v4713 = vmul.f32 %v4371, 0.5
  %v4714 = vmul.f32 %v4442, 0.5
  %v4715 = vmul.f32 %v4444, 0.5
  %v4716 = vmul.f32 %v4515, 0.5
  %v4717 = vmul.f32 %v4517, 0.5
  %v4718 = vmul.f32 %v4588, 0.5
  %v4719 = vmul.f32 %v4590, 0.5
  %v4720 = vtanh.pop %v4592
  %v4721 = vtanh.pop %v4593
  %v4722 = vtanh.pop %v4594
  %v4723 = vtanh.pop %v4595
  %v4724 = vtanh.pop %v4596
  %v4725 = vtanh.pop %v4597
  %v4726 = vtanh.pop %v4598
  %v4727 = vtanh.pop %v4599
  %v4728 = vtanh.pop %v4600
  %v4729 = vtanh.pop %v4601
  %v4730 = vtanh.pop %v4602
  %v4731 = vtanh.pop %v4603
  %v4732 = vtanh.pop %v4604
  %v4733 = vtanh.pop %v4605
  %v4734 = vtanh.pop %v4606
  %v4735 = vtanh.pop %v4607
  %v4736 = vtanh.pop %v4608
  %v4737 = vtanh.pop %v4609
  %v4738 = vtanh.pop %v4610
  %v4739 = vtanh.pop %v4611
  %v4740 = vtanh.pop %v4612
  %v4741 = vtanh.pop %v4613
  %v4742 = vtanh.pop %v4614
  %v4743 = vtanh.pop %v4615
  %v4744 = vtanh.pop %v4616
  %v4745 = vtanh.pop %v4617
  %v4746 = vtanh.pop %v4618
  %v4747 = vtanh.pop %v4619
  %v4748 = vtanh.pop %v4620
  %v4749 = vtanh.pop %v4621
  %v4750 = vtanh.pop %v4622
  %v4751 = vtanh.pop %v4623
  %v4752 = vtanh.pop %v4624
  %v4753 = vtanh.pop %v4625
  %v4754 = vtanh.pop %v4626
  %v4755 = vtanh.pop %v4627
  %v4756 = vtanh.pop %v4628
  %v4757 = vtanh.pop %v4629
  %v4758 = vtanh.pop %v4630
  %v4759 = vtanh.pop %v4631
  %v4760 = vtanh.pop %v4632
  %v4761 = vtanh.pop %v4633
  %v4762 = vtanh.pop %v4634
  %v4763 = vtanh.pop %v4635
  %v4764 = vtanh.pop %v4636
  %v4765 = vtanh.pop %v4637
  %v4766 = vtanh.pop %v4638
  %v4767 = vtanh.pop %v4639
  %v4768 = vtanh.pop %v4640
  %v4769 = vtanh.pop %v4641
  %v4770 = vtanh.pop %v4642
  %v4771 = vtanh.pop %v4643
  %v4772 = vtanh.pop %v4644
  %v4773 = vtanh.pop %v4645
  %v4774 = vtanh.pop %v4646
  %v4775 = vtanh.pop %v4647
  %v4776 = vtanh.pop %v4648
  %v4777 = vtanh.pop %v4649
  %v4778 = vtanh.pop %v4650
  %v4779 = vtanh.pop %v4651
  %v4780 = vtanh.pop %v4652
  %v4781 = vtanh.pop %v4653
  %v4782 = vtanh.pop %v4654
  %v4783 = vtanh.pop %v4655
  %v4784 = vtanh.pop %v4656
  %v4785 = vtanh.pop %v4657
  %v4786 = vtanh.pop %v4658
  %v4787 = vtanh.pop %v4659
  %v4788 = vtanh.pop %v4660
  %v4789 = vtanh.pop %v4661
  %v4790 = vtanh.pop %v4662
  %v4791 = vtanh.pop %v4663
  %v4792 = vtanh.pop %v4664
  %v4793 = vtanh.pop %v4665
  %v4794 = vtanh.pop %v4666
  %v4795 = vtanh.pop %v4667
  %v4796 = vtanh.pop %v4668
  %v4797 = vtanh.pop %v4669
  %v4798 = vtanh.pop %v4670
  %v4799 = vtanh.pop %v4671
  %v4800 = vtanh.pop %v4672
  %v4801 = vtanh.pop %v4673
  %v4802 = vtanh.pop %v4674
  %v4803 = vtanh.pop %v4675
  %v4804 = vtanh.pop %v4676
  %v4805 = vtanh.pop %v4677
  %v4806 = vtanh.pop %v4678
  %v4807 = vtanh.pop %v4679
  %v4808 = vtanh.pop %v4680
  %v4809 = vtanh.pop %v4681
  %v4810 = vtanh.pop %v4682
  %v4811 = vtanh.pop %v4683
  %v4812 = vtanh.pop %v4684
  %v4813 = vtanh.pop %v4685
  %v4814 = vtanh.pop %v4686
  %v4815 = vtanh.pop %v4687
  %v4816 = vtanh.pop %v4688
  %v4817 = vtanh.pop %v4689
  %v4818 = vtanh.pop %v4690
  %v4819 = vtanh.pop %v4691
  %v4820 = vtanh.pop %v4692
  %v4821 = vtanh.pop %v4693
  %v4822 = vtanh.pop %v4694
  %v4823 = vtanh.pop %v4695
  %v4824 = vtanh.pop %v4696
  %v4825 = vtanh.pop %v4697
  %v4826 = vtanh.pop %v4698
  %v4827 = vtanh.pop %v4699
  %v4828 = vtanh.pop %v4700
  %v4829 = vtanh.pop %v4701
  %v4830 = vtanh.pop %v4702
  %v4831 = vtanh.pop %v4703
  %v4832 = vtanh.pop %v4704
  %v4833 = vtanh.pop %v4705
  %v4834 = vtanh.pop %v4706
  %v4835 = vtanh.pop %v4707
  %v4836 = vtanh.pop %v4708
  %v4837 = vtanh.pop %v4709
  %v4838 = vtanh.pop %v4710
  %v4839 = vtanh.pop %v4711
  %v4840 = vtanh.pop %v4712
  %v4841 = vtanh.pop %v4713
  %v4842 = vtanh.pop %v4714
  %v4843 = vtanh.pop %v4715
  %v4844 = vtanh.pop %v4716
  %v4845 = vtanh.pop %v4717
  %v4846 = vtanh.pop %v4718
  %v4847 = vtanh.pop %v4719
  %v4848 = vmul.f32 %v4720, 0.5
  %v4849 = vmul.f32 %v4721, 0.5
  %v4850 = vmul.f32 %v4722, 0.5
  %v4851 = vmul.f32 %v4723, 0.5
  %v4852 = vmul.f32 %v4724, 0.5
  %v4853 = vmul.f32 %v4725, 0.5
  %v4854 = vmul.f32 %v4726, 0.5
  %v4855 = vmul.f32 %v4727, 0.5
  %v4856 = vmul.f32 %v4728, 0.5
  %v4857 = vmul.f32 %v4729, 0.5
  %v4858 = vmul.f32 %v4730, 0.5
  %v4859 = vmul.f32 %v4731, 0.5
  %v4860 = vmul.f32 %v4732, 0.5
  %v4861 = vmul.f32 %v4733, 0.5
  %v4862 = vmul.f32 %v4734, 0.5
  %v4863 = vmul.f32 %v4735, 0.5
  %v4864 = vmul.f32 %v4736, 0.5
  %v4865 = vmul.f32 %v4737, 0.5
  %v4866 = vmul.f32 %v4738, 0.5
  %v4867 = vmul.f32 %v4739, 0.5
  %v4868 = vmul.f32 %v4740, 0.5
  %v4869 = vmul.f32 %v4741, 0.5
  %v4870 = vmul.f32 %v4742, 0.5
  %v4871 = vmul.f32 %v4743, 0.5
  %v4872 = vmul.f32 %v4744, 0.5
  %v4873 = vmul.f32 %v4745, 0.5
  %v4874 = vmul.f32 %v4746, 0.5
  %v4875 = vmul.f32 %v4747, 0.5
  %v4876 = vmul.f32 %v4748, 0.5
  %v4877 = vmul.f32 %v4749, 0.5
  %v4878 = vmul.f32 %v4750, 0.5
  %v4879 = vmul.f32 %v4751, 0.5
  %v4880 = vmul.f32 %v4752, 0.5
  %v4881 = vmul.f32 %v4753, 0.5
  %v4882 = vmul.f32 %v4754, 0.5
  %v4883 = vmul.f32 %v4755, 0.5
  %v4884 = vmul.f32 %v4756, 0.5
  %v4885 = vmul.f32 %v4757, 0.5
  %v4886 = vmul.f32 %v4758, 0.5
  %v4887 = vmul.f32 %v4759, 0.5
  %v4888 = vmul.f32 %v4760, 0.5
  %v4889 = vmul.f32 %v4761, 0.5
  %v4890 = vmul.f32 %v4762, 0.5
  %v4891 = vmul.f32 %v4763, 0.5
  %v4892 = vmul.f32 %v4764, 0.5
  %v4893 = vmul.f32 %v4765, 0.5
  %v4894 = vmul.f32 %v4766, 0.5
  %v4895 = vmul.f32 %v4767, 0.5
  %v4896 = vmul.f32 %v4768, 0.5
  %v4897 = vmul.f32 %v4769, 0.5
  %v4898 = vmul.f32 %v4770, 0.5
  %v4899 = vmul.f32 %v4771, 0.5
  %v4900 = vmul.f32 %v4772, 0.5
  %v4901 = vmul.f32 %v4773, 0.5
  %v4902 = vmul.f32 %v4774, 0.5
  %v4903 = vmul.f32 %v4775, 0.5
  %v4904 = vmul.f32 %v4776, 0.5
  %v4905 = vmul.f32 %v4777, 0.5
  %v4906 = vmul.f32 %v4778, 0.5
  %v4907 = vmul.f32 %v4779, 0.5
  %v4908 = vmul.f32 %v4780, 0.5
  %v4909 = vmul.f32 %v4781, 0.5
  %v4910 = vmul.f32 %v4782, 0.5
  %v4911 = vmul.f32 %v4783, 0.5
  %v4912 = vmul.f32 %v4784, 0.5
  %v4913 = vmul.f32 %v4785, 0.5
  %v4914 = vmul.f32 %v4786, 0.5
  %v4915 = vmul.f32 %v4787, 0.5
  %v4916 = vmul.f32 %v4788, 0.5
  %v4917 = vmul.f32 %v4789, 0.5
  %v4918 = vmul.f32 %v4790, 0.5
  %v4919 = vmul.f32 %v4791, 0.5
  %v4920 = vmul.f32 %v4792, 0.5
  %v4921 = vmul.f32 %v4793, 0.5
  %v4922 = vmul.f32 %v4794, 0.5
  %v4923 = vmul.f32 %v4795, 0.5
  %v4924 = vmul.f32 %v4796, 0.5
  %v4925 = vmul.f32 %v4797, 0.5
  %v4926 = vmul.f32 %v4798, 0.5
  %v4927 = vmul.f32 %v4799, 0.5
  %v4928 = vmul.f32 %v4800, 0.5
  %v4929 = vmul.f32 %v4801, 0.5
  %v4930 = vmul.f32 %v4802, 0.5
  %v4931 = vmul.f32 %v4803, 0.5
  %v4932 = vmul.f32 %v4804, 0.5
  %v4933 = vmul.f32 %v4805, 0.5
  %v4934 = vmul.f32 %v4806, 0.5
  %v4935 = vmul.f32 %v4807, 0.5
  %v4936 = vmul.f32 %v4808, 0.5
  %v4937 = vmul.f32 %v4809, 0.5
  %v4938 = vmul.f32 %v4810, 0.5
  %v4939 = vmul.f32 %v4811, 0.5
  %v4940 = vmul.f32 %v4812, 0.5
  %v4941 = vmul.f32 %v4813, 0.5
  %v4942 = vmul.f32 %v4814, 0.5
  %v4943 = vmul.f32 %v4815, 0.5
  %v4944 = vmul.f32 %v4816, 0.5
  %v4945 = vmul.f32 %v4817, 0.5
  %v4946 = vmul.f32 %v4818, 0.5
  %v4947 = vmul.f32 %v4819, 0.5
  %v4948 = vmul.f32 %v4820, 0.5
  %v4949 = vmul.f32 %v4821, 0.5
  %v4950 = vmul.f32 %v4822, 0.5
  %v4951 = vmul.f32 %v4823, 0.5
  %v4952 = vmul.f32 %v4824, 0.5
  %v4953 = vmul.f32 %v4825, 0.5
  %v4954 = vmul.f32 %v4826, 0.5
  %v4955 = vmul.f32 %v4827, 0.5
  %v4956 = vmul.f32 %v4828, 0.5
  %v4957 = vmul.f32 %v4829, 0.5
  %v4958 = vmul.f32 %v4830, 0.5
  %v4959 = vmul.f32 %v4831, 0.5
  %v4960 = vmul.f32 %v4832, 0.5
  %v4961 = vmul.f32 %v4833, 0.5
  %v4962 = vmul.f32 %v4834, 0.5
  %v4963 = vmul.f32 %v4835, 0.5
  %v4964 = vmul.f32 %v4836, 0.5
  %v4965 = vmul.f32 %v4837, 0.5
  %v4966 = vmul.f32 %v4838, 0.5
  %v4967 = vmul.f32 %v4839, 0.5
  %v4968 = vmul.f32 %v4840, 0.5
  %v4969 = vmul.f32 %v4841, 0.5
  %v4970 = vmul.f32 %v4842, 0.5
  %v4971 = vmul.f32 %v4843, 0.5
  %v4972 = vmul.f32 %v4844, 0.5
  %v4973 = vmul.f32 %v4845, 0.5
  %v4974 = vmul.f32 %v4846, 0.5
  %v4975 = vmul.f32 %v4847, 0.5
  %v4976 = vadd.f32 %v4848, 0.5
  %v4977 = vadd.f32 %v4849, 0.5
  %v4978 = vadd.f32 %v4850, 0.5
  %v4979 = vadd.f32 %v4851, 0.5
  %v4980 = vadd.f32 %v4852, 0.5
  %v4981 = vadd.f32 %v4853, 0.5
  %v4982 = vadd.f32 %v4854, 0.5
  %v4983 = vadd.f32 %v4855, 0.5
  %v4984 = vadd.f32 %v4856, 0.5
  %v4985 = vadd.f32 %v4857, 0.5
  %v4986 = vadd.f32 %v4858, 0.5
  %v4987 = vadd.f32 %v4859, 0.5
  %v4988 = vadd.f32 %v4860, 0.5
  %v4989 = vadd.f32 %v4861, 0.5
  %v4990 = vadd.f32 %v4862, 0.5
  %v4991 = vadd.f32 %v4863, 0.5
  %v4992 = vadd.f32 %v4864, 0.5
  %v4993 = vadd.f32 %v4865, 0.5
  %v4994 = vadd.f32 %v4866, 0.5
  %v4995 = vadd.f32 %v4867, 0.5
  %v4996 = vadd.f32 %v4868, 0.5
  %v4997 = vadd.f32 %v4869, 0.5
  %v4998 = vadd.f32 %v4870, 0.5
  %v4999 = vadd.f32 %v4871, 0.5
  %v5000 = vadd.f32 %v4872, 0.5
  %v5001 = vadd.f32 %v4873, 0.5
  %v5002 = vadd.f32 %v4874, 0.5
  %v5003 = vadd.f32 %v4875, 0.5
  %v5004 = vadd.f32 %v4876, 0.5
  %v5005 = vadd.f32 %v4877, 0.5
  %v5006 = vadd.f32 %v4878, 0.5
  %v5007 = vadd.f32 %v4879, 0.5
  %v5008 = vadd.f32 %v4880, 0.5
  %v5009 = vadd.f32 %v4881, 0.5
  %v5010 = vadd.f32 %v4882, 0.5
  %v5011 = vadd.f32 %v4883, 0.5
  %v5012 = vadd.f32 %v4884, 0.5
  %v5013 = vadd.f32 %v4885, 0.5
  %v5014 = vadd.f32 %v4886, 0.5
  %v5015 = vadd.f32 %v4887, 0.5
  %v5016 = vadd.f32 %v4888, 0.5
  %v5017 = vadd.f32 %v4889, 0.5
  %v5018 = vadd.f32 %v4890, 0.5
  %v5019 = vadd.f32 %v4891, 0.5
  %v5020 = vadd.f32 %v4892, 0.5
  %v5021 = vadd.f32 %v4893, 0.5
  %v5022 = vadd.f32 %v4894, 0.5
  %v5023 = vadd.f32 %v4895, 0.5
  %v5024 = vadd.f32 %v4896, 0.5
  %v5025 = vadd.f32 %v4897, 0.5
  %v5026 = vadd.f32 %v4898, 0.5
  %v5027 = vadd.f32 %v4899, 0.5
  %v5028 = vadd.f32 %v4900, 0.5
  %v5029 = vadd.f32 %v4901, 0.5
  %v5030 = vadd.f32 %v4902, 0.5
  %v5031 = vadd.f32 %v4903, 0.5
  %v5032 = vadd.f32 %v4904, 0.5
  %v5033 = vadd.f32 %v4905, 0.5
  %v5034 = vadd.f32 %v4906, 0.5
  %v5035 = vadd.f32 %v4907, 0.5
  %v5036 = vadd.f32 %v4908, 0.5
  %v5037 = vadd.f32 %v4909, 0.5
  %v5038 = vadd.f32 %v4910, 0.5
  %v5039 = vadd.f32 %v4911, 0.5
  %v5040 = vadd.f32 %v4912, 0.5
  %v5041 = vadd.f32 %v4913, 0.5
  %v5042 = vadd.f32 %v4914, 0.5
  %v5043 = vadd.f32 %v4915, 0.5
  %v5044 = vadd.f32 %v4916, 0.5
  %v5045 = vadd.f32 %v4917, 0.5
  %v5046 = vadd.f32 %v4918, 0.5
  %v5047 = vadd.f32 %v4919, 0.5
  %v5048 = vadd.f32 %v4920, 0.5
  %v5049 = vadd.f32 %v4921, 0.5
  %v5050 = vadd.f32 %v4922, 0.5
  %v5051 = vadd.f32 %v4923, 0.5
  %v5052 = vadd.f32 %v4924, 0.5
  %v5053 = vadd.f32 %v4925, 0.5
  %v5054 = vadd.f32 %v4926, 0.5
  %v5055 = vadd.f32 %v4927, 0.5
  %v5056 = vadd.f32 %v4928, 0.5
  %v5057 = vadd.f32 %v4929, 0.5
  %v5058 = vadd.f32 %v4930, 0.5
  %v5059 = vadd.f32 %v4931, 0.5
  %v5060 = vadd.f32 %v4932, 0.5
  %v5061 = vadd.f32 %v4933, 0.5
  %v5062 = vadd.f32 %v4934, 0.5
  %v5063 = vadd.f32 %v4935, 0.5
  %v5064 = vadd.f32 %v4936, 0.5
  %v5065 = vadd.f32 %v4937, 0.5
  %v5066 = vadd.f32 %v4938, 0.5
  %v5067 = vadd.f32 %v4939, 0.5
  %v5068 = vadd.f32 %v4940, 0.5
  %v5069 = vadd.f32 %v4941, 0.5
  %v5070 = vadd.f32 %v4942, 0.5
  %v5071 = vadd.f32 %v4943, 0.5
  %v5072 = vadd.f32 %v4944, 0.5
  %v5073 = vadd.f32 %v4945, 0.5
  %v5074 = vadd.f32 %v4946, 0.5
  %v5075 = vadd.f32 %v4947, 0.5
  %v5076 = vadd.f32 %v4948, 0.5
  %v5077 = vadd.f32 %v4949, 0.5
  %v5078 = vadd.f32 %v4950, 0.5
  %v5079 = vadd.f32 %v4951, 0.5
  %v5080 = vadd.f32 %v4952, 0.5
  %v5081 = vadd.f32 %v4953, 0.5
  %v5082 = vadd.f32 %v4954, 0.5
  %v5083 = vadd.f32 %v4955, 0.5
  %v5084 = vadd.f32 %v4956, 0.5
  %v5085 = vadd.f32 %v4957, 0.5
  %v5086 = vadd.f32 %v4958, 0.5
  %v5087 = vadd.f32 %v4959, 0.5
  %v5088 = vadd.f32 %v4960, 0.5
  %v5089 = vadd.f32 %v4961, 0.5
  %v5090 = vadd.f32 %v4962, 0.5
  %v5091 = vadd.f32 %v4963, 0.5
  %v5092 = vadd.f32 %v4964, 0.5
  %v5093 = vadd.f32 %v4965, 0.5
  %v5094 = vadd.f32 %v4966, 0.5
  %v5095 = vadd.f32 %v4967, 0.5
  %v5096 = vadd.f32 %v4968, 0.5
  %v5097 = vadd.f32 %v4969, 0.5
  %v5098 = vadd.f32 %v4970, 0.5
  %v5099 = vadd.f32 %v4971, 0.5
  %v5100 = vadd.f32 %v4972, 0.5
  %v5101 = vadd.f32 %v4973, 0.5
  %v5102 = vadd.f32 %v4974, 0.5
  %v5103 = vadd.f32 %v4975, 0.5
  %v5104 = vmul.f32 %v4043, %v4976
  %v5105 = vmul.f32 %v4045, %v4977
  %v5106 = vmul.f32 %v4116, %v4978
  %v5107 = vmul.f32 %v4118, %v4979
  %v5108 = vmul.f32 %v4189, %v4980
  %v5109 = vmul.f32 %v4191, %v4981
  %v5110 = vmul.f32 %v4262, %v4982
  %v5111 = vmul.f32 %v4264, %v4983
  %v5112 = vmul.f32 %v4335, %v4984
  %v5113 = vmul.f32 %v4337, %v4985
  %v5114 = vmul.f32 %v4408, %v4986
  %v5115 = vmul.f32 %v4410, %v4987
  %v5116 = vmul.f32 %v4481, %v4988
  %v5117 = vmul.f32 %v4483, %v4989
  %v5118 = vmul.f32 %v4554, %v4990
  %v5119 = vmul.f32 %v4556, %v4991
  %v5120 = vmul.f32 %v4047, %v4992
  %v5121 = vmul.f32 %v4049, %v4993
  %v5122 = vmul.f32 %v4120, %v4994
  %v5123 = vmul.f32 %v4122, %v4995
  %v5124 = vmul.f32 %v4193, %v4996
  %v5125 = vmul.f32 %v4195, %v4997
  %v5126 = vmul.f32 %v4266, %v4998
  %v5127 = vmul.f32 %v4268, %v4999
  %v5128 = vmul.f32 %v4339, %v5000
  %v5129 = vmul.f32 %v4341, %v5001
  %v5130 = vmul.f32 %v4412, %v5002
  %v5131 = vmul.f32 %v4414, %v5003
  %v5132 = vmul.f32 %v4485, %v5004
  %v5133 = vmul.f32 %v4487, %v5005
  %v5134 = vmul.f32 %v4558, %v5006
  %v5135 = vmul.f32 %v4560, %v5007
  %v5136 = vmul.f32 %v4053, %v5008
  %v5137 = vmul.f32 %v4055, %v5009
  %v5138 = vmul.f32 %v4126, %v5010
  %v5139 = vmul.f32 %v4128, %v5011
  %v5140 = vmul.f32 %v4199, %v5012
  %v5141 = vmul.f32 %v4201, %v5013
  %v5142 = vmul.f32 %v4272, %v5014
  %v5143 = vmul.f32 %v4274, %v5015
  %v5144 = vmul.f32 %v4345, %v5016
  %v5145 = vmul.f32 %v4347, %v5017
  %v5146 = vmul.f32 %v4418, %v5018
  %v5147 = vmul.f32 %v4420, %v5019
  %v5148 = vmul.f32 %v4491, %v5020
  %v5149 = vmul.f32 %v4493, %v5021
  %v5150 = vmul.f32 %v4564, %v5022
  %v5151 = vmul.f32 %v4566, %v5023
  %v5152 = vmul.f32 %v4057, %v5024
  %v5153 = vmul.f32 %v4059, %v5025
  %v5154 = vmul.f32 %v4130, %v5026
  %v5155 = vmul.f32 %v4132, %v5027
  %v5156 = vmul.f32 %v4203, %v5028
  %v5157 = vmul.f32 %v4205, %v5029
  %v5158 = vmul.f32 %v4276, %v5030
  %v5159 = vmul.f32 %v4278, %v5031
  %v5160 = vmul.f32 %v4349, %v5032
  %v5161 = vmul.f32 %v4351, %v5033
  %v5162 = vmul.f32 %v4422, %v5034
  %v5163 = vmul.f32 %v4424, %v5035
  %v5164 = vmul.f32 %v4495, %v5036
  %v5165 = vmul.f32 %v4497, %v5037
  %v5166 = vmul.f32 %v4568, %v5038
  %v5167 = vmul.f32 %v4570, %v5039
  %v5168 = vmul.f32 %v4063, %v5040
  %v5169 = vmul.f32 %v4065, %v5041
  %v5170 = vmul.f32 %v4136, %v5042
  %v5171 = vmul.f32 %v4138, %v5043
  %v5172 = vmul.f32 %v4209, %v5044
  %v5173 = vmul.f32 %v4211, %v5045
  %v5174 = vmul.f32 %v4282, %v5046
  %v5175 = vmul.f32 %v4284, %v5047
  %v5176 = vmul.f32 %v4355, %v5048
  %v5177 = vmul.f32 %v4357, %v5049
  %v5178 = vmul.f32 %v4428, %v5050
  %v5179 = vmul.f32 %v4430, %v5051
  %v5180 = vmul.f32 %v4501, %v5052
  %v5181 = vmul.f32 %v4503, %v5053
  %v5182 = vmul.f32 %v4574, %v5054
  %v5183 = vmul.f32 %v4576, %v5055
  %v5184 = vmul.f32 %v4067, %v5056
  %v5185 = vmul.f32 %v4069, %v5057
  %v5186 = vmul.f32 %v4140, %v5058
  %v5187 = vmul.f32 %v4142, %v5059
  %v5188 = vmul.f32 %v4213, %v5060
  %v5189 = vmul.f32 %v4215, %v5061
  %v5190 = vmul.f32 %v4286, %v5062
  %v5191 = vmul.f32 %v4288, %v5063
  %v5192 = vmul.f32 %v4359, %v5064
  %v5193 = vmul.f32 %v4361, %v5065
  %v5194 = vmul.f32 %v4432, %v5066
  %v5195 = vmul.f32 %v4434, %v5067
  %v5196 = vmul.f32 %v4505, %v5068
  %v5197 = vmul.f32 %v4507, %v5069
  %v5198 = vmul.f32 %v4578, %v5070
  %v5199 = vmul.f32 %v4580, %v5071
  %v5200 = vmul.f32 %v4073, %v5072
  %v5201 = vmul.f32 %v4075, %v5073
  %v5202 = vmul.f32 %v4146, %v5074
  %v5203 = vmul.f32 %v4148, %v5075
  %v5204 = vmul.f32 %v4219, %v5076
  %v5205 = vmul.f32 %v4221, %v5077
  %v5206 = vmul.f32 %v4292, %v5078
  %v5207 = vmul.f32 %v4294, %v5079
  %v5208 = vmul.f32 %v4365, %v5080
  %v5209 = vmul.f32 %v4367, %v5081
  %v5210 = vmul.f32 %v4438, %v5082
  %v5211 = vmul.f32 %v4440, %v5083
  %v5212 = vmul.f32 %v4511, %v5084
  %v5213 = vmul.f32 %v4513, %v5085
  %v5214 = vmul.f32 %v4584, %v5086
  %v5215 = vmul.f32 %v4586, %v5087
  %v5216 = vmul.f32 %v4077, %v5088
  %v5217 = vmul.f32 %v4079, %v5089
  %v5218 = vmul.f32 %v4150, %v5090
  %v5219 = vmul.f32 %v4152, %v5091
  %v5220 = vmul.f32 %v4223, %v5092
  %v5221 = vmul.f32 %v4225, %v5093
  %v5222 = vmul.f32 %v4296, %v5094
  %v5223 = vmul.f32 %v4298, %v5095
  %v5224 = vmul.f32 %v4369, %v5096
  %v5225 = vmul.f32 %v4371, %v5097
  %v5226 = vmul.f32 %v4442, %v5098
  %v5227 = vmul.f32 %v4444, %v5099
  %v5228 = vmul.f32 %v4515, %v5100
  %v5229 = vmul.f32 %v4517, %v5101
  %v5230 = vmul.f32 %v4588, %v5102
  %v5231 = vmul.f32 %v4590, %v5103
  %s5232 = scalar_lea.vmem %s3, 64
  %v5233 = vld [vmem:[%s5232] sm:$0xf]
  %v5234 = vld [vmem:[%s5232 + $0x4] sm:$0xf]
  %v5235 = vld [vmem:[%s5232 + $0x8] sm:$0xf]
  %v5236 = vld [vmem:[%s5232 + $0xc] sm:$0xf]
  %v5237 = vld [vmem:[%s5232 + $0x10] sm:$0xf]
  %v5238 = vld [vmem:[%s5232 + $0x14] sm:$0xf]
  %v5239 = vld [vmem:[%s5232 + $0x18] sm:$0xf]
  %v5240 = vld [vmem:[%s5232 + $0x1c] sm:$0xf]
  %v5241 = vpack.c.bf16 %v5120, %v5104
  %v5242 = vpack.c.bf16 %v5121, %v5105
  %v5243 = vpack.c.bf16 %v5122, %v5106
  %v5244 = vpack.c.bf16 %v5123, %v5107
  %v5245 = vpack.c.bf16 %v5124, %v5108
  %v5246 = vpack.c.bf16 %v5125, %v5109
  %v5247 = vpack.c.bf16 %v5126, %v5110
  %v5248 = vpack.c.bf16 %v5127, %v5111
  %v5249 = vpack.c.bf16 %v5128, %v5112
  %v5250 = vpack.c.bf16 %v5129, %v5113
  %v5251 = vpack.c.bf16 %v5130, %v5114
  %v5252 = vpack.c.bf16 %v5131, %v5115
  %v5253 = vpack.c.bf16 %v5132, %v5116
  %v5254 = vpack.c.bf16 %v5133, %v5117
  %v5255 = vpack.c.bf16 %v5134, %v5118
  %v5256 = vpack.c.bf16 %v5135, %v5119
  %v5257 = vpack.c.bf16 %v5152, %v5136
  %v5258 = vpack.c.bf16 %v5153, %v5137
  %v5259 = vpack.c.bf16 %v5154, %v5138
  %v5260 = vpack.c.bf16 %v5155, %v5139
  %v5261 = vpack.c.bf16 %v5156, %v5140
  %v5262 = vpack.c.bf16 %v5157, %v5141
  %v5263 = vpack.c.bf16 %v5158, %v5142
  %v5264 = vpack.c.bf16 %v5159, %v5143
  %v5265 = vpack.c.bf16 %v5160, %v5144
  %v5266 = vpack.c.bf16 %v5161, %v5145
  %v5267 = vpack.c.bf16 %v5162, %v5146
  %v5268 = vpack.c.bf16 %v5163, %v5147
  %v5269 = vpack.c.bf16 %v5164, %v5148
  %v5270 = vpack.c.bf16 %v5165, %v5149
  %v5271 = vpack.c.bf16 %v5166, %v5150
  %v5272 = vpack.c.bf16 %v5167, %v5151
  %v5273 = vpack.c.bf16 %v5184, %v5168
  %v5274 = vpack.c.bf16 %v5185, %v5169
  %v5275 = vpack.c.bf16 %v5186, %v5170
  %v5276 = vpack.c.bf16 %v5187, %v5171
  %v5277 = vpack.c.bf16 %v5188, %v5172
  %v5278 = vpack.c.bf16 %v5189, %v5173
  %v5279 = vpack.c.bf16 %v5190, %v5174
  %v5280 = vpack.c.bf16 %v5191, %v5175
  %v5281 = vpack.c.bf16 %v5192, %v5176
  %v5282 = vpack.c.bf16 %v5193, %v5177
  %v5283 = vpack.c.bf16 %v5194, %v5178
  %v5284 = vpack.c.bf16 %v5195, %v5179
  %v5285 = vpack.c.bf16 %v5196, %v5180
  %v5286 = vpack.c.bf16 %v5197, %v5181
  %v5287 = vpack.c.bf16 %v5198, %v5182
  %v5288 = vpack.c.bf16 %v5199, %v5183
  %v5289 = vpack.c.bf16 %v5216, %v5200
  %v5290 = vpack.c.bf16 %v5217, %v5201
  %v5291 = vpack.c.bf16 %v5218, %v5202
  %v5292 = vpack.c.bf16 %v5219, %v5203
  %v5293 = vpack.c.bf16 %v5220, %v5204
  %v5294 = vpack.c.bf16 %v5221, %v5205
  %v5295 = vpack.c.bf16 %v5222, %v5206
  %v5296 = vpack.c.bf16 %v5223, %v5207
  %v5297 = vpack.c.bf16 %v5224, %v5208
  %v5298 = vpack.c.bf16 %v5225, %v5209
  %v5299 = vpack.c.bf16 %v5226, %v5210
  %v5300 = vpack.c.bf16 %v5227, %v5211
  %v5301 = vpack.c.bf16 %v5228, %v5212
  %v5302 = vpack.c.bf16 %v5229, %v5213
  %v5303 = vpack.c.bf16 %v5230, %v5214
  %v5304 = vpack.c.bf16 %v5231, %v5215
  %s5305 = scalar_lea.vmem %s4, 128
  %v5306 = vld [vmem:[%s5305] sm:$0xff]
  %v5307 = vld [vmem:[%s5305 + $0x8] sm:$0xff]
  %v5308 = vld [vmem:[%s5305 + $0x10] sm:$0xff]
  %v5309 = vld [vmem:[%s5305 + $0x18] sm:$0xff]
  %v5310 = vld [vmem:[%s5305 + $0x20] sm:$0xff]
  %v5311 = vld [vmem:[%s5305 + $0x28] sm:$0xff]
  %v5312 = vld [vmem:[%s5305 + $0x30] sm:$0xff]
  %v5313 = vld [vmem:[%s5305 + $0x38] sm:$0xff]
  %5315 = vset.pattern.permute.xlu0 0
  %5316 = vperm.xlu0 %5315, %v5306
  %v5317 = vpop.permute.xlu0 %5316
  %5320 = vset.pattern.permute.xlu0 0
  %5321 = vperm.xlu0 %5320, %v5307
  %v5322 = vpop.permute.xlu0 %5321
  %5325 = vset.pattern.permute.xlu0 0
  %5326 = vperm.xlu0 %5325, %v5308
  %v5327 = vpop.permute.xlu0 %5326
  %5330 = vset.pattern.permute.xlu0 0
  %5331 = vperm.xlu0 %5330, %v5309
  %v5332 = vpop.permute.xlu0 %5331
  %5335 = vset.pattern.permute.xlu0 0
  %5336 = vperm.xlu0 %5335, %v5310
  %v5337 = vpop.permute.xlu0 %5336
  %5340 = vset.pattern.permute.xlu0 0
  %5341 = vperm.xlu0 %5340, %v5311
  %v5342 = vpop.permute.xlu0 %5341
  %5345 = vset.pattern.permute.xlu0 0
  %5346 = vperm.xlu0 %5345, %v5312
  %v5347 = vpop.permute.xlu0 %5346
  %5350 = vset.pattern.permute.xlu0 0
  %5351 = vperm.xlu0 %5350, %v5313
  %v5352 = vpop.permute.xlu0 %5351
  %v5362 = vunpack.c.l.b16 %v5233
  %v5363 = vunpack.c.l.b16 %v5234
  %v5364 = vunpack.c.l.b16 %v5235
  %v5365 = vunpack.c.l.b16 %v5236
  %v5366 = vunpack.c.l.b16 %v5237
  %v5367 = vunpack.c.l.b16 %v5238
  %v5368 = vunpack.c.l.b16 %v5239
  %v5369 = vunpack.c.l.b16 %v5240
  %v5370 = vpack.c.b16 %v5363, %v5362
  %v5371 = vpack.c.b16 %v5365, %v5364
  %v5372 = vpack.c.b16 %v5367, %v5366
  %v5373 = vpack.c.b16 %v5369, %v5368
  %v5375 = vsel %vm2617, %v5370, 0
  %v5378 = vsel %vm2617, %v5371, 0
  %v5381 = vsel %vm2617, %v5372, 0
  %v5384 = vsel %vm2617, %v5373, 0
  %5386 = vmatprep.subr.bf16.mxu0 %v5242
  %5387 = vmatpush1.bf16.msra.mxu0 %v5241
  %5388 = vmatprep.subr.bf16.mxu0 %v5258
  %5389 = vmatpush1.bf16.msra.mxu0 %v5257
  %5390 = vmatprep.subr.bf16.mxu0 %v5274
  %5391 = vmatpush1.bf16.msra.mxu0 %v5273
  %5392 = vmatprep.subr.bf16.mxu0 %v5290
  %5393 = vmatpush1.bf16.msra.mxu0 %v5289
  %5394 = vmatprep.subr.bf16.mxu0 0
  %5395 = vmatpush1.bf16.msra.mxu0 0
  %5396 = vmatprep.subr.bf16.mxu0 0
  %5397 = vmatpush1.bf16.msra.mxu0 0
  %5398 = vmatprep.subr.bf16.mxu0 0
  %5399 = vmatpush1.bf16.msra.mxu0 0
  %5400 = vmatprep.subr.bf16.mxu0 0
  %5401 = vmatpush1.bf16.msra.mxu0 0
  %5402 = vmatprep.subr.bf16.mxu0 0
  %5403 = vmatpush1.bf16.msra.mxu0 0
  %5404 = vmatprep.subr.bf16.mxu0 0
  %5405 = vmatpush1.bf16.msra.mxu0 0
  %5406 = vmatprep.subr.bf16.mxu0 0
  %5407 = vmatpush1.bf16.msra.mxu0 0
  %5408 = vmatprep.subr.bf16.mxu0 0
  %5409 = vmatpush1.bf16.msra.mxu0 0
  %5410 = vmatprep.subr.bf16.mxu0 0
  %5411 = vmatpush1.bf16.msra.mxu0 0
  %5412 = vmatprep.subr.bf16.mxu0 0
  %5413 = vmatpush1.bf16.msra.mxu0 0
  %5414 = vmatprep.subr.bf16.mxu0 0
  %5415 = vmatpush1.bf16.msra.mxu0 0
  %5416 = vmatprep.subr.bf16.mxu0 0
  %5417 = vmatpush1.bf16.msra.mxu0 0
  %5418 = vmatprep.mubr.bf16.mxu0 0
  %5419 = vmatmul.mubr.bf16.gmra.mrb[0].mxu0 %v5375
  %v5420 = vpop.f32.mrb[0].mxu0
  %v5421 = vadd.f32 %v5317, %v5420
  %v5422 = vpop.f32.mrb[0].mxu0
  %v5423 = vadd.f32 %v5317, %v5422
  %v5424 = vpop.f32.mrb[0].mxu0
  %v5425 = vadd.f32 %v5322, %v5424
  %v5426 = vpop.f32.mrb[0].mxu0
  %v5427 = vadd.f32 %v5322, %v5426
  %5428 = vmatprep.mubr.bf16.mxu0 0
  %5429 = vmatmul.mubr.bf16.gmra.mrb[0].mxu0 %v5378
  %v5430 = vpop.f32.mrb[0].mxu0
  %v5431 = vadd.f32 %v5327, %v5430
  %v5432 = vpop.f32.mrb[0].mxu0
  %v5433 = vadd.f32 %v5327, %v5432
  %v5434 = vpop.f32.mrb[0].mxu0
  %v5435 = vadd.f32 %v5332, %v5434
  %v5436 = vpop.f32.mrb[0].mxu0
  %v5437 = vadd.f32 %v5332, %v5436
  %5438 = vmatprep.mubr.bf16.mxu0 0
  %5439 = vmatmul.mubr.bf16.gmra.mrb[0].mxu0 %v5381
  %v5440 = vpop.f32.mrb[0].mxu0
  %v5441 = vadd.f32 %v5337, %v5440
  %v5442 = vpop.f32.mrb[0].mxu0
  %v5443 = vadd.f32 %v5337, %v5442
  %v5444 = vpop.f32.mrb[0].mxu0
  %v5445 = vadd.f32 %v5342, %v5444
  %v5446 = vpop.f32.mrb[0].mxu0
  %v5447 = vadd.f32 %v5342, %v5446
  %5448 = vmatprep.mubr.bf16.mxu0 0
  %5449 = vmatmul.mubr.bf16.gmra.mrb[0].mxu0 %v5384
  %v5450 = vpop.f32.mrb[0].mxu0
  %v5451 = vadd.f32 %v5347, %v5450
  %v5452 = vpop.f32.mrb[0].mxu0
  %v5453 = vadd.f32 %v5347, %v5452
  %v5454 = vpop.f32.mrb[0].mxu0
  %v5455 = vadd.f32 %v5352, %v5454
  %v5456 = vpop.f32.mrb[0].mxu0
  %v5457 = vadd.f32 %v5352, %v5456
  %5458 = vdwg.mxu0
  %5459 = vmatprep.subr.bf16.mxu0 %v5244
  %5460 = vmatpush1.bf16.msra.mxu0 %v5243
  %5461 = vmatprep.subr.bf16.mxu0 %v5260
  %5462 = vmatpush1.bf16.msra.mxu0 %v5259
  %5463 = vmatprep.subr.bf16.mxu0 %v5276
  %5464 = vmatpush1.bf16.msra.mxu0 %v5275
  %5465 = vmatprep.subr.bf16.mxu0 %v5292
  %5466 = vmatpush1.bf16.msra.mxu0 %v5291
  %5467 = vmatprep.subr.bf16.mxu0 0
  %5468 = vmatpush1.bf16.msra.mxu0 0
  %5469 = vmatprep.subr.bf16.mxu0 0
  %5470 = vmatpush1.bf16.msra.mxu0 0
  %5471 = vmatprep.subr.bf16.mxu0 0
  %5472 = vmatpush1.bf16.msra.mxu0 0
  %5473 = vmatprep.subr.bf16.mxu0 0
  %5474 = vmatpush1.bf16.msra.mxu0 0
  %5475 = vmatprep.subr.bf16.mxu0 0
  %5476 = vmatpush1.bf16.msra.mxu0 0
  %5477 = vmatprep.subr.bf16.mxu0 0
  %5478 = vmatpush1.bf16.msra.mxu0 0
  %5479 = vmatprep.subr.bf16.mxu0 0
  %5480 = vmatpush1.bf16.msra.mxu0 0
  %5481 = vmatprep.subr.bf16.mxu0 0
  %5482 = vmatpush1.bf16.msra.mxu0 0
  %5483 = vmatprep.subr.bf16.mxu0 0
  %5484 = vmatpush1.bf16.msra.mxu0 0
  %5485 = vmatprep.subr.bf16.mxu0 0
  %5486 = vmatpush1.bf16.msra.mxu0 0
  %5487 = vmatprep.subr.bf16.mxu0 0
  %5488 = vmatpush1.bf16.msra.mxu0 0
  %5489 = vmatprep.subr.bf16.mxu0 0
  %5490 = vmatpush1.bf16.msra.mxu0 0
  %5491 = vmatprep.mubr.bf16.mxu0 0
  %5492 = vmatmul.mubr.bf16.gmra.mrb[0].mxu0 %v5375
  %v5493 = vpop.f32.mrb[0].mxu0
  %v5494 = vadd.f32 %v5317, %v5493
  %v5495 = vpop.f32.mrb[0].mxu0
  %v5496 = vadd.f32 %v5317, %v5495
  %v5497 = vpop.f32.mrb[0].mxu0
  %v5498 = vadd.f32 %v5322, %v5497
  %v5499 = vpop.f32.mrb[0].mxu0
  %v5500 = vadd.f32 %v5322, %v5499
  %5501 = vmatprep.mubr.bf16.mxu0 0
  %5502 = vmatmul.mubr.bf16.gmra.mrb[0].mxu0 %v5378
  %v5503 = vpop.f32.mrb[0].mxu0
  %v5504 = vadd.f32 %v5327, %v5503
  %v5505 = vpop.f32.mrb[0].mxu0
  %v5506 = vadd.f32 %v5327, %v5505
  %v5507 = vpop.f32.mrb[0].mxu0
  %v5508 = vadd.f32 %v5332, %v5507
  %v5509 = vpop.f32.mrb[0].mxu0
  %v5510 = vadd.f32 %v5332, %v5509
  %5511 = vmatprep.mubr.bf16.mxu0 0
  %5512 = vmatmul.mubr.bf16.gmra.mrb[0].mxu0 %v5381
  %v5513 = vpop.f32.mrb[0].mxu0
  %v5514 = vadd.f32 %v5337, %v5513
  %v5515 = vpop.f32.mrb[0].mxu0
  %v5516 = vadd.f32 %v5337, %v5515
  %v5517 = vpop.f32.mrb[0].mxu0
  %v5518 = vadd.f32 %v5342, %v5517
  %v5519 = vpop.f32.mrb[0].mxu0
  %v5520 = vadd.f32 %v5342, %v5519
  %5521 = vmatprep.mubr.bf16.mxu0 0
  %5522 = vmatmul.mubr.bf16.gmra.mrb[0].mxu0 %v5384
  %v5523 = vpop.f32.mrb[0].mxu0
  %v5524 = vadd.f32 %v5347, %v5523
  %v5525 = vpop.f32.mrb[0].mxu0
  %v5526 = vadd.f32 %v5347, %v5525
  %v5527 = vpop.f32.mrb[0].mxu0
  %v5528 = vadd.f32 %v5352, %v5527
  %v5529 = vpop.f32.mrb[0].mxu0
  %v5530 = vadd.f32 %v5352, %v5529
  %5531 = vdwg.mxu0
  %5532 = vmatprep.subr.bf16.mxu0 %v5246
  %5533 = vmatpush1.bf16.msra.mxu0 %v5245
  %5534 = vmatprep.subr.bf16.mxu0 %v5262
  %5535 = vmatpush1.bf16.msra.mxu0 %v5261
  %5536 = vmatprep.subr.bf16.mxu0 %v5278
  %5537 = vmatpush1.bf16.msra.mxu0 %v5277
  %5538 = vmatprep.subr.bf16.mxu0 %v5294
  %5539 = vmatpush1.bf16.msra.mxu0 %v5293
  %5540 = vmatprep.subr.bf16.mxu0 0
  %5541 = vmatpush1.bf16.msra.mxu0 0
  %5542 = vmatprep.subr.bf16.mxu0 0
  %5543 = vmatpush1.bf16.msra.mxu0 0
  %5544 = vmatprep.subr.bf16.mxu0 0
  %5545 = vmatpush1.bf16.msra.mxu0 0
  %5546 = vmatprep.subr.bf16.mxu0 0
  %5547 = vmatpush1.bf16.msra.mxu0 0
  %5548 = vmatprep.subr.bf16.mxu0 0
  %5549 = vmatpush1.bf16.msra.mxu0 0
  %5550 = vmatprep.subr.bf16.mxu0 0
  %5551 = vmatpush1.bf16.msra.mxu0 0
  %5552 = vmatprep.subr.bf16.mxu0 0
  %5553 = vmatpush1.bf16.msra.mxu0 0
  %5554 = vmatprep.subr.bf16.mxu0 0
  %5555 = vmatpush1.bf16.msra.mxu0 0
  %5556 = vmatprep.subr.bf16.mxu0 0
  %5557 = vmatpush1.bf16.msra.mxu0 0
  %5558 = vmatprep.subr.bf16.mxu0 0
  %5559 = vmatpush1.bf16.msra.mxu0 0
  %5560 = vmatprep.subr.bf16.mxu0 0
  %5561 = vmatpush1.bf16.msra.mxu0 0
  %5562 = vmatprep.subr.bf16.mxu0 0
  %5563 = vmatpush1.bf16.msra.mxu0 0
  %5564 = vmatprep.mubr.bf16.mxu0 0
  %5565 = vmatmul.mubr.bf16.gmra.mrb[0].mxu0 %v5375
  %v5566 = vpop.f32.mrb[0].mxu0
  %v5567 = vadd.f32 %v5317, %v5566
  %v5568 = vpop.f32.mrb[0].mxu0
  %v5569 = vadd.f32 %v5317, %v5568
  %v5570 = vpop.f32.mrb[0].mxu0
  %v5571 = vadd.f32 %v5322, %v5570
  %v5572 = vpop.f32.mrb[0].mxu0
  %v5573 = vadd.f32 %v5322, %v5572
  %5574 = vmatprep.mubr.bf16.mxu0 0
  %5575 = vmatmul.mubr.bf16.gmra.mrb[0].mxu0 %v5378
  %v5576 = vpop.f32.mrb[0].mxu0
  %v5577 = vadd.f32 %v5327, %v5576
  %v5578 = vpop.f32.mrb[0].mxu0
  %v5579 = vadd.f32 %v5327, %v5578
  %v5580 = vpop.f32.mrb[0].mxu0
  %v5581 = vadd.f32 %v5332, %v5580
  %v5582 = vpop.f32.mrb[0].mxu0
  %v5583 = vadd.f32 %v5332, %v5582
  %5584 = vmatprep.mubr.bf16.mxu0 0
  %5585 = vmatmul.mubr.bf16.gmra.mrb[0].mxu0 %v5381
  %v5586 = vpop.f32.mrb[0].mxu0
  %v5587 = vadd.f32 %v5337, %v5586
  %v5588 = vpop.f32.mrb[0].mxu0
  %v5589 = vadd.f32 %v5337, %v5588
  %v5590 = vpop.f32.mrb[0].mxu0
  %v5591 = vadd.f32 %v5342, %v5590
  %v5592 = vpop.f32.mrb[0].mxu0
  %v5593 = vadd.f32 %v5342, %v5592
  %5594 = vmatprep.mubr.bf16.mxu0 0
  %5595 = vmatmul.mubr.bf16.gmra.mrb[0].mxu0 %v5384
  %v5596 = vpop.f32.mrb[0].mxu0
  %v5597 = vadd.f32 %v5347, %v5596
  %v5598 = vpop.f32.mrb[0].mxu0
  %v5599 = vadd.f32 %v5347, %v5598
  %v5600 = vpop.f32.mrb[0].mxu0
  %v5601 = vadd.f32 %v5352, %v5600
  %v5602 = vpop.f32.mrb[0].mxu0
  %v5603 = vadd.f32 %v5352, %v5602
  %5604 = vdwg.mxu0
  %5605 = vmatprep.subr.bf16.mxu0 %v5248
  %5606 = vmatpush1.bf16.msra.mxu0 %v5247
  %5607 = vmatprep.subr.bf16.mxu0 %v5264
  %5608 = vmatpush1.bf16.msra.mxu0 %v5263
  %5609 = vmatprep.subr.bf16.mxu0 %v5280
  %5610 = vmatpush1.bf16.msra.mxu0 %v5279
  %5611 = vmatprep.subr.bf16.mxu0 %v5296
  %5612 = vmatpush1.bf16.msra.mxu0 %v5295
  %5613 = vmatprep.subr.bf16.mxu0 0
  %5614 = vmatpush1.bf16.msra.mxu0 0
  %5615 = vmatprep.subr.bf16.mxu0 0
  %5616 = vmatpush1.bf16.msra.mxu0 0
  %5617 = vmatprep.subr.bf16.mxu0 0
  %5618 = vmatpush1.bf16.msra.mxu0 0
  %5619 = vmatprep.subr.bf16.mxu0 0
  %5620 = vmatpush1.bf16.msra.mxu0 0
  %5621 = vmatprep.subr.bf16.mxu0 0
  %5622 = vmatpush1.bf16.msra.mxu0 0
  %5623 = vmatprep.subr.bf16.mxu0 0
  %5624 = vmatpush1.bf16.msra.mxu0 0
  %5625 = vmatprep.subr.bf16.mxu0 0
  %5626 = vmatpush1.bf16.msra.mxu0 0
  %5627 = vmatprep.subr.bf16.mxu0 0
  %5628 = vmatpush1.bf16.msra.mxu0 0
  %5629 = vmatprep.subr.bf16.mxu0 0
  %5630 = vmatpush1.bf16.msra.mxu0 0
  %5631 = vmatprep.subr.bf16.mxu0 0
  %5632 = vmatpush1.bf16.msra.mxu0 0
  %5633 = vmatprep.subr.bf16.mxu0 0
  %5634 = vmatpush1.bf16.msra.mxu0 0
  %5635 = vmatprep.subr.bf16.mxu0 0
  %5636 = vmatpush1.bf16.msra.mxu0 0
  %5637 = vmatprep.mubr.bf16.mxu0 0
  %5638 = vmatmul.mubr.bf16.gmra.mrb[0].mxu0 %v5375
  %v5639 = vpop.f32.mrb[0].mxu0
  %v5640 = vadd.f32 %v5317, %v5639
  %v5641 = vpop.f32.mrb[0].mxu0
  %v5642 = vadd.f32 %v5317, %v5641
  %v5643 = vpop.f32.mrb[0].mxu0
  %v5644 = vadd.f32 %v5322, %v5643
  %v5645 = vpop.f32.mrb[0].mxu0
  %v5646 = vadd.f32 %v5322, %v5645
  %5647 = vmatprep.mubr.bf16.mxu0 0
  %5648 = vmatmul.mubr.bf16.gmra.mrb[0].mxu0 %v5378
  %v5649 = vpop.f32.mrb[0].mxu0
  %v5650 = vadd.f32 %v5327, %v5649
  %v5651 = vpop.f32.mrb[0].mxu0
  %v5652 = vadd.f32 %v5327, %v5651
  %v5653 = vpop.f32.mrb[0].mxu0
  %v5654 = vadd.f32 %v5332, %v5653
  %v5655 = vpop.f32.mrb[0].mxu0
  %v5656 = vadd.f32 %v5332, %v5655
  %5657 = vmatprep.mubr.bf16.mxu0 0
  %5658 = vmatmul.mubr.bf16.gmra.mrb[0].mxu0 %v5381
  %v5659 = vpop.f32.mrb[0].mxu0
  %v5660 = vadd.f32 %v5337, %v5659
  %v5661 = vpop.f32.mrb[0].mxu0
  %v5662 = vadd.f32 %v5337, %v5661
  %v5663 = vpop.f32.mrb[0].mxu0
  %v5664 = vadd.f32 %v5342, %v5663
  %v5665 = vpop.f32.mrb[0].mxu0
  %v5666 = vadd.f32 %v5342, %v5665
  %5667 = vmatprep.mubr.bf16.mxu0 0
  %5668 = vmatmul.mubr.bf16.gmra.mrb[0].mxu0 %v5384
  %v5669 = vpop.f32.mrb[0].mxu0
  %v5670 = vadd.f32 %v5347, %v5669
  %v5671 = vpop.f32.mrb[0].mxu0
  %v5672 = vadd.f32 %v5347, %v5671
  %v5673 = vpop.f32.mrb[0].mxu0
  %v5674 = vadd.f32 %v5352, %v5673
  %v5675 = vpop.f32.mrb[0].mxu0
  %v5676 = vadd.f32 %v5352, %v5675
  %5677 = vdwg.mxu0
  %5678 = vmatprep.subr.bf16.mxu0 %v5250
  %5679 = vmatpush1.bf16.msra.mxu0 %v5249
  %5680 = vmatprep.subr.bf16.mxu0 %v5266
  %5681 = vmatpush1.bf16.msra.mxu0 %v5265
  %5682 = vmatprep.subr.bf16.mxu0 %v5282
  %5683 = vmatpush1.bf16.msra.mxu0 %v5281
  %5684 = vmatprep.subr.bf16.mxu0 %v5298
  %5685 = vmatpush1.bf16.msra.mxu0 %v5297
  %5686 = vmatprep.subr.bf16.mxu0 0
  %5687 = vmatpush1.bf16.msra.mxu0 0
  %5688 = vmatprep.subr.bf16.mxu0 0
  %5689 = vmatpush1.bf16.msra.mxu0 0
  %5690 = vmatprep.subr.bf16.mxu0 0
  %5691 = vmatpush1.bf16.msra.mxu0 0
  %5692 = vmatprep.subr.bf16.mxu0 0
  %5693 = vmatpush1.bf16.msra.mxu0 0
  %5694 = vmatprep.subr.bf16.mxu0 0
  %5695 = vmatpush1.bf16.msra.mxu0 0
  %5696 = vmatprep.subr.bf16.mxu0 0
  %5697 = vmatpush1.bf16.msra.mxu0 0
  %5698 = vmatprep.subr.bf16.mxu0 0
  %5699 = vmatpush1.bf16.msra.mxu0 0
  %5700 = vmatprep.subr.bf16.mxu0 0
  %5701 = vmatpush1.bf16.msra.mxu0 0
  %5702 = vmatprep.subr.bf16.mxu0 0
  %5703 = vmatpush1.bf16.msra.mxu0 0
  %5704 = vmatprep.subr.bf16.mxu0 0
  %5705 = vmatpush1.bf16.msra.mxu0 0
  %5706 = vmatprep.subr.bf16.mxu0 0
  %5707 = vmatpush1.bf16.msra.mxu0 0
  %5708 = vmatprep.subr.bf16.mxu0 0
  %5709 = vmatpush1.bf16.msra.mxu0 0
  %5710 = vmatprep.mubr.bf16.mxu0 0
  %5711 = vmatmul.mubr.bf16.gmra.mrb[0].mxu0 %v5375
  %v5712 = vpop.f32.mrb[0].mxu0
  %v5713 = vadd.f32 %v5317, %v5712
  %v5714 = vpop.f32.mrb[0].mxu0
  %v5715 = vadd.f32 %v5317, %v5714
  %v5716 = vpop.f32.mrb[0].mxu0
  %v5717 = vadd.f32 %v5322, %v5716
  %v5718 = vpop.f32.mrb[0].mxu0
  %v5719 = vadd.f32 %v5322, %v5718
  %5720 = vmatprep.mubr.bf16.mxu0 0
  %5721 = vmatmul.mubr.bf16.gmra.mrb[0].mxu0 %v5378
  %v5722 = vpop.f32.mrb[0].mxu0
  %v5723 = vadd.f32 %v5327, %v5722
  %v5724 = vpop.f32.mrb[0].mxu0
  %v5725 = vadd.f32 %v5327, %v5724
  %v5726 = vpop.f32.mrb[0].mxu0
  %v5727 = vadd.f32 %v5332, %v5726
  %v5728 = vpop.f32.mrb[0].mxu0
  %v5729 = vadd.f32 %v5332, %v5728
  %5730 = vmatprep.mubr.bf16.mxu0 0
  %5731 = vmatmul.mubr.bf16.gmra.mrb[0].mxu0 %v5381
  %v5732 = vpop.f32.mrb[0].mxu0
  %v5733 = vadd.f32 %v5337, %v5732
  %v5734 = vpop.f32.mrb[0].mxu0
  %v5735 = vadd.f32 %v5337, %v5734
  %v5736 = vpop.f32.mrb[0].mxu0
  %v5737 = vadd.f32 %v5342, %v5736
  %v5738 = vpop.f32.mrb[0].mxu0
  %v5739 = vadd.f32 %v5342, %v5738
  %5740 = vmatprep.mubr.bf16.mxu0 0
  %5741 = vmatmul.mubr.bf16.gmra.mrb[0].mxu0 %v5384
  %v5742 = vpop.f32.mrb[0].mxu0
  %v5743 = vadd.f32 %v5347, %v5742
  %v5744 = vpop.f32.mrb[0].mxu0
  %v5745 = vadd.f32 %v5347, %v5744
  %v5746 = vpop.f32.mrb[0].mxu0
  %v5747 = vadd.f32 %v5352, %v5746
  %v5748 = vpop.f32.mrb[0].mxu0
  %v5749 = vadd.f32 %v5352, %v5748
  %5750 = vdwg.mxu0
  %5751 = vmatprep.subr.bf16.mxu0 %v5252
  %5752 = vmatpush1.bf16.msra.mxu0 %v5251
  %5753 = vmatprep.subr.bf16.mxu0 %v5268
  %5754 = vmatpush1.bf16.msra.mxu0 %v5267
  %5755 = vmatprep.subr.bf16.mxu0 %v5284
  %5756 = vmatpush1.bf16.msra.mxu0 %v5283
  %5757 = vmatprep.subr.bf16.mxu0 %v5300
  %5758 = vmatpush1.bf16.msra.mxu0 %v5299
  %5759 = vmatprep.subr.bf16.mxu0 0
  %5760 = vmatpush1.bf16.msra.mxu0 0
  %5761 = vmatprep.subr.bf16.mxu0 0
  %5762 = vmatpush1.bf16.msra.mxu0 0
  %5763 = vmatprep.subr.bf16.mxu0 0
  %5764 = vmatpush1.bf16.msra.mxu0 0
  %5765 = vmatprep.subr.bf16.mxu0 0
  %5766 = vmatpush1.bf16.msra.mxu0 0
  %5767 = vmatprep.subr.bf16.mxu0 0
  %5768 = vmatpush1.bf16.msra.mxu0 0
  %5769 = vmatprep.subr.bf16.mxu0 0
  %5770 = vmatpush1.bf16.msra.mxu0 0
  %5771 = vmatprep.subr.bf16.mxu0 0
  %5772 = vmatpush1.bf16.msra.mxu0 0
  %5773 = vmatprep.subr.bf16.mxu0 0
  %5774 = vmatpush1.bf16.msra.mxu0 0
  %5775 = vmatprep.subr.bf16.mxu0 0
  %5776 = vmatpush1.bf16.msra.mxu0 0
  %5777 = vmatprep.subr.bf16.mxu0 0
  %5778 = vmatpush1.bf16.msra.mxu0 0
  %5779 = vmatprep.subr.bf16.mxu0 0
  %5780 = vmatpush1.bf16.msra.mxu0 0
  %5781 = vmatprep.subr.bf16.mxu0 0
  %5782 = vmatpush1.bf16.msra.mxu0 0
  %5783 = vmatprep.mubr.bf16.mxu0 0
  %5784 = vmatmul.mubr.bf16.gmra.mrb[0].mxu0 %v5375
  %v5785 = vpop.f32.mrb[0].mxu0
  %v5786 = vadd.f32 %v5317, %v5785
  %v5787 = vpop.f32.mrb[0].mxu0
  %v5788 = vadd.f32 %v5317, %v5787
  %v5789 = vpop.f32.mrb[0].mxu0
  %v5790 = vadd.f32 %v5322, %v5789
  %v5791 = vpop.f32.mrb[0].mxu0
  %v5792 = vadd.f32 %v5322, %v5791
  %5793 = vmatprep.mubr.bf16.mxu0 0
  %5794 = vmatmul.mubr.bf16.gmra.mrb[0].mxu0 %v5378
  %v5795 = vpop.f32.mrb[0].mxu0
  %v5796 = vadd.f32 %v5327, %v5795
  %v5797 = vpop.f32.mrb[0].mxu0
  %v5798 = vadd.f32 %v5327, %v5797
  %v5799 = vpop.f32.mrb[0].mxu0
  %v5800 = vadd.f32 %v5332, %v5799
  %v5801 = vpop.f32.mrb[0].mxu0
  %v5802 = vadd.f32 %v5332, %v5801
  %5803 = vmatprep.mubr.bf16.mxu0 0
  %5804 = vmatmul.mubr.bf16.gmra.mrb[0].mxu0 %v5381
  %v5805 = vpop.f32.mrb[0].mxu0
  %v5806 = vadd.f32 %v5337, %v5805
  %v5807 = vpop.f32.mrb[0].mxu0
  %v5808 = vadd.f32 %v5337, %v5807
  %v5809 = vpop.f32.mrb[0].mxu0
  %v5810 = vadd.f32 %v5342, %v5809
  %v5811 = vpop.f32.mrb[0].mxu0
  %v5812 = vadd.f32 %v5342, %v5811
  %5813 = vmatprep.mubr.bf16.mxu0 0
  %5814 = vmatmul.mubr.bf16.gmra.mrb[0].mxu0 %v5384
  %v5815 = vpop.f32.mrb[0].mxu0
  %v5816 = vadd.f32 %v5347, %v5815
  %v5817 = vpop.f32.mrb[0].mxu0
  %v5818 = vadd.f32 %v5347, %v5817
  %v5819 = vpop.f32.mrb[0].mxu0
  %v5820 = vadd.f32 %v5352, %v5819
  %v5821 = vpop.f32.mrb[0].mxu0
  %v5822 = vadd.f32 %v5352, %v5821
  %5823 = vdwg.mxu0
  %5824 = vmatprep.subr.bf16.mxu0 %v5254
  %5825 = vmatpush1.bf16.msra.mxu0 %v5253
  %5826 = vmatprep.subr.bf16.mxu0 %v5270
  %5827 = vmatpush1.bf16.msra.mxu0 %v5269
  %5828 = vmatprep.subr.bf16.mxu0 %v5286
  %5829 = vmatpush1.bf16.msra.mxu0 %v5285
  %5830 = vmatprep.subr.bf16.mxu0 %v5302
  %5831 = vmatpush1.bf16.msra.mxu0 %v5301
  %5832 = vmatprep.subr.bf16.mxu0 0
  %5833 = vmatpush1.bf16.msra.mxu0 0
  %5834 = vmatprep.subr.bf16.mxu0 0
  %5835 = vmatpush1.bf16.msra.mxu0 0
  %5836 = vmatprep.subr.bf16.mxu0 0
  %5837 = vmatpush1.bf16.msra.mxu0 0
  %5838 = vmatprep.subr.bf16.mxu0 0
  %5839 = vmatpush1.bf16.msra.mxu0 0
  %5840 = vmatprep.subr.bf16.mxu0 0
  %5841 = vmatpush1.bf16.msra.mxu0 0
  %5842 = vmatprep.subr.bf16.mxu0 0
  %5843 = vmatpush1.bf16.msra.mxu0 0
  %5844 = vmatprep.subr.bf16.mxu0 0
  %5845 = vmatpush1.bf16.msra.mxu0 0
  %5846 = vmatprep.subr.bf16.mxu0 0
  %5847 = vmatpush1.bf16.msra.mxu0 0
  %5848 = vmatprep.subr.bf16.mxu0 0
  %5849 = vmatpush1.bf16.msra.mxu0 0
  %5850 = vmatprep.subr.bf16.mxu0 0
  %5851 = vmatpush1.bf16.msra.mxu0 0
  %5852 = vmatprep.subr.bf16.mxu0 0
  %5853 = vmatpush1.bf16.msra.mxu0 0
  %5854 = vmatprep.subr.bf16.mxu0 0
  %5855 = vmatpush1.bf16.msra.mxu0 0
  %5856 = vmatprep.mubr.bf16.mxu0 0
  %5857 = vmatmul.mubr.bf16.gmra.mrb[0].mxu0 %v5375
  %v5858 = vpop.f32.mrb[0].mxu0
  %v5859 = vadd.f32 %v5317, %v5858
  %v5860 = vpop.f32.mrb[0].mxu0
  %v5861 = vadd.f32 %v5317, %v5860
  %v5862 = vpop.f32.mrb[0].mxu0
  %v5863 = vadd.f32 %v5322, %v5862
  %v5864 = vpop.f32.mrb[0].mxu0
  %v5865 = vadd.f32 %v5322, %v5864
  %5866 = vmatprep.mubr.bf16.mxu0 0
  %5867 = vmatmul.mubr.bf16.gmra.mrb[0].mxu0 %v5378
  %v5868 = vpop.f32.mrb[0].mxu0
  %v5869 = vadd.f32 %v5327, %v5868
  %v5870 = vpop.f32.mrb[0].mxu0
  %v5871 = vadd.f32 %v5327, %v5870
  %v5872 = vpop.f32.mrb[0].mxu0
  %v5873 = vadd.f32 %v5332, %v5872
  %v5874 = vpop.f32.mrb[0].mxu0
  %v5875 = vadd.f32 %v5332, %v5874
  %5876 = vmatprep.mubr.bf16.mxu0 0
  %5877 = vmatmul.mubr.bf16.gmra.mrb[0].mxu0 %v5381
  %v5878 = vpop.f32.mrb[0].mxu0
  %v5879 = vadd.f32 %v5337, %v5878
  %v5880 = vpop.f32.mrb[0].mxu0
  %v5881 = vadd.f32 %v5337, %v5880
  %v5882 = vpop.f32.mrb[0].mxu0
  %v5883 = vadd.f32 %v5342, %v5882
  %v5884 = vpop.f32.mrb[0].mxu0
  %v5885 = vadd.f32 %v5342, %v5884
  %5886 = vmatprep.mubr.bf16.mxu0 0
  %5887 = vmatmul.mubr.bf16.gmra.mrb[0].mxu0 %v5384
  %v5888 = vpop.f32.mrb[0].mxu0
  %v5889 = vadd.f32 %v5347, %v5888
  %v5890 = vpop.f32.mrb[0].mxu0
  %v5891 = vadd.f32 %v5347, %v5890
  %v5892 = vpop.f32.mrb[0].mxu0
  %v5893 = vadd.f32 %v5352, %v5892
  %v5894 = vpop.f32.mrb[0].mxu0
  %v5895 = vadd.f32 %v5352, %v5894
  %5896 = vdwg.mxu0
  %5897 = vmatprep.subr.bf16.mxu0 %v5256
  %5898 = vmatpush1.bf16.msra.mxu0 %v5255
  %5899 = vmatprep.subr.bf16.mxu0 %v5272
  %5900 = vmatpush1.bf16.msra.mxu0 %v5271
  %5901 = vmatprep.subr.bf16.mxu0 %v5288
  %5902 = vmatpush1.bf16.msra.mxu0 %v5287
  %5903 = vmatprep.subr.bf16.mxu0 %v5304
  %5904 = vmatpush1.bf16.msra.mxu0 %v5303
  %5905 = vmatprep.subr.bf16.mxu0 0
  %5906 = vmatpush1.bf16.msra.mxu0 0
  %5907 = vmatprep.subr.bf16.mxu0 0
  %5908 = vmatpush1.bf16.msra.mxu0 0
  %5909 = vmatprep.subr.bf16.mxu0 0
  %5910 = vmatpush1.bf16.msra.mxu0 0
  %5911 = vmatprep.subr.bf16.mxu0 0
  %5912 = vmatpush1.bf16.msra.mxu0 0
  %5913 = vmatprep.subr.bf16.mxu0 0
  %5914 = vmatpush1.bf16.msra.mxu0 0
  %5915 = vmatprep.subr.bf16.mxu0 0
  %5916 = vmatpush1.bf16.msra.mxu0 0
  %5917 = vmatprep.subr.bf16.mxu0 0
  %5918 = vmatpush1.bf16.msra.mxu0 0
  %5919 = vmatprep.subr.bf16.mxu0 0
  %5920 = vmatpush1.bf16.msra.mxu0 0
  %5921 = vmatprep.subr.bf16.mxu0 0
  %5922 = vmatpush1.bf16.msra.mxu0 0
  %5923 = vmatprep.subr.bf16.mxu0 0
  %5924 = vmatpush1.bf16.msra.mxu0 0
  %5925 = vmatprep.subr.bf16.mxu0 0
  %5926 = vmatpush1.bf16.msra.mxu0 0
  %5927 = vmatprep.subr.bf16.mxu0 0
  %5928 = vmatpush1.bf16.msra.mxu0 0
  %5929 = vmatprep.mubr.bf16.mxu0 0
  %5930 = vmatmul.mubr.bf16.gmra.mrb[0].mxu0 %v5375
  %v5931 = vpop.f32.mrb[0].mxu0
  %v5932 = vadd.f32 %v5317, %v5931
  %v5933 = vpop.f32.mrb[0].mxu0
  %v5934 = vadd.f32 %v5317, %v5933
  %v5935 = vpop.f32.mrb[0].mxu0
  %v5936 = vadd.f32 %v5322, %v5935
  %v5937 = vpop.f32.mrb[0].mxu0
  %v5938 = vadd.f32 %v5322, %v5937
  %5939 = vmatprep.mubr.bf16.mxu0 0
  %5940 = vmatmul.mubr.bf16.gmra.mrb[0].mxu0 %v5378
  %v5941 = vpop.f32.mrb[0].mxu0
  %v5942 = vadd.f32 %v5327, %v5941
  %v5943 = vpop.f32.mrb[0].mxu0
  %v5944 = vadd.f32 %v5327, %v5943
  %v5945 = vpop.f32.mrb[0].mxu0
  %v5946 = vadd.f32 %v5332, %v5945
  %v5947 = vpop.f32.mrb[0].mxu0
  %v5948 = vadd.f32 %v5332, %v5947
  %5949 = vmatprep.mubr.bf16.mxu0 0
  %5950 = vmatmul.mubr.bf16.gmra.mrb[0].mxu0 %v5381
  %v5951 = vpop.f32.mrb[0].mxu0
  %v5952 = vadd.f32 %v5337, %v5951
  %v5953 = vpop.f32.mrb[0].mxu0
  %v5954 = vadd.f32 %v5337, %v5953
  %v5955 = vpop.f32.mrb[0].mxu0
  %v5956 = vadd.f32 %v5342, %v5955
  %v5957 = vpop.f32.mrb[0].mxu0
  %v5958 = vadd.f32 %v5342, %v5957
  %5959 = vmatprep.mubr.bf16.mxu0 0
  %5960 = vmatmul.mubr.bf16.gmra.mrb[0].mxu0 %v5384
  %v5961 = vpop.f32.mrb[0].mxu0
  %v5962 = vadd.f32 %v5347, %v5961
  %v5963 = vpop.f32.mrb[0].mxu0
  %v5964 = vadd.f32 %v5347, %v5963
  %v5965 = vpop.f32.mrb[0].mxu0
  %v5966 = vadd.f32 %v5352, %v5965
  %v5967 = vpop.f32.mrb[0].mxu0
  %v5968 = vadd.f32 %v5352, %v5967
  %5969 = vdwg.mxu0
  %v5970 = vmul.f32 %v5421, 0.5
  %v5971 = vmul.f32 %v5423, 0.5
  %v5972 = vmul.f32 %v5494, 0.5
  %v5973 = vmul.f32 %v5496, 0.5
  %v5974 = vmul.f32 %v5567, 0.5
  %v5975 = vmul.f32 %v5569, 0.5
  %v5976 = vmul.f32 %v5640, 0.5
  %v5977 = vmul.f32 %v5642, 0.5
  %v5978 = vmul.f32 %v5713, 0.5
  %v5979 = vmul.f32 %v5715, 0.5
  %v5980 = vmul.f32 %v5786, 0.5
  %v5981 = vmul.f32 %v5788, 0.5
  %v5982 = vmul.f32 %v5859, 0.5
  %v5983 = vmul.f32 %v5861, 0.5
  %v5984 = vmul.f32 %v5932, 0.5
  %v5985 = vmul.f32 %v5934, 0.5
  %v5986 = vmul.f32 %v5425, 0.5
  %v5987 = vmul.f32 %v5427, 0.5
  %v5988 = vmul.f32 %v5498, 0.5
  %v5989 = vmul.f32 %v5500, 0.5
  %v5990 = vmul.f32 %v5571, 0.5
  %v5991 = vmul.f32 %v5573, 0.5
  %v5992 = vmul.f32 %v5644, 0.5
  %v5993 = vmul.f32 %v5646, 0.5
  %v5994 = vmul.f32 %v5717, 0.5
  %v5995 = vmul.f32 %v5719, 0.5
  %v5996 = vmul.f32 %v5790, 0.5
  %v5997 = vmul.f32 %v5792, 0.5
  %v5998 = vmul.f32 %v5863, 0.5
  %v5999 = vmul.f32 %v5865, 0.5
  %v6000 = vmul.f32 %v5936, 0.5
  %v6001 = vmul.f32 %v5938, 0.5
  %v6002 = vmul.f32 %v5431, 0.5
  %v6003 = vmul.f32 %v5433, 0.5
  %v6004 = vmul.f32 %v5504, 0.5
  %v6005 = vmul.f32 %v5506, 0.5
  %v6006 = vmul.f32 %v5577, 0.5
  %v6007 = vmul.f32 %v5579, 0.5
  %v6008 = vmul.f32 %v5650, 0.5
  %v6009 = vmul.f32 %v5652, 0.5
  %v6010 = vmul.f32 %v5723, 0.5
  %v6011 = vmul.f32 %v5725, 0.5
  %v6012 = vmul.f32 %v5796, 0.5
  %v6013 = vmul.f32 %v5798, 0.5
  %v6014 = vmul.f32 %v5869, 0.5
  %v6015 = vmul.f32 %v5871, 0.5
  %v6016 = vmul.f32 %v5942, 0.5
  %v6017 = vmul.f32 %v5944, 0.5
  %v6018 = vmul.f32 %v5435, 0.5
  %v6019 = vmul.f32 %v5437, 0.5
  %v6020 = vmul.f32 %v5508, 0.5
  %v6021 = vmul.f32 %v5510, 0.5
  %v6022 = vmul.f32 %v5581, 0.5
  %v6023 = vmul.f32 %v5583, 0.5
  %v6024 = vmul.f32 %v5654, 0.5
  %v6025 = vmul.f32 %v5656, 0.5
  %v6026 = vmul.f32 %v5727, 0.5
  %v6027 = vmul.f32 %v5729, 0.5
  %v6028 = vmul.f32 %v5800, 0.5
  %v6029 = vmul.f32 %v5802, 0.5
  %v6030 = vmul.f32 %v5873, 0.5
  %v6031 = vmul.f32 %v5875, 0.5
  %v6032 = vmul.f32 %v5946, 0.5
  %v6033 = vmul.f32 %v5948, 0.5
  %v6034 = vmul.f32 %v5441, 0.5
  %v6035 = vmul.f32 %v5443, 0.5
  %v6036 = vmul.f32 %v5514, 0.5
  %v6037 = vmul.f32 %v5516, 0.5
  %v6038 = vmul.f32 %v5587, 0.5
  %v6039 = vmul.f32 %v5589, 0.5
  %v6040 = vmul.f32 %v5660, 0.5
  %v6041 = vmul.f32 %v5662, 0.5
  %v6042 = vmul.f32 %v5733, 0.5
  %v6043 = vmul.f32 %v5735, 0.5
  %v6044 = vmul.f32 %v5806, 0.5
  %v6045 = vmul.f32 %v5808, 0.5
  %v6046 = vmul.f32 %v5879, 0.5
  %v6047 = vmul.f32 %v5881, 0.5
  %v6048 = vmul.f32 %v5952, 0.5
  %v6049 = vmul.f32 %v5954, 0.5
  %v6050 = vmul.f32 %v5445, 0.5
  %v6051 = vmul.f32 %v5447, 0.5
  %v6052 = vmul.f32 %v5518, 0.5
  %v6053 = vmul.f32 %v5520, 0.5
  %v6054 = vmul.f32 %v5591, 0.5
  %v6055 = vmul.f32 %v5593, 0.5
  %v6056 = vmul.f32 %v5664, 0.5
  %v6057 = vmul.f32 %v5666, 0.5
  %v6058 = vmul.f32 %v5737, 0.5
  %v6059 = vmul.f32 %v5739, 0.5
  %v6060 = vmul.f32 %v5810, 0.5
  %v6061 = vmul.f32 %v5812, 0.5
  %v6062 = vmul.f32 %v5883, 0.5
  %v6063 = vmul.f32 %v5885, 0.5
  %v6064 = vmul.f32 %v5956, 0.5
  %v6065 = vmul.f32 %v5958, 0.5
  %v6066 = vmul.f32 %v5451, 0.5
  %v6067 = vmul.f32 %v5453, 0.5
  %v6068 = vmul.f32 %v5524, 0.5
  %v6069 = vmul.f32 %v5526, 0.5
  %v6070 = vmul.f32 %v5597, 0.5
  %v6071 = vmul.f32 %v5599, 0.5
  %v6072 = vmul.f32 %v5670, 0.5
  %v6073 = vmul.f32 %v5672, 0.5
  %v6074 = vmul.f32 %v5743, 0.5
  %v6075 = vmul.f32 %v5745, 0.5
  %v6076 = vmul.f32 %v5816, 0.5
  %v6077 = vmul.f32 %v5818, 0.5
  %v6078 = vmul.f32 %v5889, 0.5
  %v6079 = vmul.f32 %v5891, 0.5
  %v6080 = vmul.f32 %v5962, 0.5
  %v6081 = vmul.f32 %v5964, 0.5
  %v6082 = vmul.f32 %v5455, 0.5
  %v6083 = vmul.f32 %v5457, 0.5
  %v6084 = vmul.f32 %v5528, 0.5
  %v6085 = vmul.f32 %v5530, 0.5
  %v6086 = vmul.f32 %v5601, 0.5
  %v6087 = vmul.f32 %v5603, 0.5
  %v6088 = vmul.f32 %v5674, 0.5
  %v6089 = vmul.f32 %v5676, 0.5
  %v6090 = vmul.f32 %v5747, 0.5
  %v6091 = vmul.f32 %v5749, 0.5
  %v6092 = vmul.f32 %v5820, 0.5
  %v6093 = vmul.f32 %v5822, 0.5
  %v6094 = vmul.f32 %v5893, 0.5
  %v6095 = vmul.f32 %v5895, 0.5
  %v6096 = vmul.f32 %v5966, 0.5
  %v6097 = vmul.f32 %v5968, 0.5
  %v6098 = vtanh.pop %v5970
  %v6099 = vtanh.pop %v5971
  %v6100 = vtanh.pop %v5972
  %v6101 = vtanh.pop %v5973
  %v6102 = vtanh.pop %v5974
  %v6103 = vtanh.pop %v5975
  %v6104 = vtanh.pop %v5976
  %v6105 = vtanh.pop %v5977
  %v6106 = vtanh.pop %v5978
  %v6107 = vtanh.pop %v5979
  %v6108 = vtanh.pop %v5980
  %v6109 = vtanh.pop %v5981
  %v6110 = vtanh.pop %v5982
  %v6111 = vtanh.pop %v5983
  %v6112 = vtanh.pop %v5984
  %v6113 = vtanh.pop %v5985
  %v6114 = vtanh.pop %v5986
  %v6115 = vtanh.pop %v5987
  %v6116 = vtanh.pop %v5988
  %v6117 = vtanh.pop %v5989
  %v6118 = vtanh.pop %v5990
  %v6119 = vtanh.pop %v5991
  %v6120 = vtanh.pop %v5992
  %v6121 = vtanh.pop %v5993
  %v6122 = vtanh.pop %v5994
  %v6123 = vtanh.pop %v5995
  %v6124 = vtanh.pop %v5996
  %v6125 = vtanh.pop %v5997
  %v6126 = vtanh.pop %v5998
  %v6127 = vtanh.pop %v5999
  %v6128 = vtanh.pop %v6000
  %v6129 = vtanh.pop %v6001
  %v6130 = vtanh.pop %v6002
  %v6131 = vtanh.pop %v6003
  %v6132 = vtanh.pop %v6004
  %v6133 = vtanh.pop %v6005
  %v6134 = vtanh.pop %v6006
  %v6135 = vtanh.pop %v6007
  %v6136 = vtanh.pop %v6008
  %v6137 = vtanh.pop %v6009
  %v6138 = vtanh.pop %v6010
  %v6139 = vtanh.pop %v6011
  %v6140 = vtanh.pop %v6012
  %v6141 = vtanh.pop %v6013
  %v6142 = vtanh.pop %v6014
  %v6143 = vtanh.pop %v6015
  %v6144 = vtanh.pop %v6016
  %v6145 = vtanh.pop %v6017
  %v6146 = vtanh.pop %v6018
  %v6147 = vtanh.pop %v6019
  %v6148 = vtanh.pop %v6020
  %v6149 = vtanh.pop %v6021
  %v6150 = vtanh.pop %v6022
  %v6151 = vtanh.pop %v6023
  %v6152 = vtanh.pop %v6024
  %v6153 = vtanh.pop %v6025
  %v6154 = vtanh.pop %v6026
  %v6155 = vtanh.pop %v6027
  %v6156 = vtanh.pop %v6028
  %v6157 = vtanh.pop %v6029
  %v6158 = vtanh.pop %v6030
  %v6159 = vtanh.pop %v6031
  %v6160 = vtanh.pop %v6032
  %v6161 = vtanh.pop %v6033
  %v6162 = vtanh.pop %v6034
  %v6163 = vtanh.pop %v6035
  %v6164 = vtanh.pop %v6036
  %v6165 = vtanh.pop %v6037
  %v6166 = vtanh.pop %v6038
  %v6167 = vtanh.pop %v6039
  %v6168 = vtanh.pop %v6040
  %v6169 = vtanh.pop %v6041
  %v6170 = vtanh.pop %v6042
  %v6171 = vtanh.pop %v6043
  %v6172 = vtanh.pop %v6044
  %v6173 = vtanh.pop %v6045
  %v6174 = vtanh.pop %v6046
  %v6175 = vtanh.pop %v6047
  %v6176 = vtanh.pop %v6048
  %v6177 = vtanh.pop %v6049
  %v6178 = vtanh.pop %v6050
  %v6179 = vtanh.pop %v6051
  %v6180 = vtanh.pop %v6052
  %v6181 = vtanh.pop %v6053
  %v6182 = vtanh.pop %v6054
  %v6183 = vtanh.pop %v6055
  %v6184 = vtanh.pop %v6056
  %v6185 = vtanh.pop %v6057
  %v6186 = vtanh.pop %v6058
  %v6187 = vtanh.pop %v6059
  %v6188 = vtanh.pop %v6060
  %v6189 = vtanh.pop %v6061
  %v6190 = vtanh.pop %v6062
  %v6191 = vtanh.pop %v6063
  %v6192 = vtanh.pop %v6064
  %v6193 = vtanh.pop %v6065
  %v6194 = vtanh.pop %v6066
  %v6195 = vtanh.pop %v6067
  %v6196 = vtanh.pop %v6068
  %v6197 = vtanh.pop %v6069
  %v6198 = vtanh.pop %v6070
  %v6199 = vtanh.pop %v6071
  %v6200 = vtanh.pop %v6072
  %v6201 = vtanh.pop %v6073
  %v6202 = vtanh.pop %v6074
  %v6203 = vtanh.pop %v6075
  %v6204 = vtanh.pop %v6076
  %v6205 = vtanh.pop %v6077
  %v6206 = vtanh.pop %v6078
  %v6207 = vtanh.pop %v6079
  %v6208 = vtanh.pop %v6080
  %v6209 = vtanh.pop %v6081
  %v6210 = vtanh.pop %v6082
  %v6211 = vtanh.pop %v6083
  %v6212 = vtanh.pop %v6084
  %v6213 = vtanh.pop %v6085
  %v6214 = vtanh.pop %v6086
  %v6215 = vtanh.pop %v6087
  %v6216 = vtanh.pop %v6088
  %v6217 = vtanh.pop %v6089
  %v6218 = vtanh.pop %v6090
  %v6219 = vtanh.pop %v6091
  %v6220 = vtanh.pop %v6092
  %v6221 = vtanh.pop %v6093
  %v6222 = vtanh.pop %v6094
  %v6223 = vtanh.pop %v6095
  %v6224 = vtanh.pop %v6096
  %v6225 = vtanh.pop %v6097
  %v6226 = vmul.f32 %v6098, 0.5
  %v6227 = vmul.f32 %v6099, 0.5
  %v6228 = vmul.f32 %v6100, 0.5
  %v6229 = vmul.f32 %v6101, 0.5
  %v6230 = vmul.f32 %v6102, 0.5
  %v6231 = vmul.f32 %v6103, 0.5
  %v6232 = vmul.f32 %v6104, 0.5
  %v6233 = vmul.f32 %v6105, 0.5
  %v6234 = vmul.f32 %v6106, 0.5
  %v6235 = vmul.f32 %v6107, 0.5
  %v6236 = vmul.f32 %v6108, 0.5
  %v6237 = vmul.f32 %v6109, 0.5
  %v6238 = vmul.f32 %v6110, 0.5
  %v6239 = vmul.f32 %v6111, 0.5
  %v6240 = vmul.f32 %v6112, 0.5
  %v6241 = vmul.f32 %v6113, 0.5
  %v6242 = vmul.f32 %v6114, 0.5
  %v6243 = vmul.f32 %v6115, 0.5
  %v6244 = vmul.f32 %v6116, 0.5
  %v6245 = vmul.f32 %v6117, 0.5
  %v6246 = vmul.f32 %v6118, 0.5
  %v6247 = vmul.f32 %v6119, 0.5
  %v6248 = vmul.f32 %v6120, 0.5
  %v6249 = vmul.f32 %v6121, 0.5
  %v6250 = vmul.f32 %v6122, 0.5
  %v6251 = vmul.f32 %v6123, 0.5
  %v6252 = vmul.f32 %v6124, 0.5
  %v6253 = vmul.f32 %v6125, 0.5
  %v6254 = vmul.f32 %v6126, 0.5
  %v6255 = vmul.f32 %v6127, 0.5
  %v6256 = vmul.f32 %v6128, 0.5
  %v6257 = vmul.f32 %v6129, 0.5
  %v6258 = vmul.f32 %v6130, 0.5
  %v6259 = vmul.f32 %v6131, 0.5
  %v6260 = vmul.f32 %v6132, 0.5
  %v6261 = vmul.f32 %v6133, 0.5
  %v6262 = vmul.f32 %v6134, 0.5
  %v6263 = vmul.f32 %v6135, 0.5
  %v6264 = vmul.f32 %v6136, 0.5
  %v6265 = vmul.f32 %v6137, 0.5
  %v6266 = vmul.f32 %v6138, 0.5
  %v6267 = vmul.f32 %v6139, 0.5
  %v6268 = vmul.f32 %v6140, 0.5
  %v6269 = vmul.f32 %v6141, 0.5
  %v6270 = vmul.f32 %v6142, 0.5
  %v6271 = vmul.f32 %v6143, 0.5
  %v6272 = vmul.f32 %v6144, 0.5
  %v6273 = vmul.f32 %v6145, 0.5
  %v6274 = vmul.f32 %v6146, 0.5
  %v6275 = vmul.f32 %v6147, 0.5
  %v6276 = vmul.f32 %v6148, 0.5
  %v6277 = vmul.f32 %v6149, 0.5
  %v6278 = vmul.f32 %v6150, 0.5
  %v6279 = vmul.f32 %v6151, 0.5
  %v6280 = vmul.f32 %v6152, 0.5
  %v6281 = vmul.f32 %v6153, 0.5
  %v6282 = vmul.f32 %v6154, 0.5
  %v6283 = vmul.f32 %v6155, 0.5
  %v6284 = vmul.f32 %v6156, 0.5
  %v6285 = vmul.f32 %v6157, 0.5
  %v6286 = vmul.f32 %v6158, 0.5
  %v6287 = vmul.f32 %v6159, 0.5
  %v6288 = vmul.f32 %v6160, 0.5
  %v6289 = vmul.f32 %v6161, 0.5
  %v6290 = vmul.f32 %v6162, 0.5
  %v6291 = vmul.f32 %v6163, 0.5
  %v6292 = vmul.f32 %v6164, 0.5
  %v6293 = vmul.f32 %v6165, 0.5
  %v6294 = vmul.f32 %v6166, 0.5
  %v6295 = vmul.f32 %v6167, 0.5
  %v6296 = vmul.f32 %v6168, 0.5
  %v6297 = vmul.f32 %v6169, 0.5
  %v6298 = vmul.f32 %v6170, 0.5
  %v6299 = vmul.f32 %v6171, 0.5
  %v6300 = vmul.f32 %v6172, 0.5
  %v6301 = vmul.f32 %v6173, 0.5
  %v6302 = vmul.f32 %v6174, 0.5
  %v6303 = vmul.f32 %v6175, 0.5
  %v6304 = vmul.f32 %v6176, 0.5
  %v6305 = vmul.f32 %v6177, 0.5
  %v6306 = vmul.f32 %v6178, 0.5
  %v6307 = vmul.f32 %v6179, 0.5
  %v6308 = vmul.f32 %v6180, 0.5
  %v6309 = vmul.f32 %v6181, 0.5
  %v6310 = vmul.f32 %v6182, 0.5
  %v6311 = vmul.f32 %v6183, 0.5
  %v6312 = vmul.f32 %v6184, 0.5
  %v6313 = vmul.f32 %v6185, 0.5
  %v6314 = vmul.f32 %v6186, 0.5
  %v6315 = vmul.f32 %v6187, 0.5
  %v6316 = vmul.f32 %v6188, 0.5
  %v6317 = vmul.f32 %v6189, 0.5
  %v6318 = vmul.f32 %v6190, 0.5
  %v6319 = vmul.f32 %v6191, 0.5
  %v6320 = vmul.f32 %v6192, 0.5
  %v6321 = vmul.f32 %v6193, 0.5
  %v6322 = vmul.f32 %v6194, 0.5
  %v6323 = vmul.f32 %v6195, 0.5
  %v6324 = vmul.f32 %v6196, 0.5
  %v6325 = vmul.f32 %v6197, 0.5
  %v6326 = vmul.f32 %v6198, 0.5
  %v6327 = vmul.f32 %v6199, 0.5
  %v6328 = vmul.f32 %v6200, 0.5
  %v6329 = vmul.f32 %v6201, 0.5
  %v6330 = vmul.f32 %v6202, 0.5
  %v6331 = vmul.f32 %v6203, 0.5
  %v6332 = vmul.f32 %v6204, 0.5
  %v6333 = vmul.f32 %v6205, 0.5
  %v6334 = vmul.f32 %v6206, 0.5
  %v6335 = vmul.f32 %v6207, 0.5
  %v6336 = vmul.f32 %v6208, 0.5
  %v6337 = vmul.f32 %v6209, 0.5
  %v6338 = vmul.f32 %v6210, 0.5
  %v6339 = vmul.f32 %v6211, 0.5
  %v6340 = vmul.f32 %v6212, 0.5
  %v6341 = vmul.f32 %v6213, 0.5
  %v6342 = vmul.f32 %v6214, 0.5
  %v6343 = vmul.f32 %v6215, 0.5
  %v6344 = vmul.f32 %v6216, 0.5
  %v6345 = vmul.f32 %v6217, 0.5
  %v6346 = vmul.f32 %v6218, 0.5
  %v6347 = vmul.f32 %v6219, 0.5
  %v6348 = vmul.f32 %v6220, 0.5
  %v6349 = vmul.f32 %v6221, 0.5
  %v6350 = vmul.f32 %v6222, 0.5
  %v6351 = vmul.f32 %v6223, 0.5
  %v6352 = vmul.f32 %v6224, 0.5
  %v6353 = vmul.f32 %v6225, 0.5
  %v6354 = vadd.f32 %v6226, 0.5
  %v6355 = vadd.f32 %v6227, 0.5
  %v6356 = vadd.f32 %v6228, 0.5
  %v6357 = vadd.f32 %v6229, 0.5
  %v6358 = vadd.f32 %v6230, 0.5
  %v6359 = vadd.f32 %v6231, 0.5
  %v6360 = vadd.f32 %v6232, 0.5
  %v6361 = vadd.f32 %v6233, 0.5
  %v6362 = vadd.f32 %v6234, 0.5
  %v6363 = vadd.f32 %v6235, 0.5
  %v6364 = vadd.f32 %v6236, 0.5
  %v6365 = vadd.f32 %v6237, 0.5
  %v6366 = vadd.f32 %v6238, 0.5
  %v6367 = vadd.f32 %v6239, 0.5
  %v6368 = vadd.f32 %v6240, 0.5
  %v6369 = vadd.f32 %v6241, 0.5
  %v6370 = vadd.f32 %v6242, 0.5
  %v6371 = vadd.f32 %v6243, 0.5
  %v6372 = vadd.f32 %v6244, 0.5
  %v6373 = vadd.f32 %v6245, 0.5
  %v6374 = vadd.f32 %v6246, 0.5
  %v6375 = vadd.f32 %v6247, 0.5
  %v6376 = vadd.f32 %v6248, 0.5
  %v6377 = vadd.f32 %v6249, 0.5
  %v6378 = vadd.f32 %v6250, 0.5
  %v6379 = vadd.f32 %v6251, 0.5
  %v6380 = vadd.f32 %v6252, 0.5
  %v6381 = vadd.f32 %v6253, 0.5
  %v6382 = vadd.f32 %v6254, 0.5
  %v6383 = vadd.f32 %v6255, 0.5
  %v6384 = vadd.f32 %v6256, 0.5
  %v6385 = vadd.f32 %v6257, 0.5
  %v6386 = vadd.f32 %v6258, 0.5
  %v6387 = vadd.f32 %v6259, 0.5
  %v6388 = vadd.f32 %v6260, 0.5
  %v6389 = vadd.f32 %v6261, 0.5
  %v6390 = vadd.f32 %v6262, 0.5
  %v6391 = vadd.f32 %v6263, 0.5
  %v6392 = vadd.f32 %v6264, 0.5
  %v6393 = vadd.f32 %v6265, 0.5
  %v6394 = vadd.f32 %v6266, 0.5
  %v6395 = vadd.f32 %v6267, 0.5
  %v6396 = vadd.f32 %v6268, 0.5
  %v6397 = vadd.f32 %v6269, 0.5
  %v6398 = vadd.f32 %v6270, 0.5
  %v6399 = vadd.f32 %v6271, 0.5
  %v6400 = vadd.f32 %v6272, 0.5
  %v6401 = vadd.f32 %v6273, 0.5
  %v6402 = vadd.f32 %v6274, 0.5
  %v6403 = vadd.f32 %v6275, 0.5
  %v6404 = vadd.f32 %v6276, 0.5
  %v6405 = vadd.f32 %v6277, 0.5
  %v6406 = vadd.f32 %v6278, 0.5
  %v6407 = vadd.f32 %v6279, 0.5
  %v6408 = vadd.f32 %v6280, 0.5
  %v6409 = vadd.f32 %v6281, 0.5
  %v6410 = vadd.f32 %v6282, 0.5
  %v6411 = vadd.f32 %v6283, 0.5
  %v6412 = vadd.f32 %v6284, 0.5
  %v6413 = vadd.f32 %v6285, 0.5
  %v6414 = vadd.f32 %v6286, 0.5
  %v6415 = vadd.f32 %v6287, 0.5
  %v6416 = vadd.f32 %v6288, 0.5
  %v6417 = vadd.f32 %v6289, 0.5
  %v6418 = vadd.f32 %v6290, 0.5
  %v6419 = vadd.f32 %v6291, 0.5
  %v6420 = vadd.f32 %v6292, 0.5
  %v6421 = vadd.f32 %v6293, 0.5
  %v6422 = vadd.f32 %v6294, 0.5
  %v6423 = vadd.f32 %v6295, 0.5
  %v6424 = vadd.f32 %v6296, 0.5
  %v6425 = vadd.f32 %v6297, 0.5
  %v6426 = vadd.f32 %v6298, 0.5
  %v6427 = vadd.f32 %v6299, 0.5
  %v6428 = vadd.f32 %v6300, 0.5
  %v6429 = vadd.f32 %v6301, 0.5
  %v6430 = vadd.f32 %v6302, 0.5
  %v6431 = vadd.f32 %v6303, 0.5
  %v6432 = vadd.f32 %v6304, 0.5
  %v6433 = vadd.f32 %v6305, 0.5
  %v6434 = vadd.f32 %v6306, 0.5
  %v6435 = vadd.f32 %v6307, 0.5
  %v6436 = vadd.f32 %v6308, 0.5
  %v6437 = vadd.f32 %v6309, 0.5
  %v6438 = vadd.f32 %v6310, 0.5
  %v6439 = vadd.f32 %v6311, 0.5
  %v6440 = vadd.f32 %v6312, 0.5
  %v6441 = vadd.f32 %v6313, 0.5
  %v6442 = vadd.f32 %v6314, 0.5
  %v6443 = vadd.f32 %v6315, 0.5
  %v6444 = vadd.f32 %v6316, 0.5
  %v6445 = vadd.f32 %v6317, 0.5
  %v6446 = vadd.f32 %v6318, 0.5
  %v6447 = vadd.f32 %v6319, 0.5
  %v6448 = vadd.f32 %v6320, 0.5
  %v6449 = vadd.f32 %v6321, 0.5
  %v6450 = vadd.f32 %v6322, 0.5
  %v6451 = vadd.f32 %v6323, 0.5
  %v6452 = vadd.f32 %v6324, 0.5
  %v6453 = vadd.f32 %v6325, 0.5
  %v6454 = vadd.f32 %v6326, 0.5
  %v6455 = vadd.f32 %v6327, 0.5
  %v6456 = vadd.f32 %v6328, 0.5
  %v6457 = vadd.f32 %v6329, 0.5
  %v6458 = vadd.f32 %v6330, 0.5
  %v6459 = vadd.f32 %v6331, 0.5
  %v6460 = vadd.f32 %v6332, 0.5
  %v6461 = vadd.f32 %v6333, 0.5
  %v6462 = vadd.f32 %v6334, 0.5
  %v6463 = vadd.f32 %v6335, 0.5
  %v6464 = vadd.f32 %v6336, 0.5
  %v6465 = vadd.f32 %v6337, 0.5
  %v6466 = vadd.f32 %v6338, 0.5
  %v6467 = vadd.f32 %v6339, 0.5
  %v6468 = vadd.f32 %v6340, 0.5
  %v6469 = vadd.f32 %v6341, 0.5
  %v6470 = vadd.f32 %v6342, 0.5
  %v6471 = vadd.f32 %v6343, 0.5
  %v6472 = vadd.f32 %v6344, 0.5
  %v6473 = vadd.f32 %v6345, 0.5
  %v6474 = vadd.f32 %v6346, 0.5
  %v6475 = vadd.f32 %v6347, 0.5
  %v6476 = vadd.f32 %v6348, 0.5
  %v6477 = vadd.f32 %v6349, 0.5
  %v6478 = vadd.f32 %v6350, 0.5
  %v6479 = vadd.f32 %v6351, 0.5
  %v6480 = vadd.f32 %v6352, 0.5
  %v6481 = vadd.f32 %v6353, 0.5
  %v6482 = vmul.f32 %v5421, %v6354
  %v6483 = vmul.f32 %v5423, %v6355
  %v6484 = vmul.f32 %v5494, %v6356
  %v6485 = vmul.f32 %v5496, %v6357
  %v6486 = vmul.f32 %v5567, %v6358
  %v6487 = vmul.f32 %v5569, %v6359
  %v6488 = vmul.f32 %v5640, %v6360
  %v6489 = vmul.f32 %v5642, %v6361
  %v6490 = vmul.f32 %v5713, %v6362
  %v6491 = vmul.f32 %v5715, %v6363
  %v6492 = vmul.f32 %v5786, %v6364
  %v6493 = vmul.f32 %v5788, %v6365
  %v6494 = vmul.f32 %v5859, %v6366
  %v6495 = vmul.f32 %v5861, %v6367
  %v6496 = vmul.f32 %v5932, %v6368
  %v6497 = vmul.f32 %v5934, %v6369
  %v6498 = vmul.f32 %v5425, %v6370
  %v6499 = vmul.f32 %v5427, %v6371
  %v6500 = vmul.f32 %v5498, %v6372
  %v6501 = vmul.f32 %v5500, %v6373
  %v6502 = vmul.f32 %v5571, %v6374
  %v6503 = vmul.f32 %v5573, %v6375
  %v6504 = vmul.f32 %v5644, %v6376
  %v6505 = vmul.f32 %v5646, %v6377
  %v6506 = vmul.f32 %v5717, %v6378
  %v6507 = vmul.f32 %v5719, %v6379
  %v6508 = vmul.f32 %v5790, %v6380
  %v6509 = vmul.f32 %v5792, %v6381
  %v6510 = vmul.f32 %v5863, %v6382
  %v6511 = vmul.f32 %v5865, %v6383
  %v6512 = vmul.f32 %v5936, %v6384
  %v6513 = vmul.f32 %v5938, %v6385
  %v6514 = vmul.f32 %v5431, %v6386
  %v6515 = vmul.f32 %v5433, %v6387
  %v6516 = vmul.f32 %v5504, %v6388
  %v6517 = vmul.f32 %v5506, %v6389
  %v6518 = vmul.f32 %v5577, %v6390
  %v6519 = vmul.f32 %v5579, %v6391
  %v6520 = vmul.f32 %v5650, %v6392
  %v6521 = vmul.f32 %v5652, %v6393
  %v6522 = vmul.f32 %v5723, %v6394
  %v6523 = vmul.f32 %v5725, %v6395
  %v6524 = vmul.f32 %v5796, %v6396
  %v6525 = vmul.f32 %v5798, %v6397
  %v6526 = vmul.f32 %v5869, %v6398
  %v6527 = vmul.f32 %v5871, %v6399
  %v6528 = vmul.f32 %v5942, %v6400
  %v6529 = vmul.f32 %v5944, %v6401
  %v6530 = vmul.f32 %v5435, %v6402
  %v6531 = vmul.f32 %v5437, %v6403
  %v6532 = vmul.f32 %v5508, %v6404
  %v6533 = vmul.f32 %v5510, %v6405
  %v6534 = vmul.f32 %v5581, %v6406
  %v6535 = vmul.f32 %v5583, %v6407
  %v6536 = vmul.f32 %v5654, %v6408
  %v6537 = vmul.f32 %v5656, %v6409
  %v6538 = vmul.f32 %v5727, %v6410
  %v6539 = vmul.f32 %v5729, %v6411
  %v6540 = vmul.f32 %v5800, %v6412
  %v6541 = vmul.f32 %v5802, %v6413
  %v6542 = vmul.f32 %v5873, %v6414
  %v6543 = vmul.f32 %v5875, %v6415
  %v6544 = vmul.f32 %v5946, %v6416
  %v6545 = vmul.f32 %v5948, %v6417
  %v6546 = vmul.f32 %v5441, %v6418
  %v6547 = vmul.f32 %v5443, %v6419
  %v6548 = vmul.f32 %v5514, %v6420
  %v6549 = vmul.f32 %v5516, %v6421
  %v6550 = vmul.f32 %v5587, %v6422
  %v6551 = vmul.f32 %v5589, %v6423
  %v6552 = vmul.f32 %v5660, %v6424
  %v6553 = vmul.f32 %v5662, %v6425
  %v6554 = vmul.f32 %v5733, %v6426
  %v6555 = vmul.f32 %v5735, %v6427
  %v6556 = vmul.f32 %v5806, %v6428
  %v6557 = vmul.f32 %v5808, %v6429
  %v6558 = vmul.f32 %v5879, %v6430
  %v6559 = vmul.f32 %v5881, %v6431
  %v6560 = vmul.f32 %v5952, %v6432
  %v6561 = vmul.f32 %v5954, %v6433
  %v6562 = vmul.f32 %v5445, %v6434
  %v6563 = vmul.f32 %v5447, %v6435
  %v6564 = vmul.f32 %v5518, %v6436
  %v6565 = vmul.f32 %v5520, %v6437
  %v6566 = vmul.f32 %v5591, %v6438
  %v6567 = vmul.f32 %v5593, %v6439
  %v6568 = vmul.f32 %v5664, %v6440
  %v6569 = vmul.f32 %v5666, %v6441
  %v6570 = vmul.f32 %v5737, %v6442
  %v6571 = vmul.f32 %v5739, %v6443
  %v6572 = vmul.f32 %v5810, %v6444
  %v6573 = vmul.f32 %v5812, %v6445
  %v6574 = vmul.f32 %v5883, %v6446
  %v6575 = vmul.f32 %v5885, %v6447
  %v6576 = vmul.f32 %v5956, %v6448
  %v6577 = vmul.f32 %v5958, %v6449
  %v6578 = vmul.f32 %v5451, %v6450
  %v6579 = vmul.f32 %v5453, %v6451
  %v6580 = vmul.f32 %v5524, %v6452
  %v6581 = vmul.f32 %v5526, %v6453
  %v6582 = vmul.f32 %v5597, %v6454
  %v6583 = vmul.f32 %v5599, %v6455
  %v6584 = vmul.f32 %v5670, %v6456
  %v6585 = vmul.f32 %v5672, %v6457
  %v6586 = vmul.f32 %v5743, %v6458
  %v6587 = vmul.f32 %v5745, %v6459
  %v6588 = vmul.f32 %v5816, %v6460
  %v6589 = vmul.f32 %v5818, %v6461
  %v6590 = vmul.f32 %v5889, %v6462
  %v6591 = vmul.f32 %v5891, %v6463
  %v6592 = vmul.f32 %v5962, %v6464
  %v6593 = vmul.f32 %v5964, %v6465
  %v6594 = vmul.f32 %v5455, %v6466
  %v6595 = vmul.f32 %v5457, %v6467
  %v6596 = vmul.f32 %v5528, %v6468
  %v6597 = vmul.f32 %v5530, %v6469
  %v6598 = vmul.f32 %v5601, %v6470
  %v6599 = vmul.f32 %v5603, %v6471
  %v6600 = vmul.f32 %v5674, %v6472
  %v6601 = vmul.f32 %v5676, %v6473
  %v6602 = vmul.f32 %v5747, %v6474
  %v6603 = vmul.f32 %v5749, %v6475
  %v6604 = vmul.f32 %v5820, %v6476
  %v6605 = vmul.f32 %v5822, %v6477
  %v6606 = vmul.f32 %v5893, %v6478
  %v6607 = vmul.f32 %v5895, %v6479
  %v6608 = vmul.f32 %v5966, %v6480
  %v6609 = vmul.f32 %v5968, %v6481
  %s6610 = scalar_lea.vmem %s3, 96
  %v6611 = vld [vmem:[%s6610] sm:$0xf]
  %v6612 = vld [vmem:[%s6610 + $0x4] sm:$0xf]
  %v6613 = vld [vmem:[%s6610 + $0x8] sm:$0xf]
  %v6614 = vld [vmem:[%s6610 + $0xc] sm:$0xf]
  %v6615 = vld [vmem:[%s6610 + $0x10] sm:$0xf]
  %v6616 = vld [vmem:[%s6610 + $0x14] sm:$0xf]
  %v6617 = vld [vmem:[%s6610 + $0x18] sm:$0xf]
  %v6618 = vld [vmem:[%s6610 + $0x1c] sm:$0xf]
  %v6619 = vpack.c.bf16 %v6498, %v6482
  %v6620 = vpack.c.bf16 %v6499, %v6483
  %v6621 = vpack.c.bf16 %v6500, %v6484
  %v6622 = vpack.c.bf16 %v6501, %v6485
  %v6623 = vpack.c.bf16 %v6502, %v6486
  %v6624 = vpack.c.bf16 %v6503, %v6487
  %v6625 = vpack.c.bf16 %v6504, %v6488
  %v6626 = vpack.c.bf16 %v6505, %v6489
  %v6627 = vpack.c.bf16 %v6506, %v6490
  %v6628 = vpack.c.bf16 %v6507, %v6491
  %v6629 = vpack.c.bf16 %v6508, %v6492
  %v6630 = vpack.c.bf16 %v6509, %v6493
  %v6631 = vpack.c.bf16 %v6510, %v6494
  %v6632 = vpack.c.bf16 %v6511, %v6495
  %v6633 = vpack.c.bf16 %v6512, %v6496
  %v6634 = vpack.c.bf16 %v6513, %v6497
  %v6635 = vpack.c.bf16 %v6530, %v6514
  %v6636 = vpack.c.bf16 %v6531, %v6515
  %v6637 = vpack.c.bf16 %v6532, %v6516
  %v6638 = vpack.c.bf16 %v6533, %v6517
  %v6639 = vpack.c.bf16 %v6534, %v6518
  %v6640 = vpack.c.bf16 %v6535, %v6519
  %v6641 = vpack.c.bf16 %v6536, %v6520
  %v6642 = vpack.c.bf16 %v6537, %v6521
  %v6643 = vpack.c.bf16 %v6538, %v6522
  %v6644 = vpack.c.bf16 %v6539, %v6523
  %v6645 = vpack.c.bf16 %v6540, %v6524
  %v6646 = vpack.c.bf16 %v6541, %v6525
  %v6647 = vpack.c.bf16 %v6542, %v6526
  %v6648 = vpack.c.bf16 %v6543, %v6527
  %v6649 = vpack.c.bf16 %v6544, %v6528
  %v6650 = vpack.c.bf16 %v6545, %v6529
  %v6651 = vpack.c.bf16 %v6562, %v6546
  %v6652 = vpack.c.bf16 %v6563, %v6547
  %v6653 = vpack.c.bf16 %v6564, %v6548
  %v6654 = vpack.c.bf16 %v6565, %v6549
  %v6655 = vpack.c.bf16 %v6566, %v6550
  %v6656 = vpack.c.bf16 %v6567, %v6551
  %v6657 = vpack.c.bf16 %v6568, %v6552
  %v6658 = vpack.c.bf16 %v6569, %v6553
  %v6659 = vpack.c.bf16 %v6570, %v6554
  %v6660 = vpack.c.bf16 %v6571, %v6555
  %v6661 = vpack.c.bf16 %v6572, %v6556
  %v6662 = vpack.c.bf16 %v6573, %v6557
  %v6663 = vpack.c.bf16 %v6574, %v6558
  %v6664 = vpack.c.bf16 %v6575, %v6559
  %v6665 = vpack.c.bf16 %v6576, %v6560
  %v6666 = vpack.c.bf16 %v6577, %v6561
  %v6667 = vpack.c.bf16 %v6594, %v6578
  %v6668 = vpack.c.bf16 %v6595, %v6579
  %v6669 = vpack.c.bf16 %v6596, %v6580
  %v6670 = vpack.c.bf16 %v6597, %v6581
  %v6671 = vpack.c.bf16 %v6598, %v6582
  %v6672 = vpack.c.bf16 %v6599, %v6583
  %v6673 = vpack.c.bf16 %v6600, %v6584
  %v6674 = vpack.c.bf16 %v6601, %v6585
  %v6675 = vpack.c.bf16 %v6602, %v6586
  %v6676 = vpack.c.bf16 %v6603, %v6587
  %v6677 = vpack.c.bf16 %v6604, %v6588
  %v6678 = vpack.c.bf16 %v6605, %v6589
  %v6679 = vpack.c.bf16 %v6606, %v6590
  %v6680 = vpack.c.bf16 %v6607, %v6591
  %v6681 = vpack.c.bf16 %v6608, %v6592
  %v6682 = vpack.c.bf16 %v6609, %v6593
  %s6683 = scalar_lea.vmem %s4, 192
  %v6684 = vld [vmem:[%s6683] sm:$0xff]
  %v6685 = vld [vmem:[%s6683 + $0x8] sm:$0xff]
  %v6686 = vld [vmem:[%s6683 + $0x10] sm:$0xff]
  %v6687 = vld [vmem:[%s6683 + $0x18] sm:$0xff]
  %v6688 = vld [vmem:[%s6683 + $0x20] sm:$0xff]
  %v6689 = vld [vmem:[%s6683 + $0x28] sm:$0xff]
  %v6690 = vld [vmem:[%s6683 + $0x30] sm:$0xff]
  %v6691 = vld [vmem:[%s6683 + $0x38] sm:$0xff]
  %6693 = vset.pattern.permute.xlu0 0
  %6694 = vperm.xlu0 %6693, %v6684
  %v6695 = vpop.permute.xlu0 %6694
  %6698 = vset.pattern.permute.xlu0 0
  %6699 = vperm.xlu0 %6698, %v6685
  %v6700 = vpop.permute.xlu0 %6699
  %6703 = vset.pattern.permute.xlu0 0
  %6704 = vperm.xlu0 %6703, %v6686
  %v6705 = vpop.permute.xlu0 %6704
  %6708 = vset.pattern.permute.xlu0 0
  %6709 = vperm.xlu0 %6708, %v6687
  %v6710 = vpop.permute.xlu0 %6709
  %6713 = vset.pattern.permute.xlu0 0
  %6714 = vperm.xlu0 %6713, %v6688
  %v6715 = vpop.permute.xlu0 %6714
  %6718 = vset.pattern.permute.xlu0 0
  %6719 = vperm.xlu0 %6718, %v6689
  %v6720 = vpop.permute.xlu0 %6719
  %6723 = vset.pattern.permute.xlu0 0
  %6724 = vperm.xlu0 %6723, %v6690
  %v6725 = vpop.permute.xlu0 %6724
  %6728 = vset.pattern.permute.xlu0 0
  %6729 = vperm.xlu0 %6728, %v6691
  %v6730 = vpop.permute.xlu0 %6729
  %v6740 = vunpack.c.l.b16 %v6611
  %v6741 = vunpack.c.l.b16 %v6612
  %v6742 = vunpack.c.l.b16 %v6613
  %v6743 = vunpack.c.l.b16 %v6614
  %v6744 = vunpack.c.l.b16 %v6615
  %v6745 = vunpack.c.l.b16 %v6616
  %v6746 = vunpack.c.l.b16 %v6617
  %v6747 = vunpack.c.l.b16 %v6618
  %v6748 = vpack.c.b16 %v6741, %v6740
  %v6749 = vpack.c.b16 %v6743, %v6742
  %v6750 = vpack.c.b16 %v6745, %v6744
  %v6751 = vpack.c.b16 %v6747, %v6746
  %v6753 = vsel %vm2617, %v6748, 0
  %v6756 = vsel %vm2617, %v6749, 0
  %v6759 = vsel %vm2617, %v6750, 0
  %v6762 = vsel %vm2617, %v6751, 0
  %6764 = vmatprep.subr.bf16.mxu0 %v6620
  %6765 = vmatpush1.bf16.msra.mxu0 %v6619
  %6766 = vmatprep.subr.bf16.mxu0 %v6636
  %6767 = vmatpush1.bf16.msra.mxu0 %v6635
  %6768 = vmatprep.subr.bf16.mxu0 %v6652
  %6769 = vmatpush1.bf16.msra.mxu0 %v6651
  %6770 = vmatprep.subr.bf16.mxu0 %v6668
  %6771 = vmatpush1.bf16.msra.mxu0 %v6667
  %6772 = vmatprep.subr.bf16.mxu0 0
  %6773 = vmatpush1.bf16.msra.mxu0 0
  %6774 = vmatprep.subr.bf16.mxu0 0
  %6775 = vmatpush1.bf16.msra.mxu0 0
  %6776 = vmatprep.subr.bf16.mxu0 0
  %6777 = vmatpush1.bf16.msra.mxu0 0
  %6778 = vmatprep.subr.bf16.mxu0 0
  %6779 = vmatpush1.bf16.msra.mxu0 0
  %6780 = vmatprep.subr.bf16.mxu0 0
  %6781 = vmatpush1.bf16.msra.mxu0 0
  %6782 = vmatprep.subr.bf16.mxu0 0
  %6783 = vmatpush1.bf16.msra.mxu0 0
  %6784 = vmatprep.subr.bf16.mxu0 0
  %6785 = vmatpush1.bf16.msra.mxu0 0
  %6786 = vmatprep.subr.bf16.mxu0 0
  %6787 = vmatpush1.bf16.msra.mxu0 0
  %6788 = vmatprep.subr.bf16.mxu0 0
  %6789 = vmatpush1.bf16.msra.mxu0 0
  %6790 = vmatprep.subr.bf16.mxu0 0
  %6791 = vmatpush1.bf16.msra.mxu0 0
  %6792 = vmatprep.subr.bf16.mxu0 0
  %6793 = vmatpush1.bf16.msra.mxu0 0
  %6794 = vmatprep.subr.bf16.mxu0 0
  %6795 = vmatpush1.bf16.msra.mxu0 0
  %6796 = vmatprep.mubr.bf16.mxu0 0
  %6797 = vmatmul.mubr.bf16.gmra.mrb[0].mxu0 %v6753
  %v6798 = vpop.f32.mrb[0].mxu0
  %v6799 = vadd.f32 %v6695, %v6798
  %v6800 = vpop.f32.mrb[0].mxu0
  %v6801 = vadd.f32 %v6695, %v6800
  %v6802 = vpop.f32.mrb[0].mxu0
  %v6803 = vadd.f32 %v6700, %v6802
  %v6804 = vpop.f32.mrb[0].mxu0
  %v6805 = vadd.f32 %v6700, %v6804
  %6806 = vmatprep.mubr.bf16.mxu0 0
  %6807 = vmatmul.mubr.bf16.gmra.mrb[0].mxu0 %v6756
  %v6808 = vpop.f32.mrb[0].mxu0
  %v6809 = vadd.f32 %v6705, %v6808
  %v6810 = vpop.f32.mrb[0].mxu0
  %v6811 = vadd.f32 %v6705, %v6810
  %v6812 = vpop.f32.mrb[0].mxu0
  %v6813 = vadd.f32 %v6710, %v6812
  %v6814 = vpop.f32.mrb[0].mxu0
  %v6815 = vadd.f32 %v6710, %v6814
  %6816 = vmatprep.mubr.bf16.mxu0 0
  %6817 = vmatmul.mubr.bf16.gmra.mrb[0].mxu0 %v6759
  %v6818 = vpop.f32.mrb[0].mxu0
  %v6819 = vadd.f32 %v6715, %v6818
  %v6820 = vpop.f32.mrb[0].mxu0
  %v6821 = vadd.f32 %v6715, %v6820
  %v6822 = vpop.f32.mrb[0].mxu0
  %v6823 = vadd.f32 %v6720, %v6822
  %v6824 = vpop.f32.mrb[0].mxu0
  %v6825 = vadd.f32 %v6720, %v6824
  %6826 = vmatprep.mubr.bf16.mxu0 0
  %6827 = vmatmul.mubr.bf16.gmra.mrb[0].mxu0 %v6762
  %v6828 = vpop.f32.mrb[0].mxu0
  %v6829 = vadd.f32 %v6725, %v6828
  %v6830 = vpop.f32.mrb[0].mxu0
  %v6831 = vadd.f32 %v6725, %v6830
  %v6832 = vpop.f32.mrb[0].mxu0
  %v6833 = vadd.f32 %v6730, %v6832
  %v6834 = vpop.f32.mrb[0].mxu0
  %v6835 = vadd.f32 %v6730, %v6834
  %6836 = vdwg.mxu0
  %6837 = vmatprep.subr.bf16.mxu0 %v6622
  %6838 = vmatpush1.bf16.msra.mxu0 %v6621
  %6839 = vmatprep.subr.bf16.mxu0 %v6638
  %6840 = vmatpush1.bf16.msra.mxu0 %v6637
  %6841 = vmatprep.subr.bf16.mxu0 %v6654
  %6842 = vmatpush1.bf16.msra.mxu0 %v6653
  %6843 = vmatprep.subr.bf16.mxu0 %v6670
  %6844 = vmatpush1.bf16.msra.mxu0 %v6669
  %6845 = vmatprep.subr.bf16.mxu0 0
  %6846 = vmatpush1.bf16.msra.mxu0 0
  %6847 = vmatprep.subr.bf16.mxu0 0
  %6848 = vmatpush1.bf16.msra.mxu0 0
  %6849 = vmatprep.subr.bf16.mxu0 0
  %6850 = vmatpush1.bf16.msra.mxu0 0
  %6851 = vmatprep.subr.bf16.mxu0 0
  %6852 = vmatpush1.bf16.msra.mxu0 0
  %6853 = vmatprep.subr.bf16.mxu0 0
  %6854 = vmatpush1.bf16.msra.mxu0 0
  %6855 = vmatprep.subr.bf16.mxu0 0
  %6856 = vmatpush1.bf16.msra.mxu0 0
  %6857 = vmatprep.subr.bf16.mxu0 0
  %6858 = vmatpush1.bf16.msra.mxu0 0
  %6859 = vmatprep.subr.bf16.mxu0 0
  %6860 = vmatpush1.bf16.msra.mxu0 0
  %6861 = vmatprep.subr.bf16.mxu0 0
  %6862 = vmatpush1.bf16.msra.mxu0 0
  %6863 = vmatprep.subr.bf16.mxu0 0
  %6864 = vmatpush1.bf16.msra.mxu0 0
  %6865 = vmatprep.subr.bf16.mxu0 0
  %6866 = vmatpush1.bf16.msra.mxu0 0
  %6867 = vmatprep.subr.bf16.mxu0 0
  %6868 = vmatpush1.bf16.msra.mxu0 0
  %6869 = vmatprep.mubr.bf16.mxu0 0
  %6870 = vmatmul.mubr.bf16.gmra.mrb[0].mxu0 %v6753
  %v6871 = vpop.f32.mrb[0].mxu0
  %v6872 = vadd.f32 %v6695, %v6871
  %v6873 = vpop.f32.mrb[0].mxu0
  %v6874 = vadd.f32 %v6695, %v6873
  %v6875 = vpop.f32.mrb[0].mxu0
  %v6876 = vadd.f32 %v6700, %v6875
  %v6877 = vpop.f32.mrb[0].mxu0
  %v6878 = vadd.f32 %v6700, %v6877
  %6879 = vmatprep.mubr.bf16.mxu0 0
  %6880 = vmatmul.mubr.bf16.gmra.mrb[0].mxu0 %v6756
  %v6881 = vpop.f32.mrb[0].mxu0
  %v6882 = vadd.f32 %v6705, %v6881
  %v6883 = vpop.f32.mrb[0].mxu0
  %v6884 = vadd.f32 %v6705, %v6883
  %v6885 = vpop.f32.mrb[0].mxu0
  %v6886 = vadd.f32 %v6710, %v6885
  %v6887 = vpop.f32.mrb[0].mxu0
  %v6888 = vadd.f32 %v6710, %v6887
  %6889 = vmatprep.mubr.bf16.mxu0 0
  %6890 = vmatmul.mubr.bf16.gmra.mrb[0].mxu0 %v6759
  %v6891 = vpop.f32.mrb[0].mxu0
  %v6892 = vadd.f32 %v6715, %v6891
  %v6893 = vpop.f32.mrb[0].mxu0
  %v6894 = vadd.f32 %v6715, %v6893
  %v6895 = vpop.f32.mrb[0].mxu0
  %v6896 = vadd.f32 %v6720, %v6895
  %v6897 = vpop.f32.mrb[0].mxu0
  %v6898 = vadd.f32 %v6720, %v6897
  %6899 = vmatprep.mubr.bf16.mxu0 0
  %6900 = vmatmul.mubr.bf16.gmra.mrb[0].mxu0 %v6762
  %v6901 = vpop.f32.mrb[0].mxu0
  %v6902 = vadd.f32 %v6725, %v6901
  %v6903 = vpop.f32.mrb[0].mxu0
  %v6904 = vadd.f32 %v6725, %v6903
  %v6905 = vpop.f32.mrb[0].mxu0
  %v6906 = vadd.f32 %v6730, %v6905
  %v6907 = vpop.f32.mrb[0].mxu0
  %v6908 = vadd.f32 %v6730, %v6907
  %6909 = vdwg.mxu0
  %6910 = vmatprep.subr.bf16.mxu0 %v6624
  %6911 = vmatpush1.bf16.msra.mxu0 %v6623
  %6912 = vmatprep.subr.bf16.mxu0 %v6640
  %6913 = vmatpush1.bf16.msra.mxu0 %v6639
  %6914 = vmatprep.subr.bf16.mxu0 %v6656
  %6915 = vmatpush1.bf16.msra.mxu0 %v6655
  %6916 = vmatprep.subr.bf16.mxu0 %v6672
  %6917 = vmatpush1.bf16.msra.mxu0 %v6671
  %6918 = vmatprep.subr.bf16.mxu0 0
  %6919 = vmatpush1.bf16.msra.mxu0 0
  %6920 = vmatprep.subr.bf16.mxu0 0
  %6921 = vmatpush1.bf16.msra.mxu0 0
  %6922 = vmatprep.subr.bf16.mxu0 0
  %6923 = vmatpush1.bf16.msra.mxu0 0
  %6924 = vmatprep.subr.bf16.mxu0 0
  %6925 = vmatpush1.bf16.msra.mxu0 0
  %6926 = vmatprep.subr.bf16.mxu0 0
  %6927 = vmatpush1.bf16.msra.mxu0 0
  %6928 = vmatprep.subr.bf16.mxu0 0
  %6929 = vmatpush1.bf16.msra.mxu0 0
  %6930 = vmatprep.subr.bf16.mxu0 0
  %6931 = vmatpush1.bf16.msra.mxu0 0
  %6932 = vmatprep.subr.bf16.mxu0 0
  %6933 = vmatpush1.bf16.msra.mxu0 0
  %6934 = vmatprep.subr.bf16.mxu0 0
  %6935 = vmatpush1.bf16.msra.mxu0 0
  %6936 = vmatprep.subr.bf16.mxu0 0
  %6937 = vmatpush1.bf16.msra.mxu0 0
  %6938 = vmatprep.subr.bf16.mxu0 0
  %6939 = vmatpush1.bf16.msra.mxu0 0
  %6940 = vmatprep.subr.bf16.mxu0 0
  %6941 = vmatpush1.bf16.msra.mxu0 0
  %6942 = vmatprep.mubr.bf16.mxu0 0
  %6943 = vmatmul.mubr.bf16.gmra.mrb[0].mxu0 %v6753
  %v6944 = vpop.f32.mrb[0].mxu0
  %v6945 = vadd.f32 %v6695, %v6944
  %v6946 = vpop.f32.mrb[0].mxu0
  %v6947 = vadd.f32 %v6695, %v6946
  %v6948 = vpop.f32.mrb[0].mxu0
  %v6949 = vadd.f32 %v6700, %v6948
  %v6950 = vpop.f32.mrb[0].mxu0
  %v6951 = vadd.f32 %v6700, %v6950
  %6952 = vmatprep.mubr.bf16.mxu0 0
  %6953 = vmatmul.mubr.bf16.gmra.mrb[0].mxu0 %v6756
  %v6954 = vpop.f32.mrb[0].mxu0
  %v6955 = vadd.f32 %v6705, %v6954
  %v6956 = vpop.f32.mrb[0].mxu0
  %v6957 = vadd.f32 %v6705, %v6956
  %v6958 = vpop.f32.mrb[0].mxu0
  %v6959 = vadd.f32 %v6710, %v6958
  %v6960 = vpop.f32.mrb[0].mxu0
  %v6961 = vadd.f32 %v6710, %v6960
  %6962 = vmatprep.mubr.bf16.mxu0 0
  %6963 = vmatmul.mubr.bf16.gmra.mrb[0].mxu0 %v6759
  %v6964 = vpop.f32.mrb[0].mxu0
  %v6965 = vadd.f32 %v6715, %v6964
  %v6966 = vpop.f32.mrb[0].mxu0
  %v6967 = vadd.f32 %v6715, %v6966
  %v6968 = vpop.f32.mrb[0].mxu0
  %v6969 = vadd.f32 %v6720, %v6968
  %v6970 = vpop.f32.mrb[0].mxu0
  %v6971 = vadd.f32 %v6720, %v6970
  %6972 = vmatprep.mubr.bf16.mxu0 0
  %6973 = vmatmul.mubr.bf16.gmra.mrb[0].mxu0 %v6762
  %v6974 = vpop.f32.mrb[0].mxu0
  %v6975 = vadd.f32 %v6725, %v6974
  %v6976 = vpop.f32.mrb[0].mxu0
  %v6977 = vadd.f32 %v6725, %v6976
  %v6978 = vpop.f32.mrb[0].mxu0
  %v6979 = vadd.f32 %v6730, %v6978
  %v6980 = vpop.f32.mrb[0].mxu0
  %v6981 = vadd.f32 %v6730, %v6980
  %6982 = vdwg.mxu0
  %6983 = vmatprep.subr.bf16.mxu0 %v6626
  %6984 = vmatpush1.bf16.msra.mxu0 %v6625
  %6985 = vmatprep.subr.bf16.mxu0 %v6642
  %6986 = vmatpush1.bf16.msra.mxu0 %v6641
  %6987 = vmatprep.subr.bf16.mxu0 %v6658
  %6988 = vmatpush1.bf16.msra.mxu0 %v6657
  %6989 = vmatprep.subr.bf16.mxu0 %v6674
  %6990 = vmatpush1.bf16.msra.mxu0 %v6673
  %6991 = vmatprep.subr.bf16.mxu0 0
  %6992 = vmatpush1.bf16.msra.mxu0 0
  %6993 = vmatprep.subr.bf16.mxu0 0
  %6994 = vmatpush1.bf16.msra.mxu0 0
  %6995 = vmatprep.subr.bf16.mxu0 0
  %6996 = vmatpush1.bf16.msra.mxu0 0
  %6997 = vmatprep.subr.bf16.mxu0 0
  %6998 = vmatpush1.bf16.msra.mxu0 0
  %6999 = vmatprep.subr.bf16.mxu0 0
  %7000 = vmatpush1.bf16.msra.mxu0 0
  %7001 = vmatprep.subr.bf16.mxu0 0
  %7002 = vmatpush1.bf16.msra.mxu0 0
  %7003 = vmatprep.subr.bf16.mxu0 0
  %7004 = vmatpush1.bf16.msra.mxu0 0
  %7005 = vmatprep.subr.bf16.mxu0 0
  %7006 = vmatpush1.bf16.msra.mxu0 0
  %7007 = vmatprep.subr.bf16.mxu0 0
  %7008 = vmatpush1.bf16.msra.mxu0 0
  %7009 = vmatprep.subr.bf16.mxu0 0
  %7010 = vmatpush1.bf16.msra.mxu0 0
  %7011 = vmatprep.subr.bf16.mxu0 0
  %7012 = vmatpush1.bf16.msra.mxu0 0
  %7013 = vmatprep.subr.bf16.mxu0 0
  %7014 = vmatpush1.bf16.msra.mxu0 0
  %7015 = vmatprep.mubr.bf16.mxu0 0
  %7016 = vmatmul.mubr.bf16.gmra.mrb[0].mxu0 %v6753
  %v7017 = vpop.f32.mrb[0].mxu0
  %v7018 = vadd.f32 %v6695, %v7017
  %v7019 = vpop.f32.mrb[0].mxu0
  %v7020 = vadd.f32 %v6695, %v7019
  %v7021 = vpop.f32.mrb[0].mxu0
  %v7022 = vadd.f32 %v6700, %v7021
  %v7023 = vpop.f32.mrb[0].mxu0
  %v7024 = vadd.f32 %v6700, %v7023
  %7025 = vmatprep.mubr.bf16.mxu0 0
  %7026 = vmatmul.mubr.bf16.gmra.mrb[0].mxu0 %v6756
  %v7027 = vpop.f32.mrb[0].mxu0
  %v7028 = vadd.f32 %v6705, %v7027
  %v7029 = vpop.f32.mrb[0].mxu0
  %v7030 = vadd.f32 %v6705, %v7029
  %v7031 = vpop.f32.mrb[0].mxu0
  %v7032 = vadd.f32 %v6710, %v7031
  %v7033 = vpop.f32.mrb[0].mxu0
  %v7034 = vadd.f32 %v6710, %v7033
  %7035 = vmatprep.mubr.bf16.mxu0 0
  %7036 = vmatmul.mubr.bf16.gmra.mrb[0].mxu0 %v6759
  %v7037 = vpop.f32.mrb[0].mxu0
  %v7038 = vadd.f32 %v6715, %v7037
  %v7039 = vpop.f32.mrb[0].mxu0
  %v7040 = vadd.f32 %v6715, %v7039
  %v7041 = vpop.f32.mrb[0].mxu0
  %v7042 = vadd.f32 %v6720, %v7041
  %v7043 = vpop.f32.mrb[0].mxu0
  %v7044 = vadd.f32 %v6720, %v7043
  %7045 = vmatprep.mubr.bf16.mxu0 0
  %7046 = vmatmul.mubr.bf16.gmra.mrb[0].mxu0 %v6762
  %v7047 = vpop.f32.mrb[0].mxu0
  %v7048 = vadd.f32 %v6725, %v7047
  %v7049 = vpop.f32.mrb[0].mxu0
  %v7050 = vadd.f32 %v6725, %v7049
  %v7051 = vpop.f32.mrb[0].mxu0
  %v7052 = vadd.f32 %v6730, %v7051
  %v7053 = vpop.f32.mrb[0].mxu0
  %v7054 = vadd.f32 %v6730, %v7053
  %7055 = vdwg.mxu0
  %7056 = vmatprep.subr.bf16.mxu0 %v6628
  %7057 = vmatpush1.bf16.msra.mxu0 %v6627
  %7058 = vmatprep.subr.bf16.mxu0 %v6644
  %7059 = vmatpush1.bf16.msra.mxu0 %v6643
  %7060 = vmatprep.subr.bf16.mxu0 %v6660
  %7061 = vmatpush1.bf16.msra.mxu0 %v6659
  %7062 = vmatprep.subr.bf16.mxu0 %v6676
  %7063 = vmatpush1.bf16.msra.mxu0 %v6675
  %7064 = vmatprep.subr.bf16.mxu0 0
  %7065 = vmatpush1.bf16.msra.mxu0 0
  %7066 = vmatprep.subr.bf16.mxu0 0
  %7067 = vmatpush1.bf16.msra.mxu0 0
  %7068 = vmatprep.subr.bf16.mxu0 0
  %7069 = vmatpush1.bf16.msra.mxu0 0
  %7070 = vmatprep.subr.bf16.mxu0 0
  %7071 = vmatpush1.bf16.msra.mxu0 0
  %7072 = vmatprep.subr.bf16.mxu0 0
  %7073 = vmatpush1.bf16.msra.mxu0 0
  %7074 = vmatprep.subr.bf16.mxu0 0
  %7075 = vmatpush1.bf16.msra.mxu0 0
  %7076 = vmatprep.subr.bf16.mxu0 0
  %7077 = vmatpush1.bf16.msra.mxu0 0
  %7078 = vmatprep.subr.bf16.mxu0 0
  %7079 = vmatpush1.bf16.msra.mxu0 0
  %7080 = vmatprep.subr.bf16.mxu0 0
  %7081 = vmatpush1.bf16.msra.mxu0 0
  %7082 = vmatprep.subr.bf16.mxu0 0
  %7083 = vmatpush1.bf16.msra.mxu0 0
  %7084 = vmatprep.subr.bf16.mxu0 0
  %7085 = vmatpush1.bf16.msra.mxu0 0
  %7086 = vmatprep.subr.bf16.mxu0 0
  %7087 = vmatpush1.bf16.msra.mxu0 0
  %7088 = vmatprep.mubr.bf16.mxu0 0
  %7089 = vmatmul.mubr.bf16.gmra.mrb[0].mxu0 %v6753
  %v7090 = vpop.f32.mrb[0].mxu0
  %v7091 = vadd.f32 %v6695, %v7090
  %v7092 = vpop.f32.mrb[0].mxu0
  %v7093 = vadd.f32 %v6695, %v7092
  %v7094 = vpop.f32.mrb[0].mxu0
  %v7095 = vadd.f32 %v6700, %v7094
  %v7096 = vpop.f32.mrb[0].mxu0
  %v7097 = vadd.f32 %v6700, %v7096
  %7098 = vmatprep.mubr.bf16.mxu0 0
  %7099 = vmatmul.mubr.bf16.gmra.mrb[0].mxu0 %v6756
  %v7100 = vpop.f32.mrb[0].mxu0
  %v7101 = vadd.f32 %v6705, %v7100
  %v7102 = vpop.f32.mrb[0].mxu0
  %v7103 = vadd.f32 %v6705, %v7102
  %v7104 = vpop.f32.mrb[0].mxu0
  %v7105 = vadd.f32 %v6710, %v7104
  %v7106 = vpop.f32.mrb[0].mxu0
  %v7107 = vadd.f32 %v6710, %v7106
  %7108 = vmatprep.mubr.bf16.mxu0 0
  %7109 = vmatmul.mubr.bf16.gmra.mrb[0].mxu0 %v6759
  %v7110 = vpop.f32.mrb[0].mxu0
  %v7111 = vadd.f32 %v6715, %v7110
  %v7112 = vpop.f32.mrb[0].mxu0
  %v7113 = vadd.f32 %v6715, %v7112
  %v7114 = vpop.f32.mrb[0].mxu0
  %v7115 = vadd.f32 %v6720, %v7114
  %v7116 = vpop.f32.mrb[0].mxu0
  %v7117 = vadd.f32 %v6720, %v7116
  %7118 = vmatprep.mubr.bf16.mxu0 0
  %7119 = vmatmul.mubr.bf16.gmra.mrb[0].mxu0 %v6762
  %v7120 = vpop.f32.mrb[0].mxu0
  %v7121 = vadd.f32 %v6725, %v7120
  %v7122 = vpop.f32.mrb[0].mxu0
  %v7123 = vadd.f32 %v6725, %v7122
  %v7124 = vpop.f32.mrb[0].mxu0
  %v7125 = vadd.f32 %v6730, %v7124
  %v7126 = vpop.f32.mrb[0].mxu0
  %v7127 = vadd.f32 %v6730, %v7126
  %7128 = vdwg.mxu0
  %7129 = vmatprep.subr.bf16.mxu0 %v6630
  %7130 = vmatpush1.bf16.msra.mxu0 %v6629
  %7131 = vmatprep.subr.bf16.mxu0 %v6646
  %7132 = vmatpush1.bf16.msra.mxu0 %v6645
  %7133 = vmatprep.subr.bf16.mxu0 %v6662
  %7134 = vmatpush1.bf16.msra.mxu0 %v6661
  %7135 = vmatprep.subr.bf16.mxu0 %v6678
  %7136 = vmatpush1.bf16.msra.mxu0 %v6677
  %7137 = vmatprep.subr.bf16.mxu0 0
  %7138 = vmatpush1.bf16.msra.mxu0 0
  %7139 = vmatprep.subr.bf16.mxu0 0
  %7140 = vmatpush1.bf16.msra.mxu0 0
  %7141 = vmatprep.subr.bf16.mxu0 0
  %7142 = vmatpush1.bf16.msra.mxu0 0
  %7143 = vmatprep.subr.bf16.mxu0 0
  %7144 = vmatpush1.bf16.msra.mxu0 0
  %7145 = vmatprep.subr.bf16.mxu0 0
  %7146 = vmatpush1.bf16.msra.mxu0 0
  %7147 = vmatprep.subr.bf16.mxu0 0
  %7148 = vmatpush1.bf16.msra.mxu0 0
  %7149 = vmatprep.subr.bf16.mxu0 0
  %7150 = vmatpush1.bf16.msra.mxu0 0
  %7151 = vmatprep.subr.bf16.mxu0 0
  %7152 = vmatpush1.bf16.msra.mxu0 0
  %7153 = vmatprep.subr.bf16.mxu0 0
  %7154 = vmatpush1.bf16.msra.mxu0 0
  %7155 = vmatprep.subr.bf16.mxu0 0
  %7156 = vmatpush1.bf16.msra.mxu0 0
  %7157 = vmatprep.subr.bf16.mxu0 0
  %7158 = vmatpush1.bf16.msra.mxu0 0
  %7159 = vmatprep.subr.bf16.mxu0 0
  %7160 = vmatpush1.bf16.msra.mxu0 0
  %7161 = vmatprep.mubr.bf16.mxu0 0
  %7162 = vmatmul.mubr.bf16.gmra.mrb[0].mxu0 %v6753
  %v7163 = vpop.f32.mrb[0].mxu0
  %v7164 = vadd.f32 %v6695, %v7163
  %v7165 = vpop.f32.mrb[0].mxu0
  %v7166 = vadd.f32 %v6695, %v7165
  %v7167 = vpop.f32.mrb[0].mxu0
  %v7168 = vadd.f32 %v6700, %v7167
  %v7169 = vpop.f32.mrb[0].mxu0
  %v7170 = vadd.f32 %v6700, %v7169
  %7171 = vmatprep.mubr.bf16.mxu0 0
  %7172 = vmatmul.mubr.bf16.gmra.mrb[0].mxu0 %v6756
  %v7173 = vpop.f32.mrb[0].mxu0
  %v7174 = vadd.f32 %v6705, %v7173
  %v7175 = vpop.f32.mrb[0].mxu0
  %v7176 = vadd.f32 %v6705, %v7175
  %v7177 = vpop.f32.mrb[0].mxu0
  %v7178 = vadd.f32 %v6710, %v7177
  %v7179 = vpop.f32.mrb[0].mxu0
  %v7180 = vadd.f32 %v6710, %v7179
  %7181 = vmatprep.mubr.bf16.mxu0 0
  %7182 = vmatmul.mubr.bf16.gmra.mrb[0].mxu0 %v6759
  %v7183 = vpop.f32.mrb[0].mxu0
  %v7184 = vadd.f32 %v6715, %v7183
  %v7185 = vpop.f32.mrb[0].mxu0
  %v7186 = vadd.f32 %v6715, %v7185
  %v7187 = vpop.f32.mrb[0].mxu0
  %v7188 = vadd.f32 %v6720, %v7187
  %v7189 = vpop.f32.mrb[0].mxu0
  %v7190 = vadd.f32 %v6720, %v7189
  %7191 = vmatprep.mubr.bf16.mxu0 0
  %7192 = vmatmul.mubr.bf16.gmra.mrb[0].mxu0 %v6762
  %v7193 = vpop.f32.mrb[0].mxu0
  %v7194 = vadd.f32 %v6725, %v7193
  %v7195 = vpop.f32.mrb[0].mxu0
  %v7196 = vadd.f32 %v6725, %v7195
  %v7197 = vpop.f32.mrb[0].mxu0
  %v7198 = vadd.f32 %v6730, %v7197
  %v7199 = vpop.f32.mrb[0].mxu0
  %v7200 = vadd.f32 %v6730, %v7199
  %7201 = vdwg.mxu0
  %7202 = vmatprep.subr.bf16.mxu0 %v6632
  %7203 = vmatpush1.bf16.msra.mxu0 %v6631
  %7204 = vmatprep.subr.bf16.mxu0 %v6648
  %7205 = vmatpush1.bf16.msra.mxu0 %v6647
  %7206 = vmatprep.subr.bf16.mxu0 %v6664
  %7207 = vmatpush1.bf16.msra.mxu0 %v6663
  %7208 = vmatprep.subr.bf16.mxu0 %v6680
  %7209 = vmatpush1.bf16.msra.mxu0 %v6679
  %7210 = vmatprep.subr.bf16.mxu0 0
  %7211 = vmatpush1.bf16.msra.mxu0 0
  %7212 = vmatprep.subr.bf16.mxu0 0
  %7213 = vmatpush1.bf16.msra.mxu0 0
  %7214 = vmatprep.subr.bf16.mxu0 0
  %7215 = vmatpush1.bf16.msra.mxu0 0
  %7216 = vmatprep.subr.bf16.mxu0 0
  %7217 = vmatpush1.bf16.msra.mxu0 0
  %7218 = vmatprep.subr.bf16.mxu0 0
  %7219 = vmatpush1.bf16.msra.mxu0 0
  %7220 = vmatprep.subr.bf16.mxu0 0
  %7221 = vmatpush1.bf16.msra.mxu0 0
  %7222 = vmatprep.subr.bf16.mxu0 0
  %7223 = vmatpush1.bf16.msra.mxu0 0
  %7224 = vmatprep.subr.bf16.mxu0 0
  %7225 = vmatpush1.bf16.msra.mxu0 0
  %7226 = vmatprep.subr.bf16.mxu0 0
  %7227 = vmatpush1.bf16.msra.mxu0 0
  %7228 = vmatprep.subr.bf16.mxu0 0
  %7229 = vmatpush1.bf16.msra.mxu0 0
  %7230 = vmatprep.subr.bf16.mxu0 0
  %7231 = vmatpush1.bf16.msra.mxu0 0
  %7232 = vmatprep.subr.bf16.mxu0 0
  %7233 = vmatpush1.bf16.msra.mxu0 0
  %7234 = vmatprep.mubr.bf16.mxu0 0
  %7235 = vmatmul.mubr.bf16.gmra.mrb[0].mxu0 %v6753
  %v7236 = vpop.f32.mrb[0].mxu0
  %v7237 = vadd.f32 %v6695, %v7236
  %v7238 = vpop.f32.mrb[0].mxu0
  %v7239 = vadd.f32 %v6695, %v7238
  %v7240 = vpop.f32.mrb[0].mxu0
  %v7241 = vadd.f32 %v6700, %v7240
  %v7242 = vpop.f32.mrb[0].mxu0
  %v7243 = vadd.f32 %v6700, %v7242
  %7244 = vmatprep.mubr.bf16.mxu0 0
  %7245 = vmatmul.mubr.bf16.gmra.mrb[0].mxu0 %v6756
  %v7246 = vpop.f32.mrb[0].mxu0
  %v7247 = vadd.f32 %v6705, %v7246
  %v7248 = vpop.f32.mrb[0].mxu0
  %v7249 = vadd.f32 %v6705, %v7248
  %v7250 = vpop.f32.mrb[0].mxu0
  %v7251 = vadd.f32 %v6710, %v7250
  %v7252 = vpop.f32.mrb[0].mxu0
  %v7253 = vadd.f32 %v6710, %v7252
  %7254 = vmatprep.mubr.bf16.mxu0 0
  %7255 = vmatmul.mubr.bf16.gmra.mrb[0].mxu0 %v6759
  %v7256 = vpop.f32.mrb[0].mxu0
  %v7257 = vadd.f32 %v6715, %v7256
  %v7258 = vpop.f32.mrb[0].mxu0
  %v7259 = vadd.f32 %v6715, %v7258
  %v7260 = vpop.f32.mrb[0].mxu0
  %v7261 = vadd.f32 %v6720, %v7260
  %v7262 = vpop.f32.mrb[0].mxu0
  %v7263 = vadd.f32 %v6720, %v7262
  %7264 = vmatprep.mubr.bf16.mxu0 0
  %7265 = vmatmul.mubr.bf16.gmra.mrb[0].mxu0 %v6762
  %v7266 = vpop.f32.mrb[0].mxu0
  %v7267 = vadd.f32 %v6725, %v7266
  %v7268 = vpop.f32.mrb[0].mxu0
  %v7269 = vadd.f32 %v6725, %v7268
  %v7270 = vpop.f32.mrb[0].mxu0
  %v7271 = vadd.f32 %v6730, %v7270
  %v7272 = vpop.f32.mrb[0].mxu0
  %v7273 = vadd.f32 %v6730, %v7272
  %7274 = vdwg.mxu0
  %7275 = vmatprep.subr.bf16.mxu0 %v6634
  %7276 = vmatpush1.bf16.msra.mxu0 %v6633
  %7277 = vmatprep.subr.bf16.mxu0 %v6650
  %7278 = vmatpush1.bf16.msra.mxu0 %v6649
  %7279 = vmatprep.subr.bf16.mxu0 %v6666
  %7280 = vmatpush1.bf16.msra.mxu0 %v6665
  %7281 = vmatprep.subr.bf16.mxu0 %v6682
  %7282 = vmatpush1.bf16.msra.mxu0 %v6681
  %7283 = vmatprep.subr.bf16.mxu0 0
  %7284 = vmatpush1.bf16.msra.mxu0 0
  %7285 = vmatprep.subr.bf16.mxu0 0
  %7286 = vmatpush1.bf16.msra.mxu0 0
  %7287 = vmatprep.subr.bf16.mxu0 0
  %7288 = vmatpush1.bf16.msra.mxu0 0
  %7289 = vmatprep.subr.bf16.mxu0 0
  %7290 = vmatpush1.bf16.msra.mxu0 0
  %7291 = vmatprep.subr.bf16.mxu0 0
  %7292 = vmatpush1.bf16.msra.mxu0 0
  %7293 = vmatprep.subr.bf16.mxu0 0
  %7294 = vmatpush1.bf16.msra.mxu0 0
  %7295 = vmatprep.subr.bf16.mxu0 0
  %7296 = vmatpush1.bf16.msra.mxu0 0
  %7297 = vmatprep.subr.bf16.mxu0 0
  %7298 = vmatpush1.bf16.msra.mxu0 0
  %7299 = vmatprep.subr.bf16.mxu0 0
  %7300 = vmatpush1.bf16.msra.mxu0 0
  %7301 = vmatprep.subr.bf16.mxu0 0
  %7302 = vmatpush1.bf16.msra.mxu0 0
  %7303 = vmatprep.subr.bf16.mxu0 0
  %7304 = vmatpush1.bf16.msra.mxu0 0
  %7305 = vmatprep.subr.bf16.mxu0 0
  %7306 = vmatpush1.bf16.msra.mxu0 0
  %7307 = vmatprep.mubr.bf16.mxu0 0
  %7308 = vmatmul.mubr.bf16.gmra.mrb[0].mxu0 %v6753
  %v7309 = vpop.f32.mrb[0].mxu0
  %v7310 = vadd.f32 %v6695, %v7309
  %v7311 = vpop.f32.mrb[0].mxu0
  %v7312 = vadd.f32 %v6695, %v7311
  %v7313 = vpop.f32.mrb[0].mxu0
  %v7314 = vadd.f32 %v6700, %v7313
  %v7315 = vpop.f32.mrb[0].mxu0
  %v7316 = vadd.f32 %v6700, %v7315
  %7317 = vmatprep.mubr.bf16.mxu0 0
  %7318 = vmatmul.mubr.bf16.gmra.mrb[0].mxu0 %v6756
  %v7319 = vpop.f32.mrb[0].mxu0
  %v7320 = vadd.f32 %v6705, %v7319
  %v7321 = vpop.f32.mrb[0].mxu0
  %v7322 = vadd.f32 %v6705, %v7321
  %v7323 = vpop.f32.mrb[0].mxu0
  %v7324 = vadd.f32 %v6710, %v7323
  %v7325 = vpop.f32.mrb[0].mxu0
  %v7326 = vadd.f32 %v6710, %v7325
  %7327 = vmatprep.mubr.bf16.mxu0 0
  %7328 = vmatmul.mubr.bf16.gmra.mrb[0].mxu0 %v6759
  %v7329 = vpop.f32.mrb[0].mxu0
  %v7330 = vadd.f32 %v6715, %v7329
  %v7331 = vpop.f32.mrb[0].mxu0
  %v7332 = vadd.f32 %v6715, %v7331
  %v7333 = vpop.f32.mrb[0].mxu0
  %v7334 = vadd.f32 %v6720, %v7333
  %v7335 = vpop.f32.mrb[0].mxu0
  %v7336 = vadd.f32 %v6720, %v7335
  %7337 = vmatprep.mubr.bf16.mxu0 0
  %7338 = vmatmul.mubr.bf16.gmra.mrb[0].mxu0 %v6762
  %v7339 = vpop.f32.mrb[0].mxu0
  %v7340 = vadd.f32 %v6725, %v7339
  %v7341 = vpop.f32.mrb[0].mxu0
  %v7342 = vadd.f32 %v6725, %v7341
  %v7343 = vpop.f32.mrb[0].mxu0
  %v7344 = vadd.f32 %v6730, %v7343
  %v7345 = vpop.f32.mrb[0].mxu0
  %v7346 = vadd.f32 %v6730, %v7345
  %7347 = vdwg.mxu0
  %v7348 = vmul.f32 %v6799, 0.5
  %v7349 = vmul.f32 %v6801, 0.5
  %v7350 = vmul.f32 %v6872, 0.5
  %v7351 = vmul.f32 %v6874, 0.5
  %v7352 = vmul.f32 %v6945, 0.5
  %v7353 = vmul.f32 %v6947, 0.5
  %v7354 = vmul.f32 %v7018, 0.5
  %v7355 = vmul.f32 %v7020, 0.5
  %v7356 = vmul.f32 %v7091, 0.5
  %v7357 = vmul.f32 %v7093, 0.5
  %v7358 = vmul.f32 %v7164, 0.5
  %v7359 = vmul.f32 %v7166, 0.5
  %v7360 = vmul.f32 %v7237, 0.5
  %v7361 = vmul.f32 %v7239, 0.5
  %v7362 = vmul.f32 %v7310, 0.5
  %v7363 = vmul.f32 %v7312, 0.5
  %v7364 = vmul.f32 %v6803, 0.5
  %v7365 = vmul.f32 %v6805, 0.5
  %v7366 = vmul.f32 %v6876, 0.5
  %v7367 = vmul.f32 %v6878, 0.5
  %v7368 = vmul.f32 %v6949, 0.5
  %v7369 = vmul.f32 %v6951, 0.5
  %v7370 = vmul.f32 %v7022, 0.5
  %v7371 = vmul.f32 %v7024, 0.5
  %v7372 = vmul.f32 %v7095, 0.5
  %v7373 = vmul.f32 %v7097, 0.5
  %v7374 = vmul.f32 %v7168, 0.5
  %v7375 = vmul.f32 %v7170, 0.5
  %v7376 = vmul.f32 %v7241, 0.5
  %v7377 = vmul.f32 %v7243, 0.5
  %v7378 = vmul.f32 %v7314, 0.5
  %v7379 = vmul.f32 %v7316, 0.5
  %v7380 = vmul.f32 %v6809, 0.5
  %v7381 = vmul.f32 %v6811, 0.5
  %v7382 = vmul.f32 %v6882, 0.5
  %v7383 = vmul.f32 %v6884, 0.5
  %v7384 = vmul.f32 %v6955, 0.5
  %v7385 = vmul.f32 %v6957, 0.5
  %v7386 = vmul.f32 %v7028, 0.5
  %v7387 = vmul.f32 %v7030, 0.5
  %v7388 = vmul.f32 %v7101, 0.5
  %v7389 = vmul.f32 %v7103, 0.5
  %v7390 = vmul.f32 %v7174, 0.5
  %v7391 = vmul.f32 %v7176, 0.5
  %v7392 = vmul.f32 %v7247, 0.5
  %v7393 = vmul.f32 %v7249, 0.5
  %v7394 = vmul.f32 %v7320, 0.5
  %v7395 = vmul.f32 %v7322, 0.5
  %v7396 = vmul.f32 %v6813, 0.5
  %v7397 = vmul.f32 %v6815, 0.5
  %v7398 = vmul.f32 %v6886, 0.5
  %v7399 = vmul.f32 %v6888, 0.5
  %v7400 = vmul.f32 %v6959, 0.5
  %v7401 = vmul.f32 %v6961, 0.5
  %v7402 = vmul.f32 %v7032, 0.5
  %v7403 = vmul.f32 %v7034, 0.5
  %v7404 = vmul.f32 %v7105, 0.5
  %v7405 = vmul.f32 %v7107, 0.5
  %v7406 = vmul.f32 %v7178, 0.5
  %v7407 = vmul.f32 %v7180, 0.5
  %v7408 = vmul.f32 %v7251, 0.5
  %v7409 = vmul.f32 %v7253, 0.5
  %v7410 = vmul.f32 %v7324, 0.5
  %v7411 = vmul.f32 %v7326, 0.5
  %v7412 = vmul.f32 %v6819, 0.5
  %v7413 = vmul.f32 %v6821, 0.5
  %v7414 = vmul.f32 %v6892, 0.5
  %v7415 = vmul.f32 %v6894, 0.5
  %v7416 = vmul.f32 %v6965, 0.5
  %v7417 = vmul.f32 %v6967, 0.5
  %v7418 = vmul.f32 %v7038, 0.5
  %v7419 = vmul.f32 %v7040, 0.5
  %v7420 = vmul.f32 %v7111, 0.5
  %v7421 = vmul.f32 %v7113, 0.5
  %v7422 = vmul.f32 %v7184, 0.5
  %v7423 = vmul.f32 %v7186, 0.5
  %v7424 = vmul.f32 %v7257, 0.5
  %v7425 = vmul.f32 %v7259, 0.5
  %v7426 = vmul.f32 %v7330, 0.5
  %v7427 = vmul.f32 %v7332, 0.5
  %v7428 = vmul.f32 %v6823, 0.5
  %v7429 = vmul.f32 %v6825, 0.5
  %v7430 = vmul.f32 %v6896, 0.5
  %v7431 = vmul.f32 %v6898, 0.5
  %v7432 = vmul.f32 %v6969, 0.5
  %v7433 = vmul.f32 %v6971, 0.5
  %v7434 = vmul.f32 %v7042, 0.5
  %v7435 = vmul.f32 %v7044, 0.5
  %v7436 = vmul.f32 %v7115, 0.5
  %v7437 = vmul.f32 %v7117, 0.5
  %v7438 = vmul.f32 %v7188, 0.5
  %v7439 = vmul.f32 %v7190, 0.5
  %v7440 = vmul.f32 %v7261, 0.5
  %v7441 = vmul.f32 %v7263, 0.5
  %v7442 = vmul.f32 %v7334, 0.5
  %v7443 = vmul.f32 %v7336, 0.5
  %v7444 = vmul.f32 %v6829, 0.5
  %v7445 = vmul.f32 %v6831, 0.5
  %v7446 = vmul.f32 %v6902, 0.5
  %v7447 = vmul.f32 %v6904, 0.5
  %v7448 = vmul.f32 %v6975, 0.5
  %v7449 = vmul.f32 %v6977, 0.5
  %v7450 = vmul.f32 %v7048, 0.5
  %v7451 = vmul.f32 %v7050, 0.5
  %v7452 = vmul.f32 %v7121, 0.5
  %v7453 = vmul.f32 %v7123, 0.5
  %v7454 = vmul.f32 %v7194, 0.5
  %v7455 = vmul.f32 %v7196, 0.5
  %v7456 = vmul.f32 %v7267, 0.5
  %v7457 = vmul.f32 %v7269, 0.5
  %v7458 = vmul.f32 %v7340, 0.5
  %v7459 = vmul.f32 %v7342, 0.5
  %v7460 = vmul.f32 %v6833, 0.5
  %v7461 = vmul.f32 %v6835, 0.5
  %v7462 = vmul.f32 %v6906, 0.5
  %v7463 = vmul.f32 %v6908, 0.5
  %v7464 = vmul.f32 %v6979, 0.5
  %v7465 = vmul.f32 %v6981, 0.5
  %v7466 = vmul.f32 %v7052, 0.5
  %v7467 = vmul.f32 %v7054, 0.5
  %v7468 = vmul.f32 %v7125, 0.5
  %v7469 = vmul.f32 %v7127, 0.5
  %v7470 = vmul.f32 %v7198, 0.5
  %v7471 = vmul.f32 %v7200, 0.5
  %v7472 = vmul.f32 %v7271, 0.5
  %v7473 = vmul.f32 %v7273, 0.5
  %v7474 = vmul.f32 %v7344, 0.5
  %v7475 = vmul.f32 %v7346, 0.5
  %v7476 = vtanh.pop %v7348
  %v7477 = vtanh.pop %v7349
  %v7478 = vtanh.pop %v7350
  %v7479 = vtanh.pop %v7351
  %v7480 = vtanh.pop %v7352
  %v7481 = vtanh.pop %v7353
  %v7482 = vtanh.pop %v7354
  %v7483 = vtanh.pop %v7355
  %v7484 = vtanh.pop %v7356
  %v7485 = vtanh.pop %v7357
  %v7486 = vtanh.pop %v7358
  %v7487 = vtanh.pop %v7359
  %v7488 = vtanh.pop %v7360
  %v7489 = vtanh.pop %v7361
  %v7490 = vtanh.pop %v7362
  %v7491 = vtanh.pop %v7363
  %v7492 = vtanh.pop %v7364
  %v7493 = vtanh.pop %v7365
  %v7494 = vtanh.pop %v7366
  %v7495 = vtanh.pop %v7367
  %v7496 = vtanh.pop %v7368
  %v7497 = vtanh.pop %v7369
  %v7498 = vtanh.pop %v7370
  %v7499 = vtanh.pop %v7371
  %v7500 = vtanh.pop %v7372
  %v7501 = vtanh.pop %v7373
  %v7502 = vtanh.pop %v7374
  %v7503 = vtanh.pop %v7375
  %v7504 = vtanh.pop %v7376
  %v7505 = vtanh.pop %v7377
  %v7506 = vtanh.pop %v7378
  %v7507 = vtanh.pop %v7379
  %v7508 = vtanh.pop %v7380
  %v7509 = vtanh.pop %v7381
  %v7510 = vtanh.pop %v7382
  %v7511 = vtanh.pop %v7383
  %v7512 = vtanh.pop %v7384
  %v7513 = vtanh.pop %v7385
  %v7514 = vtanh.pop %v7386
  %v7515 = vtanh.pop %v7387
  %v7516 = vtanh.pop %v7388
  %v7517 = vtanh.pop %v7389
  %v7518 = vtanh.pop %v7390
  %v7519 = vtanh.pop %v7391
  %v7520 = vtanh.pop %v7392
  %v7521 = vtanh.pop %v7393
  %v7522 = vtanh.pop %v7394
  %v7523 = vtanh.pop %v7395
  %v7524 = vtanh.pop %v7396
  %v7525 = vtanh.pop %v7397
  %v7526 = vtanh.pop %v7398
  %v7527 = vtanh.pop %v7399
  %v7528 = vtanh.pop %v7400
  %v7529 = vtanh.pop %v7401
  %v7530 = vtanh.pop %v7402
  %v7531 = vtanh.pop %v7403
  %v7532 = vtanh.pop %v7404
  %v7533 = vtanh.pop %v7405
  %v7534 = vtanh.pop %v7406
  %v7535 = vtanh.pop %v7407
  %v7536 = vtanh.pop %v7408
  %v7537 = vtanh.pop %v7409
  %v7538 = vtanh.pop %v7410
  %v7539 = vtanh.pop %v7411
  %v7540 = vtanh.pop %v7412
  %v7541 = vtanh.pop %v7413
  %v7542 = vtanh.pop %v7414
  %v7543 = vtanh.pop %v7415
  %v7544 = vtanh.pop %v7416
  %v7545 = vtanh.pop %v7417
  %v7546 = vtanh.pop %v7418
  %v7547 = vtanh.pop %v7419
  %v7548 = vtanh.pop %v7420
  %v7549 = vtanh.pop %v7421
  %v7550 = vtanh.pop %v7422
  %v7551 = vtanh.pop %v7423
  %v7552 = vtanh.pop %v7424
  %v7553 = vtanh.pop %v7425
  %v7554 = vtanh.pop %v7426
  %v7555 = vtanh.pop %v7427
  %v7556 = vtanh.pop %v7428
  %v7557 = vtanh.pop %v7429
  %v7558 = vtanh.pop %v7430
  %v7559 = vtanh.pop %v7431
  %v7560 = vtanh.pop %v7432
  %v7561 = vtanh.pop %v7433
  %v7562 = vtanh.pop %v7434
  %v7563 = vtanh.pop %v7435
  %v7564 = vtanh.pop %v7436
  %v7565 = vtanh.pop %v7437
  %v7566 = vtanh.pop %v7438
  %v7567 = vtanh.pop %v7439
  %v7568 = vtanh.pop %v7440
  %v7569 = vtanh.pop %v7441
  %v7570 = vtanh.pop %v7442
  %v7571 = vtanh.pop %v7443
  %v7572 = vtanh.pop %v7444
  %v7573 = vtanh.pop %v7445
  %v7574 = vtanh.pop %v7446
  %v7575 = vtanh.pop %v7447
  %v7576 = vtanh.pop %v7448
  %v7577 = vtanh.pop %v7449
  %v7578 = vtanh.pop %v7450
  %v7579 = vtanh.pop %v7451
  %v7580 = vtanh.pop %v7452
  %v7581 = vtanh.pop %v7453
  %v7582 = vtanh.pop %v7454
  %v7583 = vtanh.pop %v7455
  %v7584 = vtanh.pop %v7456
  %v7585 = vtanh.pop %v7457
  %v7586 = vtanh.pop %v7458
  %v7587 = vtanh.pop %v7459
  %v7588 = vtanh.pop %v7460
  %v7589 = vtanh.pop %v7461
  %v7590 = vtanh.pop %v7462
  %v7591 = vtanh.pop %v7463
  %v7592 = vtanh.pop %v7464
  %v7593 = vtanh.pop %v7465
  %v7594 = vtanh.pop %v7466
  %v7595 = vtanh.pop %v7467
  %v7596 = vtanh.pop %v7468
  %v7597 = vtanh.pop %v7469
  %v7598 = vtanh.pop %v7470
  %v7599 = vtanh.pop %v7471
  %v7600 = vtanh.pop %v7472
  %v7601 = vtanh.pop %v7473
  %v7602 = vtanh.pop %v7474
  %v7603 = vtanh.pop %v7475
  %v7604 = vmul.f32 %v7476, 0.5
  %v7605 = vmul.f32 %v7477, 0.5
  %v7606 = vmul.f32 %v7478, 0.5
  %v7607 = vmul.f32 %v7479, 0.5
  %v7608 = vmul.f32 %v7480, 0.5
  %v7609 = vmul.f32 %v7481, 0.5
  %v7610 = vmul.f32 %v7482, 0.5
  %v7611 = vmul.f32 %v7483, 0.5
  %v7612 = vmul.f32 %v7484, 0.5
  %v7613 = vmul.f32 %v7485, 0.5
  %v7614 = vmul.f32 %v7486, 0.5
  %v7615 = vmul.f32 %v7487, 0.5
  %v7616 = vmul.f32 %v7488, 0.5
  %v7617 = vmul.f32 %v7489, 0.5
  %v7618 = vmul.f32 %v7490, 0.5
  %v7619 = vmul.f32 %v7491, 0.5
  %v7620 = vmul.f32 %v7492, 0.5
  %v7621 = vmul.f32 %v7493, 0.5
  %v7622 = vmul.f32 %v7494, 0.5
  %v7623 = vmul.f32 %v7495, 0.5
  %v7624 = vmul.f32 %v7496, 0.5
  %v7625 = vmul.f32 %v7497, 0.5
  %v7626 = vmul.f32 %v7498, 0.5
  %v7627 = vmul.f32 %v7499, 0.5
  %v7628 = vmul.f32 %v7500, 0.5
  %v7629 = vmul.f32 %v7501, 0.5
  %v7630 = vmul.f32 %v7502, 0.5
  %v7631 = vmul.f32 %v7503, 0.5
  %v7632 = vmul.f32 %v7504, 0.5
  %v7633 = vmul.f32 %v7505, 0.5
  %v7634 = vmul.f32 %v7506, 0.5
  %v7635 = vmul.f32 %v7507, 0.5
  %v7636 = vmul.f32 %v7508, 0.5
  %v7637 = vmul.f32 %v7509, 0.5
  %v7638 = vmul.f32 %v7510, 0.5
  %v7639 = vmul.f32 %v7511, 0.5
  %v7640 = vmul.f32 %v7512, 0.5
  %v7641 = vmul.f32 %v7513, 0.5
  %v7642 = vmul.f32 %v7514, 0.5
  %v7643 = vmul.f32 %v7515, 0.5
  %v7644 = vmul.f32 %v7516, 0.5
  %v7645 = vmul.f32 %v7517, 0.5
  %v7646 = vmul.f32 %v7518, 0.5
  %v7647 = vmul.f32 %v7519, 0.5
  %v7648 = vmul.f32 %v7520, 0.5
  %v7649 = vmul.f32 %v7521, 0.5
  %v7650 = vmul.f32 %v7522, 0.5
  %v7651 = vmul.f32 %v7523, 0.5
  %v7652 = vmul.f32 %v7524, 0.5
  %v7653 = vmul.f32 %v7525, 0.5
  %v7654 = vmul.f32 %v7526, 0.5
  %v7655 = vmul.f32 %v7527, 0.5
  %v7656 = vmul.f32 %v7528, 0.5
  %v7657 = vmul.f32 %v7529, 0.5
  %v7658 = vmul.f32 %v7530, 0.5
  %v7659 = vmul.f32 %v7531, 0.5
  %v7660 = vmul.f32 %v7532, 0.5
  %v7661 = vmul.f32 %v7533, 0.5
  %v7662 = vmul.f32 %v7534, 0.5
  %v7663 = vmul.f32 %v7535, 0.5
  %v7664 = vmul.f32 %v7536, 0.5
  %v7665 = vmul.f32 %v7537, 0.5
  %v7666 = vmul.f32 %v7538, 0.5
  %v7667 = vmul.f32 %v7539, 0.5
  %v7668 = vmul.f32 %v7540, 0.5
  %v7669 = vmul.f32 %v7541, 0.5
  %v7670 = vmul.f32 %v7542, 0.5
  %v7671 = vmul.f32 %v7543, 0.5
  %v7672 = vmul.f32 %v7544, 0.5
  %v7673 = vmul.f32 %v7545, 0.5
  %v7674 = vmul.f32 %v7546, 0.5
  %v7675 = vmul.f32 %v7547, 0.5
  %v7676 = vmul.f32 %v7548, 0.5
  %v7677 = vmul.f32 %v7549, 0.5
  %v7678 = vmul.f32 %v7550, 0.5
  %v7679 = vmul.f32 %v7551, 0.5
  %v7680 = vmul.f32 %v7552, 0.5
  %v7681 = vmul.f32 %v7553, 0.5
  %v7682 = vmul.f32 %v7554, 0.5
  %v7683 = vmul.f32 %v7555, 0.5
  %v7684 = vmul.f32 %v7556, 0.5
  %v7685 = vmul.f32 %v7557, 0.5
  %v7686 = vmul.f32 %v7558, 0.5
  %v7687 = vmul.f32 %v7559, 0.5
  %v7688 = vmul.f32 %v7560, 0.5
  %v7689 = vmul.f32 %v7561, 0.5
  %v7690 = vmul.f32 %v7562, 0.5
  %v7691 = vmul.f32 %v7563, 0.5
  %v7692 = vmul.f32 %v7564, 0.5
  %v7693 = vmul.f32 %v7565, 0.5
  %v7694 = vmul.f32 %v7566, 0.5
  %v7695 = vmul.f32 %v7567, 0.5
  %v7696 = vmul.f32 %v7568, 0.5
  %v7697 = vmul.f32 %v7569, 0.5
  %v7698 = vmul.f32 %v7570, 0.5
  %v7699 = vmul.f32 %v7571, 0.5
  %v7700 = vmul.f32 %v7572, 0.5
  %v7701 = vmul.f32 %v7573, 0.5
  %v7702 = vmul.f32 %v7574, 0.5
  %v7703 = vmul.f32 %v7575, 0.5
  %v7704 = vmul.f32 %v7576, 0.5
  %v7705 = vmul.f32 %v7577, 0.5
  %v7706 = vmul.f32 %v7578, 0.5
  %v7707 = vmul.f32 %v7579, 0.5
  %v7708 = vmul.f32 %v7580, 0.5
  %v7709 = vmul.f32 %v7581, 0.5
  %v7710 = vmul.f32 %v7582, 0.5
  %v7711 = vmul.f32 %v7583, 0.5
  %v7712 = vmul.f32 %v7584, 0.5
  %v7713 = vmul.f32 %v7585, 0.5
  %v7714 = vmul.f32 %v7586, 0.5
  %v7715 = vmul.f32 %v7587, 0.5
  %v7716 = vmul.f32 %v7588, 0.5
  %v7717 = vmul.f32 %v7589, 0.5
  %v7718 = vmul.f32 %v7590, 0.5
  %v7719 = vmul.f32 %v7591, 0.5
  %v7720 = vmul.f32 %v7592, 0.5
  %v7721 = vmul.f32 %v7593, 0.5
  %v7722 = vmul.f32 %v7594, 0.5
  %v7723 = vmul.f32 %v7595, 0.5
  %v7724 = vmul.f32 %v7596, 0.5
  %v7725 = vmul.f32 %v7597, 0.5
  %v7726 = vmul.f32 %v7598, 0.5
  %v7727 = vmul.f32 %v7599, 0.5
  %v7728 = vmul.f32 %v7600, 0.5
  %v7729 = vmul.f32 %v7601, 0.5
  %v7730 = vmul.f32 %v7602, 0.5
  %v7731 = vmul.f32 %v7603, 0.5
  %v7732 = vadd.f32 %v7604, 0.5
  %v7733 = vadd.f32 %v7605, 0.5
  %v7734 = vadd.f32 %v7606, 0.5
  %v7735 = vadd.f32 %v7607, 0.5
  %v7736 = vadd.f32 %v7608, 0.5
  %v7737 = vadd.f32 %v7609, 0.5
  %v7738 = vadd.f32 %v7610, 0.5
  %v7739 = vadd.f32 %v7611, 0.5
  %v7740 = vadd.f32 %v7612, 0.5
  %v7741 = vadd.f32 %v7613, 0.5
  %v7742 = vadd.f32 %v7614, 0.5
  %v7743 = vadd.f32 %v7615, 0.5
  %v7744 = vadd.f32 %v7616, 0.5
  %v7745 = vadd.f32 %v7617, 0.5
  %v7746 = vadd.f32 %v7618, 0.5
  %v7747 = vadd.f32 %v7619, 0.5
  %v7748 = vadd.f32 %v7620, 0.5
  %v7749 = vadd.f32 %v7621, 0.5
  %v7750 = vadd.f32 %v7622, 0.5
  %v7751 = vadd.f32 %v7623, 0.5
  %v7752 = vadd.f32 %v7624, 0.5
  %v7753 = vadd.f32 %v7625, 0.5
  %v7754 = vadd.f32 %v7626, 0.5
  %v7755 = vadd.f32 %v7627, 0.5
  %v7756 = vadd.f32 %v7628, 0.5
  %v7757 = vadd.f32 %v7629, 0.5
  %v7758 = vadd.f32 %v7630, 0.5
  %v7759 = vadd.f32 %v7631, 0.5
  %v7760 = vadd.f32 %v7632, 0.5
  %v7761 = vadd.f32 %v7633, 0.5
  %v7762 = vadd.f32 %v7634, 0.5
  %v7763 = vadd.f32 %v7635, 0.5
  %v7764 = vadd.f32 %v7636, 0.5
  %v7765 = vadd.f32 %v7637, 0.5
  %v7766 = vadd.f32 %v7638, 0.5
  %v7767 = vadd.f32 %v7639, 0.5
  %v7768 = vadd.f32 %v7640, 0.5
  %v7769 = vadd.f32 %v7641, 0.5
  %v7770 = vadd.f32 %v7642, 0.5
  %v7771 = vadd.f32 %v7643, 0.5
  %v7772 = vadd.f32 %v7644, 0.5
  %v7773 = vadd.f32 %v7645, 0.5
  %v7774 = vadd.f32 %v7646, 0.5
  %v7775 = vadd.f32 %v7647, 0.5
  %v7776 = vadd.f32 %v7648, 0.5
  %v7777 = vadd.f32 %v7649, 0.5
  %v7778 = vadd.f32 %v7650, 0.5
  %v7779 = vadd.f32 %v7651, 0.5
  %v7780 = vadd.f32 %v7652, 0.5
  %v7781 = vadd.f32 %v7653, 0.5
  %v7782 = vadd.f32 %v7654, 0.5
  %v7783 = vadd.f32 %v7655, 0.5
  %v7784 = vadd.f32 %v7656, 0.5
  %v7785 = vadd.f32 %v7657, 0.5
  %v7786 = vadd.f32 %v7658, 0.5
  %v7787 = vadd.f32 %v7659, 0.5
  %v7788 = vadd.f32 %v7660, 0.5
  %v7789 = vadd.f32 %v7661, 0.5
  %v7790 = vadd.f32 %v7662, 0.5
  %v7791 = vadd.f32 %v7663, 0.5
  %v7792 = vadd.f32 %v7664, 0.5
  %v7793 = vadd.f32 %v7665, 0.5
  %v7794 = vadd.f32 %v7666, 0.5
  %v7795 = vadd.f32 %v7667, 0.5
  %v7796 = vadd.f32 %v7668, 0.5
  %v7797 = vadd.f32 %v7669, 0.5
  %v7798 = vadd.f32 %v7670, 0.5
  %v7799 = vadd.f32 %v7671, 0.5
  %v7800 = vadd.f32 %v7672, 0.5
  %v7801 = vadd.f32 %v7673, 0.5
  %v7802 = vadd.f32 %v7674, 0.5
  %v7803 = vadd.f32 %v7675, 0.5
  %v7804 = vadd.f32 %v7676, 0.5
  %v7805 = vadd.f32 %v7677, 0.5
  %v7806 = vadd.f32 %v7678, 0.5
  %v7807 = vadd.f32 %v7679, 0.5
  %v7808 = vadd.f32 %v7680, 0.5
  %v7809 = vadd.f32 %v7681, 0.5
  %v7810 = vadd.f32 %v7682, 0.5
  %v7811 = vadd.f32 %v7683, 0.5
  %v7812 = vadd.f32 %v7684, 0.5
  %v7813 = vadd.f32 %v7685, 0.5
  %v7814 = vadd.f32 %v7686, 0.5
  %v7815 = vadd.f32 %v7687, 0.5
  %v7816 = vadd.f32 %v7688, 0.5
  %v7817 = vadd.f32 %v7689, 0.5
  %v7818 = vadd.f32 %v7690, 0.5
  %v7819 = vadd.f32 %v7691, 0.5
  %v7820 = vadd.f32 %v7692, 0.5
  %v7821 = vadd.f32 %v7693, 0.5
  %v7822 = vadd.f32 %v7694, 0.5
  %v7823 = vadd.f32 %v7695, 0.5
  %v7824 = vadd.f32 %v7696, 0.5
  %v7825 = vadd.f32 %v7697, 0.5
  %v7826 = vadd.f32 %v7698, 0.5
  %v7827 = vadd.f32 %v7699, 0.5
  %v7828 = vadd.f32 %v7700, 0.5
  %v7829 = vadd.f32 %v7701, 0.5
  %v7830 = vadd.f32 %v7702, 0.5
  %v7831 = vadd.f32 %v7703, 0.5
  %v7832 = vadd.f32 %v7704, 0.5
  %v7833 = vadd.f32 %v7705, 0.5
  %v7834 = vadd.f32 %v7706, 0.5
  %v7835 = vadd.f32 %v7707, 0.5
  %v7836 = vadd.f32 %v7708, 0.5
  %v7837 = vadd.f32 %v7709, 0.5
  %v7838 = vadd.f32 %v7710, 0.5
  %v7839 = vadd.f32 %v7711, 0.5
  %v7840 = vadd.f32 %v7712, 0.5
  %v7841 = vadd.f32 %v7713, 0.5
  %v7842 = vadd.f32 %v7714, 0.5
  %v7843 = vadd.f32 %v7715, 0.5
  %v7844 = vadd.f32 %v7716, 0.5
  %v7845 = vadd.f32 %v7717, 0.5
  %v7846 = vadd.f32 %v7718, 0.5
  %v7847 = vadd.f32 %v7719, 0.5
  %v7848 = vadd.f32 %v7720, 0.5
  %v7849 = vadd.f32 %v7721, 0.5
  %v7850 = vadd.f32 %v7722, 0.5
  %v7851 = vadd.f32 %v7723, 0.5
  %v7852 = vadd.f32 %v7724, 0.5
  %v7853 = vadd.f32 %v7725, 0.5
  %v7854 = vadd.f32 %v7726, 0.5
  %v7855 = vadd.f32 %v7727, 0.5
  %v7856 = vadd.f32 %v7728, 0.5
  %v7857 = vadd.f32 %v7729, 0.5
  %v7858 = vadd.f32 %v7730, 0.5
  %v7859 = vadd.f32 %v7731, 0.5
  %v7860 = vmul.f32 %v6799, %v7732
  %v7861 = vmul.f32 %v6801, %v7733
  %v7862 = vmul.f32 %v6872, %v7734
  %v7863 = vmul.f32 %v6874, %v7735
  %v7864 = vmul.f32 %v6945, %v7736
  %v7865 = vmul.f32 %v6947, %v7737
  %v7866 = vmul.f32 %v7018, %v7738
  %v7867 = vmul.f32 %v7020, %v7739
  %v7868 = vmul.f32 %v7091, %v7740
  %v7869 = vmul.f32 %v7093, %v7741
  %v7870 = vmul.f32 %v7164, %v7742
  %v7871 = vmul.f32 %v7166, %v7743
  %v7872 = vmul.f32 %v7237, %v7744
  %v7873 = vmul.f32 %v7239, %v7745
  %v7874 = vmul.f32 %v7310, %v7746
  %v7875 = vmul.f32 %v7312, %v7747
  %v7876 = vmul.f32 %v6803, %v7748
  %v7877 = vmul.f32 %v6805, %v7749
  %v7878 = vmul.f32 %v6876, %v7750
  %v7879 = vmul.f32 %v6878, %v7751
  %v7880 = vmul.f32 %v6949, %v7752
  %v7881 = vmul.f32 %v6951, %v7753
  %v7882 = vmul.f32 %v7022, %v7754
  %v7883 = vmul.f32 %v7024, %v7755
  %v7884 = vmul.f32 %v7095, %v7756
  %v7885 = vmul.f32 %v7097, %v7757
  %v7886 = vmul.f32 %v7168, %v7758
  %v7887 = vmul.f32 %v7170, %v7759
  %v7888 = vmul.f32 %v7241, %v7760
  %v7889 = vmul.f32 %v7243, %v7761
  %v7890 = vmul.f32 %v7314, %v7762
  %v7891 = vmul.f32 %v7316, %v7763
  %v7892 = vmul.f32 %v6809, %v7764
  %v7893 = vmul.f32 %v6811, %v7765
  %v7894 = vmul.f32 %v6882, %v7766
  %v7895 = vmul.f32 %v6884, %v7767
  %v7896 = vmul.f32 %v6955, %v7768
  %v7897 = vmul.f32 %v6957, %v7769
  %v7898 = vmul.f32 %v7028, %v7770
  %v7899 = vmul.f32 %v7030, %v7771
  %v7900 = vmul.f32 %v7101, %v7772
  %v7901 = vmul.f32 %v7103, %v7773
  %v7902 = vmul.f32 %v7174, %v7774
  %v7903 = vmul.f32 %v7176, %v7775
  %v7904 = vmul.f32 %v7247, %v7776
  %v7905 = vmul.f32 %v7249, %v7777
  %v7906 = vmul.f32 %v7320, %v7778
  %v7907 = vmul.f32 %v7322, %v7779
  %v7908 = vmul.f32 %v6813, %v7780
  %v7909 = vmul.f32 %v6815, %v7781
  %v7910 = vmul.f32 %v6886, %v7782
  %v7911 = vmul.f32 %v6888, %v7783
  %v7912 = vmul.f32 %v6959, %v7784
  %v7913 = vmul.f32 %v6961, %v7785
  %v7914 = vmul.f32 %v7032, %v7786
  %v7915 = vmul.f32 %v7034, %v7787
  %v7916 = vmul.f32 %v7105, %v7788
  %v7917 = vmul.f32 %v7107, %v7789
  %v7918 = vmul.f32 %v7178, %v7790
  %v7919 = vmul.f32 %v7180, %v7791
  %v7920 = vmul.f32 %v7251, %v7792
  %v7921 = vmul.f32 %v7253, %v7793
  %v7922 = vmul.f32 %v7324, %v7794
  %v7923 = vmul.f32 %v7326, %v7795
  %v7924 = vmul.f32 %v6819, %v7796
  %v7925 = vmul.f32 %v6821, %v7797
  %v7926 = vmul.f32 %v6892, %v7798
  %v7927 = vmul.f32 %v6894, %v7799
  %v7928 = vmul.f32 %v6965, %v7800
  %v7929 = vmul.f32 %v6967, %v7801
  %v7930 = vmul.f32 %v7038, %v7802
  %v7931 = vmul.f32 %v7040, %v7803
  %v7932 = vmul.f32 %v7111, %v7804
  %v7933 = vmul.f32 %v7113, %v7805
  %v7934 = vmul.f32 %v7184, %v7806
  %v7935 = vmul.f32 %v7186, %v7807
  %v7936 = vmul.f32 %v7257, %v7808
  %v7937 = vmul.f32 %v7259, %v7809
  %v7938 = vmul.f32 %v7330, %v7810
  %v7939 = vmul.f32 %v7332, %v7811
  %v7940 = vmul.f32 %v6823, %v7812
  %v7941 = vmul.f32 %v6825, %v7813
  %v7942 = vmul.f32 %v6896, %v7814
  %v7943 = vmul.f32 %v6898, %v7815
  %v7944 = vmul.f32 %v6969, %v7816
  %v7945 = vmul.f32 %v6971, %v7817
  %v7946 = vmul.f32 %v7042, %v7818
  %v7947 = vmul.f32 %v7044, %v7819
  %v7948 = vmul.f32 %v7115, %v7820
  %v7949 = vmul.f32 %v7117, %v7821
  %v7950 = vmul.f32 %v7188, %v7822
  %v7951 = vmul.f32 %v7190, %v7823
  %v7952 = vmul.f32 %v7261, %v7824
  %v7953 = vmul.f32 %v7263, %v7825
  %v7954 = vmul.f32 %v7334, %v7826
  %v7955 = vmul.f32 %v7336, %v7827
  %v7956 = vmul.f32 %v6829, %v7828
  %v7957 = vmul.f32 %v6831, %v7829
  %v7958 = vmul.f32 %v6902, %v7830
  %v7959 = vmul.f32 %v6904, %v7831
  %v7960 = vmul.f32 %v6975, %v7832
  %v7961 = vmul.f32 %v6977, %v7833
  %v7962 = vmul.f32 %v7048, %v7834
  %v7963 = vmul.f32 %v7050, %v7835
  %v7964 = vmul.f32 %v7121, %v7836
  %v7965 = vmul.f32 %v7123, %v7837
  %v7966 = vmul.f32 %v7194, %v7838
  %v7967 = vmul.f32 %v7196, %v7839
  %v7968 = vmul.f32 %v7267, %v7840
  %v7969 = vmul.f32 %v7269, %v7841
  %v7970 = vmul.f32 %v7340, %v7842
  %v7971 = vmul.f32 %v7342, %v7843
  %v7972 = vmul.f32 %v6833, %v7844
  %v7973 = vmul.f32 %v6835, %v7845
  %v7974 = vmul.f32 %v6906, %v7846
  %v7975 = vmul.f32 %v6908, %v7847
  %v7976 = vmul.f32 %v6979, %v7848
  %v7977 = vmul.f32 %v6981, %v7849
  %v7978 = vmul.f32 %v7052, %v7850
  %v7979 = vmul.f32 %v7054, %v7851
  %v7980 = vmul.f32 %v7125, %v7852
  %v7981 = vmul.f32 %v7127, %v7853
  %v7982 = vmul.f32 %v7198, %v7854
  %v7983 = vmul.f32 %v7200, %v7855
  %v7984 = vmul.f32 %v7271, %v7856
  %v7985 = vmul.f32 %v7273, %v7857
  %v7986 = vmul.f32 %v7344, %v7858
  %v7987 = vmul.f32 %v7346, %v7859
  %v7988 = vld [vmem:[%s5] sm:$0xff]
  %v7989 = vld [vmem:[%s5 + $0x8] sm:$0xff]
  %v7990 = vld [vmem:[%s5 + $0x10] sm:$0xff]
  %v7991 = vld [vmem:[%s5 + $0x18] sm:$0xff]
  %v7992 = vld [vmem:[%s5 + $0x20] sm:$0xff]
  %v7993 = vld [vmem:[%s5 + $0x28] sm:$0xff]
  %v7994 = vld [vmem:[%s5 + $0x30] sm:$0xff]
  %v7995 = vld [vmem:[%s5 + $0x38] sm:$0xff]
  %7997 = vset.pattern.permute.xlu0 0
  %7998 = vperm.xlu0 %7997, %v7988
  %v7999 = vpop.permute.xlu0 %7998
  %8002 = vset.pattern.permute.xlu0 0
  %8003 = vperm.xlu0 %8002, %v7989
  %v8004 = vpop.permute.xlu0 %8003
  %8007 = vset.pattern.permute.xlu0 0
  %8008 = vperm.xlu0 %8007, %v7990
  %v8009 = vpop.permute.xlu0 %8008
  %8012 = vset.pattern.permute.xlu0 0
  %8013 = vperm.xlu0 %8012, %v7991
  %v8014 = vpop.permute.xlu0 %8013
  %8017 = vset.pattern.permute.xlu0 0
  %8018 = vperm.xlu0 %8017, %v7992
  %v8019 = vpop.permute.xlu0 %8018
  %8022 = vset.pattern.permute.xlu0 0
  %8023 = vperm.xlu0 %8022, %v7993
  %v8024 = vpop.permute.xlu0 %8023
  %8027 = vset.pattern.permute.xlu0 0
  %8028 = vperm.xlu0 %8027, %v7994
  %v8029 = vpop.permute.xlu0 %8028
  %8032 = vset.pattern.permute.xlu0 0
  %8033 = vperm.xlu0 %8032, %v7995
  %v8034 = vpop.permute.xlu0 %8033
  %v8036 = vmul.f32 %v7860, %v7999
  %v8037 = vmul.f32 %v7861, %v7999
  %v8038 = vmul.f32 %v7862, %v7999
  %v8039 = vmul.f32 %v7863, %v7999
  %v8040 = vmul.f32 %v7864, %v7999
  %v8041 = vmul.f32 %v7865, %v7999
  %v8042 = vmul.f32 %v7866, %v7999
  %v8043 = vmul.f32 %v7867, %v7999
  %v8044 = vmul.f32 %v7868, %v7999
  %v8045 = vmul.f32 %v7869, %v7999
  %v8046 = vmul.f32 %v7870, %v7999
  %v8047 = vmul.f32 %v7871, %v7999
  %v8048 = vmul.f32 %v7872, %v7999
  %v8049 = vmul.f32 %v7873, %v7999
  %v8050 = vmul.f32 %v7874, %v7999
  %v8051 = vmul.f32 %v7875, %v7999
  %v8052 = vmul.f32 %v7876, %v8004
  %v8053 = vmul.f32 %v7877, %v8004
  %v8054 = vmul.f32 %v7878, %v8004
  %v8055 = vmul.f32 %v7879, %v8004
  %v8056 = vmul.f32 %v7880, %v8004
  %v8057 = vmul.f32 %v7881, %v8004
  %v8058 = vmul.f32 %v7882, %v8004
  %v8059 = vmul.f32 %v7883, %v8004
  %v8060 = vmul.f32 %v7884, %v8004
  %v8061 = vmul.f32 %v7885, %v8004
  %v8062 = vmul.f32 %v7886, %v8004
  %v8063 = vmul.f32 %v7887, %v8004
  %v8064 = vmul.f32 %v7888, %v8004
  %v8065 = vmul.f32 %v7889, %v8004
  %v8066 = vmul.f32 %v7890, %v8004
  %v8067 = vmul.f32 %v7891, %v8004
  %v8068 = vmul.f32 %v7892, %v8009
  %v8069 = vmul.f32 %v7893, %v8009
  %v8070 = vmul.f32 %v7894, %v8009
  %v8071 = vmul.f32 %v7895, %v8009
  %v8072 = vmul.f32 %v7896, %v8009
  %v8073 = vmul.f32 %v7897, %v8009
  %v8074 = vmul.f32 %v7898, %v8009
  %v8075 = vmul.f32 %v7899, %v8009
  %v8076 = vmul.f32 %v7900, %v8009
  %v8077 = vmul.f32 %v7901, %v8009
  %v8078 = vmul.f32 %v7902, %v8009
  %v8079 = vmul.f32 %v7903, %v8009
  %v8080 = vmul.f32 %v7904, %v8009
  %v8081 = vmul.f32 %v7905, %v8009
  %v8082 = vmul.f32 %v7906, %v8009
  %v8083 = vmul.f32 %v7907, %v8009
  %v8084 = vmul.f32 %v7908, %v8014
  %v8085 = vmul.f32 %v7909, %v8014
  %v8086 = vmul.f32 %v7910, %v8014
  %v8087 = vmul.f32 %v7911, %v8014
  %v8088 = vmul.f32 %v7912, %v8014
  %v8089 = vmul.f32 %v7913, %v8014
  %v8090 = vmul.f32 %v7914, %v8014
  %v8091 = vmul.f32 %v7915, %v8014
  %v8092 = vmul.f32 %v7916, %v8014
  %v8093 = vmul.f32 %v7917, %v8014
  %v8094 = vmul.f32 %v7918, %v8014
  %v8095 = vmul.f32 %v7919, %v8014
  %v8096 = vmul.f32 %v7920, %v8014
  %v8097 = vmul.f32 %v7921, %v8014
  %v8098 = vmul.f32 %v7922, %v8014
  %v8099 = vmul.f32 %v7923, %v8014
  %v8100 = vmul.f32 %v7924, %v8019
  %v8101 = vmul.f32 %v7925, %v8019
  %v8102 = vmul.f32 %v7926, %v8019
  %v8103 = vmul.f32 %v7927, %v8019
  %v8104 = vmul.f32 %v7928, %v8019
  %v8105 = vmul.f32 %v7929, %v8019
  %v8106 = vmul.f32 %v7930, %v8019
  %v8107 = vmul.f32 %v7931, %v8019
  %v8108 = vmul.f32 %v7932, %v8019
  %v8109 = vmul.f32 %v7933, %v8019
  %v8110 = vmul.f32 %v7934, %v8019
  %v8111 = vmul.f32 %v7935, %v8019
  %v8112 = vmul.f32 %v7936, %v8019
  %v8113 = vmul.f32 %v7937, %v8019
  %v8114 = vmul.f32 %v7938, %v8019
  %v8115 = vmul.f32 %v7939, %v8019
  %v8116 = vmul.f32 %v7940, %v8024
  %v8117 = vmul.f32 %v7941, %v8024
  %v8118 = vmul.f32 %v7942, %v8024
  %v8119 = vmul.f32 %v7943, %v8024
  %v8120 = vmul.f32 %v7944, %v8024
  %v8121 = vmul.f32 %v7945, %v8024
  %v8122 = vmul.f32 %v7946, %v8024
  %v8123 = vmul.f32 %v7947, %v8024
  %v8124 = vmul.f32 %v7948, %v8024
  %v8125 = vmul.f32 %v7949, %v8024
  %v8126 = vmul.f32 %v7950, %v8024
  %v8127 = vmul.f32 %v7951, %v8024
  %v8128 = vmul.f32 %v7952, %v8024
  %v8129 = vmul.f32 %v7953, %v8024
  %v8130 = vmul.f32 %v7954, %v8024
  %v8131 = vmul.f32 %v7955, %v8024
  %v8132 = vmul.f32 %v7956, %v8029
  %v8133 = vmul.f32 %v7957, %v8029
  %v8134 = vmul.f32 %v7958, %v8029
  %v8135 = vmul.f32 %v7959, %v8029
  %v8136 = vmul.f32 %v7960, %v8029
  %v8137 = vmul.f32 %v7961, %v8029
  %v8138 = vmul.f32 %v7962, %v8029
  %v8139 = vmul.f32 %v7963, %v8029
  %v8140 = vmul.f32 %v7964, %v8029
  %v8141 = vmul.f32 %v7965, %v8029
  %v8142 = vmul.f32 %v7966, %v8029
  %v8143 = vmul.f32 %v7967, %v8029
  %v8144 = vmul.f32 %v7968, %v8029
  %v8145 = vmul.f32 %v7969, %v8029
  %v8146 = vmul.f32 %v7970, %v8029
  %v8147 = vmul.f32 %v7971, %v8029
  %v8148 = vmul.f32 %v7972, %v8034
  %v8149 = vmul.f32 %v7973, %v8034
  %v8150 = vmul.f32 %v7974, %v8034
  %v8151 = vmul.f32 %v7975, %v8034
  %v8152 = vmul.f32 %v7976, %v8034
  %v8153 = vmul.f32 %v7977, %v8034
  %v8154 = vmul.f32 %v7978, %v8034
  %v8155 = vmul.f32 %v7979, %v8034
  %v8156 = vmul.f32 %v7980, %v8034
  %v8157 = vmul.f32 %v7981, %v8034
  %v8158 = vmul.f32 %v7982, %v8034
  %v8159 = vmul.f32 %v7983, %v8034
  %v8160 = vmul.f32 %v7984, %v8034
  %v8161 = vmul.f32 %v7985, %v8034
  %v8162 = vmul.f32 %v7986, %v8034
  %v8163 = vmul.f32 %v7987, %v8034
  %v8164 = vadd.f32 %v8036, %v8052
  %v8165 = vadd.f32 %v8164, %v8068
  %v8166 = vadd.f32 %v8165, %v8084
  %v8167 = vadd.f32 %v8166, %v8100
  %v8168 = vadd.f32 %v8167, %v8116
  %v8169 = vadd.f32 %v8168, %v8132
  %v8170 = vadd.f32 %v8169, %v8148
  %v8171 = vrot.slane %v8170, 4
  %v8172 = vadd.f32 %v8170, %v8171
  %v8173 = vrot.slane %v8172, 2
  %v8174 = vadd.f32 %v8172, %v8173
  %v8175 = vrot.slane %v8174, 1
  %v8176 = vadd.f32 %v8174, %v8175
  %v8177 = vadd.f32 %v8037, %v8053
  %v8178 = vadd.f32 %v8177, %v8069
  %v8179 = vadd.f32 %v8178, %v8085
  %v8180 = vadd.f32 %v8179, %v8101
  %v8181 = vadd.f32 %v8180, %v8117
  %v8182 = vadd.f32 %v8181, %v8133
  %v8183 = vadd.f32 %v8182, %v8149
  %v8184 = vrot.slane %v8183, 4
  %v8185 = vadd.f32 %v8183, %v8184
  %v8186 = vrot.slane %v8185, 2
  %v8187 = vadd.f32 %v8185, %v8186
  %v8188 = vrot.slane %v8187, 1
  %v8189 = vadd.f32 %v8187, %v8188
  %v8190 = vadd.f32 %v8038, %v8054
  %v8191 = vadd.f32 %v8190, %v8070
  %v8192 = vadd.f32 %v8191, %v8086
  %v8193 = vadd.f32 %v8192, %v8102
  %v8194 = vadd.f32 %v8193, %v8118
  %v8195 = vadd.f32 %v8194, %v8134
  %v8196 = vadd.f32 %v8195, %v8150
  %v8197 = vrot.slane %v8196, 4
  %v8198 = vadd.f32 %v8196, %v8197
  %v8199 = vrot.slane %v8198, 2
  %v8200 = vadd.f32 %v8198, %v8199
  %v8201 = vrot.slane %v8200, 1
  %v8202 = vadd.f32 %v8200, %v8201
  %v8203 = vadd.f32 %v8039, %v8055
  %v8204 = vadd.f32 %v8203, %v8071
  %v8205 = vadd.f32 %v8204, %v8087
  %v8206 = vadd.f32 %v8205, %v8103
  %v8207 = vadd.f32 %v8206, %v8119
  %v8208 = vadd.f32 %v8207, %v8135
  %v8209 = vadd.f32 %v8208, %v8151
  %v8210 = vrot.slane %v8209, 4
  %v8211 = vadd.f32 %v8209, %v8210
  %v8212 = vrot.slane %v8211, 2
  %v8213 = vadd.f32 %v8211, %v8212
  %v8214 = vrot.slane %v8213, 1
  %v8215 = vadd.f32 %v8213, %v8214
  %v8216 = vadd.f32 %v8040, %v8056
  %v8217 = vadd.f32 %v8216, %v8072
  %v8218 = vadd.f32 %v8217, %v8088
  %v8219 = vadd.f32 %v8218, %v8104
  %v8220 = vadd.f32 %v8219, %v8120
  %v8221 = vadd.f32 %v8220, %v8136
  %v8222 = vadd.f32 %v8221, %v8152
  %v8223 = vrot.slane %v8222, 4
  %v8224 = vadd.f32 %v8222, %v8223
  %v8225 = vrot.slane %v8224, 2
  %v8226 = vadd.f32 %v8224, %v8225
  %v8227 = vrot.slane %v8226, 1
  %v8228 = vadd.f32 %v8226, %v8227
  %v8229 = vadd.f32 %v8041, %v8057
  %v8230 = vadd.f32 %v8229, %v8073
  %v8231 = vadd.f32 %v8230, %v8089
  %v8232 = vadd.f32 %v8231, %v8105
  %v8233 = vadd.f32 %v8232, %v8121
  %v8234 = vadd.f32 %v8233, %v8137
  %v8235 = vadd.f32 %v8234, %v8153
  %v8236 = vrot.slane %v8235, 4
  %v8237 = vadd.f32 %v8235, %v8236
  %v8238 = vrot.slane %v8237, 2
  %v8239 = vadd.f32 %v8237, %v8238
  %v8240 = vrot.slane %v8239, 1
  %v8241 = vadd.f32 %v8239, %v8240
  %v8242 = vadd.f32 %v8042, %v8058
  %v8243 = vadd.f32 %v8242, %v8074
  %v8244 = vadd.f32 %v8243, %v8090
  %v8245 = vadd.f32 %v8244, %v8106
  %v8246 = vadd.f32 %v8245, %v8122
  %v8247 = vadd.f32 %v8246, %v8138
  %v8248 = vadd.f32 %v8247, %v8154
  %v8249 = vrot.slane %v8248, 4
  %v8250 = vadd.f32 %v8248, %v8249
  %v8251 = vrot.slane %v8250, 2
  %v8252 = vadd.f32 %v8250, %v8251
  %v8253 = vrot.slane %v8252, 1
  %v8254 = vadd.f32 %v8252, %v8253
  %v8255 = vadd.f32 %v8043, %v8059
  %v8256 = vadd.f32 %v8255, %v8075
  %v8257 = vadd.f32 %v8256, %v8091
  %v8258 = vadd.f32 %v8257, %v8107
  %v8259 = vadd.f32 %v8258, %v8123
  %v8260 = vadd.f32 %v8259, %v8139
  %v8261 = vadd.f32 %v8260, %v8155
  %v8262 = vrot.slane %v8261, 4
  %v8263 = vadd.f32 %v8261, %v8262
  %v8264 = vrot.slane %v8263, 2
  %v8265 = vadd.f32 %v8263, %v8264
  %v8266 = vrot.slane %v8265, 1
  %v8267 = vadd.f32 %v8265, %v8266
  %v8268 = vadd.f32 %v8044, %v8060
  %v8269 = vadd.f32 %v8268, %v8076
  %v8270 = vadd.f32 %v8269, %v8092
  %v8271 = vadd.f32 %v8270, %v8108
  %v8272 = vadd.f32 %v8271, %v8124
  %v8273 = vadd.f32 %v8272, %v8140
  %v8274 = vadd.f32 %v8273, %v8156
  %v8275 = vrot.slane %v8274, 4
  %v8276 = vadd.f32 %v8274, %v8275
  %v8277 = vrot.slane %v8276, 2
  %v8278 = vadd.f32 %v8276, %v8277
  %v8279 = vrot.slane %v8278, 1
  %v8280 = vadd.f32 %v8278, %v8279
  %v8281 = vadd.f32 %v8045, %v8061
  %v8282 = vadd.f32 %v8281, %v8077
  %v8283 = vadd.f32 %v8282, %v8093
  %v8284 = vadd.f32 %v8283, %v8109
  %v8285 = vadd.f32 %v8284, %v8125
  %v8286 = vadd.f32 %v8285, %v8141
  %v8287 = vadd.f32 %v8286, %v8157
  %v8288 = vrot.slane %v8287, 4
  %v8289 = vadd.f32 %v8287, %v8288
  %v8290 = vrot.slane %v8289, 2
  %v8291 = vadd.f32 %v8289, %v8290
  %v8292 = vrot.slane %v8291, 1
  %v8293 = vadd.f32 %v8291, %v8292
  %v8294 = vadd.f32 %v8046, %v8062
  %v8295 = vadd.f32 %v8294, %v8078
  %v8296 = vadd.f32 %v8295, %v8094
  %v8297 = vadd.f32 %v8296, %v8110
  %v8298 = vadd.f32 %v8297, %v8126
  %v8299 = vadd.f32 %v8298, %v8142
  %v8300 = vadd.f32 %v8299, %v8158
  %v8301 = vrot.slane %v8300, 4
  %v8302 = vadd.f32 %v8300, %v8301
  %v8303 = vrot.slane %v8302, 2
  %v8304 = vadd.f32 %v8302, %v8303
  %v8305 = vrot.slane %v8304, 1
  %v8306 = vadd.f32 %v8304, %v8305
  %v8307 = vadd.f32 %v8047, %v8063
  %v8308 = vadd.f32 %v8307, %v8079
  %v8309 = vadd.f32 %v8308, %v8095
  %v8310 = vadd.f32 %v8309, %v8111
  %v8311 = vadd.f32 %v8310, %v8127
  %v8312 = vadd.f32 %v8311, %v8143
  %v8313 = vadd.f32 %v8312, %v8159
  %v8314 = vrot.slane %v8313, 4
  %v8315 = vadd.f32 %v8313, %v8314
  %v8316 = vrot.slane %v8315, 2
  %v8317 = vadd.f32 %v8315, %v8316
  %v8318 = vrot.slane %v8317, 1
  %v8319 = vadd.f32 %v8317, %v8318
  %v8320 = vadd.f32 %v8048, %v8064
  %v8321 = vadd.f32 %v8320, %v8080
  %v8322 = vadd.f32 %v8321, %v8096
  %v8323 = vadd.f32 %v8322, %v8112
  %v8324 = vadd.f32 %v8323, %v8128
  %v8325 = vadd.f32 %v8324, %v8144
  %v8326 = vadd.f32 %v8325, %v8160
  %v8327 = vrot.slane %v8326, 4
  %v8328 = vadd.f32 %v8326, %v8327
  %v8329 = vrot.slane %v8328, 2
  %v8330 = vadd.f32 %v8328, %v8329
  %v8331 = vrot.slane %v8330, 1
  %v8332 = vadd.f32 %v8330, %v8331
  %v8333 = vadd.f32 %v8049, %v8065
  %v8334 = vadd.f32 %v8333, %v8081
  %v8335 = vadd.f32 %v8334, %v8097
  %v8336 = vadd.f32 %v8335, %v8113
  %v8337 = vadd.f32 %v8336, %v8129
  %v8338 = vadd.f32 %v8337, %v8145
  %v8339 = vadd.f32 %v8338, %v8161
  %v8340 = vrot.slane %v8339, 4
  %v8341 = vadd.f32 %v8339, %v8340
  %v8342 = vrot.slane %v8341, 2
  %v8343 = vadd.f32 %v8341, %v8342
  %v8344 = vrot.slane %v8343, 1
  %v8345 = vadd.f32 %v8343, %v8344
  %v8346 = vadd.f32 %v8050, %v8066
  %v8347 = vadd.f32 %v8346, %v8082
  %v8348 = vadd.f32 %v8347, %v8098
  %v8349 = vadd.f32 %v8348, %v8114
  %v8350 = vadd.f32 %v8349, %v8130
  %v8351 = vadd.f32 %v8350, %v8146
  %v8352 = vadd.f32 %v8351, %v8162
  %v8353 = vrot.slane %v8352, 4
  %v8354 = vadd.f32 %v8352, %v8353
  %v8355 = vrot.slane %v8354, 2
  %v8356 = vadd.f32 %v8354, %v8355
  %v8357 = vrot.slane %v8356, 1
  %v8358 = vadd.f32 %v8356, %v8357
  %v8359 = vadd.f32 %v8051, %v8067
  %v8360 = vadd.f32 %v8359, %v8083
  %v8361 = vadd.f32 %v8360, %v8099
  %v8362 = vadd.f32 %v8361, %v8115
  %v8363 = vadd.f32 %v8362, %v8131
  %v8364 = vadd.f32 %v8363, %v8147
  %v8365 = vadd.f32 %v8364, %v8163
  %v8366 = vrot.slane %v8365, 4
  %v8367 = vadd.f32 %v8365, %v8366
  %v8368 = vrot.slane %v8367, 2
  %v8369 = vadd.f32 %v8367, %v8368
  %v8370 = vrot.slane %v8369, 1
  %v8371 = vadd.f32 %v8369, %v8370
  %v8372 = vld [vmem:[#allocation2] sm:$0x1]
  %8374 = vset.pattern.permute.xlu0 0
  %8375 = vperm.xlu0 %8374, %v8372
  %v8376 = vpop.permute.xlu0 %8375
  %v8378 = vlaneseq
  %v8379 = vshrl.u32 %v8378, 7
  %v8380 = vsub.s32 0, %v8379
  %v8381 = vrot.slane %v8376, %v8380
  %v8382 = vadd.f32 %v8176, %v8381
  %v8383 = vadd.f32 %v8189, %v8381
  %v8384 = vadd.f32 %v8202, %v8381
  %v8385 = vadd.f32 %v8215, %v8381
  %v8386 = vadd.f32 %v8228, %v8381
  %v8387 = vadd.f32 %v8241, %v8381
  %v8388 = vadd.f32 %v8254, %v8381
  %v8389 = vadd.f32 %v8267, %v8381
  %v8390 = vadd.f32 %v8280, %v8381
  %v8391 = vadd.f32 %v8293, %v8381
  %v8392 = vadd.f32 %v8306, %v8381
  %v8393 = vadd.f32 %v8319, %v8381
  %v8394 = vadd.f32 %v8332, %v8381
  %v8395 = vadd.f32 %v8345, %v8381
  %v8396 = vadd.f32 %v8358, %v8381
  %v8397 = vadd.f32 %v8371, %v8381
  %v8414 = vcombine.low %v8382, %v8383
  %v8415 = vcombine.low %v8384, %v8385
  %v8416 = vcombine.low %v8386, %v8387
  %v8417 = vcombine.low %v8388, %v8389
  %v8419 = vunpack.c.l.s4 1966171168
  %v8420 = vunpack.c.0.s8 %v8419
  %v8421 = vlaneseq
  %v8422 = vshrl.u32 %v8421, 7
  %v8423 = vsub.s32 %v8420, %v8422
  %v8424 = vrot.slane %v8414, %v8423
  %v8426 = vunpack.c.l.s4 1966171168
  %v8427 = vunpack.c.0.s8 %v8426
  %v8428 = vlaneseq
  %v8429 = vshrl.u32 %v8428, 7
  %v8430 = vsub.s32 %v8427, %v8429
  %v8431 = vrot.slane %v8415, %v8430
  %v8433 = vunpack.c.l.s4 1966171168
  %v8434 = vunpack.c.0.s8 %v8433
  %v8435 = vlaneseq
  %v8436 = vshrl.u32 %v8435, 7
  %v8437 = vsub.s32 %v8434, %v8436
  %v8438 = vrot.slane %v8416, %v8437
  %v8440 = vunpack.c.l.s4 1966171168
  %v8441 = vunpack.c.0.s8 %v8440
  %v8442 = vlaneseq
  %v8443 = vshrl.u32 %v8442, 7
  %v8444 = vsub.s32 %v8441, %v8443
  %v8445 = vrot.slane %v8417, %v8444
  %v8446 = vcombine.low %v8424, %v8431
  %v8447 = vcombine.low %v8438, %v8445
  %v8449 = vunpack.c.l.s4 1966171168
  %v8450 = vunpack.c.0.s8 %v8449
  %v8451 = vlaneseq
  %v8452 = vshrl.u32 %v8451, 7
  %v8453 = vsub.s32 %v8450, %v8452
  %v8454 = vrot.slane %v8446, %v8453
  %v8456 = vunpack.c.l.s4 1966171168
  %v8457 = vunpack.c.0.s8 %v8456
  %v8458 = vlaneseq
  %v8459 = vshrl.u32 %v8458, 7
  %v8460 = vsub.s32 %v8457, %v8459
  %v8461 = vrot.slane %v8447, %v8460
  %v8462 = vcombine.low %v8454, %v8461
  %v8463 = vcombine.low %v8390, %v8391
  %v8464 = vcombine.low %v8392, %v8393
  %v8465 = vcombine.low %v8394, %v8395
  %v8466 = vcombine.low %v8396, %v8397
  %v8468 = vunpack.c.l.s4 1966171168
  %v8469 = vunpack.c.0.s8 %v8468
  %v8470 = vlaneseq
  %v8471 = vshrl.u32 %v8470, 7
  %v8472 = vsub.s32 %v8469, %v8471
  %v8473 = vrot.slane %v8463, %v8472
  %v8475 = vunpack.c.l.s4 1966171168
  %v8476 = vunpack.c.0.s8 %v8475
  %v8477 = vlaneseq
  %v8478 = vshrl.u32 %v8477, 7
  %v8479 = vsub.s32 %v8476, %v8478
  %v8480 = vrot.slane %v8464, %v8479
  %v8482 = vunpack.c.l.s4 1966171168
  %v8483 = vunpack.c.0.s8 %v8482
  %v8484 = vlaneseq
  %v8485 = vshrl.u32 %v8484, 7
  %v8486 = vsub.s32 %v8483, %v8485
  %v8487 = vrot.slane %v8465, %v8486
  %v8489 = vunpack.c.l.s4 1966171168
  %v8490 = vunpack.c.0.s8 %v8489
  %v8491 = vlaneseq
  %v8492 = vshrl.u32 %v8491, 7
  %v8493 = vsub.s32 %v8490, %v8492
  %v8494 = vrot.slane %v8466, %v8493
  %v8495 = vcombine.low %v8473, %v8480
  %v8496 = vcombine.low %v8487, %v8494
  %v8498 = vunpack.c.l.s4 1966171168
  %v8499 = vunpack.c.0.s8 %v8498
  %v8500 = vlaneseq
  %v8501 = vshrl.u32 %v8500, 7
  %v8502 = vsub.s32 %v8499, %v8501
  %v8503 = vrot.slane %v8495, %v8502
  %v8505 = vunpack.c.l.s4 1966171168
  %v8506 = vunpack.c.0.s8 %v8505
  %v8507 = vlaneseq
  %v8508 = vshrl.u32 %v8507, 7
  %v8509 = vsub.s32 %v8506, %v8508
  %v8510 = vrot.slane %v8496, %v8509
  %v8511 = vcombine.low %v8503, %v8510
  %8514 = vst [vmem:[%s7] sm:$0xff] %v8462
  %8515 = vst [vmem:[%s7 + $0x8] sm:$0xff] %v8511
  // Predicated region
  $region30: #{function_approximator_forward.1} parent=0 // pred_check
    _
  $region31: #{function_approximator_forward.1} parent=0 // pred_check_branch
    %8517 = sbr.rel (0) target = $region33
  $region32: #{function_approximator_forward.1} parent=0 // pred_region
    _
  $region33: #{function_approximator_forward.1} parent=0 // pred_fallthru
    _
  // Predicated region
  $region34: #{function_approximator_forward.1} parent=0 // pred_check
    _
  $region35: #{function_approximator_forward.1} parent=0 // pred_check_branch
    %8519 = sbr.rel (0) target = $region37
  $region36: #{function_approximator_forward.1} parent=0 // pred_region
    _
  $region37: #{function_approximator_forward.1} parent=0 // pred_fallthru
    _

</llo_original>
